<compile_context>
chip_gen: v6e
topology: v6e:2x2x1
jax: 0.10.0
libtpu: 0.0.40
codegen_flags: <defaults>
</compile_context>

<pallas_src>
import functools

import jax
import jax.numpy as jnp
from jax import lax
from jax.experimental import pallas as pl
from jax.experimental.pallas import tpu as pltpu


def clf_head_pallas(feats, wc, bc, wf, bf, *, combine_slices, cin_tile=128):
    """Pallas implementation of the ClassificationModelDPN head (inference).

    feats: (B, S, Cin, H, W) f32 -- output of base_model.features, reshaped per-slice.
    wc:    (Cc, Cin, K, 1, 1) f32, bc: (Cc,)   -- combine_conv (Conv3d, kernel=(K,1,1), bias)
    wf:    (NF, 2*Cc, 1) f32,      bf: (NF,)   -- fc (Conv1d, kernel=1, bias)
    returns (B, S_out, NF), matching torch `out.permute(0, 2, 1)`.
    """
    B, S, CIN, H, W = feats.shape
    K = combine_slices
    CC = wc.shape[0]
    NF = wf.shape[0]
    S_OUT = S - K + 1
    HW = H * W
    HWP = ((HW + 127) // 128) * 128            # pad spatial lanes to a multiple of 128

    if CIN % cin_tile != 0:
        cin_tile = CIN                          # fall back to a single contraction step
    CIN_TILE = cin_tile
    NT = CIN // CIN_TILE                        # Cin contraction grid steps
    NW = B * S_OUT                              # sliding windows, batch folded in

    # ---- wrapper glue (tiny one-time XLA ops): layouts + bf16 on the bandwidth-heavy operands ----
    x = feats.reshape(B, S, CIN, HW)
    if HWP != HW:
        x = jnp.pad(x, ((0, 0), (0, 0), (0, 0), (0, HWP - HW)))     # zero pad -> y=0 on pad lanes
    x = x.astype(jnp.bfloat16)                                      # (B, S, Cin, HWp)

    # combine_conv weight, ordered so each Cin-tile block's columns are (k major, ci-in-tile minor),
    # matching the row order of x_ref[b, t:t+K].reshape(K*Cin_tile, HWp).
    wck = wc[:, :, :, 0, 0]                                         # (Cc, Cin, K)
    wck = wck.reshape(CC, NT, CIN_TILE, K)
    wck = jnp.transpose(wck, (0, 1, 3, 2))                          # (Cc, nt, K, Cin_tile)
    wc2 = wck.reshape(CC, NT * K * CIN_TILE).astype(jnp.bfloat16)

    wf2 = jnp.transpose(wf[:, :, 0]).astype(jnp.float32)            # (2*Cc, NF), tiny -> f32
    # fused bias: pool(y + bc) == pool(y) + bc (bc constant over pooled dims), then
    # fc(p + [bc;bc]) == wf @ p + (wf @ [bc;bc] + bf).  Exact; dropout is identity in eval.
    bc_cat = jnp.concatenate([bc, bc]).astype(jnp.float32)
    bfused = (bf.astype(jnp.float32) + wf[:, :, 0].astype(jnp.float32) @ bc_cat).reshape(1, NF)

    def kernel(x_ref, wc_ref, wf_ref, b_ref, o_ref, acc_ref):
        c = pl.program_id(0)

        @pl.when(c == 0)
        def _init():
            acc_ref[...] = jnp.zeros_like(acc_ref)

        wct = wc_ref[...]                                           # (Cc, K*Cin_tile) bf16

        # Weight-stationary combine_conv over the un-duplicated activations: per sliding window,
        # slice the ref (free view, tile-aligned) and run one MXU dot; accumulate the pre-pool y
        # across Cin tiles.  B is tiny and static; S_OUT loop is a short unrolled fori_loop.
        for b in range(B):
            def win_body(t, carry, b=b):
                rhs = x_ref[b, pl.ds(t, K)].reshape(K * CIN_TILE, HWP)     # leading-merge: free
                yw = jnp.dot(wct, rhs, preferred_element_type=jnp.float32)  # (Cc, HWp) f32
                w = b * S_OUT + t
                acc_ref[w] = acc_ref[w] + yw
                return carry
            lax.fori_loop(0, S_OUT, win_body, 0, unroll=True)

        @pl.when(c == pl.num_programs(0) - 1)
        def _finalize():
            y = acc_ref[...]                                        # (NW, Cc, HWp) f32
            # avg/max pool over the spatial lanes; zero-padded lanes contribute 0 to the sum and
            # are masked to -inf for the max; mean divides by the true HW.
            if HWP != HW:
                lane = lax.broadcasted_iota(jnp.int32, (1, 1, HWP), 2)
                y_max_in = jnp.where(lane < HW, y, -jnp.inf)
            else:
                y_max_in = y
            avg = jnp.sum(y, axis=-1) * jnp.float32(1.0 / HW)       # (NW, Cc)
            mx = jnp.max(y_max_in, axis=-1)                         # (NW, Cc)
            # fc (Conv1d k=1), computed transposed so the output is already the (NW, NF) slab;
            # fused bias already contains wf @ [bc;bc] + bf.
            wfv = wf_ref[...]                                       # (2*Cc, NF)
            out = (jnp.dot(avg, wfv[:CC, :], preferred_element_type=jnp.float32)
                   + jnp.dot(mx, wfv[CC:, :], preferred_element_type=jnp.float32)
                   + b_ref[...])
            o_ref[...] = out.astype(o_ref.dtype)

    flops = NW * 2 * CC * (K * CIN) * HWP + 2 * NW * (2 * CC) * NF
    bytes_accessed = (x.size * 2 + wc2.size * 2 + wf2.size * 4 + bfused.size * 4 + NW * NF * 4)

    out = pl.pallas_call(
        kernel,
        out_shape=jax.ShapeDtypeStruct((NW, NF), jnp.float32),
        grid_spec=pltpu.PrefetchScalarGridSpec(
            num_scalar_prefetch=0,
            grid=(NT,),                                   # Cin contraction (reduction) axis
            in_specs=[
                pl.BlockSpec((B, S, CIN_TILE, HWP), lambda c: (0, 0, c, 0)),
                pl.BlockSpec((CC, K * CIN_TILE), lambda c: (0, c)),
                pl.BlockSpec((2 * CC, NF), lambda c: (0, 0)),
                pl.BlockSpec((1, NF), lambda c: (0, 0)),
            ],
            out_specs=pl.BlockSpec((NW, NF), lambda c: (0, 0)),
            scratch_shapes=[pltpu.VMEM((NW, CC, HWP), jnp.float32)],   # pre-pool y accumulator
        ),
        compiler_params=pltpu.CompilerParams(
            dimension_semantics=("arbitrary",),
            vmem_limit_bytes=32 * 1024 * 1024,            # above v5e's 16 MiB scoped default,
        ),                                                # within v7x's 64 MiB physical VMEM
        cost_estimate=pl.CostEstimate(
            flops=flops, transcendentals=0, bytes_accessed=bytes_accessed),
    )(x, wc2, wf2, bfused)
    return out.reshape(B, S_OUT, NF)                      # free leading-dim split


def clf_head_ref(feats, wc, bc, wf, bf, *, combine_slices):
    """Pure-JAX reference mirroring the torch forward in eval mode (dropout inactive).

    Applies the same bf16 quantization to feats / combine_conv weight as the kernel wrapper so the
    comparison checks kernel math, not the (deliberate) bf16 input precision tradeoff.
    """
    B, S, CIN, H, W = feats.shape
    K = combine_slices
    S_OUT = S - K + 1
    x = feats.astype(jnp.bfloat16).astype(jnp.float32)
    wck = wc[:, :, :, 0, 0].astype(jnp.bfloat16).astype(jnp.float32)   # (Cc, Cin, K)
    x = jnp.transpose(x, (0, 2, 1, 3, 4))                              # (B, Cin, S, H, W)
    ys = []
    for t in range(S_OUT):
        slab = x[:, :, t:t + K]                                        # (B, Cin, K, H, W)
        ys.append(jnp.einsum('oik,bikhw->bohw', wck, slab))
    y = jnp.stack(ys, axis=2) + bc[None, :, None, None, None]          # (B, Cc, S_out, H, W)
    avg = y.mean(axis=(3, 4))
    mx = y.max(axis=(3, 4))
    cat = jnp.concatenate([avg, mx], axis=1)                           # (B, 2*Cc, S_out)
    out = jnp.einsum('nc,bct->bnt', wf[:, :, 0], cat) + bf[None, :, None]
    return jnp.transpose(out, (0, 2, 1))                               # (B, S_out, NF)


if __name__ == "__main__":
    # Small synthetic config consistent with the module:
    #   base_model_features = 256, combine_slices = 5, combine_conv_features = 32, nb_features = 8
    # H = W = 13 gives H*W = 169 -> padded to 256 lanes, exercising the mask/true-HW paths;
    # CIN = 256 with CIN_TILE = 128 exercises the 2-step Cin accumulation.
    B, S = 2, 8                  # batch, input slices
    CIN = 256                    # base_model_features (backbone feature channels)
    H, W = 13, 13                # backbone feature-map spatial size
    K = 5                        # combine_slices
    CC = 32                      # combine_conv_features
    NF = 8                       # nb_features

    key = jax.random.PRNGKey(0)
    k_feat, k_wc, k_bc, k_wf, k_bf = jax.random.split(key, 5)

    feats = jax.random.normal(k_feat, (B, S, CIN, H, W), dtype=jnp.float32)
    wc = 0.02 * jax.random.normal(k_wc, (CC, CIN, K, 1, 1), dtype=jnp.float32)   # Conv3d weight
    bc = 0.05 * jax.random.normal(k_bc, (CC,), dtype=jnp.float32)                # Conv3d bias
    wf = 0.05 * jax.random.normal(k_wf, (NF, 2 * CC, 1), dtype=jnp.float32)      # Conv1d weight
    bf = 0.05 * jax.random.normal(k_bf, (NF,), dtype=jnp.float32)                # Conv1d bias

    run = jax.jit(functools.partial(clf_head_pallas, combine_slices=K))
    out = run(feats, wc, bc, wf, bf)
    jax.block_until_ready(out)

    ref = clf_head_ref(feats, wc, bc, wf, bf, combine_slices=K)
    assert out.shape == (B, S - K + 1, NF), out.shape
    err = float(jnp.max(jnp.abs(out - ref)))
    assert jnp.allclose(out, ref, atol=2e-3, rtol=2e-3), err

    print("KERNEL_OK")
</pallas_src>

<mosaic_0001>
module attributes {stable_mosaic.version = 11 : i64} {
  func.func @kernel(%arg0: i32, %arg1: memref<2x8x128x256xbf16, #tpu.memory_space<vmem>>, %arg2: memref<32x640xbf16, #tpu.memory_space<vmem>>, %arg3: memref<64x8xf32, #tpu.memory_space<vmem>>, %arg4: memref<1x8xf32, #tpu.memory_space<vmem>>, %arg5: memref<8x8xf32, #tpu.memory_space<vmem>>, %arg6: memref<8x32x256xf32, #tpu.memory_space<vmem>>) attributes {dimension_semantics = [#tpu.dimension_semantics<arbitrary>], iteration_bounds = array<i64: 2>, scalar_prefetch = 0 : i64, scratch_operands = 1 : i64, tpu.core_type = #tpu.core_type<tc>, window_params = [{transform_indices = @transform_0, window_bounds = array<i64: 2, 8, 128, 256>}, {transform_indices = @transform_1, window_bounds = array<i64: 32, 640>}, {pipeline_mode = #tpu.pipeline_mode<synchronous>, transform_indices = @transform_2, window_bounds = array<i64: 64, 8>}, {pipeline_mode = #tpu.pipeline_mode<synchronous>, transform_indices = @transform_3, window_bounds = array<i64: 1, 8>}, {pipeline_mode = #tpu.pipeline_mode<synchronous>, transform_indices = @transform_4, window_bounds = array<i64: 8, 8>}]} {
    %c0_i32 = arith.constant 0 : i32
    %0 = arith.cmpi eq, %arg0, %c0_i32 : i32
    %1 = arith.extui %0 : i1 to i32
    %c0_i32_0 = arith.constant 0 : i32
    %2 = arith.cmpi ne, %1, %c0_i32_0 : i32
    scf.if %2 {
      %cst_80 = arith.constant 0.000000e+00 : f32
      %119 = vector.broadcast %cst_80 : f32 to vector<8x32x256xf32>
      %c0_81 = arith.constant 0 : index
      %c0_82 = arith.constant 0 : index
      %c0_83 = arith.constant 0 : index
      %120 = vector.load %arg6[%c0_81, %c0_82, %c0_83] : memref<8x32x256xf32, #tpu.memory_space<vmem>>, vector<8x32x256xf32>
      tpu.vector_store %arg6[%c0_81, %c0_82, %c0_83], %119 {strides = array<i32>} : memref<8x32x256xf32, #tpu.memory_space<vmem>>, vector<8x32x256xf32>,
    } else {
    }
    %c0 = arith.constant 0 : index
    %c0_1 = arith.constant 0 : index
    %3 = vector.load %arg2[%c0, %c0_1] : memref<32x640xbf16, #tpu.memory_space<vmem>>, vector<32x640xbf16>
    %c0_i32_2 = arith.constant 0 : i32
    %c0_3 = arith.constant 0 : index
    %4 = arith.index_cast %c0_i32_2 : i32 to index
    %c0_4 = arith.constant 0 : index
    %c0_5 = arith.constant 0 : index
    %5 = vector.load %arg1[%c0_3, %4, %c0_4, %c0_5] : memref<2x8x128x256xbf16, #tpu.memory_space<vmem>>, vector<1x5x128x256xbf16>
    %6 = vector.shape_cast %5 : vector<1x5x128x256xbf16> to vector<5x128x256xbf16>
    %7 = vector.shape_cast %6 : vector<5x128x256xbf16> to vector<640x256xbf16>
    %cst = arith.constant dense<0.000000e+00> : vector<32x256xf32>
    %8 = tpu.matmul %3, %7, %cst {dimension_numbers = #tpu.dot_dimension_numbers<[1], [0], [0], [1], [0, 0, 1, 1], [], []>} : vector<32x640xbf16>, vector<640x256xbf16>, vector<32x256xf32> -> vector<32x256xf32>
    %c0_i32_6 = arith.constant 0 : i32
    %9 = arith.addi %c0_i32_6, %c0_i32_2 : i32
    %10 = arith.index_cast %9 : i32 to index
    %c0_7 = arith.constant 0 : index
    %c0_8 = arith.constant 0 : index
    %11 = vector.load %arg6[%10, %c0_7, %c0_8] : memref<8x32x256xf32, #tpu.memory_space<vmem>>, vector<1x32x256xf32>
    %12 = vector.shape_cast %11 : vector<1x32x256xf32> to vector<32x256xf32>
    %13 = arith.addf %12, %8 : vector<32x256xf32>
    %14 = arith.index_cast %9 : i32 to index
    %c0_9 = arith.constant 0 : index
    %c0_10 = arith.constant 0 : index
    %15 = vector.load %arg6[%14, %c0_9, %c0_10] : memref<8x32x256xf32, #tpu.memory_space<vmem>>, vector<1x32x256xf32>
    %16 = vector.shape_cast %15 : vector<1x32x256xf32> to vector<32x256xf32>
    %17 = vector.shape_cast %13 : vector<32x256xf32> to vector<1x32x256xf32>
    tpu.vector_store %arg6[%14, %c0_9, %c0_10], %17 {strides = array<i32>} : memref<8x32x256xf32, #tpu.memory_space<vmem>>, vector<1x32x256xf32>,
    %c1_i32 = arith.constant 1 : i32
    %c0_11 = arith.constant 0 : index
    %18 = arith.index_cast %c1_i32 : i32 to index
    %c0_12 = arith.constant 0 : index
    %c0_13 = arith.constant 0 : index
    %19 = vector.load %arg1[%c0_11, %18, %c0_12, %c0_13] : memref<2x8x128x256xbf16, #tpu.memory_space<vmem>>, vector<1x5x128x256xbf16>
    %20 = vector.shape_cast %19 : vector<1x5x128x256xbf16> to vector<5x128x256xbf16>
    %21 = vector.shape_cast %20 : vector<5x128x256xbf16> to vector<640x256xbf16>
    %cst_14 = arith.constant dense<0.000000e+00> : vector<32x256xf32>
    %22 = tpu.matmul %3, %21, %cst_14 {dimension_numbers = #tpu.dot_dimension_numbers<[1], [0], [0], [1], [0, 0, 1, 1], [], []>} : vector<32x640xbf16>, vector<640x256xbf16>, vector<32x256xf32> -> vector<32x256xf32>
    %c0_i32_15 = arith.constant 0 : i32
    %23 = arith.addi %c0_i32_15, %c1_i32 : i32
    %24 = arith.index_cast %23 : i32 to index
    %c0_16 = arith.constant 0 : index
    %c0_17 = arith.constant 0 : index
    %25 = vector.load %arg6[%24, %c0_16, %c0_17] : memref<8x32x256xf32, #tpu.memory_space<vmem>>, vector<1x32x256xf32>
    %26 = vector.shape_cast %25 : vector<1x32x256xf32> to vector<32x256xf32>
    %27 = arith.addf %26, %22 : vector<32x256xf32>
    %28 = arith.index_cast %23 : i32 to index
    %c0_18 = arith.constant 0 : index
    %c0_19 = arith.constant 0 : index
    %29 = vector.load %arg6[%28, %c0_18, %c0_19] : memref<8x32x256xf32, #tpu.memory_space<vmem>>, vector<1x32x256xf32>
    %30 = vector.shape_cast %29 : vector<1x32x256xf32> to vector<32x256xf32>
    %31 = vector.shape_cast %27 : vector<32x256xf32> to vector<1x32x256xf32>
    tpu.vector_store %arg6[%28, %c0_18, %c0_19], %31 {strides = array<i32>} : memref<8x32x256xf32, #tpu.memory_space<vmem>>, vector<1x32x256xf32>,
    %c2_i32 = arith.constant 2 : i32
    %c0_20 = arith.constant 0 : index
    %32 = arith.index_cast %c2_i32 : i32 to index
    %c0_21 = arith.constant 0 : index
    %c0_22 = arith.constant 0 : index
    %33 = vector.load %arg1[%c0_20, %32, %c0_21, %c0_22] : memref<2x8x128x256xbf16, #tpu.memory_space<vmem>>, vector<1x5x128x256xbf16>
    %34 = vector.shape_cast %33 : vector<1x5x128x256xbf16> to vector<5x128x256xbf16>
    %35 = vector.shape_cast %34 : vector<5x128x256xbf16> to vector<640x256xbf16>
    %cst_23 = arith.constant dense<0.000000e+00> : vector<32x256xf32>
    %36 = tpu.matmul %3, %35, %cst_23 {dimension_numbers = #tpu.dot_dimension_numbers<[1], [0], [0], [1], [0, 0, 1, 1], [], []>} : vector<32x640xbf16>, vector<640x256xbf16>, vector<32x256xf32> -> vector<32x256xf32>
    %c0_i32_24 = arith.constant 0 : i32
    %37 = arith.addi %c0_i32_24, %c2_i32 : i32
    %38 = arith.index_cast %37 : i32 to index
    %c0_25 = arith.constant 0 : index
    %c0_26 = arith.constant 0 : index
    %39 = vector.load %arg6[%38, %c0_25, %c0_26] : memref<8x32x256xf32, #tpu.memory_space<vmem>>, vector<1x32x256xf32>
    %40 = vector.shape_cast %39 : vector<1x32x256xf32> to vector<32x256xf32>
    %41 = arith.addf %40, %36 : vector<32x256xf32>
    %42 = arith.index_cast %37 : i32 to index
    %c0_27 = arith.constant 0 : index
    %c0_28 = arith.constant 0 : index
    %43 = vector.load %arg6[%42, %c0_27, %c0_28] : memref<8x32x256xf32, #tpu.memory_space<vmem>>, vector<1x32x256xf32>
    %44 = vector.shape_cast %43 : vector<1x32x256xf32> to vector<32x256xf32>
    %45 = vector.shape_cast %41 : vector<32x256xf32> to vector<1x32x256xf32>
    tpu.vector_store %arg6[%42, %c0_27, %c0_28], %45 {strides = array<i32>} : memref<8x32x256xf32, #tpu.memory_space<vmem>>, vector<1x32x256xf32>,
    %c3_i32 = arith.constant 3 : i32
    %c0_29 = arith.constant 0 : index
    %46 = arith.index_cast %c3_i32 : i32 to index
    %c0_30 = arith.constant 0 : index
    %c0_31 = arith.constant 0 : index
    %47 = vector.load %arg1[%c0_29, %46, %c0_30, %c0_31] : memref<2x8x128x256xbf16, #tpu.memory_space<vmem>>, vector<1x5x128x256xbf16>
    %48 = vector.shape_cast %47 : vector<1x5x128x256xbf16> to vector<5x128x256xbf16>
    %49 = vector.shape_cast %48 : vector<5x128x256xbf16> to vector<640x256xbf16>
    %cst_32 = arith.constant dense<0.000000e+00> : vector<32x256xf32>
    %50 = tpu.matmul %3, %49, %cst_32 {dimension_numbers = #tpu.dot_dimension_numbers<[1], [0], [0], [1], [0, 0, 1, 1], [], []>} : vector<32x640xbf16>, vector<640x256xbf16>, vector<32x256xf32> -> vector<32x256xf32>
    %c0_i32_33 = arith.constant 0 : i32
    %51 = arith.addi %c0_i32_33, %c3_i32 : i32
    %52 = arith.index_cast %51 : i32 to index
    %c0_34 = arith.constant 0 : index
    %c0_35 = arith.constant 0 : index
    %53 = vector.load %arg6[%52, %c0_34, %c0_35] : memref<8x32x256xf32, #tpu.memory_space<vmem>>, vector<1x32x256xf32>
    %54 = vector.shape_cast %53 : vector<1x32x256xf32> to vector<32x256xf32>
    %55 = arith.addf %54, %50 : vector<32x256xf32>
    %56 = arith.index_cast %51 : i32 to index
    %c0_36 = arith.constant 0 : index
    %c0_37 = arith.constant 0 : index
    %57 = vector.load %arg6[%56, %c0_36, %c0_37] : memref<8x32x256xf32, #tpu.memory_space<vmem>>, vector<1x32x256xf32>
    %58 = vector.shape_cast %57 : vector<1x32x256xf32> to vector<32x256xf32>
    %59 = vector.shape_cast %55 : vector<32x256xf32> to vector<1x32x256xf32>
    tpu.vector_store %arg6[%56, %c0_36, %c0_37], %59 {strides = array<i32>} : memref<8x32x256xf32, #tpu.memory_space<vmem>>, vector<1x32x256xf32>,
    %c4_i32 = arith.constant 4 : i32
    %c0_i32_38 = arith.constant 0 : i32
    %c1 = arith.constant 1 : index
    %60 = arith.index_cast %c0_i32_38 : i32 to index
    %c0_39 = arith.constant 0 : index
    %c0_40 = arith.constant 0 : index
    %61 = vector.load %arg1[%c1, %60, %c0_39, %c0_40] : memref<2x8x128x256xbf16, #tpu.memory_space<vmem>>, vector<1x5x128x256xbf16>
    %62 = vector.shape_cast %61 : vector<1x5x128x256xbf16> to vector<5x128x256xbf16>
    %63 = vector.shape_cast %62 : vector<5x128x256xbf16> to vector<640x256xbf16>
    %cst_41 = arith.constant dense<0.000000e+00> : vector<32x256xf32>
    %64 = tpu.matmul %3, %63, %cst_41 {dimension_numbers = #tpu.dot_dimension_numbers<[1], [0], [0], [1], [0, 0, 1, 1], [], []>} : vector<32x640xbf16>, vector<640x256xbf16>, vector<32x256xf32> -> vector<32x256xf32>
    %c4_i32_42 = arith.constant 4 : i32
    %65 = arith.addi %c4_i32_42, %c0_i32_38 : i32
    %66 = arith.index_cast %65 : i32 to index
    %c0_43 = arith.constant 0 : index
    %c0_44 = arith.constant 0 : index
    %67 = vector.load %arg6[%66, %c0_43, %c0_44] : memref<8x32x256xf32, #tpu.memory_space<vmem>>, vector<1x32x256xf32>
    %68 = vector.shape_cast %67 : vector<1x32x256xf32> to vector<32x256xf32>
    %69 = arith.addf %68, %64 : vector<32x256xf32>
    %70 = arith.index_cast %65 : i32 to index
    %c0_45 = arith.constant 0 : index
    %c0_46 = arith.constant 0 : index
    %71 = vector.load %arg6[%70, %c0_45, %c0_46] : memref<8x32x256xf32, #tpu.memory_space<vmem>>, vector<1x32x256xf32>
    %72 = vector.shape_cast %71 : vector<1x32x256xf32> to vector<32x256xf32>
    %73 = vector.shape_cast %69 : vector<32x256xf32> to vector<1x32x256xf32>
    tpu.vector_store %arg6[%70, %c0_45, %c0_46], %73 {strides = array<i32>} : memref<8x32x256xf32, #tpu.memory_space<vmem>>, vector<1x32x256xf32>,
    %c1_i32_47 = arith.constant 1 : i32
    %c1_48 = arith.constant 1 : index
    %74 = arith.index_cast %c1_i32_47 : i32 to index
    %c0_49 = arith.constant 0 : index
    %c0_50 = arith.constant 0 : index
    %75 = vector.load %arg1[%c1_48, %74, %c0_49, %c0_50] : memref<2x8x128x256xbf16, #tpu.memory_space<vmem>>, vector<1x5x128x256xbf16>
    %76 = vector.shape_cast %75 : vector<1x5x128x256xbf16> to vector<5x128x256xbf16>
    %77 = vector.shape_cast %76 : vector<5x128x256xbf16> to vector<640x256xbf16>
    %cst_51 = arith.constant dense<0.000000e+00> : vector<32x256xf32>
    %78 = tpu.matmul %3, %77, %cst_51 {dimension_numbers = #tpu.dot_dimension_numbers<[1], [0], [0], [1], [0, 0, 1, 1], [], []>} : vector<32x640xbf16>, vector<640x256xbf16>, vector<32x256xf32> -> vector<32x256xf32>
    %c4_i32_52 = arith.constant 4 : i32
    %79 = arith.addi %c4_i32_52, %c1_i32_47 : i32
    %80 = arith.index_cast %79 : i32 to index
    %c0_53 = arith.constant 0 : index
    %c0_54 = arith.constant 0 : index
    %81 = vector.load %arg6[%80, %c0_53, %c0_54] : memref<8x32x256xf32, #tpu.memory_space<vmem>>, vector<1x32x256xf32>
    %82 = vector.shape_cast %81 : vector<1x32x256xf32> to vector<32x256xf32>
    %83 = arith.addf %82, %78 : vector<32x256xf32>
    %84 = arith.index_cast %79 : i32 to index
    %c0_55 = arith.constant 0 : index
    %c0_56 = arith.constant 0 : index
    %85 = vector.load %arg6[%84, %c0_55, %c0_56] : memref<8x32x256xf32, #tpu.memory_space<vmem>>, vector<1x32x256xf32>
    %86 = vector.shape_cast %85 : vector<1x32x256xf32> to vector<32x256xf32>
    %87 = vector.shape_cast %83 : vector<32x256xf32> to vector<1x32x256xf32>
    tpu.vector_store %arg6[%84, %c0_55, %c0_56], %87 {strides = array<i32>} : memref<8x32x256xf32, #tpu.memory_space<vmem>>, vector<1x32x256xf32>,
    %c2_i32_57 = arith.constant 2 : i32
    %c1_58 = arith.constant 1 : index
    %88 = arith.index_cast %c2_i32_57 : i32 to index
    %c0_59 = arith.constant 0 : index
    %c0_60 = arith.constant 0 : index
    %89 = vector.load %arg1[%c1_58, %88, %c0_59, %c0_60] : memref<2x8x128x256xbf16, #tpu.memory_space<vmem>>, vector<1x5x128x256xbf16>
    %90 = vector.shape_cast %89 : vector<1x5x128x256xbf16> to vector<5x128x256xbf16>
    %91 = vector.shape_cast %90 : vector<5x128x256xbf16> to vector<640x256xbf16>
    %cst_61 = arith.constant dense<0.000000e+00> : vector<32x256xf32>
    %92 = tpu.matmul %3, %91, %cst_61 {dimension_numbers = #tpu.dot_dimension_numbers<[1], [0], [0], [1], [0, 0, 1, 1], [], []>} : vector<32x640xbf16>, vector<640x256xbf16>, vector<32x256xf32> -> vector<32x256xf32>
    %c4_i32_62 = arith.constant 4 : i32
    %93 = arith.addi %c4_i32_62, %c2_i32_57 : i32
    %94 = arith.index_cast %93 : i32 to index
    %c0_63 = arith.constant 0 : index
    %c0_64 = arith.constant 0 : index
    %95 = vector.load %arg6[%94, %c0_63, %c0_64] : memref<8x32x256xf32, #tpu.memory_space<vmem>>, vector<1x32x256xf32>
    %96 = vector.shape_cast %95 : vector<1x32x256xf32> to vector<32x256xf32>
    %97 = arith.addf %96, %92 : vector<32x256xf32>
    %98 = arith.index_cast %93 : i32 to index
    %c0_65 = arith.constant 0 : index
    %c0_66 = arith.constant 0 : index
    %99 = vector.load %arg6[%98, %c0_65, %c0_66] : memref<8x32x256xf32, #tpu.memory_space<vmem>>, vector<1x32x256xf32>
    %100 = vector.shape_cast %99 : vector<1x32x256xf32> to vector<32x256xf32>
    %101 = vector.shape_cast %97 : vector<32x256xf32> to vector<1x32x256xf32>
    tpu.vector_store %arg6[%98, %c0_65, %c0_66], %101 {strides = array<i32>} : memref<8x32x256xf32, #tpu.memory_space<vmem>>, vector<1x32x256xf32>,
    %c3_i32_67 = arith.constant 3 : i32
    %c1_68 = arith.constant 1 : index
    %102 = arith.index_cast %c3_i32_67 : i32 to index
    %c0_69 = arith.constant 0 : index
    %c0_70 = arith.constant 0 : index
    %103 = vector.load %arg1[%c1_68, %102, %c0_69, %c0_70] : memref<2x8x128x256xbf16, #tpu.memory_space<vmem>>, vector<1x5x128x256xbf16>
    %104 = vector.shape_cast %103 : vector<1x5x128x256xbf16> to vector<5x128x256xbf16>
    %105 = vector.shape_cast %104 : vector<5x128x256xbf16> to vector<640x256xbf16>
    %cst_71 = arith.constant dense<0.000000e+00> : vector<32x256xf32>
    %106 = tpu.matmul %3, %105, %cst_71 {dimension_numbers = #tpu.dot_dimension_numbers<[1], [0], [0], [1], [0, 0, 1, 1], [], []>} : vector<32x640xbf16>, vector<640x256xbf16>, vector<32x256xf32> -> vector<32x256xf32>
    %c4_i32_72 = arith.constant 4 : i32
    %107 = arith.addi %c4_i32_72, %c3_i32_67 : i32
    %108 = arith.index_cast %107 : i32 to index
    %c0_73 = arith.constant 0 : index
    %c0_74 = arith.constant 0 : index
    %109 = vector.load %arg6[%108, %c0_73, %c0_74] : memref<8x32x256xf32, #tpu.memory_space<vmem>>, vector<1x32x256xf32>
    %110 = vector.shape_cast %109 : vector<1x32x256xf32> to vector<32x256xf32>
    %111 = arith.addf %110, %106 : vector<32x256xf32>
    %112 = arith.index_cast %107 : i32 to index
    %c0_75 = arith.constant 0 : index
    %c0_76 = arith.constant 0 : index
    %113 = vector.load %arg6[%112, %c0_75, %c0_76] : memref<8x32x256xf32, #tpu.memory_space<vmem>>, vector<1x32x256xf32>
    %114 = vector.shape_cast %113 : vector<1x32x256xf32> to vector<32x256xf32>
    %115 = vector.shape_cast %111 : vector<32x256xf32> to vector<1x32x256xf32>
    tpu.vector_store %arg6[%112, %c0_75, %c0_76], %115 {strides = array<i32>} : memref<8x32x256xf32, #tpu.memory_space<vmem>>, vector<1x32x256xf32>,
    %c4_i32_77 = arith.constant 4 : i32
    %c1_i32_78 = arith.constant 1 : i32
    %116 = arith.cmpi eq, %arg0, %c1_i32_78 : i32
    %117 = arith.extui %116 : i1 to i32
    %c0_i32_79 = arith.constant 0 : i32
    %118 = arith.cmpi ne, %117, %c0_i32_79 : i32
    scf.if %118 {
      %c0_80 = arith.constant 0 : index
      %c0_81 = arith.constant 0 : index
      %c0_82 = arith.constant 0 : index
      %119 = vector.load %arg6[%c0_80, %c0_81, %c0_82] : memref<8x32x256xf32, #tpu.memory_space<vmem>>, vector<8x32x256xf32>
      %120 = tpu.iota {dimensions = array<i32: 2>} : vector<1x1x256xi32>
      %c169_i32 = arith.constant 169 : i32
      %121 = vector.broadcast %c169_i32 : i32 to vector<1x1x256xi32>
      %122 = arith.cmpi slt, %120, %121 : vector<1x1x256xi32>
      %cst_83 = arith.constant 0xFF800000 : f32
      %123 = vector.shape_cast %122 : vector<1x1x256xi1> to vector<1x1x256xi1>
      %124 = vector.broadcast %123 : vector<1x1x256xi1> to vector<8x32x256xi1>
      %125 = vector.broadcast %cst_83 : f32 to vector<8x32x256xf32>
      %126 = arith.select %124, %119, %125 : vector<8x32x256xi1>, vector<8x32x256xf32>
      %cst_84 = arith.constant dense<0.000000e+00> : vector<8x32xf32>
      %127 = vector.multi_reduction <add>, %119, %cst_84 [2] : vector<8x32x256xf32> to vector<8x32xf32>
      %cst_85 = arith.constant 5.917160e-03 : f32
      %128 = vector.broadcast %cst_85 : f32 to vector<8x32xf32>
      %129 = arith.mulf %127, %128 : vector<8x32xf32>
      %cst_86 = arith.constant dense<0xFF800000> : vector<8x32xf32>
      %130 = vector.multi_reduction <maximumf>, %126, %cst_86 [2] : vector<8x32x256xf32> to vector<8x32xf32>
      %c0_87 = arith.constant 0 : index
      %c0_88 = arith.constant 0 : index
      %131 = vector.load %arg3[%c0_87, %c0_88] : memref<64x8xf32, #tpu.memory_space<vmem>>, vector<64x8xf32>
      %132 = vector.extract_strided_slice %131 {offsets = [0, 0], sizes = [32, 8], strides = [1, 1]} : vector<64x8xf32> to vector<32x8xf32>
      %cst_89 = arith.constant dense<0.000000e+00> : vector<8x8xf32>
      %133 = tpu.matmul %129, %132, %cst_89 {dimension_numbers = #tpu.dot_dimension_numbers<[1], [0], [0], [1], [0, 0, 1, 1], [], []>} : vector<8x32xf32>, vector<32x8xf32>, vector<8x8xf32> -> vector<8x8xf32>
      %134 = vector.extract_strided_slice %131 {offsets = [32, 0], sizes = [32, 8], strides = [1, 1]} : vector<64x8xf32> to vector<32x8xf32>
      %cst_90 = arith.constant dense<0.000000e+00> : vector<8x8xf32>
      %135 = tpu.matmul %130, %134, %cst_90 {dimension_numbers = #tpu.dot_dimension_numbers<[1], [0], [0], [1], [0, 0, 1, 1], [], []>} : vector<8x32xf32>, vector<32x8xf32>, vector<8x8xf32> -> vector<8x8xf32>
      %136 = arith.addf %133, %135 : vector<8x8xf32>
      %c0_91 = arith.constant 0 : index
      %c0_92 = arith.constant 0 : index
      %137 = vector.load %arg4[%c0_91, %c0_92] : memref<1x8xf32, #tpu.memory_space<vmem>>, vector<1x8xf32>
      %138 = vector.broadcast %137 : vector<1x8xf32> to vector<8x8xf32>
      %139 = arith.addf %136, %138 : vector<8x8xf32>
      %c0_93 = arith.constant 0 : index
      %c0_94 = arith.constant 0 : index
      %140 = vector.load %arg5[%c0_93, %c0_94] : memref<8x8xf32, #tpu.memory_space<vmem>>, vector<8x8xf32>
      tpu.vector_store %arg5[%c0_93, %c0_94], %139 {strides = array<i32>} : memref<8x8xf32, #tpu.memory_space<vmem>>, vector<8x8xf32>,
    } else {
    }
    return
  }
  func.func @transform_0(%arg0: i32) -> (i32, i32, i32, i32) {
    %c0_i32 = arith.constant 0 : i32
    %c0_i32_0 = arith.constant 0 : i32
    %c0_i32_1 = arith.constant 0 : i32
    %c0_i32_2 = arith.constant 0 : i32
    return %c0_i32, %c0_i32_0, %arg0, %c0_i32_1 : i32, i32, i32, i32
  }
  func.func @transform_1(%arg0: i32) -> (i32, i32) {
    %c0_i32 = arith.constant 0 : i32
    %c0_i32_0 = arith.constant 0 : i32
    return %c0_i32, %arg0 : i32, i32
  }
  func.func @transform_2(%arg0: i32) -> (i32, i32) {
    %c0_i32 = arith.constant 0 : i32
    %c0_i32_0 = arith.constant 0 : i32
    %c0_i32_1 = arith.constant 0 : i32
    return %c0_i32, %c0_i32_0 : i32, i32
  }
  func.func @transform_3(%arg0: i32) -> (i32, i32) {
    %c0_i32 = arith.constant 0 : i32
    %c0_i32_0 = arith.constant 0 : i32
    %c0_i32_1 = arith.constant 0 : i32
    return %c0_i32, %c0_i32_0 : i32, i32
  }
  func.func @transform_4(%arg0: i32) -> (i32, i32) {
    %c0_i32 = arith.constant 0 : i32
    %c0_i32_0 = arith.constant 0 : i32
    %c0_i32_1 = arith.constant 0 : i32
    return %c0_i32, %c0_i32_0 : i32, i32
  }
}

</mosaic_0001>

<llo_original>
// kernel: clf_head_pallas.1
$region0: #{clf_head_pallas.1}
  #allocation0 [shape = 'u32[]', space=smem, size = 0x4, offset = 0x4, fixed_abs, tag = 'smem constant byte address 0x4 - core index']
  #allocation1 [shape = 'u32[144,128]{1,0:T(1,128)}', space=vmem, size = 0x12000, scoped, tag = 'internal scratch']
  #allocation2 [shape = 'f32[8,32,256]{2,1,0:T(8,128)}', space=vmem, size = 0x40000, scoped, tag = 'scratch operand']
  %s0 = inlined_call_operand.vmem [shape: bf16[2,8,256,256], index: 0, kind: input, shape index: {}]
  %s1 = inlined_call_operand.vmem [shape: bf16[32,1280], index: 1, kind: input, shape index: {}]
  %s2 = inlined_call_operand.vmem [shape: f32[64,8], index: 2, kind: input, shape index: {}]
  %s3 = inlined_call_operand.vmem [shape: f32[1,8], index: 3, kind: input, shape index: {}]
  %s4 = inlined_call_operand.hbm [shape: f32[8,8], index: 4, kind: output, shape index: {}]
  %s5 = sld [smem:[#allocation0]]
  $region121: #{clf_head_pallas.1} parent=0
    _
  %s7 = ssub.s32 1, %s5
  %s8 = scalar_select 0, %s7, %s5
  $region1: #{clf_head_pallas.1} parent=0
    #allocation3 [shape = 'u8[2097152]{0}', space=vmem, size = 0x200000, scoped, tag = 'input window, operand 0']
    #allocation4 [shape = 'u8[81920]{0}', space=vmem, size = 0x14000, scoped, tag = 'input window, operand 1']
    #allocation5 [shape = 'u8[4096]{0}', space=vmem, size = 0x1000, scoped, tag = 'output window, operand 0, single buffered']
    #allocation6 [shape = 's32[2]{0}', space=sflag, size = 0x8, scoped, tag = 'scoped memory for clf_head_pallas.1']
    %9 = vsyncpa [#allocation6], 0
    loop: start=0, step=1, limit=4
    $region2: #{clf_head_pallas.1} parent=1 // loop_pre_header
      _
    $region3: #{clf_head_pallas.1} parent=1 // loop_header
      %s11 = sphi 0, %s15
      %p12 = scmp.ge.s32.totalorder %s11, 4
      %s21 = sphi 0, %s23
      %s24 = sphi 0, %s21
      %s25 = sphi 0, %s24
      %s41 = sphi 0, %s25
      %s47 = sphi 0, %s49
      %s50 = sphi 0, %s47
      %s51 = sphi 0, %s50
      %s67 = sphi 0, %s51
      %s71 = sphi 0, %s71
      %s73 = sphi 0, %s71
      %s74 = sphi 0, %s73
      %s88 = sphi 0, %s74
      %s92 = sphi 0, %s92
      %s94 = sphi 0, %s92
      %s95 = sphi 0, %s94
      %s109 = sphi 0, %s95
      %s113 = sphi 0, %s113
      %s115 = sphi 0, %s113
      %s116 = sphi 0, %s115
      %s130 = sphi 0, %s116
    $region4: #{clf_head_pallas.1} parent=1 // loop_header_branch
      %14 = sbr.rel (%p12) target = $region8
    $region5: #{clf_head_pallas.1} parent=1 // loop_body
      %s16 = ssub.s32 %s11, 1
      %s17 = ssub.s32 %s11, 2
      %s18 = sadd.s32 %s11, 1
      %s19 = ssub.s32 %s11, %s18
      %p20 = scmp.eq.s32.totalorder %s19, 0
      %s22 = sadd.s32 %s21, 1
      %s23 = scalar_select %p20, %s21, %s22
      %p26 = pneg %p20
      %p27 = scmp.eq.s32.totalorder %s11, 1
      %p28 = por %p26, %p27
      %p29 = scmp.ne.s32.totalorder %s21, %s24
      %p30 = scmp.eq.s32.totalorder %s11, 0
      %p31 = por %p29, %p30
      %p32 = scmp.ne.s32.totalorder %s21, %s24
      %p33 = scmp.eq.s32.totalorder %s16, 1
      %p34 = por %p32, %p33
      %p35 = scmp.ne.s32.totalorder %s24, %s25
      %p36 = scmp.eq.s32.totalorder %s16, 0
      %p37 = por %p35, %p36
      %p38 = scmp.ne.s32.totalorder %s24, %s25
      %p39 = scmp.eq.s32.totalorder %s17, 1
      %p40 = por %p38, %p39
      %p42 = scmp.ne.s32.totalorder %s25, %s41
      %p43 = scmp.eq.s32.totalorder %s17, 0
      %p44 = por %p42, %p43
      %s45 = ssub.s32 %s11, %s18
      %p46 = scmp.eq.s32.totalorder %s45, 0
      %s48 = sadd.s32 %s47, 1
      %s49 = scalar_select %p46, %s47, %s48
      %p52 = pneg %p46
      %p53 = scmp.eq.s32.totalorder %s11, 1
      %p54 = por %p52, %p53
      %p55 = scmp.ne.s32.totalorder %s47, %s50
      %p56 = scmp.eq.s32.totalorder %s11, 0
      %p57 = por %p55, %p56
      %p58 = scmp.ne.s32.totalorder %s47, %s50
      %p59 = scmp.eq.s32.totalorder %s16, 1
      %p60 = por %p58, %p59
      %p61 = scmp.ne.s32.totalorder %s50, %s51
      %p62 = scmp.eq.s32.totalorder %s16, 0
      %p63 = por %p61, %p62
      %p64 = scmp.ne.s32.totalorder %s50, %s51
      %p65 = scmp.eq.s32.totalorder %s17, 1
      %p66 = por %p64, %p65
      %p68 = scmp.ne.s32.totalorder %s51, %s67
      %p69 = scmp.eq.s32.totalorder %s17, 0
      %p70 = por %p68, %p69
      %s72 = sadd.s32 %s71, 1
      %p75 = scmp.eq.s32.totalorder %s11, 1
      %p76 = scmp.ne.s32.totalorder %s71, %s73
      %p77 = scmp.eq.s32.totalorder %s11, 0
      %p78 = por %p76, %p77
      %p79 = scmp.ne.s32.totalorder %s71, %s73
      %p80 = scmp.eq.s32.totalorder %s16, 1
      %p81 = por %p79, %p80
      %p82 = scmp.ne.s32.totalorder %s73, %s74
      %p83 = scmp.eq.s32.totalorder %s16, 0
      %p84 = por %p82, %p83
      %p85 = scmp.ne.s32.totalorder %s73, %s74
      %p86 = scmp.eq.s32.totalorder %s17, 1
      %p87 = por %p85, %p86
      %p89 = scmp.ne.s32.totalorder %s74, %s88
      %p90 = scmp.eq.s32.totalorder %s17, 0
      %p91 = por %p89, %p90
      %s93 = sadd.s32 %s92, 1
      %p96 = scmp.eq.s32.totalorder %s11, 1
      %p97 = scmp.ne.s32.totalorder %s92, %s94
      %p98 = scmp.eq.s32.totalorder %s11, 0
      %p99 = por %p97, %p98
      %p100 = scmp.ne.s32.totalorder %s92, %s94
      %p101 = scmp.eq.s32.totalorder %s16, 1
      %p102 = por %p100, %p101
      %p103 = scmp.ne.s32.totalorder %s94, %s95
      %p104 = scmp.eq.s32.totalorder %s16, 0
      %p105 = por %p103, %p104
      %p106 = scmp.ne.s32.totalorder %s94, %s95
      %p107 = scmp.eq.s32.totalorder %s17, 1
      %p108 = por %p106, %p107
      %p110 = scmp.ne.s32.totalorder %s95, %s109
      %p111 = scmp.eq.s32.totalorder %s17, 0
      %p112 = por %p110, %p111
      %s114 = sadd.s32 %s113, 1
      %p117 = scmp.eq.s32.totalorder %s11, 1
      %p118 = scmp.ne.s32.totalorder %s113, %s115
      %p119 = scmp.eq.s32.totalorder %s11, 0
      %p120 = por %p118, %p119
      %p121 = scmp.ne.s32.totalorder %s113, %s115
      %p122 = scmp.eq.s32.totalorder %s16, 1
      %p123 = por %p121, %p122
      %p124 = scmp.ne.s32.totalorder %s115, %s116
      %p125 = scmp.eq.s32.totalorder %s16, 0
      %p126 = por %p124, %p125
      %p127 = scmp.ne.s32.totalorder %s115, %s116
      %p128 = scmp.eq.s32.totalorder %s17, 1
      %p129 = por %p127, %p128
      %p131 = scmp.ne.s32.totalorder %s116, %s130
      %p132 = scmp.eq.s32.totalorder %s17, 0
      %p133 = por %p131, %p132
      %p134 = scmp.le.s32.totalorder 1, %s11
      %p135 = scmp.lt.s32.totalorder %s11, 3
      %p136 = pnand %p134, %p135
      %p137 = pneg %p136
      // Predicated region
      $region9: #{clf_head_pallas.1} parent=5 // pred_check
        _
      $region10: #{clf_head_pallas.1} parent=5 // pred_check_branch
        %139 = sbr.rel (%p136) target = $region12
      $region11: #{clf_head_pallas.1} parent=5 // pred_region
        %s140 = ssub.s32 %s11, 1
        // Predicated region
        $region13: #{clf_head_pallas.1} parent=11 // pred_check
          %p141 = pneg %p84
        $region14: #{clf_head_pallas.1} parent=11 // pred_check_branch
          %143 = sbr.rel (%p141) target = $region16
        $region15: #{clf_head_pallas.1} parent=11 // pred_region
          _
        $region16: #{clf_head_pallas.1} parent=11 // pred_fallthru
          _
        // Predicated region
        $region17: #{clf_head_pallas.1} parent=11 // pred_check
          %p144 = pneg %p105
        $region18: #{clf_head_pallas.1} parent=11 // pred_check_branch
          %146 = sbr.rel (%p144) target = $region20
        $region19: #{clf_head_pallas.1} parent=11 // pred_region
          _
        $region20: #{clf_head_pallas.1} parent=11 // pred_fallthru
          _
      $region12: #{clf_head_pallas.1} parent=5 // pred_fallthru
        _
      %p147 = scmp.lt.s32.totalorder %s11, 2
      // Predicated region
      $region21: #{clf_head_pallas.1} parent=5 // pred_check
        %p148 = pneg %p147
      $region22: #{clf_head_pallas.1} parent=5 // pred_check_branch
        %150 = sbr.rel (%p148) target = $region24
      $region23: #{clf_head_pallas.1} parent=5 // pred_region
        // Predicated region
        $region25: #{clf_head_pallas.1} parent=23 // pred_check
          %p151 = pneg %p31
        $region26: #{clf_head_pallas.1} parent=23 // pred_check_branch
          %153 = sbr.rel (%p151) target = $region28
        $region27: #{clf_head_pallas.1} parent=23 // pred_region
          %s154 = sand.u32 %s21, 1
          %s155 = sand.u32 %s21, 1
          %s156 = smul.addr %s155, 2048
          %s157 = scalar_lea.vmem [#allocation3], %s156
          %s158 = smul.u32 16, %s11
          %s159 = smul.addr %s158, 2
          %s160 = smul.addr %s159, 4
          %s161 = scalar_lea.vmem %s0, %s160
          // Predicated region
          $region29: #{clf_head_pallas.1} parent=27 // pred_check
            _
          $region30: #{clf_head_pallas.1} parent=27 // pred_check_branch
            %163 = sbr.rel (0) target = $region32
          $region31: #{clf_head_pallas.1} parent=27 // pred_region
            // Predicated region
            $region33: #{clf_head_pallas.1} parent=31 // pred_check
              _
            $region34: #{clf_head_pallas.1} parent=31 // pred_check_branch
              %165 = sbr.rel (0) target = $region36
            $region35: #{clf_head_pallas.1} parent=31 // pred_region
              // Predicated region
              $region48: #{clf_head_pallas.1} parent=35 // pred_check
                _
              $region49: #{clf_head_pallas.1} parent=35 // pred_check_branch
                %691 = sbr.rel (0) target = $region51
              $region50: #{clf_head_pallas.1} parent=35 // pred_region
                loop: start=0, step=1, limit=1
                $region52: #{clf_head_pallas.1} parent=50 // loop_pre_header
                  _
                $region53: #{clf_head_pallas.1} parent=50 // loop_header
                  %s693 = sphi 0, %s697
                  %p694 = scmp.ge.s32.totalorder %s693, 1
                  %s698 = sphi %s161, %s161
                  %s699 = sphi %s157, %s157
                $region54: #{clf_head_pallas.1} parent=50 // loop_header_branch
                  %696 = sbr.rel (%p694) target = $region58
                $region55: #{clf_head_pallas.1} parent=50 // loop_body
                  %v700 = vld [vmem:[%s698] sm:$0xff]
                  %701 = vst [vmem:[%s699] sm:$0xff] %v700
                  %v702 = vld [vmem:[%s698 + $0x8] sm:$0xff]
                  %703 = vst [vmem:[%s699 + $0x8] sm:$0xff] %v702
                  %v704 = vld [vmem:[%s698 + $0x10] sm:$0xff]
                  %705 = vst [vmem:[%s699 + $0x10] sm:$0xff] %v704
                  %v706 = vld [vmem:[%s698 + $0x18] sm:$0xff]
                  %707 = vst [vmem:[%s699 + $0x18] sm:$0xff] %v706
                  %v708 = vld [vmem:[%s698 + $0x20] sm:$0xff]
                  %709 = vst [vmem:[%s699 + $0x20] sm:$0xff] %v708
                  %v710 = vld [vmem:[%s698 + $0x28] sm:$0xff]
                  %711 = vst [vmem:[%s699 + $0x28] sm:$0xff] %v710
                  %v712 = vld [vmem:[%s698 + $0x30] sm:$0xff]
                  %713 = vst [vmem:[%s699 + $0x30] sm:$0xff] %v712
                  %v714 = vld [vmem:[%s698 + $0x38] sm:$0xff]
                  %715 = vst [vmem:[%s699 + $0x38] sm:$0xff] %v714
                  %v716 = vld [vmem:[%s698 + $0x40] sm:$0xff]
                  %717 = vst [vmem:[%s699 + $0x40] sm:$0xff] %v716
                  %v718 = vld [vmem:[%s698 + $0x48] sm:$0xff]
                  %719 = vst [vmem:[%s699 + $0x48] sm:$0xff] %v718
                  %v720 = vld [vmem:[%s698 + $0x50] sm:$0xff]
                  %721 = vst [vmem:[%s699 + $0x50] sm:$0xff] %v720
                  %v722 = vld [vmem:[%s698 + $0x58] sm:$0xff]
                  %723 = vst [vmem:[%s699 + $0x58] sm:$0xff] %v722
                  %v724 = vld [vmem:[%s698 + $0x60] sm:$0xff]
                  %725 = vst [vmem:[%s699 + $0x60] sm:$0xff] %v724
                  %v726 = vld [vmem:[%s698 + $0x68] sm:$0xff]
                  %727 = vst [vmem:[%s699 + $0x68] sm:$0xff] %v726
                  %v728 = vld [vmem:[%s698 + $0x70] sm:$0xff]
                  %729 = vst [vmem:[%s699 + $0x70] sm:$0xff] %v728
                  %v730 = vld [vmem:[%s698 + $0x78] sm:$0xff]
                  %731 = vst [vmem:[%s699 + $0x78] sm:$0xff] %v730
                  %v732 = vld [vmem:[%s698 + $0x100] sm:$0xff]
                  %733 = vst [vmem:[%s699 + $0x80] sm:$0xff] %v732
                  %v734 = vld [vmem:[%s698 + $0x108] sm:$0xff]
                  %735 = vst [vmem:[%s699 + $0x88] sm:$0xff] %v734
                  %v736 = vld [vmem:[%s698 + $0x110] sm:$0xff]
                  %737 = vst [vmem:[%s699 + $0x90] sm:$0xff] %v736
                  %v738 = vld [vmem:[%s698 + $0x118] sm:$0xff]
                  %739 = vst [vmem:[%s699 + $0x98] sm:$0xff] %v738
                  %v740 = vld [vmem:[%s698 + $0x120] sm:$0xff]
                  %741 = vst [vmem:[%s699 + $0xa0] sm:$0xff] %v740
                  %v742 = vld [vmem:[%s698 + $0x128] sm:$0xff]
                  %743 = vst [vmem:[%s699 + $0xa8] sm:$0xff] %v742
                  %v744 = vld [vmem:[%s698 + $0x130] sm:$0xff]
                  %745 = vst [vmem:[%s699 + $0xb0] sm:$0xff] %v744
                  %v746 = vld [vmem:[%s698 + $0x138] sm:$0xff]
                  %747 = vst [vmem:[%s699 + $0xb8] sm:$0xff] %v746
                  %v748 = vld [vmem:[%s698 + $0x140] sm:$0xff]
                  %749 = vst [vmem:[%s699 + $0xc0] sm:$0xff] %v748
                  %v750 = vld [vmem:[%s698 + $0x148] sm:$0xff]
                  %751 = vst [vmem:[%s699 + $0xc8] sm:$0xff] %v750
                  %v752 = vld [vmem:[%s698 + $0x150] sm:$0xff]
                  %753 = vst [vmem:[%s699 + $0xd0] sm:$0xff] %v752
                  %v754 = vld [vmem:[%s698 + $0x158] sm:$0xff]
                  %755 = vst [vmem:[%s699 + $0xd8] sm:$0xff] %v754
                  %v756 = vld [vmem:[%s698 + $0x160] sm:$0xff]
                  %757 = vst [vmem:[%s699 + $0xe0] sm:$0xff] %v756
                  %v758 = vld [vmem:[%s698 + $0x168] sm:$0xff]
                  %759 = vst [vmem:[%s699 + $0xe8] sm:$0xff] %v758
                  %v760 = vld [vmem:[%s698 + $0x170] sm:$0xff]
                  %761 = vst [vmem:[%s699 + $0xf0] sm:$0xff] %v760
                  %v762 = vld [vmem:[%s698 + $0x178] sm:$0xff]
                  %763 = vst [vmem:[%s699 + $0xf8] sm:$0xff] %v762
                  %v764 = vld [vmem:[%s698 + $0x200] sm:$0xff]
                  %765 = vst [vmem:[%s699 + $0x100] sm:$0xff] %v764
                  %v766 = vld [vmem:[%s698 + $0x208] sm:$0xff]
                  %767 = vst [vmem:[%s699 + $0x108] sm:$0xff] %v766
                  %v768 = vld [vmem:[%s698 + $0x210] sm:$0xff]
                  %769 = vst [vmem:[%s699 + $0x110] sm:$0xff] %v768
                  %v770 = vld [vmem:[%s698 + $0x218] sm:$0xff]
                  %771 = vst [vmem:[%s699 + $0x118] sm:$0xff] %v770
                  %v772 = vld [vmem:[%s698 + $0x220] sm:$0xff]
                  %773 = vst [vmem:[%s699 + $0x120] sm:$0xff] %v772
                  %v774 = vld [vmem:[%s698 + $0x228] sm:$0xff]
                  %775 = vst [vmem:[%s699 + $0x128] sm:$0xff] %v774
                  %v776 = vld [vmem:[%s698 + $0x230] sm:$0xff]
                  %777 = vst [vmem:[%s699 + $0x130] sm:$0xff] %v776
                  %v778 = vld [vmem:[%s698 + $0x238] sm:$0xff]
                  %779 = vst [vmem:[%s699 + $0x138] sm:$0xff] %v778
                  %v780 = vld [vmem:[%s698 + $0x240] sm:$0xff]
                  %781 = vst [vmem:[%s699 + $0x140] sm:$0xff] %v780
                  %v782 = vld [vmem:[%s698 + $0x248] sm:$0xff]
                  %783 = vst [vmem:[%s699 + $0x148] sm:$0xff] %v782
                  %v784 = vld [vmem:[%s698 + $0x250] sm:$0xff]
                  %785 = vst [vmem:[%s699 + $0x150] sm:$0xff] %v784
                  %v786 = vld [vmem:[%s698 + $0x258] sm:$0xff]
                  %787 = vst [vmem:[%s699 + $0x158] sm:$0xff] %v786
                  %v788 = vld [vmem:[%s698 + $0x260] sm:$0xff]
                  %789 = vst [vmem:[%s699 + $0x160] sm:$0xff] %v788
                  %v790 = vld [vmem:[%s698 + $0x268] sm:$0xff]
                  %791 = vst [vmem:[%s699 + $0x168] sm:$0xff] %v790
                  %v792 = vld [vmem:[%s698 + $0x270] sm:$0xff]
                  %793 = vst [vmem:[%s699 + $0x170] sm:$0xff] %v792
                  %v794 = vld [vmem:[%s698 + $0x278] sm:$0xff]
                  %795 = vst [vmem:[%s699 + $0x178] sm:$0xff] %v794
                  %v796 = vld [vmem:[%s698 + $0x300] sm:$0xff]
                  %797 = vst [vmem:[%s699 + $0x180] sm:$0xff] %v796
                  %v798 = vld [vmem:[%s698 + $0x308] sm:$0xff]
                  %799 = vst [vmem:[%s699 + $0x188] sm:$0xff] %v798
                  %v800 = vld [vmem:[%s698 + $0x310] sm:$0xff]
                  %801 = vst [vmem:[%s699 + $0x190] sm:$0xff] %v800
                  %v802 = vld [vmem:[%s698 + $0x318] sm:$0xff]
                  %803 = vst [vmem:[%s699 + $0x198] sm:$0xff] %v802
                  %v804 = vld [vmem:[%s698 + $0x320] sm:$0xff]
                  %805 = vst [vmem:[%s699 + $0x1a0] sm:$0xff] %v804
                  %v806 = vld [vmem:[%s698 + $0x328] sm:$0xff]
                  %807 = vst [vmem:[%s699 + $0x1a8] sm:$0xff] %v806
                  %v808 = vld [vmem:[%s698 + $0x330] sm:$0xff]
                  %809 = vst [vmem:[%s699 + $0x1b0] sm:$0xff] %v808
                  %v810 = vld [vmem:[%s698 + $0x338] sm:$0xff]
                  %811 = vst [vmem:[%s699 + $0x1b8] sm:$0xff] %v810
                  %v812 = vld [vmem:[%s698 + $0x340] sm:$0xff]
                  %813 = vst [vmem:[%s699 + $0x1c0] sm:$0xff] %v812
                  %v814 = vld [vmem:[%s698 + $0x348] sm:$0xff]
                  %815 = vst [vmem:[%s699 + $0x1c8] sm:$0xff] %v814
                  %v816 = vld [vmem:[%s698 + $0x350] sm:$0xff]
                  %817 = vst [vmem:[%s699 + $0x1d0] sm:$0xff] %v816
                  %v818 = vld [vmem:[%s698 + $0x358] sm:$0xff]
                  %819 = vst [vmem:[%s699 + $0x1d8] sm:$0xff] %v818
                  %v820 = vld [vmem:[%s698 + $0x360] sm:$0xff]
                  %821 = vst [vmem:[%s699 + $0x1e0] sm:$0xff] %v820
                  %v822 = vld [vmem:[%s698 + $0x368] sm:$0xff]
                  %823 = vst [vmem:[%s699 + $0x1e8] sm:$0xff] %v822
                  %v824 = vld [vmem:[%s698 + $0x370] sm:$0xff]
                  %825 = vst [vmem:[%s699 + $0x1f0] sm:$0xff] %v824
                  %v826 = vld [vmem:[%s698 + $0x378] sm:$0xff]
                  %827 = vst [vmem:[%s699 + $0x1f8] sm:$0xff] %v826
                  %v828 = vld [vmem:[%s698 + $0x400] sm:$0xff]
                  %829 = vst [vmem:[%s699 + $0x200] sm:$0xff] %v828
                  %v830 = vld [vmem:[%s698 + $0x408] sm:$0xff]
                  %831 = vst [vmem:[%s699 + $0x208] sm:$0xff] %v830
                  %v832 = vld [vmem:[%s698 + $0x410] sm:$0xff]
                  %833 = vst [vmem:[%s699 + $0x210] sm:$0xff] %v832
                  %v834 = vld [vmem:[%s698 + $0x418] sm:$0xff]
                  %835 = vst [vmem:[%s699 + $0x218] sm:$0xff] %v834
                  %v836 = vld [vmem:[%s698 + $0x420] sm:$0xff]
                  %837 = vst [vmem:[%s699 + $0x220] sm:$0xff] %v836
                  %v838 = vld [vmem:[%s698 + $0x428] sm:$0xff]
                  %839 = vst [vmem:[%s699 + $0x228] sm:$0xff] %v838
                  %v840 = vld [vmem:[%s698 + $0x430] sm:$0xff]
                  %841 = vst [vmem:[%s699 + $0x230] sm:$0xff] %v840
                  %v842 = vld [vmem:[%s698 + $0x438] sm:$0xff]
                  %843 = vst [vmem:[%s699 + $0x238] sm:$0xff] %v842
                  %v844 = vld [vmem:[%s698 + $0x440] sm:$0xff]
                  %845 = vst [vmem:[%s699 + $0x240] sm:$0xff] %v844
                  %v846 = vld [vmem:[%s698 + $0x448] sm:$0xff]
                  %847 = vst [vmem:[%s699 + $0x248] sm:$0xff] %v846
                  %v848 = vld [vmem:[%s698 + $0x450] sm:$0xff]
                  %849 = vst [vmem:[%s699 + $0x250] sm:$0xff] %v848
                  %v850 = vld [vmem:[%s698 + $0x458] sm:$0xff]
                  %851 = vst [vmem:[%s699 + $0x258] sm:$0xff] %v850
                  %v852 = vld [vmem:[%s698 + $0x460] sm:$0xff]
                  %853 = vst [vmem:[%s699 + $0x260] sm:$0xff] %v852
                  %v854 = vld [vmem:[%s698 + $0x468] sm:$0xff]
                  %855 = vst [vmem:[%s699 + $0x268] sm:$0xff] %v854
                  %v856 = vld [vmem:[%s698 + $0x470] sm:$0xff]
                  %857 = vst [vmem:[%s699 + $0x270] sm:$0xff] %v856
                  %v858 = vld [vmem:[%s698 + $0x478] sm:$0xff]
                  %859 = vst [vmem:[%s699 + $0x278] sm:$0xff] %v858
                  %v860 = vld [vmem:[%s698 + $0x500] sm:$0xff]
                  %861 = vst [vmem:[%s699 + $0x280] sm:$0xff] %v860
                  %v862 = vld [vmem:[%s698 + $0x508] sm:$0xff]
                  %863 = vst [vmem:[%s699 + $0x288] sm:$0xff] %v862
                  %v864 = vld [vmem:[%s698 + $0x510] sm:$0xff]
                  %865 = vst [vmem:[%s699 + $0x290] sm:$0xff] %v864
                  %v866 = vld [vmem:[%s698 + $0x518] sm:$0xff]
                  %867 = vst [vmem:[%s699 + $0x298] sm:$0xff] %v866
                  %v868 = vld [vmem:[%s698 + $0x520] sm:$0xff]
                  %869 = vst [vmem:[%s699 + $0x2a0] sm:$0xff] %v868
                  %v870 = vld [vmem:[%s698 + $0x528] sm:$0xff]
                  %871 = vst [vmem:[%s699 + $0x2a8] sm:$0xff] %v870
                  %v872 = vld [vmem:[%s698 + $0x530] sm:$0xff]
                  %873 = vst [vmem:[%s699 + $0x2b0] sm:$0xff] %v872
                  %v874 = vld [vmem:[%s698 + $0x538] sm:$0xff]
                  %875 = vst [vmem:[%s699 + $0x2b8] sm:$0xff] %v874
                  %v876 = vld [vmem:[%s698 + $0x540] sm:$0xff]
                  %877 = vst [vmem:[%s699 + $0x2c0] sm:$0xff] %v876
                  %v878 = vld [vmem:[%s698 + $0x548] sm:$0xff]
                  %879 = vst [vmem:[%s699 + $0x2c8] sm:$0xff] %v878
                  %v880 = vld [vmem:[%s698 + $0x550] sm:$0xff]
                  %881 = vst [vmem:[%s699 + $0x2d0] sm:$0xff] %v880
                  %v882 = vld [vmem:[%s698 + $0x558] sm:$0xff]
                  %883 = vst [vmem:[%s699 + $0x2d8] sm:$0xff] %v882
                  %v884 = vld [vmem:[%s698 + $0x560] sm:$0xff]
                  %885 = vst [vmem:[%s699 + $0x2e0] sm:$0xff] %v884
                  %v886 = vld [vmem:[%s698 + $0x568] sm:$0xff]
                  %887 = vst [vmem:[%s699 + $0x2e8] sm:$0xff] %v886
                  %v888 = vld [vmem:[%s698 + $0x570] sm:$0xff]
                  %889 = vst [vmem:[%s699 + $0x2f0] sm:$0xff] %v888
                  %v890 = vld [vmem:[%s698 + $0x578] sm:$0xff]
                  %891 = vst [vmem:[%s699 + $0x2f8] sm:$0xff] %v890
                  %v892 = vld [vmem:[%s698 + $0x600] sm:$0xff]
                  %893 = vst [vmem:[%s699 + $0x300] sm:$0xff] %v892
                  %v894 = vld [vmem:[%s698 + $0x608] sm:$0xff]
                  %895 = vst [vmem:[%s699 + $0x308] sm:$0xff] %v894
                  %v896 = vld [vmem:[%s698 + $0x610] sm:$0xff]
                  %897 = vst [vmem:[%s699 + $0x310] sm:$0xff] %v896
                  %v898 = vld [vmem:[%s698 + $0x618] sm:$0xff]
                  %899 = vst [vmem:[%s699 + $0x318] sm:$0xff] %v898
                  %v900 = vld [vmem:[%s698 + $0x620] sm:$0xff]
                  %901 = vst [vmem:[%s699 + $0x320] sm:$0xff] %v900
                  %v902 = vld [vmem:[%s698 + $0x628] sm:$0xff]
                  %903 = vst [vmem:[%s699 + $0x328] sm:$0xff] %v902
                  %v904 = vld [vmem:[%s698 + $0x630] sm:$0xff]
                  %905 = vst [vmem:[%s699 + $0x330] sm:$0xff] %v904
                  %v906 = vld [vmem:[%s698 + $0x638] sm:$0xff]
                  %907 = vst [vmem:[%s699 + $0x338] sm:$0xff] %v906
                  %v908 = vld [vmem:[%s698 + $0x640] sm:$0xff]
                  %909 = vst [vmem:[%s699 + $0x340] sm:$0xff] %v908
                  %v910 = vld [vmem:[%s698 + $0x648] sm:$0xff]
                  %911 = vst [vmem:[%s699 + $0x348] sm:$0xff] %v910
                  %v912 = vld [vmem:[%s698 + $0x650] sm:$0xff]
                  %913 = vst [vmem:[%s699 + $0x350] sm:$0xff] %v912
                  %v914 = vld [vmem:[%s698 + $0x658] sm:$0xff]
                  %915 = vst [vmem:[%s699 + $0x358] sm:$0xff] %v914
                  %v916 = vld [vmem:[%s698 + $0x660] sm:$0xff]
                  %917 = vst [vmem:[%s699 + $0x360] sm:$0xff] %v916
                  %v918 = vld [vmem:[%s698 + $0x668] sm:$0xff]
                  %919 = vst [vmem:[%s699 + $0x368] sm:$0xff] %v918
                  %v920 = vld [vmem:[%s698 + $0x670] sm:$0xff]
                  %921 = vst [vmem:[%s699 + $0x370] sm:$0xff] %v920
                  %v922 = vld [vmem:[%s698 + $0x678] sm:$0xff]
                  %923 = vst [vmem:[%s699 + $0x378] sm:$0xff] %v922
                  %v924 = vld [vmem:[%s698 + $0x700] sm:$0xff]
                  %925 = vst [vmem:[%s699 + $0x380] sm:$0xff] %v924
                  %v926 = vld [vmem:[%s698 + $0x708] sm:$0xff]
                  %927 = vst [vmem:[%s699 + $0x388] sm:$0xff] %v926
                  %v928 = vld [vmem:[%s698 + $0x710] sm:$0xff]
                  %929 = vst [vmem:[%s699 + $0x390] sm:$0xff] %v928
                  %v930 = vld [vmem:[%s698 + $0x718] sm:$0xff]
                  %931 = vst [vmem:[%s699 + $0x398] sm:$0xff] %v930
                  %v932 = vld [vmem:[%s698 + $0x720] sm:$0xff]
                  %933 = vst [vmem:[%s699 + $0x3a0] sm:$0xff] %v932
                  %v934 = vld [vmem:[%s698 + $0x728] sm:$0xff]
                  %935 = vst [vmem:[%s699 + $0x3a8] sm:$0xff] %v934
                  %v936 = vld [vmem:[%s698 + $0x730] sm:$0xff]
                  %937 = vst [vmem:[%s699 + $0x3b0] sm:$0xff] %v936
                  %v938 = vld [vmem:[%s698 + $0x738] sm:$0xff]
                  %939 = vst [vmem:[%s699 + $0x3b8] sm:$0xff] %v938
                  %v940 = vld [vmem:[%s698 + $0x740] sm:$0xff]
                  %941 = vst [vmem:[%s699 + $0x3c0] sm:$0xff] %v940
                  %v942 = vld [vmem:[%s698 + $0x748] sm:$0xff]
                  %943 = vst [vmem:[%s699 + $0x3c8] sm:$0xff] %v942
                  %v944 = vld [vmem:[%s698 + $0x750] sm:$0xff]
                  %945 = vst [vmem:[%s699 + $0x3d0] sm:$0xff] %v944
                  %v946 = vld [vmem:[%s698 + $0x758] sm:$0xff]
                  %947 = vst [vmem:[%s699 + $0x3d8] sm:$0xff] %v946
                  %v948 = vld [vmem:[%s698 + $0x760] sm:$0xff]
                  %949 = vst [vmem:[%s699 + $0x3e0] sm:$0xff] %v948
                  %v950 = vld [vmem:[%s698 + $0x768] sm:$0xff]
                  %951 = vst [vmem:[%s699 + $0x3e8] sm:$0xff] %v950
                  %v952 = vld [vmem:[%s698 + $0x770] sm:$0xff]
                  %953 = vst [vmem:[%s699 + $0x3f0] sm:$0xff] %v952
                  %v954 = vld [vmem:[%s698 + $0x778] sm:$0xff]
                  %955 = vst [vmem:[%s699 + $0x3f8] sm:$0xff] %v954
                  %v956 = vld [vmem:[%s698 + $0x800] sm:$0xff]
                  %957 = vst [vmem:[%s699 + $0x400] sm:$0xff] %v956
                  %v958 = vld [vmem:[%s698 + $0x808] sm:$0xff]
                  %959 = vst [vmem:[%s699 + $0x408] sm:$0xff] %v958
                  %v960 = vld [vmem:[%s698 + $0x810] sm:$0xff]
                  %961 = vst [vmem:[%s699 + $0x410] sm:$0xff] %v960
                  %v962 = vld [vmem:[%s698 + $0x818] sm:$0xff]
                  %963 = vst [vmem:[%s699 + $0x418] sm:$0xff] %v962
                  %v964 = vld [vmem:[%s698 + $0x820] sm:$0xff]
                  %965 = vst [vmem:[%s699 + $0x420] sm:$0xff] %v964
                  %v966 = vld [vmem:[%s698 + $0x828] sm:$0xff]
                  %967 = vst [vmem:[%s699 + $0x428] sm:$0xff] %v966
                  %v968 = vld [vmem:[%s698 + $0x830] sm:$0xff]
                  %969 = vst [vmem:[%s699 + $0x430] sm:$0xff] %v968
                  %v970 = vld [vmem:[%s698 + $0x838] sm:$0xff]
                  %971 = vst [vmem:[%s699 + $0x438] sm:$0xff] %v970
                  %v972 = vld [vmem:[%s698 + $0x840] sm:$0xff]
                  %973 = vst [vmem:[%s699 + $0x440] sm:$0xff] %v972
                  %v974 = vld [vmem:[%s698 + $0x848] sm:$0xff]
                  %975 = vst [vmem:[%s699 + $0x448] sm:$0xff] %v974
                  %v976 = vld [vmem:[%s698 + $0x850] sm:$0xff]
                  %977 = vst [vmem:[%s699 + $0x450] sm:$0xff] %v976
                  %v978 = vld [vmem:[%s698 + $0x858] sm:$0xff]
                  %979 = vst [vmem:[%s699 + $0x458] sm:$0xff] %v978
                  %v980 = vld [vmem:[%s698 + $0x860] sm:$0xff]
                  %981 = vst [vmem:[%s699 + $0x460] sm:$0xff] %v980
                  %v982 = vld [vmem:[%s698 + $0x868] sm:$0xff]
                  %983 = vst [vmem:[%s699 + $0x468] sm:$0xff] %v982
                  %v984 = vld [vmem:[%s698 + $0x870] sm:$0xff]
                  %985 = vst [vmem:[%s699 + $0x470] sm:$0xff] %v984
                  %v986 = vld [vmem:[%s698 + $0x878] sm:$0xff]
                  %987 = vst [vmem:[%s699 + $0x478] sm:$0xff] %v986
                  %v988 = vld [vmem:[%s698 + $0x900] sm:$0xff]
                  %989 = vst [vmem:[%s699 + $0x480] sm:$0xff] %v988
                  %v990 = vld [vmem:[%s698 + $0x908] sm:$0xff]
                  %991 = vst [vmem:[%s699 + $0x488] sm:$0xff] %v990
                  %v992 = vld [vmem:[%s698 + $0x910] sm:$0xff]
                  %993 = vst [vmem:[%s699 + $0x490] sm:$0xff] %v992
                  %v994 = vld [vmem:[%s698 + $0x918] sm:$0xff]
                  %995 = vst [vmem:[%s699 + $0x498] sm:$0xff] %v994
                  %v996 = vld [vmem:[%s698 + $0x920] sm:$0xff]
                  %997 = vst [vmem:[%s699 + $0x4a0] sm:$0xff] %v996
                  %v998 = vld [vmem:[%s698 + $0x928] sm:$0xff]
                  %999 = vst [vmem:[%s699 + $0x4a8] sm:$0xff] %v998
                  %v1000 = vld [vmem:[%s698 + $0x930] sm:$0xff]
                  %1001 = vst [vmem:[%s699 + $0x4b0] sm:$0xff] %v1000
                  %v1002 = vld [vmem:[%s698 + $0x938] sm:$0xff]
                  %1003 = vst [vmem:[%s699 + $0x4b8] sm:$0xff] %v1002
                  %v1004 = vld [vmem:[%s698 + $0x940] sm:$0xff]
                  %1005 = vst [vmem:[%s699 + $0x4c0] sm:$0xff] %v1004
                  %v1006 = vld [vmem:[%s698 + $0x948] sm:$0xff]
                  %1007 = vst [vmem:[%s699 + $0x4c8] sm:$0xff] %v1006
                  %v1008 = vld [vmem:[%s698 + $0x950] sm:$0xff]
                  %1009 = vst [vmem:[%s699 + $0x4d0] sm:$0xff] %v1008
                  %v1010 = vld [vmem:[%s698 + $0x958] sm:$0xff]
                  %1011 = vst [vmem:[%s699 + $0x4d8] sm:$0xff] %v1010
                  %v1012 = vld [vmem:[%s698 + $0x960] sm:$0xff]
                  %1013 = vst [vmem:[%s699 + $0x4e0] sm:$0xff] %v1012
                  %v1014 = vld [vmem:[%s698 + $0x968] sm:$0xff]
                  %1015 = vst [vmem:[%s699 + $0x4e8] sm:$0xff] %v1014
                  %v1016 = vld [vmem:[%s698 + $0x970] sm:$0xff]
                  %1017 = vst [vmem:[%s699 + $0x4f0] sm:$0xff] %v1016
                  %v1018 = vld [vmem:[%s698 + $0x978] sm:$0xff]
                  %1019 = vst [vmem:[%s699 + $0x4f8] sm:$0xff] %v1018
                  %v1020 = vld [vmem:[%s698 + $0xa00] sm:$0xff]
                  %1021 = vst [vmem:[%s699 + $0x500] sm:$0xff] %v1020
                  %v1022 = vld [vmem:[%s698 + $0xa08] sm:$0xff]
                  %1023 = vst [vmem:[%s699 + $0x508] sm:$0xff] %v1022
                  %v1024 = vld [vmem:[%s698 + $0xa10] sm:$0xff]
                  %1025 = vst [vmem:[%s699 + $0x510] sm:$0xff] %v1024
                  %v1026 = vld [vmem:[%s698 + $0xa18] sm:$0xff]
                  %1027 = vst [vmem:[%s699 + $0x518] sm:$0xff] %v1026
                  %v1028 = vld [vmem:[%s698 + $0xa20] sm:$0xff]
                  %1029 = vst [vmem:[%s699 + $0x520] sm:$0xff] %v1028
                  %v1030 = vld [vmem:[%s698 + $0xa28] sm:$0xff]
                  %1031 = vst [vmem:[%s699 + $0x528] sm:$0xff] %v1030
                  %v1032 = vld [vmem:[%s698 + $0xa30] sm:$0xff]
                  %1033 = vst [vmem:[%s699 + $0x530] sm:$0xff] %v1032
                  %v1034 = vld [vmem:[%s698 + $0xa38] sm:$0xff]
                  %1035 = vst [vmem:[%s699 + $0x538] sm:$0xff] %v1034
                  %v1036 = vld [vmem:[%s698 + $0xa40] sm:$0xff]
                  %1037 = vst [vmem:[%s699 + $0x540] sm:$0xff] %v1036
                  %v1038 = vld [vmem:[%s698 + $0xa48] sm:$0xff]
                  %1039 = vst [vmem:[%s699 + $0x548] sm:$0xff] %v1038
                  %v1040 = vld [vmem:[%s698 + $0xa50] sm:$0xff]
                  %1041 = vst [vmem:[%s699 + $0x550] sm:$0xff] %v1040
                  %v1042 = vld [vmem:[%s698 + $0xa58] sm:$0xff]
                  %1043 = vst [vmem:[%s699 + $0x558] sm:$0xff] %v1042
                  %v1044 = vld [vmem:[%s698 + $0xa60] sm:$0xff]
                  %1045 = vst [vmem:[%s699 + $0x560] sm:$0xff] %v1044
                  %v1046 = vld [vmem:[%s698 + $0xa68] sm:$0xff]
                  %1047 = vst [vmem:[%s699 + $0x568] sm:$0xff] %v1046
                  %v1048 = vld [vmem:[%s698 + $0xa70] sm:$0xff]
                  %1049 = vst [vmem:[%s699 + $0x570] sm:$0xff] %v1048
                  %v1050 = vld [vmem:[%s698 + $0xa78] sm:$0xff]
                  %1051 = vst [vmem:[%s699 + $0x578] sm:$0xff] %v1050
                  %v1052 = vld [vmem:[%s698 + $0xb00] sm:$0xff]
                  %1053 = vst [vmem:[%s699 + $0x580] sm:$0xff] %v1052
                  %v1054 = vld [vmem:[%s698 + $0xb08] sm:$0xff]
                  %1055 = vst [vmem:[%s699 + $0x588] sm:$0xff] %v1054
                  %v1056 = vld [vmem:[%s698 + $0xb10] sm:$0xff]
                  %1057 = vst [vmem:[%s699 + $0x590] sm:$0xff] %v1056
                  %v1058 = vld [vmem:[%s698 + $0xb18] sm:$0xff]
                  %1059 = vst [vmem:[%s699 + $0x598] sm:$0xff] %v1058
                  %v1060 = vld [vmem:[%s698 + $0xb20] sm:$0xff]
                  %1061 = vst [vmem:[%s699 + $0x5a0] sm:$0xff] %v1060
                  %v1062 = vld [vmem:[%s698 + $0xb28] sm:$0xff]
                  %1063 = vst [vmem:[%s699 + $0x5a8] sm:$0xff] %v1062
                  %v1064 = vld [vmem:[%s698 + $0xb30] sm:$0xff]
                  %1065 = vst [vmem:[%s699 + $0x5b0] sm:$0xff] %v1064
                  %v1066 = vld [vmem:[%s698 + $0xb38] sm:$0xff]
                  %1067 = vst [vmem:[%s699 + $0x5b8] sm:$0xff] %v1066
                  %v1068 = vld [vmem:[%s698 + $0xb40] sm:$0xff]
                  %1069 = vst [vmem:[%s699 + $0x5c0] sm:$0xff] %v1068
                  %v1070 = vld [vmem:[%s698 + $0xb48] sm:$0xff]
                  %1071 = vst [vmem:[%s699 + $0x5c8] sm:$0xff] %v1070
                  %v1072 = vld [vmem:[%s698 + $0xb50] sm:$0xff]
                  %1073 = vst [vmem:[%s699 + $0x5d0] sm:$0xff] %v1072
                  %v1074 = vld [vmem:[%s698 + $0xb58] sm:$0xff]
                  %1075 = vst [vmem:[%s699 + $0x5d8] sm:$0xff] %v1074
                  %v1076 = vld [vmem:[%s698 + $0xb60] sm:$0xff]
                  %1077 = vst [vmem:[%s699 + $0x5e0] sm:$0xff] %v1076
                  %v1078 = vld [vmem:[%s698 + $0xb68] sm:$0xff]
                  %1079 = vst [vmem:[%s699 + $0x5e8] sm:$0xff] %v1078
                  %v1080 = vld [vmem:[%s698 + $0xb70] sm:$0xff]
                  %1081 = vst [vmem:[%s699 + $0x5f0] sm:$0xff] %v1080
                  %v1082 = vld [vmem:[%s698 + $0xb78] sm:$0xff]
                  %1083 = vst [vmem:[%s699 + $0x5f8] sm:$0xff] %v1082
                  %v1084 = vld [vmem:[%s698 + $0xc00] sm:$0xff]
                  %1085 = vst [vmem:[%s699 + $0x600] sm:$0xff] %v1084
                  %v1086 = vld [vmem:[%s698 + $0xc08] sm:$0xff]
                  %1087 = vst [vmem:[%s699 + $0x608] sm:$0xff] %v1086
                  %v1088 = vld [vmem:[%s698 + $0xc10] sm:$0xff]
                  %1089 = vst [vmem:[%s699 + $0x610] sm:$0xff] %v1088
                  %v1090 = vld [vmem:[%s698 + $0xc18] sm:$0xff]
                  %1091 = vst [vmem:[%s699 + $0x618] sm:$0xff] %v1090
                  %v1092 = vld [vmem:[%s698 + $0xc20] sm:$0xff]
                  %1093 = vst [vmem:[%s699 + $0x620] sm:$0xff] %v1092
                  %v1094 = vld [vmem:[%s698 + $0xc28] sm:$0xff]
                  %1095 = vst [vmem:[%s699 + $0x628] sm:$0xff] %v1094
                  %v1096 = vld [vmem:[%s698 + $0xc30] sm:$0xff]
                  %1097 = vst [vmem:[%s699 + $0x630] sm:$0xff] %v1096
                  %v1098 = vld [vmem:[%s698 + $0xc38] sm:$0xff]
                  %1099 = vst [vmem:[%s699 + $0x638] sm:$0xff] %v1098
                  %v1100 = vld [vmem:[%s698 + $0xc40] sm:$0xff]
                  %1101 = vst [vmem:[%s699 + $0x640] sm:$0xff] %v1100
                  %v1102 = vld [vmem:[%s698 + $0xc48] sm:$0xff]
                  %1103 = vst [vmem:[%s699 + $0x648] sm:$0xff] %v1102
                  %v1104 = vld [vmem:[%s698 + $0xc50] sm:$0xff]
                  %1105 = vst [vmem:[%s699 + $0x650] sm:$0xff] %v1104
                  %v1106 = vld [vmem:[%s698 + $0xc58] sm:$0xff]
                  %1107 = vst [vmem:[%s699 + $0x658] sm:$0xff] %v1106
                  %v1108 = vld [vmem:[%s698 + $0xc60] sm:$0xff]
                  %1109 = vst [vmem:[%s699 + $0x660] sm:$0xff] %v1108
                  %v1110 = vld [vmem:[%s698 + $0xc68] sm:$0xff]
                  %1111 = vst [vmem:[%s699 + $0x668] sm:$0xff] %v1110
                  %v1112 = vld [vmem:[%s698 + $0xc70] sm:$0xff]
                  %1113 = vst [vmem:[%s699 + $0x670] sm:$0xff] %v1112
                  %v1114 = vld [vmem:[%s698 + $0xc78] sm:$0xff]
                  %1115 = vst [vmem:[%s699 + $0x678] sm:$0xff] %v1114
                  %v1116 = vld [vmem:[%s698 + $0xd00] sm:$0xff]
                  %1117 = vst [vmem:[%s699 + $0x680] sm:$0xff] %v1116
                  %v1118 = vld [vmem:[%s698 + $0xd08] sm:$0xff]
                  %1119 = vst [vmem:[%s699 + $0x688] sm:$0xff] %v1118
                  %v1120 = vld [vmem:[%s698 + $0xd10] sm:$0xff]
                  %1121 = vst [vmem:[%s699 + $0x690] sm:$0xff] %v1120
                  %v1122 = vld [vmem:[%s698 + $0xd18] sm:$0xff]
                  %1123 = vst [vmem:[%s699 + $0x698] sm:$0xff] %v1122
                  %v1124 = vld [vmem:[%s698 + $0xd20] sm:$0xff]
                  %1125 = vst [vmem:[%s699 + $0x6a0] sm:$0xff] %v1124
                  %v1126 = vld [vmem:[%s698 + $0xd28] sm:$0xff]
                  %1127 = vst [vmem:[%s699 + $0x6a8] sm:$0xff] %v1126
                  %v1128 = vld [vmem:[%s698 + $0xd30] sm:$0xff]
                  %1129 = vst [vmem:[%s699 + $0x6b0] sm:$0xff] %v1128
                  %v1130 = vld [vmem:[%s698 + $0xd38] sm:$0xff]
                  %1131 = vst [vmem:[%s699 + $0x6b8] sm:$0xff] %v1130
                  %v1132 = vld [vmem:[%s698 + $0xd40] sm:$0xff]
                  %1133 = vst [vmem:[%s699 + $0x6c0] sm:$0xff] %v1132
                  %v1134 = vld [vmem:[%s698 + $0xd48] sm:$0xff]
                  %1135 = vst [vmem:[%s699 + $0x6c8] sm:$0xff] %v1134
                  %v1136 = vld [vmem:[%s698 + $0xd50] sm:$0xff]
                  %1137 = vst [vmem:[%s699 + $0x6d0] sm:$0xff] %v1136
                  %v1138 = vld [vmem:[%s698 + $0xd58] sm:$0xff]
                  %1139 = vst [vmem:[%s699 + $0x6d8] sm:$0xff] %v1138
                  %v1140 = vld [vmem:[%s698 + $0xd60] sm:$0xff]
                  %1141 = vst [vmem:[%s699 + $0x6e0] sm:$0xff] %v1140
                  %v1142 = vld [vmem:[%s698 + $0xd68] sm:$0xff]
                  %1143 = vst [vmem:[%s699 + $0x6e8] sm:$0xff] %v1142
                  %v1144 = vld [vmem:[%s698 + $0xd70] sm:$0xff]
                  %1145 = vst [vmem:[%s699 + $0x6f0] sm:$0xff] %v1144
                  %v1146 = vld [vmem:[%s698 + $0xd78] sm:$0xff]
                  %1147 = vst [vmem:[%s699 + $0x6f8] sm:$0xff] %v1146
                  %v1148 = vld [vmem:[%s698 + $0xe00] sm:$0xff]
                  %1149 = vst [vmem:[%s699 + $0x700] sm:$0xff] %v1148
                  %v1150 = vld [vmem:[%s698 + $0xe08] sm:$0xff]
                  %1151 = vst [vmem:[%s699 + $0x708] sm:$0xff] %v1150
                  %v1152 = vld [vmem:[%s698 + $0xe10] sm:$0xff]
                  %1153 = vst [vmem:[%s699 + $0x710] sm:$0xff] %v1152
                  %v1154 = vld [vmem:[%s698 + $0xe18] sm:$0xff]
                  %1155 = vst [vmem:[%s699 + $0x718] sm:$0xff] %v1154
                  %v1156 = vld [vmem:[%s698 + $0xe20] sm:$0xff]
                  %1157 = vst [vmem:[%s699 + $0x720] sm:$0xff] %v1156
                  %v1158 = vld [vmem:[%s698 + $0xe28] sm:$0xff]
                  %1159 = vst [vmem:[%s699 + $0x728] sm:$0xff] %v1158
                  %v1160 = vld [vmem:[%s698 + $0xe30] sm:$0xff]
                  %1161 = vst [vmem:[%s699 + $0x730] sm:$0xff] %v1160
                  %v1162 = vld [vmem:[%s698 + $0xe38] sm:$0xff]
                  %1163 = vst [vmem:[%s699 + $0x738] sm:$0xff] %v1162
                  %v1164 = vld [vmem:[%s698 + $0xe40] sm:$0xff]
                  %1165 = vst [vmem:[%s699 + $0x740] sm:$0xff] %v1164
                  %v1166 = vld [vmem:[%s698 + $0xe48] sm:$0xff]
                  %1167 = vst [vmem:[%s699 + $0x748] sm:$0xff] %v1166
                  %v1168 = vld [vmem:[%s698 + $0xe50] sm:$0xff]
                  %1169 = vst [vmem:[%s699 + $0x750] sm:$0xff] %v1168
                  %v1170 = vld [vmem:[%s698 + $0xe58] sm:$0xff]
                  %1171 = vst [vmem:[%s699 + $0x758] sm:$0xff] %v1170
                  %v1172 = vld [vmem:[%s698 + $0xe60] sm:$0xff]
                  %1173 = vst [vmem:[%s699 + $0x760] sm:$0xff] %v1172
                  %v1174 = vld [vmem:[%s698 + $0xe68] sm:$0xff]
                  %1175 = vst [vmem:[%s699 + $0x768] sm:$0xff] %v1174
                  %v1176 = vld [vmem:[%s698 + $0xe70] sm:$0xff]
                  %1177 = vst [vmem:[%s699 + $0x770] sm:$0xff] %v1176
                  %v1178 = vld [vmem:[%s698 + $0xe78] sm:$0xff]
                  %1179 = vst [vmem:[%s699 + $0x778] sm:$0xff] %v1178
                  %v1180 = vld [vmem:[%s698 + $0xf00] sm:$0xff]
                  %1181 = vst [vmem:[%s699 + $0x780] sm:$0xff] %v1180
                  %v1182 = vld [vmem:[%s698 + $0xf08] sm:$0xff]
                  %1183 = vst [vmem:[%s699 + $0x788] sm:$0xff] %v1182
                  %v1184 = vld [vmem:[%s698 + $0xf10] sm:$0xff]
                  %1185 = vst [vmem:[%s699 + $0x790] sm:$0xff] %v1184
                  %v1186 = vld [vmem:[%s698 + $0xf18] sm:$0xff]
                  %1187 = vst [vmem:[%s699 + $0x798] sm:$0xff] %v1186
                  %v1188 = vld [vmem:[%s698 + $0xf20] sm:$0xff]
                  %1189 = vst [vmem:[%s699 + $0x7a0] sm:$0xff] %v1188
                  %v1190 = vld [vmem:[%s698 + $0xf28] sm:$0xff]
                  %1191 = vst [vmem:[%s699 + $0x7a8] sm:$0xff] %v1190
                  %v1192 = vld [vmem:[%s698 + $0xf30] sm:$0xff]
                  %1193 = vst [vmem:[%s699 + $0x7b0] sm:$0xff] %v1192
                  %v1194 = vld [vmem:[%s698 + $0xf38] sm:$0xff]
                  %1195 = vst [vmem:[%s699 + $0x7b8] sm:$0xff] %v1194
                  %v1196 = vld [vmem:[%s698 + $0xf40] sm:$0xff]
                  %1197 = vst [vmem:[%s699 + $0x7c0] sm:$0xff] %v1196
                  %v1198 = vld [vmem:[%s698 + $0xf48] sm:$0xff]
                  %1199 = vst [vmem:[%s699 + $0x7c8] sm:$0xff] %v1198
                  %v1200 = vld [vmem:[%s698 + $0xf50] sm:$0xff]
                  %1201 = vst [vmem:[%s699 + $0x7d0] sm:$0xff] %v1200
                  %v1202 = vld [vmem:[%s698 + $0xf58] sm:$0xff]
                  %1203 = vst [vmem:[%s699 + $0x7d8] sm:$0xff] %v1202
                  %v1204 = vld [vmem:[%s698 + $0xf60] sm:$0xff]
                  %1205 = vst [vmem:[%s699 + $0x7e0] sm:$0xff] %v1204
                  %v1206 = vld [vmem:[%s698 + $0xf68] sm:$0xff]
                  %1207 = vst [vmem:[%s699 + $0x7e8] sm:$0xff] %v1206
                  %v1208 = vld [vmem:[%s698 + $0xf70] sm:$0xff]
                  %1209 = vst [vmem:[%s699 + $0x7f0] sm:$0xff] %v1208
                  %v1210 = vld [vmem:[%s698 + $0xf78] sm:$0xff]
                  %1211 = vst [vmem:[%s699 + $0x7f8] sm:$0xff] %v1210
                $region56: #{clf_head_pallas.1} parent=50 // loop_footer
                  %s697 = sadd.s32 1, %s693
                $region57: #{clf_head_pallas.1} parent=50 // loop_footer_branch
                  %692 = sbr.rel target = $region53
                $region58: #{clf_head_pallas.1} parent=50 // loop_exit
                  _
              $region51: #{clf_head_pallas.1} parent=35 // pred_fallthru
                _
              // Predicated region
              $region59: #{clf_head_pallas.1} parent=35 // pred_check
                _
              $region60: #{clf_head_pallas.1} parent=35 // pred_check_branch
                %1213 = sbr.rel target = $region62
              $region61: #{clf_head_pallas.1} parent=35 // pred_region
                _
              $region62: #{clf_head_pallas.1} parent=35 // pred_fallthru
                _
            $region36: #{clf_head_pallas.1} parent=31 // pred_fallthru
              _
            // Predicated region
            $region37: #{clf_head_pallas.1} parent=31 // pred_check
              _
            $region38: #{clf_head_pallas.1} parent=31 // pred_check_branch
              %167 = sbr.rel target = $region40
            $region39: #{clf_head_pallas.1} parent=31 // pred_region
              %s169 = ssub.s32 256, 1
              loop: start=0, step=1, limit=1
              $region41: #{clf_head_pallas.1} parent=39 // loop_pre_header
                _
              $region42: #{clf_head_pallas.1} parent=39 // loop_header
                %s171 = sphi 0, %s175
                %p172 = scmp.ge.s32.totalorder %s171, 1
                %s176 = sphi %s161, %s161
                %s177 = sphi %s157, %s157
              $region43: #{clf_head_pallas.1} parent=39 // loop_header_branch
                %174 = sbr.rel (%p172) target = $region47
              $region44: #{clf_head_pallas.1} parent=39 // loop_body
                %v178 = vld [vmem:[%s176] sm:%s169]
                %179 = vst [vmem:[%s177] sm:%s169] %v178
                %v180 = vld [vmem:[%s176 + $0x8] sm:%s169]
                %181 = vst [vmem:[%s177 + $0x8] sm:%s169] %v180
                %v182 = vld [vmem:[%s176 + $0x10] sm:%s169]
                %183 = vst [vmem:[%s177 + $0x10] sm:%s169] %v182
                %v184 = vld [vmem:[%s176 + $0x18] sm:%s169]
                %185 = vst [vmem:[%s177 + $0x18] sm:%s169] %v184
                %v186 = vld [vmem:[%s176 + $0x20] sm:%s169]
                %187 = vst [vmem:[%s177 + $0x20] sm:%s169] %v186
                %v188 = vld [vmem:[%s176 + $0x28] sm:%s169]
                %189 = vst [vmem:[%s177 + $0x28] sm:%s169] %v188
                %v190 = vld [vmem:[%s176 + $0x30] sm:%s169]
                %191 = vst [vmem:[%s177 + $0x30] sm:%s169] %v190
                %v192 = vld [vmem:[%s176 + $0x38] sm:%s169]
                %193 = vst [vmem:[%s177 + $0x38] sm:%s169] %v192
                %v194 = vld [vmem:[%s176 + $0x40] sm:%s169]
                %195 = vst [vmem:[%s177 + $0x40] sm:%s169] %v194
                %v196 = vld [vmem:[%s176 + $0x48] sm:%s169]
                %197 = vst [vmem:[%s177 + $0x48] sm:%s169] %v196
                %v198 = vld [vmem:[%s176 + $0x50] sm:%s169]
                %199 = vst [vmem:[%s177 + $0x50] sm:%s169] %v198
                %v200 = vld [vmem:[%s176 + $0x58] sm:%s169]
                %201 = vst [vmem:[%s177 + $0x58] sm:%s169] %v200
                %v202 = vld [vmem:[%s176 + $0x60] sm:%s169]
                %203 = vst [vmem:[%s177 + $0x60] sm:%s169] %v202
                %v204 = vld [vmem:[%s176 + $0x68] sm:%s169]
                %205 = vst [vmem:[%s177 + $0x68] sm:%s169] %v204
                %v206 = vld [vmem:[%s176 + $0x70] sm:%s169]
                %207 = vst [vmem:[%s177 + $0x70] sm:%s169] %v206
                %v208 = vld [vmem:[%s176 + $0x78] sm:%s169]
                %209 = vst [vmem:[%s177 + $0x78] sm:%s169] %v208
                %v210 = vld [vmem:[%s176 + $0x100] sm:%s169]
                %211 = vst [vmem:[%s177 + $0x80] sm:%s169] %v210
                %v212 = vld [vmem:[%s176 + $0x108] sm:%s169]
                %213 = vst [vmem:[%s177 + $0x88] sm:%s169] %v212
                %v214 = vld [vmem:[%s176 + $0x110] sm:%s169]
                %215 = vst [vmem:[%s177 + $0x90] sm:%s169] %v214
                %v216 = vld [vmem:[%s176 + $0x118] sm:%s169]
                %217 = vst [vmem:[%s177 + $0x98] sm:%s169] %v216
                %v218 = vld [vmem:[%s176 + $0x120] sm:%s169]
                %219 = vst [vmem:[%s177 + $0xa0] sm:%s169] %v218
                %v220 = vld [vmem:[%s176 + $0x128] sm:%s169]
                %221 = vst [vmem:[%s177 + $0xa8] sm:%s169] %v220
                %v222 = vld [vmem:[%s176 + $0x130] sm:%s169]
                %223 = vst [vmem:[%s177 + $0xb0] sm:%s169] %v222
                %v224 = vld [vmem:[%s176 + $0x138] sm:%s169]
                %225 = vst [vmem:[%s177 + $0xb8] sm:%s169] %v224
                %v226 = vld [vmem:[%s176 + $0x140] sm:%s169]
                %227 = vst [vmem:[%s177 + $0xc0] sm:%s169] %v226
                %v228 = vld [vmem:[%s176 + $0x148] sm:%s169]
                %229 = vst [vmem:[%s177 + $0xc8] sm:%s169] %v228
                %v230 = vld [vmem:[%s176 + $0x150] sm:%s169]
                %231 = vst [vmem:[%s177 + $0xd0] sm:%s169] %v230
                %v232 = vld [vmem:[%s176 + $0x158] sm:%s169]
                %233 = vst [vmem:[%s177 + $0xd8] sm:%s169] %v232
                %v234 = vld [vmem:[%s176 + $0x160] sm:%s169]
                %235 = vst [vmem:[%s177 + $0xe0] sm:%s169] %v234
                %v236 = vld [vmem:[%s176 + $0x168] sm:%s169]
                %237 = vst [vmem:[%s177 + $0xe8] sm:%s169] %v236
                %v238 = vld [vmem:[%s176 + $0x170] sm:%s169]
                %239 = vst [vmem:[%s177 + $0xf0] sm:%s169] %v238
                %v240 = vld [vmem:[%s176 + $0x178] sm:%s169]
                %241 = vst [vmem:[%s177 + $0xf8] sm:%s169] %v240
                %v242 = vld [vmem:[%s176 + $0x200] sm:%s169]
                %243 = vst [vmem:[%s177 + $0x100] sm:%s169] %v242
                %v244 = vld [vmem:[%s176 + $0x208] sm:%s169]
                %245 = vst [vmem:[%s177 + $0x108] sm:%s169] %v244
                %v246 = vld [vmem:[%s176 + $0x210] sm:%s169]
                %247 = vst [vmem:[%s177 + $0x110] sm:%s169] %v246
                %v248 = vld [vmem:[%s176 + $0x218] sm:%s169]
                %249 = vst [vmem:[%s177 + $0x118] sm:%s169] %v248
                %v250 = vld [vmem:[%s176 + $0x220] sm:%s169]
                %251 = vst [vmem:[%s177 + $0x120] sm:%s169] %v250
                %v252 = vld [vmem:[%s176 + $0x228] sm:%s169]
                %253 = vst [vmem:[%s177 + $0x128] sm:%s169] %v252
                %v254 = vld [vmem:[%s176 + $0x230] sm:%s169]
                %255 = vst [vmem:[%s177 + $0x130] sm:%s169] %v254
                %v256 = vld [vmem:[%s176 + $0x238] sm:%s169]
                %257 = vst [vmem:[%s177 + $0x138] sm:%s169] %v256
                %v258 = vld [vmem:[%s176 + $0x240] sm:%s169]
                %259 = vst [vmem:[%s177 + $0x140] sm:%s169] %v258
                %v260 = vld [vmem:[%s176 + $0x248] sm:%s169]
                %261 = vst [vmem:[%s177 + $0x148] sm:%s169] %v260
                %v262 = vld [vmem:[%s176 + $0x250] sm:%s169]
                %263 = vst [vmem:[%s177 + $0x150] sm:%s169] %v262
                %v264 = vld [vmem:[%s176 + $0x258] sm:%s169]
                %265 = vst [vmem:[%s177 + $0x158] sm:%s169] %v264
                %v266 = vld [vmem:[%s176 + $0x260] sm:%s169]
                %267 = vst [vmem:[%s177 + $0x160] sm:%s169] %v266
                %v268 = vld [vmem:[%s176 + $0x268] sm:%s169]
                %269 = vst [vmem:[%s177 + $0x168] sm:%s169] %v268
                %v270 = vld [vmem:[%s176 + $0x270] sm:%s169]
                %271 = vst [vmem:[%s177 + $0x170] sm:%s169] %v270
                %v272 = vld [vmem:[%s176 + $0x278] sm:%s169]
                %273 = vst [vmem:[%s177 + $0x178] sm:%s169] %v272
                %v274 = vld [vmem:[%s176 + $0x300] sm:%s169]
                %275 = vst [vmem:[%s177 + $0x180] sm:%s169] %v274
                %v276 = vld [vmem:[%s176 + $0x308] sm:%s169]
                %277 = vst [vmem:[%s177 + $0x188] sm:%s169] %v276
                %v278 = vld [vmem:[%s176 + $0x310] sm:%s169]
                %279 = vst [vmem:[%s177 + $0x190] sm:%s169] %v278
                %v280 = vld [vmem:[%s176 + $0x318] sm:%s169]
                %281 = vst [vmem:[%s177 + $0x198] sm:%s169] %v280
                %v282 = vld [vmem:[%s176 + $0x320] sm:%s169]
                %283 = vst [vmem:[%s177 + $0x1a0] sm:%s169] %v282
                %v284 = vld [vmem:[%s176 + $0x328] sm:%s169]
                %285 = vst [vmem:[%s177 + $0x1a8] sm:%s169] %v284
                %v286 = vld [vmem:[%s176 + $0x330] sm:%s169]
                %287 = vst [vmem:[%s177 + $0x1b0] sm:%s169] %v286
                %v288 = vld [vmem:[%s176 + $0x338] sm:%s169]
                %289 = vst [vmem:[%s177 + $0x1b8] sm:%s169] %v288
                %v290 = vld [vmem:[%s176 + $0x340] sm:%s169]
                %291 = vst [vmem:[%s177 + $0x1c0] sm:%s169] %v290
                %v292 = vld [vmem:[%s176 + $0x348] sm:%s169]
                %293 = vst [vmem:[%s177 + $0x1c8] sm:%s169] %v292
                %v294 = vld [vmem:[%s176 + $0x350] sm:%s169]
                %295 = vst [vmem:[%s177 + $0x1d0] sm:%s169] %v294
                %v296 = vld [vmem:[%s176 + $0x358] sm:%s169]
                %297 = vst [vmem:[%s177 + $0x1d8] sm:%s169] %v296
                %v298 = vld [vmem:[%s176 + $0x360] sm:%s169]
                %299 = vst [vmem:[%s177 + $0x1e0] sm:%s169] %v298
                %v300 = vld [vmem:[%s176 + $0x368] sm:%s169]
                %301 = vst [vmem:[%s177 + $0x1e8] sm:%s169] %v300
                %v302 = vld [vmem:[%s176 + $0x370] sm:%s169]
                %303 = vst [vmem:[%s177 + $0x1f0] sm:%s169] %v302
                %v304 = vld [vmem:[%s176 + $0x378] sm:%s169]
                %305 = vst [vmem:[%s177 + $0x1f8] sm:%s169] %v304
                %v306 = vld [vmem:[%s176 + $0x400] sm:%s169]
                %307 = vst [vmem:[%s177 + $0x200] sm:%s169] %v306
                %v308 = vld [vmem:[%s176 + $0x408] sm:%s169]
                %309 = vst [vmem:[%s177 + $0x208] sm:%s169] %v308
                %v310 = vld [vmem:[%s176 + $0x410] sm:%s169]
                %311 = vst [vmem:[%s177 + $0x210] sm:%s169] %v310
                %v312 = vld [vmem:[%s176 + $0x418] sm:%s169]
                %313 = vst [vmem:[%s177 + $0x218] sm:%s169] %v312
                %v314 = vld [vmem:[%s176 + $0x420] sm:%s169]
                %315 = vst [vmem:[%s177 + $0x220] sm:%s169] %v314
                %v316 = vld [vmem:[%s176 + $0x428] sm:%s169]
                %317 = vst [vmem:[%s177 + $0x228] sm:%s169] %v316
                %v318 = vld [vmem:[%s176 + $0x430] sm:%s169]
                %319 = vst [vmem:[%s177 + $0x230] sm:%s169] %v318
                %v320 = vld [vmem:[%s176 + $0x438] sm:%s169]
                %321 = vst [vmem:[%s177 + $0x238] sm:%s169] %v320
                %v322 = vld [vmem:[%s176 + $0x440] sm:%s169]
                %323 = vst [vmem:[%s177 + $0x240] sm:%s169] %v322
                %v324 = vld [vmem:[%s176 + $0x448] sm:%s169]
                %325 = vst [vmem:[%s177 + $0x248] sm:%s169] %v324
                %v326 = vld [vmem:[%s176 + $0x450] sm:%s169]
                %327 = vst [vmem:[%s177 + $0x250] sm:%s169] %v326
                %v328 = vld [vmem:[%s176 + $0x458] sm:%s169]
                %329 = vst [vmem:[%s177 + $0x258] sm:%s169] %v328
                %v330 = vld [vmem:[%s176 + $0x460] sm:%s169]
                %331 = vst [vmem:[%s177 + $0x260] sm:%s169] %v330
                %v332 = vld [vmem:[%s176 + $0x468] sm:%s169]
                %333 = vst [vmem:[%s177 + $0x268] sm:%s169] %v332
                %v334 = vld [vmem:[%s176 + $0x470] sm:%s169]
                %335 = vst [vmem:[%s177 + $0x270] sm:%s169] %v334
                %v336 = vld [vmem:[%s176 + $0x478] sm:%s169]
                %337 = vst [vmem:[%s177 + $0x278] sm:%s169] %v336
                %v338 = vld [vmem:[%s176 + $0x500] sm:%s169]
                %339 = vst [vmem:[%s177 + $0x280] sm:%s169] %v338
                %v340 = vld [vmem:[%s176 + $0x508] sm:%s169]
                %341 = vst [vmem:[%s177 + $0x288] sm:%s169] %v340
                %v342 = vld [vmem:[%s176 + $0x510] sm:%s169]
                %343 = vst [vmem:[%s177 + $0x290] sm:%s169] %v342
                %v344 = vld [vmem:[%s176 + $0x518] sm:%s169]
                %345 = vst [vmem:[%s177 + $0x298] sm:%s169] %v344
                %v346 = vld [vmem:[%s176 + $0x520] sm:%s169]
                %347 = vst [vmem:[%s177 + $0x2a0] sm:%s169] %v346
                %v348 = vld [vmem:[%s176 + $0x528] sm:%s169]
                %349 = vst [vmem:[%s177 + $0x2a8] sm:%s169] %v348
                %v350 = vld [vmem:[%s176 + $0x530] sm:%s169]
                %351 = vst [vmem:[%s177 + $0x2b0] sm:%s169] %v350
                %v352 = vld [vmem:[%s176 + $0x538] sm:%s169]
                %353 = vst [vmem:[%s177 + $0x2b8] sm:%s169] %v352
                %v354 = vld [vmem:[%s176 + $0x540] sm:%s169]
                %355 = vst [vmem:[%s177 + $0x2c0] sm:%s169] %v354
                %v356 = vld [vmem:[%s176 + $0x548] sm:%s169]
                %357 = vst [vmem:[%s177 + $0x2c8] sm:%s169] %v356
                %v358 = vld [vmem:[%s176 + $0x550] sm:%s169]
                %359 = vst [vmem:[%s177 + $0x2d0] sm:%s169] %v358
                %v360 = vld [vmem:[%s176 + $0x558] sm:%s169]
                %361 = vst [vmem:[%s177 + $0x2d8] sm:%s169] %v360
                %v362 = vld [vmem:[%s176 + $0x560] sm:%s169]
                %363 = vst [vmem:[%s177 + $0x2e0] sm:%s169] %v362
                %v364 = vld [vmem:[%s176 + $0x568] sm:%s169]
                %365 = vst [vmem:[%s177 + $0x2e8] sm:%s169] %v364
                %v366 = vld [vmem:[%s176 + $0x570] sm:%s169]
                %367 = vst [vmem:[%s177 + $0x2f0] sm:%s169] %v366
                %v368 = vld [vmem:[%s176 + $0x578] sm:%s169]
                %369 = vst [vmem:[%s177 + $0x2f8] sm:%s169] %v368
                %v370 = vld [vmem:[%s176 + $0x600] sm:%s169]
                %371 = vst [vmem:[%s177 + $0x300] sm:%s169] %v370
                %v372 = vld [vmem:[%s176 + $0x608] sm:%s169]
                %373 = vst [vmem:[%s177 + $0x308] sm:%s169] %v372
                %v374 = vld [vmem:[%s176 + $0x610] sm:%s169]
                %375 = vst [vmem:[%s177 + $0x310] sm:%s169] %v374
                %v376 = vld [vmem:[%s176 + $0x618] sm:%s169]
                %377 = vst [vmem:[%s177 + $0x318] sm:%s169] %v376
                %v378 = vld [vmem:[%s176 + $0x620] sm:%s169]
                %379 = vst [vmem:[%s177 + $0x320] sm:%s169] %v378
                %v380 = vld [vmem:[%s176 + $0x628] sm:%s169]
                %381 = vst [vmem:[%s177 + $0x328] sm:%s169] %v380
                %v382 = vld [vmem:[%s176 + $0x630] sm:%s169]
                %383 = vst [vmem:[%s177 + $0x330] sm:%s169] %v382
                %v384 = vld [vmem:[%s176 + $0x638] sm:%s169]
                %385 = vst [vmem:[%s177 + $0x338] sm:%s169] %v384
                %v386 = vld [vmem:[%s176 + $0x640] sm:%s169]
                %387 = vst [vmem:[%s177 + $0x340] sm:%s169] %v386
                %v388 = vld [vmem:[%s176 + $0x648] sm:%s169]
                %389 = vst [vmem:[%s177 + $0x348] sm:%s169] %v388
                %v390 = vld [vmem:[%s176 + $0x650] sm:%s169]
                %391 = vst [vmem:[%s177 + $0x350] sm:%s169] %v390
                %v392 = vld [vmem:[%s176 + $0x658] sm:%s169]
                %393 = vst [vmem:[%s177 + $0x358] sm:%s169] %v392
                %v394 = vld [vmem:[%s176 + $0x660] sm:%s169]
                %395 = vst [vmem:[%s177 + $0x360] sm:%s169] %v394
                %v396 = vld [vmem:[%s176 + $0x668] sm:%s169]
                %397 = vst [vmem:[%s177 + $0x368] sm:%s169] %v396
                %v398 = vld [vmem:[%s176 + $0x670] sm:%s169]
                %399 = vst [vmem:[%s177 + $0x370] sm:%s169] %v398
                %v400 = vld [vmem:[%s176 + $0x678] sm:%s169]
                %401 = vst [vmem:[%s177 + $0x378] sm:%s169] %v400
                %v402 = vld [vmem:[%s176 + $0x700] sm:%s169]
                %403 = vst [vmem:[%s177 + $0x380] sm:%s169] %v402
                %v404 = vld [vmem:[%s176 + $0x708] sm:%s169]
                %405 = vst [vmem:[%s177 + $0x388] sm:%s169] %v404
                %v406 = vld [vmem:[%s176 + $0x710] sm:%s169]
                %407 = vst [vmem:[%s177 + $0x390] sm:%s169] %v406
                %v408 = vld [vmem:[%s176 + $0x718] sm:%s169]
                %409 = vst [vmem:[%s177 + $0x398] sm:%s169] %v408
                %v410 = vld [vmem:[%s176 + $0x720] sm:%s169]
                %411 = vst [vmem:[%s177 + $0x3a0] sm:%s169] %v410
                %v412 = vld [vmem:[%s176 + $0x728] sm:%s169]
                %413 = vst [vmem:[%s177 + $0x3a8] sm:%s169] %v412
                %v414 = vld [vmem:[%s176 + $0x730] sm:%s169]
                %415 = vst [vmem:[%s177 + $0x3b0] sm:%s169] %v414
                %v416 = vld [vmem:[%s176 + $0x738] sm:%s169]
                %417 = vst [vmem:[%s177 + $0x3b8] sm:%s169] %v416
                %v418 = vld [vmem:[%s176 + $0x740] sm:%s169]
                %419 = vst [vmem:[%s177 + $0x3c0] sm:%s169] %v418
                %v420 = vld [vmem:[%s176 + $0x748] sm:%s169]
                %421 = vst [vmem:[%s177 + $0x3c8] sm:%s169] %v420
                %v422 = vld [vmem:[%s176 + $0x750] sm:%s169]
                %423 = vst [vmem:[%s177 + $0x3d0] sm:%s169] %v422
                %v424 = vld [vmem:[%s176 + $0x758] sm:%s169]
                %425 = vst [vmem:[%s177 + $0x3d8] sm:%s169] %v424
                %v426 = vld [vmem:[%s176 + $0x760] sm:%s169]
                %427 = vst [vmem:[%s177 + $0x3e0] sm:%s169] %v426
                %v428 = vld [vmem:[%s176 + $0x768] sm:%s169]
                %429 = vst [vmem:[%s177 + $0x3e8] sm:%s169] %v428
                %v430 = vld [vmem:[%s176 + $0x770] sm:%s169]
                %431 = vst [vmem:[%s177 + $0x3f0] sm:%s169] %v430
                %v432 = vld [vmem:[%s176 + $0x778] sm:%s169]
                %433 = vst [vmem:[%s177 + $0x3f8] sm:%s169] %v432
                %v434 = vld [vmem:[%s176 + $0x800] sm:%s169]
                %435 = vst [vmem:[%s177 + $0x400] sm:%s169] %v434
                %v436 = vld [vmem:[%s176 + $0x808] sm:%s169]
                %437 = vst [vmem:[%s177 + $0x408] sm:%s169] %v436
                %v438 = vld [vmem:[%s176 + $0x810] sm:%s169]
                %439 = vst [vmem:[%s177 + $0x410] sm:%s169] %v438
                %v440 = vld [vmem:[%s176 + $0x818] sm:%s169]
                %441 = vst [vmem:[%s177 + $0x418] sm:%s169] %v440
                %v442 = vld [vmem:[%s176 + $0x820] sm:%s169]
                %443 = vst [vmem:[%s177 + $0x420] sm:%s169] %v442
                %v444 = vld [vmem:[%s176 + $0x828] sm:%s169]
                %445 = vst [vmem:[%s177 + $0x428] sm:%s169] %v444
                %v446 = vld [vmem:[%s176 + $0x830] sm:%s169]
                %447 = vst [vmem:[%s177 + $0x430] sm:%s169] %v446
                %v448 = vld [vmem:[%s176 + $0x838] sm:%s169]
                %449 = vst [vmem:[%s177 + $0x438] sm:%s169] %v448
                %v450 = vld [vmem:[%s176 + $0x840] sm:%s169]
                %451 = vst [vmem:[%s177 + $0x440] sm:%s169] %v450
                %v452 = vld [vmem:[%s176 + $0x848] sm:%s169]
                %453 = vst [vmem:[%s177 + $0x448] sm:%s169] %v452
                %v454 = vld [vmem:[%s176 + $0x850] sm:%s169]
                %455 = vst [vmem:[%s177 + $0x450] sm:%s169] %v454
                %v456 = vld [vmem:[%s176 + $0x858] sm:%s169]
                %457 = vst [vmem:[%s177 + $0x458] sm:%s169] %v456
                %v458 = vld [vmem:[%s176 + $0x860] sm:%s169]
                %459 = vst [vmem:[%s177 + $0x460] sm:%s169] %v458
                %v460 = vld [vmem:[%s176 + $0x868] sm:%s169]
                %461 = vst [vmem:[%s177 + $0x468] sm:%s169] %v460
                %v462 = vld [vmem:[%s176 + $0x870] sm:%s169]
                %463 = vst [vmem:[%s177 + $0x470] sm:%s169] %v462
                %v464 = vld [vmem:[%s176 + $0x878] sm:%s169]
                %465 = vst [vmem:[%s177 + $0x478] sm:%s169] %v464
                %v466 = vld [vmem:[%s176 + $0x900] sm:%s169]
                %467 = vst [vmem:[%s177 + $0x480] sm:%s169] %v466
                %v468 = vld [vmem:[%s176 + $0x908] sm:%s169]
                %469 = vst [vmem:[%s177 + $0x488] sm:%s169] %v468
                %v470 = vld [vmem:[%s176 + $0x910] sm:%s169]
                %471 = vst [vmem:[%s177 + $0x490] sm:%s169] %v470
                %v472 = vld [vmem:[%s176 + $0x918] sm:%s169]
                %473 = vst [vmem:[%s177 + $0x498] sm:%s169] %v472
                %v474 = vld [vmem:[%s176 + $0x920] sm:%s169]
                %475 = vst [vmem:[%s177 + $0x4a0] sm:%s169] %v474
                %v476 = vld [vmem:[%s176 + $0x928] sm:%s169]
                %477 = vst [vmem:[%s177 + $0x4a8] sm:%s169] %v476
                %v478 = vld [vmem:[%s176 + $0x930] sm:%s169]
                %479 = vst [vmem:[%s177 + $0x4b0] sm:%s169] %v478
                %v480 = vld [vmem:[%s176 + $0x938] sm:%s169]
                %481 = vst [vmem:[%s177 + $0x4b8] sm:%s169] %v480
                %v482 = vld [vmem:[%s176 + $0x940] sm:%s169]
                %483 = vst [vmem:[%s177 + $0x4c0] sm:%s169] %v482
                %v484 = vld [vmem:[%s176 + $0x948] sm:%s169]
                %485 = vst [vmem:[%s177 + $0x4c8] sm:%s169] %v484
                %v486 = vld [vmem:[%s176 + $0x950] sm:%s169]
                %487 = vst [vmem:[%s177 + $0x4d0] sm:%s169] %v486
                %v488 = vld [vmem:[%s176 + $0x958] sm:%s169]
                %489 = vst [vmem:[%s177 + $0x4d8] sm:%s169] %v488
                %v490 = vld [vmem:[%s176 + $0x960] sm:%s169]
                %491 = vst [vmem:[%s177 + $0x4e0] sm:%s169] %v490
                %v492 = vld [vmem:[%s176 + $0x968] sm:%s169]
                %493 = vst [vmem:[%s177 + $0x4e8] sm:%s169] %v492
                %v494 = vld [vmem:[%s176 + $0x970] sm:%s169]
                %495 = vst [vmem:[%s177 + $0x4f0] sm:%s169] %v494
                %v496 = vld [vmem:[%s176 + $0x978] sm:%s169]
                %497 = vst [vmem:[%s177 + $0x4f8] sm:%s169] %v496
                %v498 = vld [vmem:[%s176 + $0xa00] sm:%s169]
                %499 = vst [vmem:[%s177 + $0x500] sm:%s169] %v498
                %v500 = vld [vmem:[%s176 + $0xa08] sm:%s169]
                %501 = vst [vmem:[%s177 + $0x508] sm:%s169] %v500
                %v502 = vld [vmem:[%s176 + $0xa10] sm:%s169]
                %503 = vst [vmem:[%s177 + $0x510] sm:%s169] %v502
                %v504 = vld [vmem:[%s176 + $0xa18] sm:%s169]
                %505 = vst [vmem:[%s177 + $0x518] sm:%s169] %v504
                %v506 = vld [vmem:[%s176 + $0xa20] sm:%s169]
                %507 = vst [vmem:[%s177 + $0x520] sm:%s169] %v506
                %v508 = vld [vmem:[%s176 + $0xa28] sm:%s169]
                %509 = vst [vmem:[%s177 + $0x528] sm:%s169] %v508
                %v510 = vld [vmem:[%s176 + $0xa30] sm:%s169]
                %511 = vst [vmem:[%s177 + $0x530] sm:%s169] %v510
                %v512 = vld [vmem:[%s176 + $0xa38] sm:%s169]
                %513 = vst [vmem:[%s177 + $0x538] sm:%s169] %v512
                %v514 = vld [vmem:[%s176 + $0xa40] sm:%s169]
                %515 = vst [vmem:[%s177 + $0x540] sm:%s169] %v514
                %v516 = vld [vmem:[%s176 + $0xa48] sm:%s169]
                %517 = vst [vmem:[%s177 + $0x548] sm:%s169] %v516
                %v518 = vld [vmem:[%s176 + $0xa50] sm:%s169]
                %519 = vst [vmem:[%s177 + $0x550] sm:%s169] %v518
                %v520 = vld [vmem:[%s176 + $0xa58] sm:%s169]
                %521 = vst [vmem:[%s177 + $0x558] sm:%s169] %v520
                %v522 = vld [vmem:[%s176 + $0xa60] sm:%s169]
                %523 = vst [vmem:[%s177 + $0x560] sm:%s169] %v522
                %v524 = vld [vmem:[%s176 + $0xa68] sm:%s169]
                %525 = vst [vmem:[%s177 + $0x568] sm:%s169] %v524
                %v526 = vld [vmem:[%s176 + $0xa70] sm:%s169]
                %527 = vst [vmem:[%s177 + $0x570] sm:%s169] %v526
                %v528 = vld [vmem:[%s176 + $0xa78] sm:%s169]
                %529 = vst [vmem:[%s177 + $0x578] sm:%s169] %v528
                %v530 = vld [vmem:[%s176 + $0xb00] sm:%s169]
                %531 = vst [vmem:[%s177 + $0x580] sm:%s169] %v530
                %v532 = vld [vmem:[%s176 + $0xb08] sm:%s169]
                %533 = vst [vmem:[%s177 + $0x588] sm:%s169] %v532
                %v534 = vld [vmem:[%s176 + $0xb10] sm:%s169]
                %535 = vst [vmem:[%s177 + $0x590] sm:%s169] %v534
                %v536 = vld [vmem:[%s176 + $0xb18] sm:%s169]
                %537 = vst [vmem:[%s177 + $0x598] sm:%s169] %v536
                %v538 = vld [vmem:[%s176 + $0xb20] sm:%s169]
                %539 = vst [vmem:[%s177 + $0x5a0] sm:%s169] %v538
                %v540 = vld [vmem:[%s176 + $0xb28] sm:%s169]
                %541 = vst [vmem:[%s177 + $0x5a8] sm:%s169] %v540
                %v542 = vld [vmem:[%s176 + $0xb30] sm:%s169]
                %543 = vst [vmem:[%s177 + $0x5b0] sm:%s169] %v542
                %v544 = vld [vmem:[%s176 + $0xb38] sm:%s169]
                %545 = vst [vmem:[%s177 + $0x5b8] sm:%s169] %v544
                %v546 = vld [vmem:[%s176 + $0xb40] sm:%s169]
                %547 = vst [vmem:[%s177 + $0x5c0] sm:%s169] %v546
                %v548 = vld [vmem:[%s176 + $0xb48] sm:%s169]
                %549 = vst [vmem:[%s177 + $0x5c8] sm:%s169] %v548
                %v550 = vld [vmem:[%s176 + $0xb50] sm:%s169]
                %551 = vst [vmem:[%s177 + $0x5d0] sm:%s169] %v550
                %v552 = vld [vmem:[%s176 + $0xb58] sm:%s169]
                %553 = vst [vmem:[%s177 + $0x5d8] sm:%s169] %v552
                %v554 = vld [vmem:[%s176 + $0xb60] sm:%s169]
                %555 = vst [vmem:[%s177 + $0x5e0] sm:%s169] %v554
                %v556 = vld [vmem:[%s176 + $0xb68] sm:%s169]
                %557 = vst [vmem:[%s177 + $0x5e8] sm:%s169] %v556
                %v558 = vld [vmem:[%s176 + $0xb70] sm:%s169]
                %559 = vst [vmem:[%s177 + $0x5f0] sm:%s169] %v558
                %v560 = vld [vmem:[%s176 + $0xb78] sm:%s169]
                %561 = vst [vmem:[%s177 + $0x5f8] sm:%s169] %v560
                %v562 = vld [vmem:[%s176 + $0xc00] sm:%s169]
                %563 = vst [vmem:[%s177 + $0x600] sm:%s169] %v562
                %v564 = vld [vmem:[%s176 + $0xc08] sm:%s169]
                %565 = vst [vmem:[%s177 + $0x608] sm:%s169] %v564
                %v566 = vld [vmem:[%s176 + $0xc10] sm:%s169]
                %567 = vst [vmem:[%s177 + $0x610] sm:%s169] %v566
                %v568 = vld [vmem:[%s176 + $0xc18] sm:%s169]
                %569 = vst [vmem:[%s177 + $0x618] sm:%s169] %v568
                %v570 = vld [vmem:[%s176 + $0xc20] sm:%s169]
                %571 = vst [vmem:[%s177 + $0x620] sm:%s169] %v570
                %v572 = vld [vmem:[%s176 + $0xc28] sm:%s169]
                %573 = vst [vmem:[%s177 + $0x628] sm:%s169] %v572
                %v574 = vld [vmem:[%s176 + $0xc30] sm:%s169]
                %575 = vst [vmem:[%s177 + $0x630] sm:%s169] %v574
                %v576 = vld [vmem:[%s176 + $0xc38] sm:%s169]
                %577 = vst [vmem:[%s177 + $0x638] sm:%s169] %v576
                %v578 = vld [vmem:[%s176 + $0xc40] sm:%s169]
                %579 = vst [vmem:[%s177 + $0x640] sm:%s169] %v578
                %v580 = vld [vmem:[%s176 + $0xc48] sm:%s169]
                %581 = vst [vmem:[%s177 + $0x648] sm:%s169] %v580
                %v582 = vld [vmem:[%s176 + $0xc50] sm:%s169]
                %583 = vst [vmem:[%s177 + $0x650] sm:%s169] %v582
                %v584 = vld [vmem:[%s176 + $0xc58] sm:%s169]
                %585 = vst [vmem:[%s177 + $0x658] sm:%s169] %v584
                %v586 = vld [vmem:[%s176 + $0xc60] sm:%s169]
                %587 = vst [vmem:[%s177 + $0x660] sm:%s169] %v586
                %v588 = vld [vmem:[%s176 + $0xc68] sm:%s169]
                %589 = vst [vmem:[%s177 + $0x668] sm:%s169] %v588
                %v590 = vld [vmem:[%s176 + $0xc70] sm:%s169]
                %591 = vst [vmem:[%s177 + $0x670] sm:%s169] %v590
                %v592 = vld [vmem:[%s176 + $0xc78] sm:%s169]
                %593 = vst [vmem:[%s177 + $0x678] sm:%s169] %v592
                %v594 = vld [vmem:[%s176 + $0xd00] sm:%s169]
                %595 = vst [vmem:[%s177 + $0x680] sm:%s169] %v594
                %v596 = vld [vmem:[%s176 + $0xd08] sm:%s169]
                %597 = vst [vmem:[%s177 + $0x688] sm:%s169] %v596
                %v598 = vld [vmem:[%s176 + $0xd10] sm:%s169]
                %599 = vst [vmem:[%s177 + $0x690] sm:%s169] %v598
                %v600 = vld [vmem:[%s176 + $0xd18] sm:%s169]
                %601 = vst [vmem:[%s177 + $0x698] sm:%s169] %v600
                %v602 = vld [vmem:[%s176 + $0xd20] sm:%s169]
                %603 = vst [vmem:[%s177 + $0x6a0] sm:%s169] %v602
                %v604 = vld [vmem:[%s176 + $0xd28] sm:%s169]
                %605 = vst [vmem:[%s177 + $0x6a8] sm:%s169] %v604
                %v606 = vld [vmem:[%s176 + $0xd30] sm:%s169]
                %607 = vst [vmem:[%s177 + $0x6b0] sm:%s169] %v606
                %v608 = vld [vmem:[%s176 + $0xd38] sm:%s169]
                %609 = vst [vmem:[%s177 + $0x6b8] sm:%s169] %v608
                %v610 = vld [vmem:[%s176 + $0xd40] sm:%s169]
                %611 = vst [vmem:[%s177 + $0x6c0] sm:%s169] %v610
                %v612 = vld [vmem:[%s176 + $0xd48] sm:%s169]
                %613 = vst [vmem:[%s177 + $0x6c8] sm:%s169] %v612
                %v614 = vld [vmem:[%s176 + $0xd50] sm:%s169]
                %615 = vst [vmem:[%s177 + $0x6d0] sm:%s169] %v614
                %v616 = vld [vmem:[%s176 + $0xd58] sm:%s169]
                %617 = vst [vmem:[%s177 + $0x6d8] sm:%s169] %v616
                %v618 = vld [vmem:[%s176 + $0xd60] sm:%s169]
                %619 = vst [vmem:[%s177 + $0x6e0] sm:%s169] %v618
                %v620 = vld [vmem:[%s176 + $0xd68] sm:%s169]
                %621 = vst [vmem:[%s177 + $0x6e8] sm:%s169] %v620
                %v622 = vld [vmem:[%s176 + $0xd70] sm:%s169]
                %623 = vst [vmem:[%s177 + $0x6f0] sm:%s169] %v622
                %v624 = vld [vmem:[%s176 + $0xd78] sm:%s169]
                %625 = vst [vmem:[%s177 + $0x6f8] sm:%s169] %v624
                %v626 = vld [vmem:[%s176 + $0xe00] sm:%s169]
                %627 = vst [vmem:[%s177 + $0x700] sm:%s169] %v626
                %v628 = vld [vmem:[%s176 + $0xe08] sm:%s169]
                %629 = vst [vmem:[%s177 + $0x708] sm:%s169] %v628
                %v630 = vld [vmem:[%s176 + $0xe10] sm:%s169]
                %631 = vst [vmem:[%s177 + $0x710] sm:%s169] %v630
                %v632 = vld [vmem:[%s176 + $0xe18] sm:%s169]
                %633 = vst [vmem:[%s177 + $0x718] sm:%s169] %v632
                %v634 = vld [vmem:[%s176 + $0xe20] sm:%s169]
                %635 = vst [vmem:[%s177 + $0x720] sm:%s169] %v634
                %v636 = vld [vmem:[%s176 + $0xe28] sm:%s169]
                %637 = vst [vmem:[%s177 + $0x728] sm:%s169] %v636
                %v638 = vld [vmem:[%s176 + $0xe30] sm:%s169]
                %639 = vst [vmem:[%s177 + $0x730] sm:%s169] %v638
                %v640 = vld [vmem:[%s176 + $0xe38] sm:%s169]
                %641 = vst [vmem:[%s177 + $0x738] sm:%s169] %v640
                %v642 = vld [vmem:[%s176 + $0xe40] sm:%s169]
                %643 = vst [vmem:[%s177 + $0x740] sm:%s169] %v642
                %v644 = vld [vmem:[%s176 + $0xe48] sm:%s169]
                %645 = vst [vmem:[%s177 + $0x748] sm:%s169] %v644
                %v646 = vld [vmem:[%s176 + $0xe50] sm:%s169]
                %647 = vst [vmem:[%s177 + $0x750] sm:%s169] %v646
                %v648 = vld [vmem:[%s176 + $0xe58] sm:%s169]
                %649 = vst [vmem:[%s177 + $0x758] sm:%s169] %v648
                %v650 = vld [vmem:[%s176 + $0xe60] sm:%s169]
                %651 = vst [vmem:[%s177 + $0x760] sm:%s169] %v650
                %v652 = vld [vmem:[%s176 + $0xe68] sm:%s169]
                %653 = vst [vmem:[%s177 + $0x768] sm:%s169] %v652
                %v654 = vld [vmem:[%s176 + $0xe70] sm:%s169]
                %655 = vst [vmem:[%s177 + $0x770] sm:%s169] %v654
                %v656 = vld [vmem:[%s176 + $0xe78] sm:%s169]
                %657 = vst [vmem:[%s177 + $0x778] sm:%s169] %v656
                %v658 = vld [vmem:[%s176 + $0xf00] sm:%s169]
                %659 = vst [vmem:[%s177 + $0x780] sm:%s169] %v658
                %v660 = vld [vmem:[%s176 + $0xf08] sm:%s169]
                %661 = vst [vmem:[%s177 + $0x788] sm:%s169] %v660
                %v662 = vld [vmem:[%s176 + $0xf10] sm:%s169]
                %663 = vst [vmem:[%s177 + $0x790] sm:%s169] %v662
                %v664 = vld [vmem:[%s176 + $0xf18] sm:%s169]
                %665 = vst [vmem:[%s177 + $0x798] sm:%s169] %v664
                %v666 = vld [vmem:[%s176 + $0xf20] sm:%s169]
                %667 = vst [vmem:[%s177 + $0x7a0] sm:%s169] %v666
                %v668 = vld [vmem:[%s176 + $0xf28] sm:%s169]
                %669 = vst [vmem:[%s177 + $0x7a8] sm:%s169] %v668
                %v670 = vld [vmem:[%s176 + $0xf30] sm:%s169]
                %671 = vst [vmem:[%s177 + $0x7b0] sm:%s169] %v670
                %v672 = vld [vmem:[%s176 + $0xf38] sm:%s169]
                %673 = vst [vmem:[%s177 + $0x7b8] sm:%s169] %v672
                %v674 = vld [vmem:[%s176 + $0xf40] sm:%s169]
                %675 = vst [vmem:[%s177 + $0x7c0] sm:%s169] %v674
                %v676 = vld [vmem:[%s176 + $0xf48] sm:%s169]
                %677 = vst [vmem:[%s177 + $0x7c8] sm:%s169] %v676
                %v678 = vld [vmem:[%s176 + $0xf50] sm:%s169]
                %679 = vst [vmem:[%s177 + $0x7d0] sm:%s169] %v678
                %v680 = vld [vmem:[%s176 + $0xf58] sm:%s169]
                %681 = vst [vmem:[%s177 + $0x7d8] sm:%s169] %v680
                %v682 = vld [vmem:[%s176 + $0xf60] sm:%s169]
                %683 = vst [vmem:[%s177 + $0x7e0] sm:%s169] %v682
                %v684 = vld [vmem:[%s176 + $0xf68] sm:%s169]
                %685 = vst [vmem:[%s177 + $0x7e8] sm:%s169] %v684
                %v686 = vld [vmem:[%s176 + $0xf70] sm:%s169]
                %687 = vst [vmem:[%s177 + $0x7f0] sm:%s169] %v686
                %v688 = vld [vmem:[%s176 + $0xf78] sm:%s169]
                %689 = vst [vmem:[%s177 + $0x7f8] sm:%s169] %v688
              $region45: #{clf_head_pallas.1} parent=39 // loop_footer
                %s175 = sadd.s32 1, %s171
              $region46: #{clf_head_pallas.1} parent=39 // loop_footer_branch
                %170 = sbr.rel target = $region42
              $region47: #{clf_head_pallas.1} parent=39 // loop_exit
                _
            $region40: #{clf_head_pallas.1} parent=31 // pred_fallthru
              _
          $region32: #{clf_head_pallas.1} parent=27 // pred_fallthru
            _
          %1214 = vnop
        $region28: #{clf_head_pallas.1} parent=23 // pred_fallthru
          _
        // Predicated region
        $region63: #{clf_head_pallas.1} parent=23 // pred_check
          %p1215 = pneg %p57
        $region64: #{clf_head_pallas.1} parent=23 // pred_check_branch
          %1217 = sbr.rel (%p1215) target = $region66
        $region65: #{clf_head_pallas.1} parent=23 // pred_region
          %s1218 = sand.u32 %s47, 1
          %s1219 = sand.u32 %s47, 1
          %s1220 = smul.addr %s1219, 80
          %s1221 = scalar_lea.vmem [#allocation4], %s1220
          %s1222 = smul.u32 5, %s11
          %s1223 = smul.addr %s1222, 4
          %s1224 = scalar_lea.vmem %s1, %s1223
          // Predicated region
          $region67: #{clf_head_pallas.1} parent=65 // pred_check
            _
          $region68: #{clf_head_pallas.1} parent=65 // pred_check_branch
            %1226 = sbr.rel (0) target = $region70
          $region69: #{clf_head_pallas.1} parent=65 // pred_region
            // Predicated region
            $region71: #{clf_head_pallas.1} parent=69 // pred_check
              _
            $region72: #{clf_head_pallas.1} parent=69 // pred_check_branch
              %1228 = sbr.rel (0) target = $region74
            $region73: #{clf_head_pallas.1} parent=69 // pred_region
              %s1229 = scalar_lea.vmem %s1224, 16
              %s1230 = scalar_lea.vmem %s1221, 16 [#allocation4]
              loop: start=0, step=1, limit=1
              $region75: #{clf_head_pallas.1} parent=73 // loop_pre_header
                _
              $region76: #{clf_head_pallas.1} parent=73 // loop_header
                %s1232 = sphi 0, %s1236
                %p1233 = scmp.ge.s32.totalorder %s1232, 1
                %s1237 = sphi %s1224, %s1224
                %s1238 = sphi %s1221, %s1221
              $region77: #{clf_head_pallas.1} parent=73 // loop_header_branch
                %1235 = sbr.rel (%p1233) target = $region81
              $region78: #{clf_head_pallas.1} parent=73 // loop_body
                %v1239 = vld [vmem:[%s1237] sm:$0xff]
                %1240 = vst [vmem:[%s1238] sm:$0xff] %v1239
                %v1241 = vld [vmem:[%s1237 + $0x8] sm:$0xff]
                %1242 = vst [vmem:[%s1238 + $0x8] sm:$0xff] %v1241
                %v1243 = vld [vmem:[%s1237 + $0x28] sm:$0xff]
                %1244 = vst [vmem:[%s1238 + $0x14] sm:$0xff] %v1243
                %v1245 = vld [vmem:[%s1237 + $0x30] sm:$0xff]
                %1246 = vst [vmem:[%s1238 + $0x1c] sm:$0xff] %v1245
                %v1247 = vld [vmem:[%s1237 + $0x50] sm:$0xff]
                %1248 = vst [vmem:[%s1238 + $0x28] sm:$0xff] %v1247
                %v1249 = vld [vmem:[%s1237 + $0x58] sm:$0xff]
                %1250 = vst [vmem:[%s1238 + $0x30] sm:$0xff] %v1249
                %v1251 = vld [vmem:[%s1237 + $0x78] sm:$0xff]
                %1252 = vst [vmem:[%s1238 + $0x3c] sm:$0xff] %v1251
                %v1253 = vld [vmem:[%s1237 + $0x80] sm:$0xff]
                %1254 = vst [vmem:[%s1238 + $0x44] sm:$0xff] %v1253
              $region79: #{clf_head_pallas.1} parent=73 // loop_footer
                %s1236 = sadd.s32 1, %s1232
              $region80: #{clf_head_pallas.1} parent=73 // loop_footer_branch
                %1231 = sbr.rel target = $region76
              $region81: #{clf_head_pallas.1} parent=73 // loop_exit
                _
              %s1256 = ssub.s32 16, 1
              loop: start=0, step=1, limit=1
              $region82: #{clf_head_pallas.1} parent=73 // loop_pre_header
                _
              $region83: #{clf_head_pallas.1} parent=73 // loop_header
                %s1258 = sphi 0, %s1262
                %p1259 = scmp.ge.s32.totalorder %s1258, 1
                %s1263 = sphi %s1229, %s1229
                %s1264 = sphi %s1230, %s1230
              $region84: #{clf_head_pallas.1} parent=73 // loop_header_branch
                %1261 = sbr.rel (%p1259) target = $region88
              $region85: #{clf_head_pallas.1} parent=73 // loop_body
                %v1265 = vld [vmem:[%s1263] sm:%s1256]
                %1266 = vst [vmem:[%s1264] sm:%s1256] %v1265
                %v1267 = vld [vmem:[%s1263 + $0x28] sm:%s1256]
                %1268 = vst [vmem:[%s1264 + $0x14] sm:%s1256] %v1267
                %v1269 = vld [vmem:[%s1263 + $0x50] sm:%s1256]
                %1270 = vst [vmem:[%s1264 + $0x28] sm:%s1256] %v1269
                %v1271 = vld [vmem:[%s1263 + $0x78] sm:%s1256]
                %1272 = vst [vmem:[%s1264 + $0x3c] sm:%s1256] %v1271
              $region86: #{clf_head_pallas.1} parent=73 // loop_footer
                %s1262 = sadd.s32 1, %s1258
              $region87: #{clf_head_pallas.1} parent=73 // loop_footer_branch
                %1257 = sbr.rel target = $region83
              $region88: #{clf_head_pallas.1} parent=73 // loop_exit
                _
            $region74: #{clf_head_pallas.1} parent=69 // pred_fallthru
              _
          $region70: #{clf_head_pallas.1} parent=65 // pred_fallthru
            _
          %1273 = vnop
        $region66: #{clf_head_pallas.1} parent=23 // pred_fallthru
          _
      $region24: #{clf_head_pallas.1} parent=5 // pred_fallthru
        _
      %p1274 = scmp.le.s32.totalorder 1, %s11
      %p1275 = scmp.lt.s32.totalorder %s11, 3
      %p1276 = pnand %p1274, %p1275
      %p1277 = pneg %p1276
      // Predicated region
      $region89: #{clf_head_pallas.1} parent=5 // pred_check
        _
      $region90: #{clf_head_pallas.1} parent=5 // pred_check_branch
        %1279 = sbr.rel (%p1276) target = $region92
      $region91: #{clf_head_pallas.1} parent=5 // pred_region
        %s1280 = ssub.s32 %s11, 1
        %s1281 = sand.u32 %s24, 1
        %s1282 = sand.u32 %s24, 1
        %s1283 = smul.addr %s1282, 2048
        %s1284 = scalar_lea.vmem [#allocation3], %s1283
        // Predicated region
        $region93: #{clf_head_pallas.1} parent=91 // pred_check
          %p1285 = pneg %p37
        $region94: #{clf_head_pallas.1} parent=91 // pred_check_branch
          %1287 = sbr.rel (%p1285) target = $region96
        $region95: #{clf_head_pallas.1} parent=91 // pred_region
          _
        $region96: #{clf_head_pallas.1} parent=91 // pred_fallthru
          _
        %s1288 = sand.u32 %s50, 1
        %s1289 = sand.u32 %s50, 1
        %s1290 = smul.addr %s1289, 80
        %s1291 = scalar_lea.vmem [#allocation4], %s1290
        // Predicated region
        $region97: #{clf_head_pallas.1} parent=91 // pred_check
          %p1292 = pneg %p63
        $region98: #{clf_head_pallas.1} parent=91 // pred_check_branch
          %1294 = sbr.rel (%p1292) target = $region100
        $region99: #{clf_head_pallas.1} parent=91 // pred_region
          _
        $region100: #{clf_head_pallas.1} parent=91 // pred_fallthru
          _
        %s1295 = sand.u32 %s24, 1
        %s1296 = sand.u32 %s24, 1
        %s1297 = smul.addr %s1296, 2048
        %s1298 = scalar_lea.vmem [#allocation3], %s1297
        %p1299 = pneg %p37
        %p1300 = pneg %p34
        %s1301 = sand.u32 %s50, 1
        %s1302 = sand.u32 %s50, 1
        %s1303 = smul.addr %s1302, 80
        %s1304 = scalar_lea.vmem [#allocation4], %s1303
        %p1305 = pneg %p63
        %p1306 = pneg %p60
        %p1307 = pneg %p84
        %p1308 = pneg %p81
        %p1309 = pneg %p105
        %p1310 = pneg %p102
        %p1311 = pneg %p126
        %p1312 = pneg %p123
        %s1313 = smul.u32 16, %s16
        %s1314 = smul.u32 5, %s16
        %p1316 = scmp.eq.s32.totalorder %s16, 0
        // Predicated region
        $region101: #{clf_head_pallas.1} parent=91 // pred_check
          %p1317 = pneg %p1316
        $region102: #{clf_head_pallas.1} parent=91 // pred_check_branch
          %1319 = sbr.rel (%p1317) target = $region104
        $region103: #{clf_head_pallas.1} parent=91 // pred_region
          %1320 = vst [vmem:[#allocation2] sm:$0xff] 0.0
          %1321 = vst [vmem:[#allocation2 + $0x8] sm:$0xff] 0.0
          %1322 = vst [vmem:[#allocation2 + $0x10] sm:$0xff] 0.0
          %1323 = vst [vmem:[#allocation2 + $0x18] sm:$0xff] 0.0
          %1324 = vst [vmem:[#allocation2 + $0x20] sm:$0xff] 0.0
          %1325 = vst [vmem:[#allocation2 + $0x28] sm:$0xff] 0.0
          %1326 = vst [vmem:[#allocation2 + $0x30] sm:$0xff] 0.0
          %1327 = vst [vmem:[#allocation2 + $0x38] sm:$0xff] 0.0
          %1328 = vst [vmem:[#allocation2 + $0x40] sm:$0xff] 0.0
          %1329 = vst [vmem:[#allocation2 + $0x48] sm:$0xff] 0.0
          %1330 = vst [vmem:[#allocation2 + $0x50] sm:$0xff] 0.0
          %1331 = vst [vmem:[#allocation2 + $0x58] sm:$0xff] 0.0
          %1332 = vst [vmem:[#allocation2 + $0x60] sm:$0xff] 0.0
          %1333 = vst [vmem:[#allocation2 + $0x68] sm:$0xff] 0.0
          %1334 = vst [vmem:[#allocation2 + $0x70] sm:$0xff] 0.0
          %1335 = vst [vmem:[#allocation2 + $0x78] sm:$0xff] 0.0
          %1336 = vst [vmem:[#allocation2 + $0x80] sm:$0xff] 0.0
          %1337 = vst [vmem:[#allocation2 + $0x88] sm:$0xff] 0.0
          %1338 = vst [vmem:[#allocation2 + $0x90] sm:$0xff] 0.0
          %1339 = vst [vmem:[#allocation2 + $0x98] sm:$0xff] 0.0
          %1340 = vst [vmem:[#allocation2 + $0xa0] sm:$0xff] 0.0
          %1341 = vst [vmem:[#allocation2 + $0xa8] sm:$0xff] 0.0
          %1342 = vst [vmem:[#allocation2 + $0xb0] sm:$0xff] 0.0
          %1343 = vst [vmem:[#allocation2 + $0xb8] sm:$0xff] 0.0
          %1344 = vst [vmem:[#allocation2 + $0xc0] sm:$0xff] 0.0
          %1345 = vst [vmem:[#allocation2 + $0xc8] sm:$0xff] 0.0
          %1346 = vst [vmem:[#allocation2 + $0xd0] sm:$0xff] 0.0
          %1347 = vst [vmem:[#allocation2 + $0xd8] sm:$0xff] 0.0
          %1348 = vst [vmem:[#allocation2 + $0xe0] sm:$0xff] 0.0
          %1349 = vst [vmem:[#allocation2 + $0xe8] sm:$0xff] 0.0
          %1350 = vst [vmem:[#allocation2 + $0xf0] sm:$0xff] 0.0
          %1351 = vst [vmem:[#allocation2 + $0xf8] sm:$0xff] 0.0
          %1352 = vst [vmem:[#allocation2 + $0x100] sm:$0xff] 0.0
          %1353 = vst [vmem:[#allocation2 + $0x108] sm:$0xff] 0.0
          %1354 = vst [vmem:[#allocation2 + $0x110] sm:$0xff] 0.0
          %1355 = vst [vmem:[#allocation2 + $0x118] sm:$0xff] 0.0
          %1356 = vst [vmem:[#allocation2 + $0x120] sm:$0xff] 0.0
          %1357 = vst [vmem:[#allocation2 + $0x128] sm:$0xff] 0.0
          %1358 = vst [vmem:[#allocation2 + $0x130] sm:$0xff] 0.0
          %1359 = vst [vmem:[#allocation2 + $0x138] sm:$0xff] 0.0
          %1360 = vst [vmem:[#allocation2 + $0x140] sm:$0xff] 0.0
          %1361 = vst [vmem:[#allocation2 + $0x148] sm:$0xff] 0.0
          %1362 = vst [vmem:[#allocation2 + $0x150] sm:$0xff] 0.0
          %1363 = vst [vmem:[#allocation2 + $0x158] sm:$0xff] 0.0
          %1364 = vst [vmem:[#allocation2 + $0x160] sm:$0xff] 0.0
          %1365 = vst [vmem:[#allocation2 + $0x168] sm:$0xff] 0.0
          %1366 = vst [vmem:[#allocation2 + $0x170] sm:$0xff] 0.0
          %1367 = vst [vmem:[#allocation2 + $0x178] sm:$0xff] 0.0
          %1368 = vst [vmem:[#allocation2 + $0x180] sm:$0xff] 0.0
          %1369 = vst [vmem:[#allocation2 + $0x188] sm:$0xff] 0.0
          %1370 = vst [vmem:[#allocation2 + $0x190] sm:$0xff] 0.0
          %1371 = vst [vmem:[#allocation2 + $0x198] sm:$0xff] 0.0
          %1372 = vst [vmem:[#allocation2 + $0x1a0] sm:$0xff] 0.0
          %1373 = vst [vmem:[#allocation2 + $0x1a8] sm:$0xff] 0.0
          %1374 = vst [vmem:[#allocation2 + $0x1b0] sm:$0xff] 0.0
          %1375 = vst [vmem:[#allocation2 + $0x1b8] sm:$0xff] 0.0
          %1376 = vst [vmem:[#allocation2 + $0x1c0] sm:$0xff] 0.0
          %1377 = vst [vmem:[#allocation2 + $0x1c8] sm:$0xff] 0.0
          %1378 = vst [vmem:[#allocation2 + $0x1d0] sm:$0xff] 0.0
          %1379 = vst [vmem:[#allocation2 + $0x1d8] sm:$0xff] 0.0
          %1380 = vst [vmem:[#allocation2 + $0x1e0] sm:$0xff] 0.0
          %1381 = vst [vmem:[#allocation2 + $0x1e8] sm:$0xff] 0.0
          %1382 = vst [vmem:[#allocation2 + $0x1f0] sm:$0xff] 0.0
          %1383 = vst [vmem:[#allocation2 + $0x1f8] sm:$0xff] 0.0
        $region104: #{clf_head_pallas.1} parent=91 // pred_fallthru
          _
        %v1384 = vld [vmem:[%s1291] sm:$0xff]
        %v1385 = vld [vmem:[%s1291 + $0x8] sm:$0xff]
        %v1386 = vld [vmem:[%s1291 + $0x10] sm:$0xf]
        %v1387 = vld [vmem:[%s1291 + $0x14] sm:$0xff]
        %v1388 = vld [vmem:[%s1291 + $0x1c] sm:$0xff]
        %v1389 = vld [vmem:[%s1291 + $0x24] sm:$0xf]
        %v1390 = vld [vmem:[%s1291 + $0x28] sm:$0xff]
        %v1391 = vld [vmem:[%s1291 + $0x30] sm:$0xff]
        %v1392 = vld [vmem:[%s1291 + $0x38] sm:$0xf]
        %v1393 = vld [vmem:[%s1291 + $0x3c] sm:$0xff]
        %v1394 = vld [vmem:[%s1291 + $0x44] sm:$0xff]
        %v1395 = vld [vmem:[%s1291 + $0x4c] sm:$0xf]
        %v1396 = vld [vmem:[%s1284] sm:$0xff]
        %v1397 = vld [vmem:[%s1284 + $0x8] sm:$0xff]
        %v1398 = vld [vmem:[%s1284 + $0x10] sm:$0xff]
        %v1399 = vld [vmem:[%s1284 + $0x18] sm:$0xff]
        %v1400 = vld [vmem:[%s1284 + $0x20] sm:$0xff]
        %v1401 = vld [vmem:[%s1284 + $0x28] sm:$0xff]
        %v1402 = vld [vmem:[%s1284 + $0x30] sm:$0xff]
        %v1403 = vld [vmem:[%s1284 + $0x38] sm:$0xff]
        %v1404 = vld [vmem:[%s1284 + $0x40] sm:$0xff]
        %v1405 = vld [vmem:[%s1284 + $0x48] sm:$0xff]
        %v1406 = vld [vmem:[%s1284 + $0x50] sm:$0xff]
        %v1407 = vld [vmem:[%s1284 + $0x58] sm:$0xff]
        %v1408 = vld [vmem:[%s1284 + $0x60] sm:$0xff]
        %v1409 = vld [vmem:[%s1284 + $0x68] sm:$0xff]
        %v1410 = vld [vmem:[%s1284 + $0x70] sm:$0xff]
        %v1411 = vld [vmem:[%s1284 + $0x78] sm:$0xff]
        %v1412 = vld [vmem:[%s1284 + $0x80] sm:$0xff]
        %v1413 = vld [vmem:[%s1284 + $0x88] sm:$0xff]
        %v1414 = vld [vmem:[%s1284 + $0x90] sm:$0xff]
        %v1415 = vld [vmem:[%s1284 + $0x98] sm:$0xff]
        %v1416 = vld [vmem:[%s1284 + $0xa0] sm:$0xff]
        %v1417 = vld [vmem:[%s1284 + $0xa8] sm:$0xff]
        %v1418 = vld [vmem:[%s1284 + $0xb0] sm:$0xff]
        %v1419 = vld [vmem:[%s1284 + $0xb8] sm:$0xff]
        %v1420 = vld [vmem:[%s1284 + $0xc0] sm:$0xff]
        %v1421 = vld [vmem:[%s1284 + $0xc8] sm:$0xff]
        %v1422 = vld [vmem:[%s1284 + $0xd0] sm:$0xff]
        %v1423 = vld [vmem:[%s1284 + $0xd8] sm:$0xff]
        %v1424 = vld [vmem:[%s1284 + $0xe0] sm:$0xff]
        %v1425 = vld [vmem:[%s1284 + $0xe8] sm:$0xff]
        %v1426 = vld [vmem:[%s1284 + $0xf0] sm:$0xff]
        %v1427 = vld [vmem:[%s1284 + $0xf8] sm:$0xff]
        %v1428 = vld [vmem:[%s1284 + $0x100] sm:$0xff]
        %v1429 = vld [vmem:[%s1284 + $0x108] sm:$0xff]
        %v1430 = vld [vmem:[%s1284 + $0x110] sm:$0xff]
        %v1431 = vld [vmem:[%s1284 + $0x118] sm:$0xff]
        %v1432 = vld [vmem:[%s1284 + $0x120] sm:$0xff]
        %v1433 = vld [vmem:[%s1284 + $0x128] sm:$0xff]
        %v1434 = vld [vmem:[%s1284 + $0x130] sm:$0xff]
        %v1435 = vld [vmem:[%s1284 + $0x138] sm:$0xff]
        %v1436 = vld [vmem:[%s1284 + $0x140] sm:$0xff]
        %v1437 = vld [vmem:[%s1284 + $0x148] sm:$0xff]
        %v1438 = vld [vmem:[%s1284 + $0x150] sm:$0xff]
        %v1439 = vld [vmem:[%s1284 + $0x158] sm:$0xff]
        %v1440 = vld [vmem:[%s1284 + $0x160] sm:$0xff]
        %v1441 = vld [vmem:[%s1284 + $0x168] sm:$0xff]
        %v1442 = vld [vmem:[%s1284 + $0x170] sm:$0xff]
        %v1443 = vld [vmem:[%s1284 + $0x178] sm:$0xff]
        %v1444 = vld [vmem:[%s1284 + $0x180] sm:$0xff]
        %v1445 = vld [vmem:[%s1284 + $0x188] sm:$0xff]
        %v1446 = vld [vmem:[%s1284 + $0x190] sm:$0xff]
        %v1447 = vld [vmem:[%s1284 + $0x198] sm:$0xff]
        %v1448 = vld [vmem:[%s1284 + $0x1a0] sm:$0xff]
        %v1449 = vld [vmem:[%s1284 + $0x1a8] sm:$0xff]
        %v1450 = vld [vmem:[%s1284 + $0x1b0] sm:$0xff]
        %v1451 = vld [vmem:[%s1284 + $0x1b8] sm:$0xff]
        %v1452 = vld [vmem:[%s1284 + $0x1c0] sm:$0xff]
        %v1453 = vld [vmem:[%s1284 + $0x1c8] sm:$0xff]
        %v1454 = vld [vmem:[%s1284 + $0x1d0] sm:$0xff]
        %v1455 = vld [vmem:[%s1284 + $0x1d8] sm:$0xff]
        %v1456 = vld [vmem:[%s1284 + $0x1e0] sm:$0xff]
        %v1457 = vld [vmem:[%s1284 + $0x1e8] sm:$0xff]
        %v1458 = vld [vmem:[%s1284 + $0x1f0] sm:$0xff]
        %v1459 = vld [vmem:[%s1284 + $0x1f8] sm:$0xff]
        %v1460 = vld [vmem:[%s1284 + $0x200] sm:$0xff]
        %v1461 = vld [vmem:[%s1284 + $0x208] sm:$0xff]
        %v1462 = vld [vmem:[%s1284 + $0x210] sm:$0xff]
        %v1463 = vld [vmem:[%s1284 + $0x218] sm:$0xff]
        %v1464 = vld [vmem:[%s1284 + $0x220] sm:$0xff]
        %v1465 = vld [vmem:[%s1284 + $0x228] sm:$0xff]
        %v1466 = vld [vmem:[%s1284 + $0x230] sm:$0xff]
        %v1467 = vld [vmem:[%s1284 + $0x238] sm:$0xff]
        %v1468 = vld [vmem:[%s1284 + $0x240] sm:$0xff]
        %v1469 = vld [vmem:[%s1284 + $0x248] sm:$0xff]
        %v1470 = vld [vmem:[%s1284 + $0x250] sm:$0xff]
        %v1471 = vld [vmem:[%s1284 + $0x258] sm:$0xff]
        %v1472 = vld [vmem:[%s1284 + $0x260] sm:$0xff]
        %v1473 = vld [vmem:[%s1284 + $0x268] sm:$0xff]
        %v1474 = vld [vmem:[%s1284 + $0x270] sm:$0xff]
        %v1475 = vld [vmem:[%s1284 + $0x278] sm:$0xff]
        %v1488 = vunpack.c.l.b16 %v1384
        %v1489 = vunpack.c.h.b16 %v1384
        %v1490 = vunpack.c.l.b16 %v1385
        %v1491 = vunpack.c.h.b16 %v1385
        %v1492 = vunpack.c.l.b16 %v1386
        %v1493 = vunpack.c.l.b16 %v1387
        %v1494 = vunpack.c.h.b16 %v1387
        %v1495 = vunpack.c.l.b16 %v1388
        %v1496 = vunpack.c.h.b16 %v1388
        %v1497 = vunpack.c.l.b16 %v1389
        %v1498 = vunpack.c.l.b16 %v1390
        %v1499 = vunpack.c.h.b16 %v1390
        %v1500 = vunpack.c.l.b16 %v1391
        %v1501 = vunpack.c.h.b16 %v1391
        %v1502 = vunpack.c.l.b16 %v1392
        %v1503 = vunpack.c.l.b16 %v1393
        %v1504 = vunpack.c.h.b16 %v1393
        %v1505 = vunpack.c.l.b16 %v1394
        %v1506 = vunpack.c.h.b16 %v1394
        %v1507 = vunpack.c.l.b16 %v1395
        %v1508 = vpack.c.b16 %v1493, %v1488
        %v1509 = vpack.c.b16 %v1494, %v1489
        %v1510 = vpack.c.b16 %v1495, %v1490
        %v1511 = vpack.c.b16 %v1496, %v1491
        %v1512 = vpack.c.b16 %v1497, %v1492
        %v1513 = vpack.c.b16 %v1503, %v1498
        %v1514 = vpack.c.b16 %v1504, %v1499
        %v1515 = vpack.c.b16 %v1505, %v1500
        %v1516 = vpack.c.b16 %v1506, %v1501
        %v1517 = vpack.c.b16 %v1507, %v1502
        %v1608 = vunpack.c.l.b16 %v1396
        %v1609 = vunpack.c.h.b16 %v1396
        %v1610 = vunpack.c.l.b16 %v1397
        %v1611 = vunpack.c.h.b16 %v1397
        %v1612 = vunpack.c.l.b16 %v1398
        %v1613 = vunpack.c.h.b16 %v1398
        %v1614 = vunpack.c.l.b16 %v1399
        %v1615 = vunpack.c.h.b16 %v1399
        %v1616 = vunpack.c.l.b16 %v1400
        %v1617 = vunpack.c.h.b16 %v1400
        %v1618 = vunpack.c.l.b16 %v1401
        %v1619 = vunpack.c.h.b16 %v1401
        %v1620 = vunpack.c.l.b16 %v1402
        %v1621 = vunpack.c.h.b16 %v1402
        %v1622 = vunpack.c.l.b16 %v1403
        %v1623 = vunpack.c.h.b16 %v1403
        %v1624 = vunpack.c.l.b16 %v1404
        %v1625 = vunpack.c.h.b16 %v1404
        %v1626 = vunpack.c.l.b16 %v1405
        %v1627 = vunpack.c.h.b16 %v1405
        %v1628 = vunpack.c.l.b16 %v1406
        %v1629 = vunpack.c.h.b16 %v1406
        %v1630 = vunpack.c.l.b16 %v1407
        %v1631 = vunpack.c.h.b16 %v1407
        %v1632 = vunpack.c.l.b16 %v1408
        %v1633 = vunpack.c.h.b16 %v1408
        %v1634 = vunpack.c.l.b16 %v1409
        %v1635 = vunpack.c.h.b16 %v1409
        %v1636 = vunpack.c.l.b16 %v1410
        %v1637 = vunpack.c.h.b16 %v1410
        %v1638 = vunpack.c.l.b16 %v1411
        %v1639 = vunpack.c.h.b16 %v1411
        %v1640 = vunpack.c.l.b16 %v1412
        %v1641 = vunpack.c.h.b16 %v1412
        %v1642 = vunpack.c.l.b16 %v1413
        %v1643 = vunpack.c.h.b16 %v1413
        %v1644 = vunpack.c.l.b16 %v1414
        %v1645 = vunpack.c.h.b16 %v1414
        %v1646 = vunpack.c.l.b16 %v1415
        %v1647 = vunpack.c.h.b16 %v1415
        %v1648 = vunpack.c.l.b16 %v1416
        %v1649 = vunpack.c.h.b16 %v1416
        %v1650 = vunpack.c.l.b16 %v1417
        %v1651 = vunpack.c.h.b16 %v1417
        %v1652 = vunpack.c.l.b16 %v1418
        %v1653 = vunpack.c.h.b16 %v1418
        %v1654 = vunpack.c.l.b16 %v1419
        %v1655 = vunpack.c.h.b16 %v1419
        %v1656 = vunpack.c.l.b16 %v1420
        %v1657 = vunpack.c.h.b16 %v1420
        %v1658 = vunpack.c.l.b16 %v1421
        %v1659 = vunpack.c.h.b16 %v1421
        %v1660 = vunpack.c.l.b16 %v1422
        %v1661 = vunpack.c.h.b16 %v1422
        %v1662 = vunpack.c.l.b16 %v1423
        %v1663 = vunpack.c.h.b16 %v1423
        %v1664 = vunpack.c.l.b16 %v1424
        %v1665 = vunpack.c.h.b16 %v1424
        %v1666 = vunpack.c.l.b16 %v1425
        %v1667 = vunpack.c.h.b16 %v1425
        %v1668 = vunpack.c.l.b16 %v1426
        %v1669 = vunpack.c.h.b16 %v1426
        %v1670 = vunpack.c.l.b16 %v1427
        %v1671 = vunpack.c.h.b16 %v1427
        %v1672 = vunpack.c.l.b16 %v1428
        %v1673 = vunpack.c.h.b16 %v1428
        %v1674 = vunpack.c.l.b16 %v1429
        %v1675 = vunpack.c.h.b16 %v1429
        %v1676 = vunpack.c.l.b16 %v1430
        %v1677 = vunpack.c.h.b16 %v1430
        %v1678 = vunpack.c.l.b16 %v1431
        %v1679 = vunpack.c.h.b16 %v1431
        %v1680 = vunpack.c.l.b16 %v1432
        %v1681 = vunpack.c.h.b16 %v1432
        %v1682 = vunpack.c.l.b16 %v1433
        %v1683 = vunpack.c.h.b16 %v1433
        %v1684 = vunpack.c.l.b16 %v1434
        %v1685 = vunpack.c.h.b16 %v1434
        %v1686 = vunpack.c.l.b16 %v1435
        %v1687 = vunpack.c.h.b16 %v1435
        %v1688 = vunpack.c.l.b16 %v1436
        %v1689 = vunpack.c.h.b16 %v1436
        %v1690 = vunpack.c.l.b16 %v1437
        %v1691 = vunpack.c.h.b16 %v1437
        %v1692 = vunpack.c.l.b16 %v1438
        %v1693 = vunpack.c.h.b16 %v1438
        %v1694 = vunpack.c.l.b16 %v1439
        %v1695 = vunpack.c.h.b16 %v1439
        %v1696 = vunpack.c.l.b16 %v1440
        %v1697 = vunpack.c.h.b16 %v1440
        %v1698 = vunpack.c.l.b16 %v1441
        %v1699 = vunpack.c.h.b16 %v1441
        %v1700 = vunpack.c.l.b16 %v1442
        %v1701 = vunpack.c.h.b16 %v1442
        %v1702 = vunpack.c.l.b16 %v1443
        %v1703 = vunpack.c.h.b16 %v1443
        %v1704 = vunpack.c.l.b16 %v1444
        %v1705 = vunpack.c.h.b16 %v1444
        %v1706 = vunpack.c.l.b16 %v1445
        %v1707 = vunpack.c.h.b16 %v1445
        %v1708 = vunpack.c.l.b16 %v1446
        %v1709 = vunpack.c.h.b16 %v1446
        %v1710 = vunpack.c.l.b16 %v1447
        %v1711 = vunpack.c.h.b16 %v1447
        %v1712 = vunpack.c.l.b16 %v1448
        %v1713 = vunpack.c.h.b16 %v1448
        %v1714 = vunpack.c.l.b16 %v1449
        %v1715 = vunpack.c.h.b16 %v1449
        %v1716 = vunpack.c.l.b16 %v1450
        %v1717 = vunpack.c.h.b16 %v1450
        %v1718 = vunpack.c.l.b16 %v1451
        %v1719 = vunpack.c.h.b16 %v1451
        %v1720 = vunpack.c.l.b16 %v1452
        %v1721 = vunpack.c.h.b16 %v1452
        %v1722 = vunpack.c.l.b16 %v1453
        %v1723 = vunpack.c.h.b16 %v1453
        %v1724 = vunpack.c.l.b16 %v1454
        %v1725 = vunpack.c.h.b16 %v1454
        %v1726 = vunpack.c.l.b16 %v1455
        %v1727 = vunpack.c.h.b16 %v1455
        %v1728 = vunpack.c.l.b16 %v1456
        %v1729 = vunpack.c.h.b16 %v1456
        %v1730 = vunpack.c.l.b16 %v1457
        %v1731 = vunpack.c.h.b16 %v1457
        %v1732 = vunpack.c.l.b16 %v1458
        %v1733 = vunpack.c.h.b16 %v1458
        %v1734 = vunpack.c.l.b16 %v1459
        %v1735 = vunpack.c.h.b16 %v1459
        %v1736 = vunpack.c.l.b16 %v1460
        %v1737 = vunpack.c.h.b16 %v1460
        %v1738 = vunpack.c.l.b16 %v1461
        %v1739 = vunpack.c.h.b16 %v1461
        %v1740 = vunpack.c.l.b16 %v1462
        %v1741 = vunpack.c.h.b16 %v1462
        %v1742 = vunpack.c.l.b16 %v1463
        %v1743 = vunpack.c.h.b16 %v1463
        %v1744 = vunpack.c.l.b16 %v1464
        %v1745 = vunpack.c.h.b16 %v1464
        %v1746 = vunpack.c.l.b16 %v1465
        %v1747 = vunpack.c.h.b16 %v1465
        %v1748 = vunpack.c.l.b16 %v1466
        %v1749 = vunpack.c.h.b16 %v1466
        %v1750 = vunpack.c.l.b16 %v1467
        %v1751 = vunpack.c.h.b16 %v1467
        %v1752 = vunpack.c.l.b16 %v1468
        %v1753 = vunpack.c.h.b16 %v1468
        %v1754 = vunpack.c.l.b16 %v1469
        %v1755 = vunpack.c.h.b16 %v1469
        %v1756 = vunpack.c.l.b16 %v1470
        %v1757 = vunpack.c.h.b16 %v1470
        %v1758 = vunpack.c.l.b16 %v1471
        %v1759 = vunpack.c.h.b16 %v1471
        %v1760 = vunpack.c.l.b16 %v1472
        %v1761 = vunpack.c.h.b16 %v1472
        %v1762 = vunpack.c.l.b16 %v1473
        %v1763 = vunpack.c.h.b16 %v1473
        %v1764 = vunpack.c.l.b16 %v1474
        %v1765 = vunpack.c.h.b16 %v1474
        %v1766 = vunpack.c.l.b16 %v1475
        %v1767 = vunpack.c.h.b16 %v1475
        %v1768 = vpack.c.b16 %v1610, %v1608
        %v1769 = vpack.c.b16 %v1611, %v1609
        %v1770 = vpack.c.b16 %v1614, %v1612
        %v1771 = vpack.c.b16 %v1615, %v1613
        %v1772 = vpack.c.b16 %v1618, %v1616
        %v1773 = vpack.c.b16 %v1619, %v1617
        %v1774 = vpack.c.b16 %v1622, %v1620
        %v1775 = vpack.c.b16 %v1623, %v1621
        %v1776 = vpack.c.b16 %v1626, %v1624
        %v1777 = vpack.c.b16 %v1627, %v1625
        %v1778 = vpack.c.b16 %v1630, %v1628
        %v1779 = vpack.c.b16 %v1631, %v1629
        %v1780 = vpack.c.b16 %v1634, %v1632
        %v1781 = vpack.c.b16 %v1635, %v1633
        %v1782 = vpack.c.b16 %v1638, %v1636
        %v1783 = vpack.c.b16 %v1639, %v1637
        %v1784 = vpack.c.b16 %v1642, %v1640
        %v1785 = vpack.c.b16 %v1643, %v1641
        %v1786 = vpack.c.b16 %v1646, %v1644
        %v1787 = vpack.c.b16 %v1647, %v1645
        %v1788 = vpack.c.b16 %v1650, %v1648
        %v1789 = vpack.c.b16 %v1651, %v1649
        %v1790 = vpack.c.b16 %v1654, %v1652
        %v1791 = vpack.c.b16 %v1655, %v1653
        %v1792 = vpack.c.b16 %v1658, %v1656
        %v1793 = vpack.c.b16 %v1659, %v1657
        %v1794 = vpack.c.b16 %v1662, %v1660
        %v1795 = vpack.c.b16 %v1663, %v1661
        %v1796 = vpack.c.b16 %v1666, %v1664
        %v1797 = vpack.c.b16 %v1667, %v1665
        %v1798 = vpack.c.b16 %v1670, %v1668
        %v1799 = vpack.c.b16 %v1671, %v1669
        %v1800 = vpack.c.b16 %v1674, %v1672
        %v1801 = vpack.c.b16 %v1675, %v1673
        %v1802 = vpack.c.b16 %v1678, %v1676
        %v1803 = vpack.c.b16 %v1679, %v1677
        %v1804 = vpack.c.b16 %v1682, %v1680
        %v1805 = vpack.c.b16 %v1683, %v1681
        %v1806 = vpack.c.b16 %v1686, %v1684
        %v1807 = vpack.c.b16 %v1687, %v1685
        %v1808 = vpack.c.b16 %v1690, %v1688
        %v1809 = vpack.c.b16 %v1691, %v1689
        %v1810 = vpack.c.b16 %v1694, %v1692
        %v1811 = vpack.c.b16 %v1695, %v1693
        %v1812 = vpack.c.b16 %v1698, %v1696
        %v1813 = vpack.c.b16 %v1699, %v1697
        %v1814 = vpack.c.b16 %v1702, %v1700
        %v1815 = vpack.c.b16 %v1703, %v1701
        %v1816 = vpack.c.b16 %v1706, %v1704
        %v1817 = vpack.c.b16 %v1707, %v1705
        %v1818 = vpack.c.b16 %v1710, %v1708
        %v1819 = vpack.c.b16 %v1711, %v1709
        %v1820 = vpack.c.b16 %v1714, %v1712
        %v1821 = vpack.c.b16 %v1715, %v1713
        %v1822 = vpack.c.b16 %v1718, %v1716
        %v1823 = vpack.c.b16 %v1719, %v1717
        %v1824 = vpack.c.b16 %v1722, %v1720
        %v1825 = vpack.c.b16 %v1723, %v1721
        %v1826 = vpack.c.b16 %v1726, %v1724
        %v1827 = vpack.c.b16 %v1727, %v1725
        %v1828 = vpack.c.b16 %v1730, %v1728
        %v1829 = vpack.c.b16 %v1731, %v1729
        %v1830 = vpack.c.b16 %v1734, %v1732
        %v1831 = vpack.c.b16 %v1735, %v1733
        %v1832 = vpack.c.b16 %v1738, %v1736
        %v1833 = vpack.c.b16 %v1739, %v1737
        %v1834 = vpack.c.b16 %v1742, %v1740
        %v1835 = vpack.c.b16 %v1743, %v1741
        %v1836 = vpack.c.b16 %v1746, %v1744
        %v1837 = vpack.c.b16 %v1747, %v1745
        %v1838 = vpack.c.b16 %v1750, %v1748
        %v1839 = vpack.c.b16 %v1751, %v1749
        %v1840 = vpack.c.b16 %v1754, %v1752
        %v1841 = vpack.c.b16 %v1755, %v1753
        %v1842 = vpack.c.b16 %v1758, %v1756
        %v1843 = vpack.c.b16 %v1759, %v1757
        %v1844 = vpack.c.b16 %v1762, %v1760
        %v1845 = vpack.c.b16 %v1763, %v1761
        %v1846 = vpack.c.b16 %v1766, %v1764
        %v1847 = vpack.c.b16 %v1767, %v1765
        %1928 = vmatprep.subr.bf16.mxu0 %v1783
        %1929 = vmatpush1.bf16.msra.mxu0 %v1782
        %1930 = vmatprep.subr.bf16.mxu0 %v1781
        %1931 = vmatpush1.bf16.msra.mxu0 %v1780
        %1932 = vmatprep.subr.bf16.mxu0 %v1779
        %1933 = vmatpush1.bf16.msra.mxu0 %v1778
        %1934 = vmatprep.subr.bf16.mxu0 %v1777
        %1935 = vmatpush1.bf16.msra.mxu0 %v1776
        %1936 = vmatprep.subr.bf16.mxu0 %v1775
        %1937 = vmatpush1.bf16.msra.mxu0 %v1774
        %1938 = vmatprep.subr.bf16.mxu0 %v1773
        %1939 = vmatpush1.bf16.msra.mxu0 %v1772
        %1940 = vmatprep.subr.bf16.mxu0 %v1771
        %1941 = vmatpush1.bf16.msra.mxu0 %v1770
        %1942 = vmatprep.subr.bf16.mxu0 %v1769
        %1943 = vmatpush1.bf16.msra.mxu0 %v1768
        %1944 = vmatprep.subr.bf16.mxu0 %v1799
        %1945 = vmatpush2.bf16.msra.mxu0 %v1798
        %1946 = vmatprep.subr.bf16.mxu0 %v1797
        %1947 = vmatpush2.bf16.msra.mxu0 %v1796
        %1948 = vmatprep.subr.bf16.mxu0 %v1795
        %1949 = vmatpush2.bf16.msra.mxu0 %v1794
        %1950 = vmatprep.subr.bf16.mxu0 %v1793
        %1951 = vmatpush2.bf16.msra.mxu0 %v1792
        %1952 = vmatprep.subr.bf16.mxu0 %v1791
        %1953 = vmatpush2.bf16.msra.mxu0 %v1790
        %1954 = vmatprep.subr.bf16.mxu0 %v1789
        %1955 = vmatpush2.bf16.msra.mxu0 %v1788
        %1956 = vmatprep.subr.bf16.mxu0 %v1787
        %1957 = vmatpush2.bf16.msra.mxu0 %v1786
        %1958 = vmatprep.subr.bf16.mxu0 %v1785
        %1959 = vmatpush2.bf16.msra.mxu0 %v1784
        %1960 = vmatprep.mubr.bf16.mxu0 %v1509
        %1961 = vmatmul.mubr.bf16.gmra.mxu0 %v1508
        %v1962 = vpop.f32.mrf.mxu0
        %v1963 = vadd.f32 0.0, %v1962
        %v1964 = vpop.f32.mrf.mxu0
        %v1965 = vadd.f32 0.0, %v1964
        %v1966 = vpop.f32.mrf.mxu0
        %v1967 = vadd.f32 0.0, %v1966
        %v1968 = vpop.f32.mrf.mxu0
        %v1969 = vadd.f32 0.0, %v1968
        %1970 = vmatprep.mubr.bf16.mxu0 %v1514
        %1971 = vmatmul.mubr.bf16.gmra.mxu0 %v1513
        %v1972 = vpop.f32.mrf.mxu0
        %v1973 = vadd.f32 0.0, %v1972
        %v1974 = vpop.f32.mrf.mxu0
        %v1975 = vadd.f32 0.0, %v1974
        %v1976 = vpop.f32.mrf.mxu0
        %v1977 = vadd.f32 0.0, %v1976
        %v1978 = vpop.f32.mrf.mxu0
        %v1979 = vadd.f32 0.0, %v1978
        %1980 = vdwg.mxu0
        %1981 = vmatprep.subr.bf16.mxu0 %v1815
        %1982 = vmatpush1.bf16.msra.mxu0 %v1814
        %1983 = vmatprep.subr.bf16.mxu0 %v1813
        %1984 = vmatpush1.bf16.msra.mxu0 %v1812
        %1985 = vmatprep.subr.bf16.mxu0 %v1811
        %1986 = vmatpush1.bf16.msra.mxu0 %v1810
        %1987 = vmatprep.subr.bf16.mxu0 %v1809
        %1988 = vmatpush1.bf16.msra.mxu0 %v1808
        %1989 = vmatprep.subr.bf16.mxu0 %v1807
        %1990 = vmatpush1.bf16.msra.mxu0 %v1806
        %1991 = vmatprep.subr.bf16.mxu0 %v1805
        %1992 = vmatpush1.bf16.msra.mxu0 %v1804
        %1993 = vmatprep.subr.bf16.mxu0 %v1803
        %1994 = vmatpush1.bf16.msra.mxu0 %v1802
        %1995 = vmatprep.subr.bf16.mxu0 %v1801
        %1996 = vmatpush1.bf16.msra.mxu0 %v1800
        %1997 = vmatprep.subr.bf16.mxu0 %v1831
        %1998 = vmatpush2.bf16.msra.mxu0 %v1830
        %1999 = vmatprep.subr.bf16.mxu0 %v1829
        %2000 = vmatpush2.bf16.msra.mxu0 %v1828
        %2001 = vmatprep.subr.bf16.mxu0 %v1827
        %2002 = vmatpush2.bf16.msra.mxu0 %v1826
        %2003 = vmatprep.subr.bf16.mxu0 %v1825
        %2004 = vmatpush2.bf16.msra.mxu0 %v1824
        %2005 = vmatprep.subr.bf16.mxu0 %v1823
        %2006 = vmatpush2.bf16.msra.mxu0 %v1822
        %2007 = vmatprep.subr.bf16.mxu0 %v1821
        %2008 = vmatpush2.bf16.msra.mxu0 %v1820
        %2009 = vmatprep.subr.bf16.mxu0 %v1819
        %2010 = vmatpush2.bf16.msra.mxu0 %v1818
        %2011 = vmatprep.subr.bf16.mxu0 %v1817
        %2012 = vmatpush2.bf16.msra.mxu0 %v1816
        %2013 = vmatprep.mubr.bf16.mxu0 %v1511
        %2014 = vmatmul.mubr.bf16.gmra.mxu0 %v1510
        %v2015 = vpop.f32.mrf.mxu0
        %v2016 = vadd.f32 %v1963, %v2015
        %v2017 = vpop.f32.mrf.mxu0
        %v2018 = vadd.f32 %v1965, %v2017
        %v2019 = vpop.f32.mrf.mxu0
        %v2020 = vadd.f32 %v1967, %v2019
        %v2021 = vpop.f32.mrf.mxu0
        %v2022 = vadd.f32 %v1969, %v2021
        %2023 = vmatprep.mubr.bf16.mxu0 %v1516
        %2024 = vmatmul.mubr.bf16.gmra.mxu0 %v1515
        %v2025 = vpop.f32.mrf.mxu0
        %v2026 = vadd.f32 %v1973, %v2025
        %v2027 = vpop.f32.mrf.mxu0
        %v2028 = vadd.f32 %v1975, %v2027
        %v2029 = vpop.f32.mrf.mxu0
        %v2030 = vadd.f32 %v1977, %v2029
        %v2031 = vpop.f32.mrf.mxu0
        %v2032 = vadd.f32 %v1979, %v2031
        %2033 = vdwg.mxu0
        %2034 = vmatprep.subr.bf16.mxu0 %v1847
        %2035 = vmatpush1.bf16.msra.mxu0 %v1846
        %2036 = vmatprep.subr.bf16.mxu0 %v1845
        %2037 = vmatpush1.bf16.msra.mxu0 %v1844
        %2038 = vmatprep.subr.bf16.mxu0 %v1843
        %2039 = vmatpush1.bf16.msra.mxu0 %v1842
        %2040 = vmatprep.subr.bf16.mxu0 %v1841
        %2041 = vmatpush1.bf16.msra.mxu0 %v1840
        %2042 = vmatprep.subr.bf16.mxu0 %v1839
        %2043 = vmatpush1.bf16.msra.mxu0 %v1838
        %2044 = vmatprep.subr.bf16.mxu0 %v1837
        %2045 = vmatpush1.bf16.msra.mxu0 %v1836
        %2046 = vmatprep.subr.bf16.mxu0 %v1835
        %2047 = vmatpush1.bf16.msra.mxu0 %v1834
        %2048 = vmatprep.subr.bf16.mxu0 %v1833
        %2049 = vmatpush1.bf16.msra.mxu0 %v1832
        %2050 = vmatprep.subr.bf16.mxu0 0
        %2051 = vmatpush2.bf16.msra.mxu0 0
        %2052 = vmatprep.subr.bf16.mxu0 0
        %2053 = vmatpush2.bf16.msra.mxu0 0
        %2054 = vmatprep.subr.bf16.mxu0 0
        %2055 = vmatpush2.bf16.msra.mxu0 0
        %2056 = vmatprep.subr.bf16.mxu0 0
        %2057 = vmatpush2.bf16.msra.mxu0 0
        %2058 = vmatprep.subr.bf16.mxu0 0
        %2059 = vmatpush2.bf16.msra.mxu0 0
        %2060 = vmatprep.subr.bf16.mxu0 0
        %2061 = vmatpush2.bf16.msra.mxu0 0
        %2062 = vmatprep.subr.bf16.mxu0 0
        %2063 = vmatpush2.bf16.msra.mxu0 0
        %2064 = vmatprep.subr.bf16.mxu0 0
        %2065 = vmatpush2.bf16.msra.mxu0 0
        %2066 = vmatprep.mubr.bf16.mxu0 0
        %2067 = vmatmul.mubr.bf16.gmra.mxu0 %v1512
        %v2068 = vpop.f32.mrf.mxu0
        %v2069 = vadd.f32 %v2016, %v2068
        %v2070 = vpop.f32.mrf.mxu0
        %v2071 = vadd.f32 %v2018, %v2070
        %v2072 = vpop.f32.mrf.mxu0
        %v2073 = vadd.f32 %v2020, %v2072
        %v2074 = vpop.f32.mrf.mxu0
        %v2075 = vadd.f32 %v2022, %v2074
        %2076 = vmatprep.mubr.bf16.mxu0 0
        %2077 = vmatmul.mubr.bf16.gmra.mxu0 %v1517
        %v2078 = vpop.f32.mrf.mxu0
        %v2079 = vadd.f32 %v2026, %v2078
        %v2080 = vpop.f32.mrf.mxu0
        %v2081 = vadd.f32 %v2028, %v2080
        %v2082 = vpop.f32.mrf.mxu0
        %v2083 = vadd.f32 %v2030, %v2082
        %v2084 = vpop.f32.mrf.mxu0
        %v2085 = vadd.f32 %v2032, %v2084
        %2086 = vdwg.mxu0
        %v2087 = vld [vmem:[#allocation2] sm:$0xff]
        %v2088 = vld [vmem:[#allocation2 + $0x8] sm:$0xff]
        %v2089 = vld [vmem:[#allocation2 + $0x10] sm:$0xff]
        %v2090 = vld [vmem:[#allocation2 + $0x18] sm:$0xff]
        %v2091 = vld [vmem:[#allocation2 + $0x20] sm:$0xff]
        %v2092 = vld [vmem:[#allocation2 + $0x28] sm:$0xff]
        %v2093 = vld [vmem:[#allocation2 + $0x30] sm:$0xff]
        %v2094 = vld [vmem:[#allocation2 + $0x38] sm:$0xff]
        %v2095 = vadd.f32 %v2087, %v2069
        %v2096 = vadd.f32 %v2088, %v2071
        %v2097 = vadd.f32 %v2089, %v2073
        %v2098 = vadd.f32 %v2090, %v2075
        %v2099 = vadd.f32 %v2091, %v2079
        %v2100 = vadd.f32 %v2092, %v2081
        %v2101 = vadd.f32 %v2093, %v2083
        %v2102 = vadd.f32 %v2094, %v2085
        %2103 = vst [vmem:[#allocation2] sm:$0xff] %v2095
        %2104 = vst [vmem:[#allocation2 + $0x8] sm:$0xff] %v2096
        %2105 = vst [vmem:[#allocation2 + $0x10] sm:$0xff] %v2097
        %2106 = vst [vmem:[#allocation2 + $0x18] sm:$0xff] %v2098
        %2107 = vst [vmem:[#allocation2 + $0x20] sm:$0xff] %v2099
        %2108 = vst [vmem:[#allocation2 + $0x28] sm:$0xff] %v2100
        %2109 = vst [vmem:[#allocation2 + $0x30] sm:$0xff] %v2101
        %2110 = vst [vmem:[#allocation2 + $0x38] sm:$0xff] %v2102
        %s2111 = scalar_lea.vmem %s1284, 128 [#allocation3]
        %v2112 = vld [vmem:[%s2111] sm:$0xff]
        %v2113 = vld [vmem:[%s2111 + $0x8] sm:$0xff]
        %v2114 = vld [vmem:[%s2111 + $0x10] sm:$0xff]
        %v2115 = vld [vmem:[%s2111 + $0x18] sm:$0xff]
        %v2116 = vld [vmem:[%s2111 + $0x20] sm:$0xff]
        %v2117 = vld [vmem:[%s2111 + $0x28] sm:$0xff]
        %v2118 = vld [vmem:[%s2111 + $0x30] sm:$0xff]
        %v2119 = vld [vmem:[%s2111 + $0x38] sm:$0xff]
        %v2120 = vld [vmem:[%s2111 + $0x40] sm:$0xff]
        %v2121 = vld [vmem:[%s2111 + $0x48] sm:$0xff]
        %v2122 = vld [vmem:[%s2111 + $0x50] sm:$0xff]
        %v2123 = vld [vmem:[%s2111 + $0x58] sm:$0xff]
        %v2124 = vld [vmem:[%s2111 + $0x60] sm:$0xff]
        %v2125 = vld [vmem:[%s2111 + $0x68] sm:$0xff]
        %v2126 = vld [vmem:[%s2111 + $0x70] sm:$0xff]
        %v2127 = vld [vmem:[%s2111 + $0x78] sm:$0xff]
        %v2128 = vld [vmem:[%s2111 + $0x80] sm:$0xff]
        %v2129 = vld [vmem:[%s2111 + $0x88] sm:$0xff]
        %v2130 = vld [vmem:[%s2111 + $0x90] sm:$0xff]
        %v2131 = vld [vmem:[%s2111 + $0x98] sm:$0xff]
        %v2132 = vld [vmem:[%s2111 + $0xa0] sm:$0xff]
        %v2133 = vld [vmem:[%s2111 + $0xa8] sm:$0xff]
        %v2134 = vld [vmem:[%s2111 + $0xb0] sm:$0xff]
        %v2135 = vld [vmem:[%s2111 + $0xb8] sm:$0xff]
        %v2136 = vld [vmem:[%s2111 + $0xc0] sm:$0xff]
        %v2137 = vld [vmem:[%s2111 + $0xc8] sm:$0xff]
        %v2138 = vld [vmem:[%s2111 + $0xd0] sm:$0xff]
        %v2139 = vld [vmem:[%s2111 + $0xd8] sm:$0xff]
        %v2140 = vld [vmem:[%s2111 + $0xe0] sm:$0xff]
        %v2141 = vld [vmem:[%s2111 + $0xe8] sm:$0xff]
        %v2142 = vld [vmem:[%s2111 + $0xf0] sm:$0xff]
        %v2143 = vld [vmem:[%s2111 + $0xf8] sm:$0xff]
        %v2144 = vld [vmem:[%s2111 + $0x100] sm:$0xff]
        %v2145 = vld [vmem:[%s2111 + $0x108] sm:$0xff]
        %v2146 = vld [vmem:[%s2111 + $0x110] sm:$0xff]
        %v2147 = vld [vmem:[%s2111 + $0x118] sm:$0xff]
        %v2148 = vld [vmem:[%s2111 + $0x120] sm:$0xff]
        %v2149 = vld [vmem:[%s2111 + $0x128] sm:$0xff]
        %v2150 = vld [vmem:[%s2111 + $0x130] sm:$0xff]
        %v2151 = vld [vmem:[%s2111 + $0x138] sm:$0xff]
        %v2152 = vld [vmem:[%s2111 + $0x140] sm:$0xff]
        %v2153 = vld [vmem:[%s2111 + $0x148] sm:$0xff]
        %v2154 = vld [vmem:[%s2111 + $0x150] sm:$0xff]
        %v2155 = vld [vmem:[%s2111 + $0x158] sm:$0xff]
        %v2156 = vld [vmem:[%s2111 + $0x160] sm:$0xff]
        %v2157 = vld [vmem:[%s2111 + $0x168] sm:$0xff]
        %v2158 = vld [vmem:[%s2111 + $0x170] sm:$0xff]
        %v2159 = vld [vmem:[%s2111 + $0x178] sm:$0xff]
        %v2160 = vld [vmem:[%s2111 + $0x180] sm:$0xff]
        %v2161 = vld [vmem:[%s2111 + $0x188] sm:$0xff]
        %v2162 = vld [vmem:[%s2111 + $0x190] sm:$0xff]
        %v2163 = vld [vmem:[%s2111 + $0x198] sm:$0xff]
        %v2164 = vld [vmem:[%s2111 + $0x1a0] sm:$0xff]
        %v2165 = vld [vmem:[%s2111 + $0x1a8] sm:$0xff]
        %v2166 = vld [vmem:[%s2111 + $0x1b0] sm:$0xff]
        %v2167 = vld [vmem:[%s2111 + $0x1b8] sm:$0xff]
        %v2168 = vld [vmem:[%s2111 + $0x1c0] sm:$0xff]
        %v2169 = vld [vmem:[%s2111 + $0x1c8] sm:$0xff]
        %v2170 = vld [vmem:[%s2111 + $0x1d0] sm:$0xff]
        %v2171 = vld [vmem:[%s2111 + $0x1d8] sm:$0xff]
        %v2172 = vld [vmem:[%s2111 + $0x1e0] sm:$0xff]
        %v2173 = vld [vmem:[%s2111 + $0x1e8] sm:$0xff]
        %v2174 = vld [vmem:[%s2111 + $0x1f0] sm:$0xff]
        %v2175 = vld [vmem:[%s2111 + $0x1f8] sm:$0xff]
        %v2176 = vld [vmem:[%s2111 + $0x200] sm:$0xff]
        %v2177 = vld [vmem:[%s2111 + $0x208] sm:$0xff]
        %v2178 = vld [vmem:[%s2111 + $0x210] sm:$0xff]
        %v2179 = vld [vmem:[%s2111 + $0x218] sm:$0xff]
        %v2180 = vld [vmem:[%s2111 + $0x220] sm:$0xff]
        %v2181 = vld [vmem:[%s2111 + $0x228] sm:$0xff]
        %v2182 = vld [vmem:[%s2111 + $0x230] sm:$0xff]
        %v2183 = vld [vmem:[%s2111 + $0x238] sm:$0xff]
        %v2184 = vld [vmem:[%s2111 + $0x240] sm:$0xff]
        %v2185 = vld [vmem:[%s2111 + $0x248] sm:$0xff]
        %v2186 = vld [vmem:[%s2111 + $0x250] sm:$0xff]
        %v2187 = vld [vmem:[%s2111 + $0x258] sm:$0xff]
        %v2188 = vld [vmem:[%s2111 + $0x260] sm:$0xff]
        %v2189 = vld [vmem:[%s2111 + $0x268] sm:$0xff]
        %v2190 = vld [vmem:[%s2111 + $0x270] sm:$0xff]
        %v2191 = vld [vmem:[%s2111 + $0x278] sm:$0xff]
        %v2272 = vunpack.c.l.b16 %v2112
        %v2273 = vunpack.c.h.b16 %v2112
        %v2274 = vunpack.c.l.b16 %v2113
        %v2275 = vunpack.c.h.b16 %v2113
        %v2276 = vunpack.c.l.b16 %v2114
        %v2277 = vunpack.c.h.b16 %v2114
        %v2278 = vunpack.c.l.b16 %v2115
        %v2279 = vunpack.c.h.b16 %v2115
        %v2280 = vunpack.c.l.b16 %v2116
        %v2281 = vunpack.c.h.b16 %v2116
        %v2282 = vunpack.c.l.b16 %v2117
        %v2283 = vunpack.c.h.b16 %v2117
        %v2284 = vunpack.c.l.b16 %v2118
        %v2285 = vunpack.c.h.b16 %v2118
        %v2286 = vunpack.c.l.b16 %v2119
        %v2287 = vunpack.c.h.b16 %v2119
        %v2288 = vunpack.c.l.b16 %v2120
        %v2289 = vunpack.c.h.b16 %v2120
        %v2290 = vunpack.c.l.b16 %v2121
        %v2291 = vunpack.c.h.b16 %v2121
        %v2292 = vunpack.c.l.b16 %v2122
        %v2293 = vunpack.c.h.b16 %v2122
        %v2294 = vunpack.c.l.b16 %v2123
        %v2295 = vunpack.c.h.b16 %v2123
        %v2296 = vunpack.c.l.b16 %v2124
        %v2297 = vunpack.c.h.b16 %v2124
        %v2298 = vunpack.c.l.b16 %v2125
        %v2299 = vunpack.c.h.b16 %v2125
        %v2300 = vunpack.c.l.b16 %v2126
        %v2301 = vunpack.c.h.b16 %v2126
        %v2302 = vunpack.c.l.b16 %v2127
        %v2303 = vunpack.c.h.b16 %v2127
        %v2304 = vunpack.c.l.b16 %v2128
        %v2305 = vunpack.c.h.b16 %v2128
        %v2306 = vunpack.c.l.b16 %v2129
        %v2307 = vunpack.c.h.b16 %v2129
        %v2308 = vunpack.c.l.b16 %v2130
        %v2309 = vunpack.c.h.b16 %v2130
        %v2310 = vunpack.c.l.b16 %v2131
        %v2311 = vunpack.c.h.b16 %v2131
        %v2312 = vunpack.c.l.b16 %v2132
        %v2313 = vunpack.c.h.b16 %v2132
        %v2314 = vunpack.c.l.b16 %v2133
        %v2315 = vunpack.c.h.b16 %v2133
        %v2316 = vunpack.c.l.b16 %v2134
        %v2317 = vunpack.c.h.b16 %v2134
        %v2318 = vunpack.c.l.b16 %v2135
        %v2319 = vunpack.c.h.b16 %v2135
        %v2320 = vunpack.c.l.b16 %v2136
        %v2321 = vunpack.c.h.b16 %v2136
        %v2322 = vunpack.c.l.b16 %v2137
        %v2323 = vunpack.c.h.b16 %v2137
        %v2324 = vunpack.c.l.b16 %v2138
        %v2325 = vunpack.c.h.b16 %v2138
        %v2326 = vunpack.c.l.b16 %v2139
        %v2327 = vunpack.c.h.b16 %v2139
        %v2328 = vunpack.c.l.b16 %v2140
        %v2329 = vunpack.c.h.b16 %v2140
        %v2330 = vunpack.c.l.b16 %v2141
        %v2331 = vunpack.c.h.b16 %v2141
        %v2332 = vunpack.c.l.b16 %v2142
        %v2333 = vunpack.c.h.b16 %v2142
        %v2334 = vunpack.c.l.b16 %v2143
        %v2335 = vunpack.c.h.b16 %v2143
        %v2336 = vunpack.c.l.b16 %v2144
        %v2337 = vunpack.c.h.b16 %v2144
        %v2338 = vunpack.c.l.b16 %v2145
        %v2339 = vunpack.c.h.b16 %v2145
        %v2340 = vunpack.c.l.b16 %v2146
        %v2341 = vunpack.c.h.b16 %v2146
        %v2342 = vunpack.c.l.b16 %v2147
        %v2343 = vunpack.c.h.b16 %v2147
        %v2344 = vunpack.c.l.b16 %v2148
        %v2345 = vunpack.c.h.b16 %v2148
        %v2346 = vunpack.c.l.b16 %v2149
        %v2347 = vunpack.c.h.b16 %v2149
        %v2348 = vunpack.c.l.b16 %v2150
        %v2349 = vunpack.c.h.b16 %v2150
        %v2350 = vunpack.c.l.b16 %v2151
        %v2351 = vunpack.c.h.b16 %v2151
        %v2352 = vunpack.c.l.b16 %v2152
        %v2353 = vunpack.c.h.b16 %v2152
        %v2354 = vunpack.c.l.b16 %v2153
        %v2355 = vunpack.c.h.b16 %v2153
        %v2356 = vunpack.c.l.b16 %v2154
        %v2357 = vunpack.c.h.b16 %v2154
        %v2358 = vunpack.c.l.b16 %v2155
        %v2359 = vunpack.c.h.b16 %v2155
        %v2360 = vunpack.c.l.b16 %v2156
        %v2361 = vunpack.c.h.b16 %v2156
        %v2362 = vunpack.c.l.b16 %v2157
        %v2363 = vunpack.c.h.b16 %v2157
        %v2364 = vunpack.c.l.b16 %v2158
        %v2365 = vunpack.c.h.b16 %v2158
        %v2366 = vunpack.c.l.b16 %v2159
        %v2367 = vunpack.c.h.b16 %v2159
        %v2368 = vunpack.c.l.b16 %v2160
        %v2369 = vunpack.c.h.b16 %v2160
        %v2370 = vunpack.c.l.b16 %v2161
        %v2371 = vunpack.c.h.b16 %v2161
        %v2372 = vunpack.c.l.b16 %v2162
        %v2373 = vunpack.c.h.b16 %v2162
        %v2374 = vunpack.c.l.b16 %v2163
        %v2375 = vunpack.c.h.b16 %v2163
        %v2376 = vunpack.c.l.b16 %v2164
        %v2377 = vunpack.c.h.b16 %v2164
        %v2378 = vunpack.c.l.b16 %v2165
        %v2379 = vunpack.c.h.b16 %v2165
        %v2380 = vunpack.c.l.b16 %v2166
        %v2381 = vunpack.c.h.b16 %v2166
        %v2382 = vunpack.c.l.b16 %v2167
        %v2383 = vunpack.c.h.b16 %v2167
        %v2384 = vunpack.c.l.b16 %v2168
        %v2385 = vunpack.c.h.b16 %v2168
        %v2386 = vunpack.c.l.b16 %v2169
        %v2387 = vunpack.c.h.b16 %v2169
        %v2388 = vunpack.c.l.b16 %v2170
        %v2389 = vunpack.c.h.b16 %v2170
        %v2390 = vunpack.c.l.b16 %v2171
        %v2391 = vunpack.c.h.b16 %v2171
        %v2392 = vunpack.c.l.b16 %v2172
        %v2393 = vunpack.c.h.b16 %v2172
        %v2394 = vunpack.c.l.b16 %v2173
        %v2395 = vunpack.c.h.b16 %v2173
        %v2396 = vunpack.c.l.b16 %v2174
        %v2397 = vunpack.c.h.b16 %v2174
        %v2398 = vunpack.c.l.b16 %v2175
        %v2399 = vunpack.c.h.b16 %v2175
        %v2400 = vunpack.c.l.b16 %v2176
        %v2401 = vunpack.c.h.b16 %v2176
        %v2402 = vunpack.c.l.b16 %v2177
        %v2403 = vunpack.c.h.b16 %v2177
        %v2404 = vunpack.c.l.b16 %v2178
        %v2405 = vunpack.c.h.b16 %v2178
        %v2406 = vunpack.c.l.b16 %v2179
        %v2407 = vunpack.c.h.b16 %v2179
        %v2408 = vunpack.c.l.b16 %v2180
        %v2409 = vunpack.c.h.b16 %v2180
        %v2410 = vunpack.c.l.b16 %v2181
        %v2411 = vunpack.c.h.b16 %v2181
        %v2412 = vunpack.c.l.b16 %v2182
        %v2413 = vunpack.c.h.b16 %v2182
        %v2414 = vunpack.c.l.b16 %v2183
        %v2415 = vunpack.c.h.b16 %v2183
        %v2416 = vunpack.c.l.b16 %v2184
        %v2417 = vunpack.c.h.b16 %v2184
        %v2418 = vunpack.c.l.b16 %v2185
        %v2419 = vunpack.c.h.b16 %v2185
        %v2420 = vunpack.c.l.b16 %v2186
        %v2421 = vunpack.c.h.b16 %v2186
        %v2422 = vunpack.c.l.b16 %v2187
        %v2423 = vunpack.c.h.b16 %v2187
        %v2424 = vunpack.c.l.b16 %v2188
        %v2425 = vunpack.c.h.b16 %v2188
        %v2426 = vunpack.c.l.b16 %v2189
        %v2427 = vunpack.c.h.b16 %v2189
        %v2428 = vunpack.c.l.b16 %v2190
        %v2429 = vunpack.c.h.b16 %v2190
        %v2430 = vunpack.c.l.b16 %v2191
        %v2431 = vunpack.c.h.b16 %v2191
        %v2432 = vpack.c.b16 %v2274, %v2272
        %v2433 = vpack.c.b16 %v2275, %v2273
        %v2434 = vpack.c.b16 %v2278, %v2276
        %v2435 = vpack.c.b16 %v2279, %v2277
        %v2436 = vpack.c.b16 %v2282, %v2280
        %v2437 = vpack.c.b16 %v2283, %v2281
        %v2438 = vpack.c.b16 %v2286, %v2284
        %v2439 = vpack.c.b16 %v2287, %v2285
        %v2440 = vpack.c.b16 %v2290, %v2288
        %v2441 = vpack.c.b16 %v2291, %v2289
        %v2442 = vpack.c.b16 %v2294, %v2292
        %v2443 = vpack.c.b16 %v2295, %v2293
        %v2444 = vpack.c.b16 %v2298, %v2296
        %v2445 = vpack.c.b16 %v2299, %v2297
        %v2446 = vpack.c.b16 %v2302, %v2300
        %v2447 = vpack.c.b16 %v2303, %v2301
        %v2448 = vpack.c.b16 %v2306, %v2304
        %v2449 = vpack.c.b16 %v2307, %v2305
        %v2450 = vpack.c.b16 %v2310, %v2308
        %v2451 = vpack.c.b16 %v2311, %v2309
        %v2452 = vpack.c.b16 %v2314, %v2312
        %v2453 = vpack.c.b16 %v2315, %v2313
        %v2454 = vpack.c.b16 %v2318, %v2316
        %v2455 = vpack.c.b16 %v2319, %v2317
        %v2456 = vpack.c.b16 %v2322, %v2320
        %v2457 = vpack.c.b16 %v2323, %v2321
        %v2458 = vpack.c.b16 %v2326, %v2324
        %v2459 = vpack.c.b16 %v2327, %v2325
        %v2460 = vpack.c.b16 %v2330, %v2328
        %v2461 = vpack.c.b16 %v2331, %v2329
        %v2462 = vpack.c.b16 %v2334, %v2332
        %v2463 = vpack.c.b16 %v2335, %v2333
        %v2464 = vpack.c.b16 %v2338, %v2336
        %v2465 = vpack.c.b16 %v2339, %v2337
        %v2466 = vpack.c.b16 %v2342, %v2340
        %v2467 = vpack.c.b16 %v2343, %v2341
        %v2468 = vpack.c.b16 %v2346, %v2344
        %v2469 = vpack.c.b16 %v2347, %v2345
        %v2470 = vpack.c.b16 %v2350, %v2348
        %v2471 = vpack.c.b16 %v2351, %v2349
        %v2472 = vpack.c.b16 %v2354, %v2352
        %v2473 = vpack.c.b16 %v2355, %v2353
        %v2474 = vpack.c.b16 %v2358, %v2356
        %v2475 = vpack.c.b16 %v2359, %v2357
        %v2476 = vpack.c.b16 %v2362, %v2360
        %v2477 = vpack.c.b16 %v2363, %v2361
        %v2478 = vpack.c.b16 %v2366, %v2364
        %v2479 = vpack.c.b16 %v2367, %v2365
        %v2480 = vpack.c.b16 %v2370, %v2368
        %v2481 = vpack.c.b16 %v2371, %v2369
        %v2482 = vpack.c.b16 %v2374, %v2372
        %v2483 = vpack.c.b16 %v2375, %v2373
        %v2484 = vpack.c.b16 %v2378, %v2376
        %v2485 = vpack.c.b16 %v2379, %v2377
        %v2486 = vpack.c.b16 %v2382, %v2380
        %v2487 = vpack.c.b16 %v2383, %v2381
        %v2488 = vpack.c.b16 %v2386, %v2384
        %v2489 = vpack.c.b16 %v2387, %v2385
        %v2490 = vpack.c.b16 %v2390, %v2388
        %v2491 = vpack.c.b16 %v2391, %v2389
        %v2492 = vpack.c.b16 %v2394, %v2392
        %v2493 = vpack.c.b16 %v2395, %v2393
        %v2494 = vpack.c.b16 %v2398, %v2396
        %v2495 = vpack.c.b16 %v2399, %v2397
        %v2496 = vpack.c.b16 %v2402, %v2400
        %v2497 = vpack.c.b16 %v2403, %v2401
        %v2498 = vpack.c.b16 %v2406, %v2404
        %v2499 = vpack.c.b16 %v2407, %v2405
        %v2500 = vpack.c.b16 %v2410, %v2408
        %v2501 = vpack.c.b16 %v2411, %v2409
        %v2502 = vpack.c.b16 %v2414, %v2412
        %v2503 = vpack.c.b16 %v2415, %v2413
        %v2504 = vpack.c.b16 %v2418, %v2416
        %v2505 = vpack.c.b16 %v2419, %v2417
        %v2506 = vpack.c.b16 %v2422, %v2420
        %v2507 = vpack.c.b16 %v2423, %v2421
        %v2508 = vpack.c.b16 %v2426, %v2424
        %v2509 = vpack.c.b16 %v2427, %v2425
        %v2510 = vpack.c.b16 %v2430, %v2428
        %v2511 = vpack.c.b16 %v2431, %v2429
        %2592 = vmatprep.subr.bf16.mxu0 %v2447
        %2593 = vmatpush1.bf16.msra.mxu0 %v2446
        %2594 = vmatprep.subr.bf16.mxu0 %v2445
        %2595 = vmatpush1.bf16.msra.mxu0 %v2444
        %2596 = vmatprep.subr.bf16.mxu0 %v2443
        %2597 = vmatpush1.bf16.msra.mxu0 %v2442
        %2598 = vmatprep.subr.bf16.mxu0 %v2441
        %2599 = vmatpush1.bf16.msra.mxu0 %v2440
        %2600 = vmatprep.subr.bf16.mxu0 %v2439
        %2601 = vmatpush1.bf16.msra.mxu0 %v2438
        %2602 = vmatprep.subr.bf16.mxu0 %v2437
        %2603 = vmatpush1.bf16.msra.mxu0 %v2436
        %2604 = vmatprep.subr.bf16.mxu0 %v2435
        %2605 = vmatpush1.bf16.msra.mxu0 %v2434
        %2606 = vmatprep.subr.bf16.mxu0 %v2433
        %2607 = vmatpush1.bf16.msra.mxu0 %v2432
        %2608 = vmatprep.subr.bf16.mxu0 %v2463
        %2609 = vmatpush2.bf16.msra.mxu0 %v2462
        %2610 = vmatprep.subr.bf16.mxu0 %v2461
        %2611 = vmatpush2.bf16.msra.mxu0 %v2460
        %2612 = vmatprep.subr.bf16.mxu0 %v2459
        %2613 = vmatpush2.bf16.msra.mxu0 %v2458
        %2614 = vmatprep.subr.bf16.mxu0 %v2457
        %2615 = vmatpush2.bf16.msra.mxu0 %v2456
        %2616 = vmatprep.subr.bf16.mxu0 %v2455
        %2617 = vmatpush2.bf16.msra.mxu0 %v2454
        %2618 = vmatprep.subr.bf16.mxu0 %v2453
        %2619 = vmatpush2.bf16.msra.mxu0 %v2452
        %2620 = vmatprep.subr.bf16.mxu0 %v2451
        %2621 = vmatpush2.bf16.msra.mxu0 %v2450
        %2622 = vmatprep.subr.bf16.mxu0 %v2449
        %2623 = vmatpush2.bf16.msra.mxu0 %v2448
        %2624 = vmatprep.mubr.bf16.mxu0 %v1509
        %2625 = vmatmul.mubr.bf16.gmra.mxu0 %v1508
        %v2626 = vpop.f32.mrf.mxu0
        %v2627 = vadd.f32 0.0, %v2626
        %v2628 = vpop.f32.mrf.mxu0
        %v2629 = vadd.f32 0.0, %v2628
        %v2630 = vpop.f32.mrf.mxu0
        %v2631 = vadd.f32 0.0, %v2630
        %v2632 = vpop.f32.mrf.mxu0
        %v2633 = vadd.f32 0.0, %v2632
        %2634 = vmatprep.mubr.bf16.mxu0 %v1514
        %2635 = vmatmul.mubr.bf16.gmra.mxu0 %v1513
        %v2636 = vpop.f32.mrf.mxu0
        %v2637 = vadd.f32 0.0, %v2636
        %v2638 = vpop.f32.mrf.mxu0
        %v2639 = vadd.f32 0.0, %v2638
        %v2640 = vpop.f32.mrf.mxu0
        %v2641 = vadd.f32 0.0, %v2640
        %v2642 = vpop.f32.mrf.mxu0
        %v2643 = vadd.f32 0.0, %v2642
        %2644 = vdwg.mxu0
        %2645 = vmatprep.subr.bf16.mxu0 %v2479
        %2646 = vmatpush1.bf16.msra.mxu0 %v2478
        %2647 = vmatprep.subr.bf16.mxu0 %v2477
        %2648 = vmatpush1.bf16.msra.mxu0 %v2476
        %2649 = vmatprep.subr.bf16.mxu0 %v2475
        %2650 = vmatpush1.bf16.msra.mxu0 %v2474
        %2651 = vmatprep.subr.bf16.mxu0 %v2473
        %2652 = vmatpush1.bf16.msra.mxu0 %v2472
        %2653 = vmatprep.subr.bf16.mxu0 %v2471
        %2654 = vmatpush1.bf16.msra.mxu0 %v2470
        %2655 = vmatprep.subr.bf16.mxu0 %v2469
        %2656 = vmatpush1.bf16.msra.mxu0 %v2468
        %2657 = vmatprep.subr.bf16.mxu0 %v2467
        %2658 = vmatpush1.bf16.msra.mxu0 %v2466
        %2659 = vmatprep.subr.bf16.mxu0 %v2465
        %2660 = vmatpush1.bf16.msra.mxu0 %v2464
        %2661 = vmatprep.subr.bf16.mxu0 %v2495
        %2662 = vmatpush2.bf16.msra.mxu0 %v2494
        %2663 = vmatprep.subr.bf16.mxu0 %v2493
        %2664 = vmatpush2.bf16.msra.mxu0 %v2492
        %2665 = vmatprep.subr.bf16.mxu0 %v2491
        %2666 = vmatpush2.bf16.msra.mxu0 %v2490
        %2667 = vmatprep.subr.bf16.mxu0 %v2489
        %2668 = vmatpush2.bf16.msra.mxu0 %v2488
        %2669 = vmatprep.subr.bf16.mxu0 %v2487
        %2670 = vmatpush2.bf16.msra.mxu0 %v2486
        %2671 = vmatprep.subr.bf16.mxu0 %v2485
        %2672 = vmatpush2.bf16.msra.mxu0 %v2484
        %2673 = vmatprep.subr.bf16.mxu0 %v2483
        %2674 = vmatpush2.bf16.msra.mxu0 %v2482
        %2675 = vmatprep.subr.bf16.mxu0 %v2481
        %2676 = vmatpush2.bf16.msra.mxu0 %v2480
        %2677 = vmatprep.mubr.bf16.mxu0 %v1511
        %2678 = vmatmul.mubr.bf16.gmra.mxu0 %v1510
        %v2679 = vpop.f32.mrf.mxu0
        %v2680 = vadd.f32 %v2627, %v2679
        %v2681 = vpop.f32.mrf.mxu0
        %v2682 = vadd.f32 %v2629, %v2681
        %v2683 = vpop.f32.mrf.mxu0
        %v2684 = vadd.f32 %v2631, %v2683
        %v2685 = vpop.f32.mrf.mxu0
        %v2686 = vadd.f32 %v2633, %v2685
        %2687 = vmatprep.mubr.bf16.mxu0 %v1516
        %2688 = vmatmul.mubr.bf16.gmra.mxu0 %v1515
        %v2689 = vpop.f32.mrf.mxu0
        %v2690 = vadd.f32 %v2637, %v2689
        %v2691 = vpop.f32.mrf.mxu0
        %v2692 = vadd.f32 %v2639, %v2691
        %v2693 = vpop.f32.mrf.mxu0
        %v2694 = vadd.f32 %v2641, %v2693
        %v2695 = vpop.f32.mrf.mxu0
        %v2696 = vadd.f32 %v2643, %v2695
        %2697 = vdwg.mxu0
        %2698 = vmatprep.subr.bf16.mxu0 %v2511
        %2699 = vmatpush1.bf16.msra.mxu0 %v2510
        %2700 = vmatprep.subr.bf16.mxu0 %v2509
        %2701 = vmatpush1.bf16.msra.mxu0 %v2508
        %2702 = vmatprep.subr.bf16.mxu0 %v2507
        %2703 = vmatpush1.bf16.msra.mxu0 %v2506
        %2704 = vmatprep.subr.bf16.mxu0 %v2505
        %2705 = vmatpush1.bf16.msra.mxu0 %v2504
        %2706 = vmatprep.subr.bf16.mxu0 %v2503
        %2707 = vmatpush1.bf16.msra.mxu0 %v2502
        %2708 = vmatprep.subr.bf16.mxu0 %v2501
        %2709 = vmatpush1.bf16.msra.mxu0 %v2500
        %2710 = vmatprep.subr.bf16.mxu0 %v2499
        %2711 = vmatpush1.bf16.msra.mxu0 %v2498
        %2712 = vmatprep.subr.bf16.mxu0 %v2497
        %2713 = vmatpush1.bf16.msra.mxu0 %v2496
        %2714 = vmatprep.subr.bf16.mxu0 0
        %2715 = vmatpush2.bf16.msra.mxu0 0
        %2716 = vmatprep.subr.bf16.mxu0 0
        %2717 = vmatpush2.bf16.msra.mxu0 0
        %2718 = vmatprep.subr.bf16.mxu0 0
        %2719 = vmatpush2.bf16.msra.mxu0 0
        %2720 = vmatprep.subr.bf16.mxu0 0
        %2721 = vmatpush2.bf16.msra.mxu0 0
        %2722 = vmatprep.subr.bf16.mxu0 0
        %2723 = vmatpush2.bf16.msra.mxu0 0
        %2724 = vmatprep.subr.bf16.mxu0 0
        %2725 = vmatpush2.bf16.msra.mxu0 0
        %2726 = vmatprep.subr.bf16.mxu0 0
        %2727 = vmatpush2.bf16.msra.mxu0 0
        %2728 = vmatprep.subr.bf16.mxu0 0
        %2729 = vmatpush2.bf16.msra.mxu0 0
        %2730 = vmatprep.mubr.bf16.mxu0 0
        %2731 = vmatmul.mubr.bf16.gmra.mxu0 %v1512
        %v2732 = vpop.f32.mrf.mxu0
        %v2733 = vadd.f32 %v2680, %v2732
        %v2734 = vpop.f32.mrf.mxu0
        %v2735 = vadd.f32 %v2682, %v2734
        %v2736 = vpop.f32.mrf.mxu0
        %v2737 = vadd.f32 %v2684, %v2736
        %v2738 = vpop.f32.mrf.mxu0
        %v2739 = vadd.f32 %v2686, %v2738
        %2740 = vmatprep.mubr.bf16.mxu0 0
        %2741 = vmatmul.mubr.bf16.gmra.mxu0 %v1517
        %v2742 = vpop.f32.mrf.mxu0
        %v2743 = vadd.f32 %v2690, %v2742
        %v2744 = vpop.f32.mrf.mxu0
        %v2745 = vadd.f32 %v2692, %v2744
        %v2746 = vpop.f32.mrf.mxu0
        %v2747 = vadd.f32 %v2694, %v2746
        %v2748 = vpop.f32.mrf.mxu0
        %v2749 = vadd.f32 %v2696, %v2748
        %2750 = vdwg.mxu0
        %s2751 = scalar_lea.vmem [#allocation2], 64
        %v2752 = vld [vmem:[%s2751] sm:$0xff]
        %v2753 = vld [vmem:[%s2751 + $0x8] sm:$0xff]
        %v2754 = vld [vmem:[%s2751 + $0x10] sm:$0xff]
        %v2755 = vld [vmem:[%s2751 + $0x18] sm:$0xff]
        %v2756 = vld [vmem:[%s2751 + $0x20] sm:$0xff]
        %v2757 = vld [vmem:[%s2751 + $0x28] sm:$0xff]
        %v2758 = vld [vmem:[%s2751 + $0x30] sm:$0xff]
        %v2759 = vld [vmem:[%s2751 + $0x38] sm:$0xff]
        %v2760 = vadd.f32 %v2752, %v2733
        %v2761 = vadd.f32 %v2753, %v2735
        %v2762 = vadd.f32 %v2754, %v2737
        %v2763 = vadd.f32 %v2755, %v2739
        %v2764 = vadd.f32 %v2756, %v2743
        %v2765 = vadd.f32 %v2757, %v2745
        %v2766 = vadd.f32 %v2758, %v2747
        %v2767 = vadd.f32 %v2759, %v2749
        %2768 = vst [vmem:[%s2751] sm:$0xff] %v2760
        %2769 = vst [vmem:[%s2751 + $0x8] sm:$0xff] %v2761
        %2770 = vst [vmem:[%s2751 + $0x10] sm:$0xff] %v2762
        %2771 = vst [vmem:[%s2751 + $0x18] sm:$0xff] %v2763
        %2772 = vst [vmem:[%s2751 + $0x20] sm:$0xff] %v2764
        %2773 = vst [vmem:[%s2751 + $0x28] sm:$0xff] %v2765
        %2774 = vst [vmem:[%s2751 + $0x30] sm:$0xff] %v2766
        %2775 = vst [vmem:[%s2751 + $0x38] sm:$0xff] %v2767
        %s2776 = scalar_lea.vmem %s1284, 256 [#allocation3]
        %v2777 = vld [vmem:[%s2776] sm:$0xff]
        %v2778 = vld [vmem:[%s2776 + $0x8] sm:$0xff]
        %v2779 = vld [vmem:[%s2776 + $0x10] sm:$0xff]
        %v2780 = vld [vmem:[%s2776 + $0x18] sm:$0xff]
        %v2781 = vld [vmem:[%s2776 + $0x20] sm:$0xff]
        %v2782 = vld [vmem:[%s2776 + $0x28] sm:$0xff]
        %v2783 = vld [vmem:[%s2776 + $0x30] sm:$0xff]
        %v2784 = vld [vmem:[%s2776 + $0x38] sm:$0xff]
        %v2785 = vld [vmem:[%s2776 + $0x40] sm:$0xff]
        %v2786 = vld [vmem:[%s2776 + $0x48] sm:$0xff]
        %v2787 = vld [vmem:[%s2776 + $0x50] sm:$0xff]
        %v2788 = vld [vmem:[%s2776 + $0x58] sm:$0xff]
        %v2789 = vld [vmem:[%s2776 + $0x60] sm:$0xff]
        %v2790 = vld [vmem:[%s2776 + $0x68] sm:$0xff]
        %v2791 = vld [vmem:[%s2776 + $0x70] sm:$0xff]
        %v2792 = vld [vmem:[%s2776 + $0x78] sm:$0xff]
        %v2793 = vld [vmem:[%s2776 + $0x80] sm:$0xff]
        %v2794 = vld [vmem:[%s2776 + $0x88] sm:$0xff]
        %v2795 = vld [vmem:[%s2776 + $0x90] sm:$0xff]
        %v2796 = vld [vmem:[%s2776 + $0x98] sm:$0xff]
        %v2797 = vld [vmem:[%s2776 + $0xa0] sm:$0xff]
        %v2798 = vld [vmem:[%s2776 + $0xa8] sm:$0xff]
        %v2799 = vld [vmem:[%s2776 + $0xb0] sm:$0xff]
        %v2800 = vld [vmem:[%s2776 + $0xb8] sm:$0xff]
        %v2801 = vld [vmem:[%s2776 + $0xc0] sm:$0xff]
        %v2802 = vld [vmem:[%s2776 + $0xc8] sm:$0xff]
        %v2803 = vld [vmem:[%s2776 + $0xd0] sm:$0xff]
        %v2804 = vld [vmem:[%s2776 + $0xd8] sm:$0xff]
        %v2805 = vld [vmem:[%s2776 + $0xe0] sm:$0xff]
        %v2806 = vld [vmem:[%s2776 + $0xe8] sm:$0xff]
        %v2807 = vld [vmem:[%s2776 + $0xf0] sm:$0xff]
        %v2808 = vld [vmem:[%s2776 + $0xf8] sm:$0xff]
        %v2809 = vld [vmem:[%s2776 + $0x100] sm:$0xff]
        %v2810 = vld [vmem:[%s2776 + $0x108] sm:$0xff]
        %v2811 = vld [vmem:[%s2776 + $0x110] sm:$0xff]
        %v2812 = vld [vmem:[%s2776 + $0x118] sm:$0xff]
        %v2813 = vld [vmem:[%s2776 + $0x120] sm:$0xff]
        %v2814 = vld [vmem:[%s2776 + $0x128] sm:$0xff]
        %v2815 = vld [vmem:[%s2776 + $0x130] sm:$0xff]
        %v2816 = vld [vmem:[%s2776 + $0x138] sm:$0xff]
        %v2817 = vld [vmem:[%s2776 + $0x140] sm:$0xff]
        %v2818 = vld [vmem:[%s2776 + $0x148] sm:$0xff]
        %v2819 = vld [vmem:[%s2776 + $0x150] sm:$0xff]
        %v2820 = vld [vmem:[%s2776 + $0x158] sm:$0xff]
        %v2821 = vld [vmem:[%s2776 + $0x160] sm:$0xff]
        %v2822 = vld [vmem:[%s2776 + $0x168] sm:$0xff]
        %v2823 = vld [vmem:[%s2776 + $0x170] sm:$0xff]
        %v2824 = vld [vmem:[%s2776 + $0x178] sm:$0xff]
        %v2825 = vld [vmem:[%s2776 + $0x180] sm:$0xff]
        %v2826 = vld [vmem:[%s2776 + $0x188] sm:$0xff]
        %v2827 = vld [vmem:[%s2776 + $0x190] sm:$0xff]
        %v2828 = vld [vmem:[%s2776 + $0x198] sm:$0xff]
        %v2829 = vld [vmem:[%s2776 + $0x1a0] sm:$0xff]
        %v2830 = vld [vmem:[%s2776 + $0x1a8] sm:$0xff]
        %v2831 = vld [vmem:[%s2776 + $0x1b0] sm:$0xff]
        %v2832 = vld [vmem:[%s2776 + $0x1b8] sm:$0xff]
        %v2833 = vld [vmem:[%s2776 + $0x1c0] sm:$0xff]
        %v2834 = vld [vmem:[%s2776 + $0x1c8] sm:$0xff]
        %v2835 = vld [vmem:[%s2776 + $0x1d0] sm:$0xff]
        %v2836 = vld [vmem:[%s2776 + $0x1d8] sm:$0xff]
        %v2837 = vld [vmem:[%s2776 + $0x1e0] sm:$0xff]
        %v2838 = vld [vmem:[%s2776 + $0x1e8] sm:$0xff]
        %v2839 = vld [vmem:[%s2776 + $0x1f0] sm:$0xff]
        %v2840 = vld [vmem:[%s2776 + $0x1f8] sm:$0xff]
        %v2841 = vld [vmem:[%s2776 + $0x200] sm:$0xff]
        %v2842 = vld [vmem:[%s2776 + $0x208] sm:$0xff]
        %v2843 = vld [vmem:[%s2776 + $0x210] sm:$0xff]
        %v2844 = vld [vmem:[%s2776 + $0x218] sm:$0xff]
        %v2845 = vld [vmem:[%s2776 + $0x220] sm:$0xff]
        %v2846 = vld [vmem:[%s2776 + $0x228] sm:$0xff]
        %v2847 = vld [vmem:[%s2776 + $0x230] sm:$0xff]
        %v2848 = vld [vmem:[%s2776 + $0x238] sm:$0xff]
        %v2849 = vld [vmem:[%s2776 + $0x240] sm:$0xff]
        %v2850 = vld [vmem:[%s2776 + $0x248] sm:$0xff]
        %v2851 = vld [vmem:[%s2776 + $0x250] sm:$0xff]
        %v2852 = vld [vmem:[%s2776 + $0x258] sm:$0xff]
        %v2853 = vld [vmem:[%s2776 + $0x260] sm:$0xff]
        %v2854 = vld [vmem:[%s2776 + $0x268] sm:$0xff]
        %v2855 = vld [vmem:[%s2776 + $0x270] sm:$0xff]
        %v2856 = vld [vmem:[%s2776 + $0x278] sm:$0xff]
        %v2937 = vunpack.c.l.b16 %v2777
        %v2938 = vunpack.c.h.b16 %v2777
        %v2939 = vunpack.c.l.b16 %v2778
        %v2940 = vunpack.c.h.b16 %v2778
        %v2941 = vunpack.c.l.b16 %v2779
        %v2942 = vunpack.c.h.b16 %v2779
        %v2943 = vunpack.c.l.b16 %v2780
        %v2944 = vunpack.c.h.b16 %v2780
        %v2945 = vunpack.c.l.b16 %v2781
        %v2946 = vunpack.c.h.b16 %v2781
        %v2947 = vunpack.c.l.b16 %v2782
        %v2948 = vunpack.c.h.b16 %v2782
        %v2949 = vunpack.c.l.b16 %v2783
        %v2950 = vunpack.c.h.b16 %v2783
        %v2951 = vunpack.c.l.b16 %v2784
        %v2952 = vunpack.c.h.b16 %v2784
        %v2953 = vunpack.c.l.b16 %v2785
        %v2954 = vunpack.c.h.b16 %v2785
        %v2955 = vunpack.c.l.b16 %v2786
        %v2956 = vunpack.c.h.b16 %v2786
        %v2957 = vunpack.c.l.b16 %v2787
        %v2958 = vunpack.c.h.b16 %v2787
        %v2959 = vunpack.c.l.b16 %v2788
        %v2960 = vunpack.c.h.b16 %v2788
        %v2961 = vunpack.c.l.b16 %v2789
        %v2962 = vunpack.c.h.b16 %v2789
        %v2963 = vunpack.c.l.b16 %v2790
        %v2964 = vunpack.c.h.b16 %v2790
        %v2965 = vunpack.c.l.b16 %v2791
        %v2966 = vunpack.c.h.b16 %v2791
        %v2967 = vunpack.c.l.b16 %v2792
        %v2968 = vunpack.c.h.b16 %v2792
        %v2969 = vunpack.c.l.b16 %v2793
        %v2970 = vunpack.c.h.b16 %v2793
        %v2971 = vunpack.c.l.b16 %v2794
        %v2972 = vunpack.c.h.b16 %v2794
        %v2973 = vunpack.c.l.b16 %v2795
        %v2974 = vunpack.c.h.b16 %v2795
        %v2975 = vunpack.c.l.b16 %v2796
        %v2976 = vunpack.c.h.b16 %v2796
        %v2977 = vunpack.c.l.b16 %v2797
        %v2978 = vunpack.c.h.b16 %v2797
        %v2979 = vunpack.c.l.b16 %v2798
        %v2980 = vunpack.c.h.b16 %v2798
        %v2981 = vunpack.c.l.b16 %v2799
        %v2982 = vunpack.c.h.b16 %v2799
        %v2983 = vunpack.c.l.b16 %v2800
        %v2984 = vunpack.c.h.b16 %v2800
        %v2985 = vunpack.c.l.b16 %v2801
        %v2986 = vunpack.c.h.b16 %v2801
        %v2987 = vunpack.c.l.b16 %v2802
        %v2988 = vunpack.c.h.b16 %v2802
        %v2989 = vunpack.c.l.b16 %v2803
        %v2990 = vunpack.c.h.b16 %v2803
        %v2991 = vunpack.c.l.b16 %v2804
        %v2992 = vunpack.c.h.b16 %v2804
        %v2993 = vunpack.c.l.b16 %v2805
        %v2994 = vunpack.c.h.b16 %v2805
        %v2995 = vunpack.c.l.b16 %v2806
        %v2996 = vunpack.c.h.b16 %v2806
        %v2997 = vunpack.c.l.b16 %v2807
        %v2998 = vunpack.c.h.b16 %v2807
        %v2999 = vunpack.c.l.b16 %v2808
        %v3000 = vunpack.c.h.b16 %v2808
        %v3001 = vunpack.c.l.b16 %v2809
        %v3002 = vunpack.c.h.b16 %v2809
        %v3003 = vunpack.c.l.b16 %v2810
        %v3004 = vunpack.c.h.b16 %v2810
        %v3005 = vunpack.c.l.b16 %v2811
        %v3006 = vunpack.c.h.b16 %v2811
        %v3007 = vunpack.c.l.b16 %v2812
        %v3008 = vunpack.c.h.b16 %v2812
        %v3009 = vunpack.c.l.b16 %v2813
        %v3010 = vunpack.c.h.b16 %v2813
        %v3011 = vunpack.c.l.b16 %v2814
        %v3012 = vunpack.c.h.b16 %v2814
        %v3013 = vunpack.c.l.b16 %v2815
        %v3014 = vunpack.c.h.b16 %v2815
        %v3015 = vunpack.c.l.b16 %v2816
        %v3016 = vunpack.c.h.b16 %v2816
        %v3017 = vunpack.c.l.b16 %v2817
        %v3018 = vunpack.c.h.b16 %v2817
        %v3019 = vunpack.c.l.b16 %v2818
        %v3020 = vunpack.c.h.b16 %v2818
        %v3021 = vunpack.c.l.b16 %v2819
        %v3022 = vunpack.c.h.b16 %v2819
        %v3023 = vunpack.c.l.b16 %v2820
        %v3024 = vunpack.c.h.b16 %v2820
        %v3025 = vunpack.c.l.b16 %v2821
        %v3026 = vunpack.c.h.b16 %v2821
        %v3027 = vunpack.c.l.b16 %v2822
        %v3028 = vunpack.c.h.b16 %v2822
        %v3029 = vunpack.c.l.b16 %v2823
        %v3030 = vunpack.c.h.b16 %v2823
        %v3031 = vunpack.c.l.b16 %v2824
        %v3032 = vunpack.c.h.b16 %v2824
        %v3033 = vunpack.c.l.b16 %v2825
        %v3034 = vunpack.c.h.b16 %v2825
        %v3035 = vunpack.c.l.b16 %v2826
        %v3036 = vunpack.c.h.b16 %v2826
        %v3037 = vunpack.c.l.b16 %v2827
        %v3038 = vunpack.c.h.b16 %v2827
        %v3039 = vunpack.c.l.b16 %v2828
        %v3040 = vunpack.c.h.b16 %v2828
        %v3041 = vunpack.c.l.b16 %v2829
        %v3042 = vunpack.c.h.b16 %v2829
        %v3043 = vunpack.c.l.b16 %v2830
        %v3044 = vunpack.c.h.b16 %v2830
        %v3045 = vunpack.c.l.b16 %v2831
        %v3046 = vunpack.c.h.b16 %v2831
        %v3047 = vunpack.c.l.b16 %v2832
        %v3048 = vunpack.c.h.b16 %v2832
        %v3049 = vunpack.c.l.b16 %v2833
        %v3050 = vunpack.c.h.b16 %v2833
        %v3051 = vunpack.c.l.b16 %v2834
        %v3052 = vunpack.c.h.b16 %v2834
        %v3053 = vunpack.c.l.b16 %v2835
        %v3054 = vunpack.c.h.b16 %v2835
        %v3055 = vunpack.c.l.b16 %v2836
        %v3056 = vunpack.c.h.b16 %v2836
        %v3057 = vunpack.c.l.b16 %v2837
        %v3058 = vunpack.c.h.b16 %v2837
        %v3059 = vunpack.c.l.b16 %v2838
        %v3060 = vunpack.c.h.b16 %v2838
        %v3061 = vunpack.c.l.b16 %v2839
        %v3062 = vunpack.c.h.b16 %v2839
        %v3063 = vunpack.c.l.b16 %v2840
        %v3064 = vunpack.c.h.b16 %v2840
        %v3065 = vunpack.c.l.b16 %v2841
        %v3066 = vunpack.c.h.b16 %v2841
        %v3067 = vunpack.c.l.b16 %v2842
        %v3068 = vunpack.c.h.b16 %v2842
        %v3069 = vunpack.c.l.b16 %v2843
        %v3070 = vunpack.c.h.b16 %v2843
        %v3071 = vunpack.c.l.b16 %v2844
        %v3072 = vunpack.c.h.b16 %v2844
        %v3073 = vunpack.c.l.b16 %v2845
        %v3074 = vunpack.c.h.b16 %v2845
        %v3075 = vunpack.c.l.b16 %v2846
        %v3076 = vunpack.c.h.b16 %v2846
        %v3077 = vunpack.c.l.b16 %v2847
        %v3078 = vunpack.c.h.b16 %v2847
        %v3079 = vunpack.c.l.b16 %v2848
        %v3080 = vunpack.c.h.b16 %v2848
        %v3081 = vunpack.c.l.b16 %v2849
        %v3082 = vunpack.c.h.b16 %v2849
        %v3083 = vunpack.c.l.b16 %v2850
        %v3084 = vunpack.c.h.b16 %v2850
        %v3085 = vunpack.c.l.b16 %v2851
        %v3086 = vunpack.c.h.b16 %v2851
        %v3087 = vunpack.c.l.b16 %v2852
        %v3088 = vunpack.c.h.b16 %v2852
        %v3089 = vunpack.c.l.b16 %v2853
        %v3090 = vunpack.c.h.b16 %v2853
        %v3091 = vunpack.c.l.b16 %v2854
        %v3092 = vunpack.c.h.b16 %v2854
        %v3093 = vunpack.c.l.b16 %v2855
        %v3094 = vunpack.c.h.b16 %v2855
        %v3095 = vunpack.c.l.b16 %v2856
        %v3096 = vunpack.c.h.b16 %v2856
        %v3097 = vpack.c.b16 %v2939, %v2937
        %v3098 = vpack.c.b16 %v2940, %v2938
        %v3099 = vpack.c.b16 %v2943, %v2941
        %v3100 = vpack.c.b16 %v2944, %v2942
        %v3101 = vpack.c.b16 %v2947, %v2945
        %v3102 = vpack.c.b16 %v2948, %v2946
        %v3103 = vpack.c.b16 %v2951, %v2949
        %v3104 = vpack.c.b16 %v2952, %v2950
        %v3105 = vpack.c.b16 %v2955, %v2953
        %v3106 = vpack.c.b16 %v2956, %v2954
        %v3107 = vpack.c.b16 %v2959, %v2957
        %v3108 = vpack.c.b16 %v2960, %v2958
        %v3109 = vpack.c.b16 %v2963, %v2961
        %v3110 = vpack.c.b16 %v2964, %v2962
        %v3111 = vpack.c.b16 %v2967, %v2965
        %v3112 = vpack.c.b16 %v2968, %v2966
        %v3113 = vpack.c.b16 %v2971, %v2969
        %v3114 = vpack.c.b16 %v2972, %v2970
        %v3115 = vpack.c.b16 %v2975, %v2973
        %v3116 = vpack.c.b16 %v2976, %v2974
        %v3117 = vpack.c.b16 %v2979, %v2977
        %v3118 = vpack.c.b16 %v2980, %v2978
        %v3119 = vpack.c.b16 %v2983, %v2981
        %v3120 = vpack.c.b16 %v2984, %v2982
        %v3121 = vpack.c.b16 %v2987, %v2985
        %v3122 = vpack.c.b16 %v2988, %v2986
        %v3123 = vpack.c.b16 %v2991, %v2989
        %v3124 = vpack.c.b16 %v2992, %v2990
        %v3125 = vpack.c.b16 %v2995, %v2993
        %v3126 = vpack.c.b16 %v2996, %v2994
        %v3127 = vpack.c.b16 %v2999, %v2997
        %v3128 = vpack.c.b16 %v3000, %v2998
        %v3129 = vpack.c.b16 %v3003, %v3001
        %v3130 = vpack.c.b16 %v3004, %v3002
        %v3131 = vpack.c.b16 %v3007, %v3005
        %v3132 = vpack.c.b16 %v3008, %v3006
        %v3133 = vpack.c.b16 %v3011, %v3009
        %v3134 = vpack.c.b16 %v3012, %v3010
        %v3135 = vpack.c.b16 %v3015, %v3013
        %v3136 = vpack.c.b16 %v3016, %v3014
        %v3137 = vpack.c.b16 %v3019, %v3017
        %v3138 = vpack.c.b16 %v3020, %v3018
        %v3139 = vpack.c.b16 %v3023, %v3021
        %v3140 = vpack.c.b16 %v3024, %v3022
        %v3141 = vpack.c.b16 %v3027, %v3025
        %v3142 = vpack.c.b16 %v3028, %v3026
        %v3143 = vpack.c.b16 %v3031, %v3029
        %v3144 = vpack.c.b16 %v3032, %v3030
        %v3145 = vpack.c.b16 %v3035, %v3033
        %v3146 = vpack.c.b16 %v3036, %v3034
        %v3147 = vpack.c.b16 %v3039, %v3037
        %v3148 = vpack.c.b16 %v3040, %v3038
        %v3149 = vpack.c.b16 %v3043, %v3041
        %v3150 = vpack.c.b16 %v3044, %v3042
        %v3151 = vpack.c.b16 %v3047, %v3045
        %v3152 = vpack.c.b16 %v3048, %v3046
        %v3153 = vpack.c.b16 %v3051, %v3049
        %v3154 = vpack.c.b16 %v3052, %v3050
        %v3155 = vpack.c.b16 %v3055, %v3053
        %v3156 = vpack.c.b16 %v3056, %v3054
        %v3157 = vpack.c.b16 %v3059, %v3057
        %v3158 = vpack.c.b16 %v3060, %v3058
        %v3159 = vpack.c.b16 %v3063, %v3061
        %v3160 = vpack.c.b16 %v3064, %v3062
        %v3161 = vpack.c.b16 %v3067, %v3065
        %v3162 = vpack.c.b16 %v3068, %v3066
        %v3163 = vpack.c.b16 %v3071, %v3069
        %v3164 = vpack.c.b16 %v3072, %v3070
        %v3165 = vpack.c.b16 %v3075, %v3073
        %v3166 = vpack.c.b16 %v3076, %v3074
        %v3167 = vpack.c.b16 %v3079, %v3077
        %v3168 = vpack.c.b16 %v3080, %v3078
        %v3169 = vpack.c.b16 %v3083, %v3081
        %v3170 = vpack.c.b16 %v3084, %v3082
        %v3171 = vpack.c.b16 %v3087, %v3085
        %v3172 = vpack.c.b16 %v3088, %v3086
        %v3173 = vpack.c.b16 %v3091, %v3089
        %v3174 = vpack.c.b16 %v3092, %v3090
        %v3175 = vpack.c.b16 %v3095, %v3093
        %v3176 = vpack.c.b16 %v3096, %v3094
        %3257 = vmatprep.subr.bf16.mxu0 %v3112
        %3258 = vmatpush1.bf16.msra.mxu0 %v3111
        %3259 = vmatprep.subr.bf16.mxu0 %v3110
        %3260 = vmatpush1.bf16.msra.mxu0 %v3109
        %3261 = vmatprep.subr.bf16.mxu0 %v3108
        %3262 = vmatpush1.bf16.msra.mxu0 %v3107
        %3263 = vmatprep.subr.bf16.mxu0 %v3106
        %3264 = vmatpush1.bf16.msra.mxu0 %v3105
        %3265 = vmatprep.subr.bf16.mxu0 %v3104
        %3266 = vmatpush1.bf16.msra.mxu0 %v3103
        %3267 = vmatprep.subr.bf16.mxu0 %v3102
        %3268 = vmatpush1.bf16.msra.mxu0 %v3101
        %3269 = vmatprep.subr.bf16.mxu0 %v3100
        %3270 = vmatpush1.bf16.msra.mxu0 %v3099
        %3271 = vmatprep.subr.bf16.mxu0 %v3098
        %3272 = vmatpush1.bf16.msra.mxu0 %v3097
        %3273 = vmatprep.subr.bf16.mxu0 %v3128
        %3274 = vmatpush2.bf16.msra.mxu0 %v3127
        %3275 = vmatprep.subr.bf16.mxu0 %v3126
        %3276 = vmatpush2.bf16.msra.mxu0 %v3125
        %3277 = vmatprep.subr.bf16.mxu0 %v3124
        %3278 = vmatpush2.bf16.msra.mxu0 %v3123
        %3279 = vmatprep.subr.bf16.mxu0 %v3122
        %3280 = vmatpush2.bf16.msra.mxu0 %v3121
        %3281 = vmatprep.subr.bf16.mxu0 %v3120
        %3282 = vmatpush2.bf16.msra.mxu0 %v3119
        %3283 = vmatprep.subr.bf16.mxu0 %v3118
        %3284 = vmatpush2.bf16.msra.mxu0 %v3117
        %3285 = vmatprep.subr.bf16.mxu0 %v3116
        %3286 = vmatpush2.bf16.msra.mxu0 %v3115
        %3287 = vmatprep.subr.bf16.mxu0 %v3114
        %3288 = vmatpush2.bf16.msra.mxu0 %v3113
        %3289 = vmatprep.mubr.bf16.mxu0 %v1509
        %3290 = vmatmul.mubr.bf16.gmra.mxu0 %v1508
        %v3291 = vpop.f32.mrf.mxu0
        %v3292 = vadd.f32 0.0, %v3291
        %v3293 = vpop.f32.mrf.mxu0
        %v3294 = vadd.f32 0.0, %v3293
        %v3295 = vpop.f32.mrf.mxu0
        %v3296 = vadd.f32 0.0, %v3295
        %v3297 = vpop.f32.mrf.mxu0
        %v3298 = vadd.f32 0.0, %v3297
        %3299 = vmatprep.mubr.bf16.mxu0 %v1514
        %3300 = vmatmul.mubr.bf16.gmra.mxu0 %v1513
        %v3301 = vpop.f32.mrf.mxu0
        %v3302 = vadd.f32 0.0, %v3301
        %v3303 = vpop.f32.mrf.mxu0
        %v3304 = vadd.f32 0.0, %v3303
        %v3305 = vpop.f32.mrf.mxu0
        %v3306 = vadd.f32 0.0, %v3305
        %v3307 = vpop.f32.mrf.mxu0
        %v3308 = vadd.f32 0.0, %v3307
        %3309 = vdwg.mxu0
        %3310 = vmatprep.subr.bf16.mxu0 %v3144
        %3311 = vmatpush1.bf16.msra.mxu0 %v3143
        %3312 = vmatprep.subr.bf16.mxu0 %v3142
        %3313 = vmatpush1.bf16.msra.mxu0 %v3141
        %3314 = vmatprep.subr.bf16.mxu0 %v3140
        %3315 = vmatpush1.bf16.msra.mxu0 %v3139
        %3316 = vmatprep.subr.bf16.mxu0 %v3138
        %3317 = vmatpush1.bf16.msra.mxu0 %v3137
        %3318 = vmatprep.subr.bf16.mxu0 %v3136
        %3319 = vmatpush1.bf16.msra.mxu0 %v3135
        %3320 = vmatprep.subr.bf16.mxu0 %v3134
        %3321 = vmatpush1.bf16.msra.mxu0 %v3133
        %3322 = vmatprep.subr.bf16.mxu0 %v3132
        %3323 = vmatpush1.bf16.msra.mxu0 %v3131
        %3324 = vmatprep.subr.bf16.mxu0 %v3130
        %3325 = vmatpush1.bf16.msra.mxu0 %v3129
        %3326 = vmatprep.subr.bf16.mxu0 %v3160
        %3327 = vmatpush2.bf16.msra.mxu0 %v3159
        %3328 = vmatprep.subr.bf16.mxu0 %v3158
        %3329 = vmatpush2.bf16.msra.mxu0 %v3157
        %3330 = vmatprep.subr.bf16.mxu0 %v3156
        %3331 = vmatpush2.bf16.msra.mxu0 %v3155
        %3332 = vmatprep.subr.bf16.mxu0 %v3154
        %3333 = vmatpush2.bf16.msra.mxu0 %v3153
        %3334 = vmatprep.subr.bf16.mxu0 %v3152
        %3335 = vmatpush2.bf16.msra.mxu0 %v3151
        %3336 = vmatprep.subr.bf16.mxu0 %v3150
        %3337 = vmatpush2.bf16.msra.mxu0 %v3149
        %3338 = vmatprep.subr.bf16.mxu0 %v3148
        %3339 = vmatpush2.bf16.msra.mxu0 %v3147
        %3340 = vmatprep.subr.bf16.mxu0 %v3146
        %3341 = vmatpush2.bf16.msra.mxu0 %v3145
        %3342 = vmatprep.mubr.bf16.mxu0 %v1511
        %3343 = vmatmul.mubr.bf16.gmra.mxu0 %v1510
        %v3344 = vpop.f32.mrf.mxu0
        %v3345 = vadd.f32 %v3292, %v3344
        %v3346 = vpop.f32.mrf.mxu0
        %v3347 = vadd.f32 %v3294, %v3346
        %v3348 = vpop.f32.mrf.mxu0
        %v3349 = vadd.f32 %v3296, %v3348
        %v3350 = vpop.f32.mrf.mxu0
        %v3351 = vadd.f32 %v3298, %v3350
        %3352 = vmatprep.mubr.bf16.mxu0 %v1516
        %3353 = vmatmul.mubr.bf16.gmra.mxu0 %v1515
        %v3354 = vpop.f32.mrf.mxu0
        %v3355 = vadd.f32 %v3302, %v3354
        %v3356 = vpop.f32.mrf.mxu0
        %v3357 = vadd.f32 %v3304, %v3356
        %v3358 = vpop.f32.mrf.mxu0
        %v3359 = vadd.f32 %v3306, %v3358
        %v3360 = vpop.f32.mrf.mxu0
        %v3361 = vadd.f32 %v3308, %v3360
        %3362 = vdwg.mxu0
        %3363 = vmatprep.subr.bf16.mxu0 %v3176
        %3364 = vmatpush1.bf16.msra.mxu0 %v3175
        %3365 = vmatprep.subr.bf16.mxu0 %v3174
        %3366 = vmatpush1.bf16.msra.mxu0 %v3173
        %3367 = vmatprep.subr.bf16.mxu0 %v3172
        %3368 = vmatpush1.bf16.msra.mxu0 %v3171
        %3369 = vmatprep.subr.bf16.mxu0 %v3170
        %3370 = vmatpush1.bf16.msra.mxu0 %v3169
        %3371 = vmatprep.subr.bf16.mxu0 %v3168
        %3372 = vmatpush1.bf16.msra.mxu0 %v3167
        %3373 = vmatprep.subr.bf16.mxu0 %v3166
        %3374 = vmatpush1.bf16.msra.mxu0 %v3165
        %3375 = vmatprep.subr.bf16.mxu0 %v3164
        %3376 = vmatpush1.bf16.msra.mxu0 %v3163
        %3377 = vmatprep.subr.bf16.mxu0 %v3162
        %3378 = vmatpush1.bf16.msra.mxu0 %v3161
        %3379 = vmatprep.subr.bf16.mxu0 0
        %3380 = vmatpush2.bf16.msra.mxu0 0
        %3381 = vmatprep.subr.bf16.mxu0 0
        %3382 = vmatpush2.bf16.msra.mxu0 0
        %3383 = vmatprep.subr.bf16.mxu0 0
        %3384 = vmatpush2.bf16.msra.mxu0 0
        %3385 = vmatprep.subr.bf16.mxu0 0
        %3386 = vmatpush2.bf16.msra.mxu0 0
        %3387 = vmatprep.subr.bf16.mxu0 0
        %3388 = vmatpush2.bf16.msra.mxu0 0
        %3389 = vmatprep.subr.bf16.mxu0 0
        %3390 = vmatpush2.bf16.msra.mxu0 0
        %3391 = vmatprep.subr.bf16.mxu0 0
        %3392 = vmatpush2.bf16.msra.mxu0 0
        %3393 = vmatprep.subr.bf16.mxu0 0
        %3394 = vmatpush2.bf16.msra.mxu0 0
        %3395 = vmatprep.mubr.bf16.mxu0 0
        %3396 = vmatmul.mubr.bf16.gmra.mxu0 %v1512
        %v3397 = vpop.f32.mrf.mxu0
        %v3398 = vadd.f32 %v3345, %v3397
        %v3399 = vpop.f32.mrf.mxu0
        %v3400 = vadd.f32 %v3347, %v3399
        %v3401 = vpop.f32.mrf.mxu0
        %v3402 = vadd.f32 %v3349, %v3401
        %v3403 = vpop.f32.mrf.mxu0
        %v3404 = vadd.f32 %v3351, %v3403
        %3405 = vmatprep.mubr.bf16.mxu0 0
        %3406 = vmatmul.mubr.bf16.gmra.mxu0 %v1517
        %v3407 = vpop.f32.mrf.mxu0
        %v3408 = vadd.f32 %v3355, %v3407
        %v3409 = vpop.f32.mrf.mxu0
        %v3410 = vadd.f32 %v3357, %v3409
        %v3411 = vpop.f32.mrf.mxu0
        %v3412 = vadd.f32 %v3359, %v3411
        %v3413 = vpop.f32.mrf.mxu0
        %v3414 = vadd.f32 %v3361, %v3413
        %3415 = vdwg.mxu0
        %s3416 = scalar_lea.vmem [#allocation2], 128
        %v3417 = vld [vmem:[%s3416] sm:$0xff]
        %v3418 = vld [vmem:[%s3416 + $0x8] sm:$0xff]
        %v3419 = vld [vmem:[%s3416 + $0x10] sm:$0xff]
        %v3420 = vld [vmem:[%s3416 + $0x18] sm:$0xff]
        %v3421 = vld [vmem:[%s3416 + $0x20] sm:$0xff]
        %v3422 = vld [vmem:[%s3416 + $0x28] sm:$0xff]
        %v3423 = vld [vmem:[%s3416 + $0x30] sm:$0xff]
        %v3424 = vld [vmem:[%s3416 + $0x38] sm:$0xff]
        %v3425 = vadd.f32 %v3417, %v3398
        %v3426 = vadd.f32 %v3418, %v3400
        %v3427 = vadd.f32 %v3419, %v3402
        %v3428 = vadd.f32 %v3420, %v3404
        %v3429 = vadd.f32 %v3421, %v3408
        %v3430 = vadd.f32 %v3422, %v3410
        %v3431 = vadd.f32 %v3423, %v3412
        %v3432 = vadd.f32 %v3424, %v3414
        %3433 = vst [vmem:[%s3416] sm:$0xff] %v3425
        %3434 = vst [vmem:[%s3416 + $0x8] sm:$0xff] %v3426
        %3435 = vst [vmem:[%s3416 + $0x10] sm:$0xff] %v3427
        %3436 = vst [vmem:[%s3416 + $0x18] sm:$0xff] %v3428
        %3437 = vst [vmem:[%s3416 + $0x20] sm:$0xff] %v3429
        %3438 = vst [vmem:[%s3416 + $0x28] sm:$0xff] %v3430
        %3439 = vst [vmem:[%s3416 + $0x30] sm:$0xff] %v3431
        %3440 = vst [vmem:[%s3416 + $0x38] sm:$0xff] %v3432
        %s3441 = scalar_lea.vmem %s1284, 384 [#allocation3]
        %v3442 = vld [vmem:[%s3441] sm:$0xff]
        %v3443 = vld [vmem:[%s3441 + $0x8] sm:$0xff]
        %v3444 = vld [vmem:[%s3441 + $0x10] sm:$0xff]
        %v3445 = vld [vmem:[%s3441 + $0x18] sm:$0xff]
        %v3446 = vld [vmem:[%s3441 + $0x20] sm:$0xff]
        %v3447 = vld [vmem:[%s3441 + $0x28] sm:$0xff]
        %v3448 = vld [vmem:[%s3441 + $0x30] sm:$0xff]
        %v3449 = vld [vmem:[%s3441 + $0x38] sm:$0xff]
        %v3450 = vld [vmem:[%s3441 + $0x40] sm:$0xff]
        %v3451 = vld [vmem:[%s3441 + $0x48] sm:$0xff]
        %v3452 = vld [vmem:[%s3441 + $0x50] sm:$0xff]
        %v3453 = vld [vmem:[%s3441 + $0x58] sm:$0xff]
        %v3454 = vld [vmem:[%s3441 + $0x60] sm:$0xff]
        %v3455 = vld [vmem:[%s3441 + $0x68] sm:$0xff]
        %v3456 = vld [vmem:[%s3441 + $0x70] sm:$0xff]
        %v3457 = vld [vmem:[%s3441 + $0x78] sm:$0xff]
        %v3458 = vld [vmem:[%s3441 + $0x80] sm:$0xff]
        %v3459 = vld [vmem:[%s3441 + $0x88] sm:$0xff]
        %v3460 = vld [vmem:[%s3441 + $0x90] sm:$0xff]
        %v3461 = vld [vmem:[%s3441 + $0x98] sm:$0xff]
        %v3462 = vld [vmem:[%s3441 + $0xa0] sm:$0xff]
        %v3463 = vld [vmem:[%s3441 + $0xa8] sm:$0xff]
        %v3464 = vld [vmem:[%s3441 + $0xb0] sm:$0xff]
        %v3465 = vld [vmem:[%s3441 + $0xb8] sm:$0xff]
        %v3466 = vld [vmem:[%s3441 + $0xc0] sm:$0xff]
        %v3467 = vld [vmem:[%s3441 + $0xc8] sm:$0xff]
        %v3468 = vld [vmem:[%s3441 + $0xd0] sm:$0xff]
        %v3469 = vld [vmem:[%s3441 + $0xd8] sm:$0xff]
        %v3470 = vld [vmem:[%s3441 + $0xe0] sm:$0xff]
        %v3471 = vld [vmem:[%s3441 + $0xe8] sm:$0xff]
        %v3472 = vld [vmem:[%s3441 + $0xf0] sm:$0xff]
        %v3473 = vld [vmem:[%s3441 + $0xf8] sm:$0xff]
        %v3474 = vld [vmem:[%s3441 + $0x100] sm:$0xff]
        %v3475 = vld [vmem:[%s3441 + $0x108] sm:$0xff]
        %v3476 = vld [vmem:[%s3441 + $0x110] sm:$0xff]
        %v3477 = vld [vmem:[%s3441 + $0x118] sm:$0xff]
        %v3478 = vld [vmem:[%s3441 + $0x120] sm:$0xff]
        %v3479 = vld [vmem:[%s3441 + $0x128] sm:$0xff]
        %v3480 = vld [vmem:[%s3441 + $0x130] sm:$0xff]
        %v3481 = vld [vmem:[%s3441 + $0x138] sm:$0xff]
        %v3482 = vld [vmem:[%s3441 + $0x140] sm:$0xff]
        %v3483 = vld [vmem:[%s3441 + $0x148] sm:$0xff]
        %v3484 = vld [vmem:[%s3441 + $0x150] sm:$0xff]
        %v3485 = vld [vmem:[%s3441 + $0x158] sm:$0xff]
        %v3486 = vld [vmem:[%s3441 + $0x160] sm:$0xff]
        %v3487 = vld [vmem:[%s3441 + $0x168] sm:$0xff]
        %v3488 = vld [vmem:[%s3441 + $0x170] sm:$0xff]
        %v3489 = vld [vmem:[%s3441 + $0x178] sm:$0xff]
        %v3490 = vld [vmem:[%s3441 + $0x180] sm:$0xff]
        %v3491 = vld [vmem:[%s3441 + $0x188] sm:$0xff]
        %v3492 = vld [vmem:[%s3441 + $0x190] sm:$0xff]
        %v3493 = vld [vmem:[%s3441 + $0x198] sm:$0xff]
        %v3494 = vld [vmem:[%s3441 + $0x1a0] sm:$0xff]
        %v3495 = vld [vmem:[%s3441 + $0x1a8] sm:$0xff]
        %v3496 = vld [vmem:[%s3441 + $0x1b0] sm:$0xff]
        %v3497 = vld [vmem:[%s3441 + $0x1b8] sm:$0xff]
        %v3498 = vld [vmem:[%s3441 + $0x1c0] sm:$0xff]
        %v3499 = vld [vmem:[%s3441 + $0x1c8] sm:$0xff]
        %v3500 = vld [vmem:[%s3441 + $0x1d0] sm:$0xff]
        %v3501 = vld [vmem:[%s3441 + $0x1d8] sm:$0xff]
        %v3502 = vld [vmem:[%s3441 + $0x1e0] sm:$0xff]
        %v3503 = vld [vmem:[%s3441 + $0x1e8] sm:$0xff]
        %v3504 = vld [vmem:[%s3441 + $0x1f0] sm:$0xff]
        %v3505 = vld [vmem:[%s3441 + $0x1f8] sm:$0xff]
        %v3506 = vld [vmem:[%s3441 + $0x200] sm:$0xff]
        %v3507 = vld [vmem:[%s3441 + $0x208] sm:$0xff]
        %v3508 = vld [vmem:[%s3441 + $0x210] sm:$0xff]
        %v3509 = vld [vmem:[%s3441 + $0x218] sm:$0xff]
        %v3510 = vld [vmem:[%s3441 + $0x220] sm:$0xff]
        %v3511 = vld [vmem:[%s3441 + $0x228] sm:$0xff]
        %v3512 = vld [vmem:[%s3441 + $0x230] sm:$0xff]
        %v3513 = vld [vmem:[%s3441 + $0x238] sm:$0xff]
        %v3514 = vld [vmem:[%s3441 + $0x240] sm:$0xff]
        %v3515 = vld [vmem:[%s3441 + $0x248] sm:$0xff]
        %v3516 = vld [vmem:[%s3441 + $0x250] sm:$0xff]
        %v3517 = vld [vmem:[%s3441 + $0x258] sm:$0xff]
        %v3518 = vld [vmem:[%s3441 + $0x260] sm:$0xff]
        %v3519 = vld [vmem:[%s3441 + $0x268] sm:$0xff]
        %v3520 = vld [vmem:[%s3441 + $0x270] sm:$0xff]
        %v3521 = vld [vmem:[%s3441 + $0x278] sm:$0xff]
        %v3602 = vunpack.c.l.b16 %v3442
        %v3603 = vunpack.c.h.b16 %v3442
        %v3604 = vunpack.c.l.b16 %v3443
        %v3605 = vunpack.c.h.b16 %v3443
        %v3606 = vunpack.c.l.b16 %v3444
        %v3607 = vunpack.c.h.b16 %v3444
        %v3608 = vunpack.c.l.b16 %v3445
        %v3609 = vunpack.c.h.b16 %v3445
        %v3610 = vunpack.c.l.b16 %v3446
        %v3611 = vunpack.c.h.b16 %v3446
        %v3612 = vunpack.c.l.b16 %v3447
        %v3613 = vunpack.c.h.b16 %v3447
        %v3614 = vunpack.c.l.b16 %v3448
        %v3615 = vunpack.c.h.b16 %v3448
        %v3616 = vunpack.c.l.b16 %v3449
        %v3617 = vunpack.c.h.b16 %v3449
        %v3618 = vunpack.c.l.b16 %v3450
        %v3619 = vunpack.c.h.b16 %v3450
        %v3620 = vunpack.c.l.b16 %v3451
        %v3621 = vunpack.c.h.b16 %v3451
        %v3622 = vunpack.c.l.b16 %v3452
        %v3623 = vunpack.c.h.b16 %v3452
        %v3624 = vunpack.c.l.b16 %v3453
        %v3625 = vunpack.c.h.b16 %v3453
        %v3626 = vunpack.c.l.b16 %v3454
        %v3627 = vunpack.c.h.b16 %v3454
        %v3628 = vunpack.c.l.b16 %v3455
        %v3629 = vunpack.c.h.b16 %v3455
        %v3630 = vunpack.c.l.b16 %v3456
        %v3631 = vunpack.c.h.b16 %v3456
        %v3632 = vunpack.c.l.b16 %v3457
        %v3633 = vunpack.c.h.b16 %v3457
        %v3634 = vunpack.c.l.b16 %v3458
        %v3635 = vunpack.c.h.b16 %v3458
        %v3636 = vunpack.c.l.b16 %v3459
        %v3637 = vunpack.c.h.b16 %v3459
        %v3638 = vunpack.c.l.b16 %v3460
        %v3639 = vunpack.c.h.b16 %v3460
        %v3640 = vunpack.c.l.b16 %v3461
        %v3641 = vunpack.c.h.b16 %v3461
        %v3642 = vunpack.c.l.b16 %v3462
        %v3643 = vunpack.c.h.b16 %v3462
        %v3644 = vunpack.c.l.b16 %v3463
        %v3645 = vunpack.c.h.b16 %v3463
        %v3646 = vunpack.c.l.b16 %v3464
        %v3647 = vunpack.c.h.b16 %v3464
        %v3648 = vunpack.c.l.b16 %v3465
        %v3649 = vunpack.c.h.b16 %v3465
        %v3650 = vunpack.c.l.b16 %v3466
        %v3651 = vunpack.c.h.b16 %v3466
        %v3652 = vunpack.c.l.b16 %v3467
        %v3653 = vunpack.c.h.b16 %v3467
        %v3654 = vunpack.c.l.b16 %v3468
        %v3655 = vunpack.c.h.b16 %v3468
        %v3656 = vunpack.c.l.b16 %v3469
        %v3657 = vunpack.c.h.b16 %v3469
        %v3658 = vunpack.c.l.b16 %v3470
        %v3659 = vunpack.c.h.b16 %v3470
        %v3660 = vunpack.c.l.b16 %v3471
        %v3661 = vunpack.c.h.b16 %v3471
        %v3662 = vunpack.c.l.b16 %v3472
        %v3663 = vunpack.c.h.b16 %v3472
        %v3664 = vunpack.c.l.b16 %v3473
        %v3665 = vunpack.c.h.b16 %v3473
        %v3666 = vunpack.c.l.b16 %v3474
        %v3667 = vunpack.c.h.b16 %v3474
        %v3668 = vunpack.c.l.b16 %v3475
        %v3669 = vunpack.c.h.b16 %v3475
        %v3670 = vunpack.c.l.b16 %v3476
        %v3671 = vunpack.c.h.b16 %v3476
        %v3672 = vunpack.c.l.b16 %v3477
        %v3673 = vunpack.c.h.b16 %v3477
        %v3674 = vunpack.c.l.b16 %v3478
        %v3675 = vunpack.c.h.b16 %v3478
        %v3676 = vunpack.c.l.b16 %v3479
        %v3677 = vunpack.c.h.b16 %v3479
        %v3678 = vunpack.c.l.b16 %v3480
        %v3679 = vunpack.c.h.b16 %v3480
        %v3680 = vunpack.c.l.b16 %v3481
        %v3681 = vunpack.c.h.b16 %v3481
        %v3682 = vunpack.c.l.b16 %v3482
        %v3683 = vunpack.c.h.b16 %v3482
        %v3684 = vunpack.c.l.b16 %v3483
        %v3685 = vunpack.c.h.b16 %v3483
        %v3686 = vunpack.c.l.b16 %v3484
        %v3687 = vunpack.c.h.b16 %v3484
        %v3688 = vunpack.c.l.b16 %v3485
        %v3689 = vunpack.c.h.b16 %v3485
        %v3690 = vunpack.c.l.b16 %v3486
        %v3691 = vunpack.c.h.b16 %v3486
        %v3692 = vunpack.c.l.b16 %v3487
        %v3693 = vunpack.c.h.b16 %v3487
        %v3694 = vunpack.c.l.b16 %v3488
        %v3695 = vunpack.c.h.b16 %v3488
        %v3696 = vunpack.c.l.b16 %v3489
        %v3697 = vunpack.c.h.b16 %v3489
        %v3698 = vunpack.c.l.b16 %v3490
        %v3699 = vunpack.c.h.b16 %v3490
        %v3700 = vunpack.c.l.b16 %v3491
        %v3701 = vunpack.c.h.b16 %v3491
        %v3702 = vunpack.c.l.b16 %v3492
        %v3703 = vunpack.c.h.b16 %v3492
        %v3704 = vunpack.c.l.b16 %v3493
        %v3705 = vunpack.c.h.b16 %v3493
        %v3706 = vunpack.c.l.b16 %v3494
        %v3707 = vunpack.c.h.b16 %v3494
        %v3708 = vunpack.c.l.b16 %v3495
        %v3709 = vunpack.c.h.b16 %v3495
        %v3710 = vunpack.c.l.b16 %v3496
        %v3711 = vunpack.c.h.b16 %v3496
        %v3712 = vunpack.c.l.b16 %v3497
        %v3713 = vunpack.c.h.b16 %v3497
        %v3714 = vunpack.c.l.b16 %v3498
        %v3715 = vunpack.c.h.b16 %v3498
        %v3716 = vunpack.c.l.b16 %v3499
        %v3717 = vunpack.c.h.b16 %v3499
        %v3718 = vunpack.c.l.b16 %v3500
        %v3719 = vunpack.c.h.b16 %v3500
        %v3720 = vunpack.c.l.b16 %v3501
        %v3721 = vunpack.c.h.b16 %v3501
        %v3722 = vunpack.c.l.b16 %v3502
        %v3723 = vunpack.c.h.b16 %v3502
        %v3724 = vunpack.c.l.b16 %v3503
        %v3725 = vunpack.c.h.b16 %v3503
        %v3726 = vunpack.c.l.b16 %v3504
        %v3727 = vunpack.c.h.b16 %v3504
        %v3728 = vunpack.c.l.b16 %v3505
        %v3729 = vunpack.c.h.b16 %v3505
        %v3730 = vunpack.c.l.b16 %v3506
        %v3731 = vunpack.c.h.b16 %v3506
        %v3732 = vunpack.c.l.b16 %v3507
        %v3733 = vunpack.c.h.b16 %v3507
        %v3734 = vunpack.c.l.b16 %v3508
        %v3735 = vunpack.c.h.b16 %v3508
        %v3736 = vunpack.c.l.b16 %v3509
        %v3737 = vunpack.c.h.b16 %v3509
        %v3738 = vunpack.c.l.b16 %v3510
        %v3739 = vunpack.c.h.b16 %v3510
        %v3740 = vunpack.c.l.b16 %v3511
        %v3741 = vunpack.c.h.b16 %v3511
        %v3742 = vunpack.c.l.b16 %v3512
        %v3743 = vunpack.c.h.b16 %v3512
        %v3744 = vunpack.c.l.b16 %v3513
        %v3745 = vunpack.c.h.b16 %v3513
        %v3746 = vunpack.c.l.b16 %v3514
        %v3747 = vunpack.c.h.b16 %v3514
        %v3748 = vunpack.c.l.b16 %v3515
        %v3749 = vunpack.c.h.b16 %v3515
        %v3750 = vunpack.c.l.b16 %v3516
        %v3751 = vunpack.c.h.b16 %v3516
        %v3752 = vunpack.c.l.b16 %v3517
        %v3753 = vunpack.c.h.b16 %v3517
        %v3754 = vunpack.c.l.b16 %v3518
        %v3755 = vunpack.c.h.b16 %v3518
        %v3756 = vunpack.c.l.b16 %v3519
        %v3757 = vunpack.c.h.b16 %v3519
        %v3758 = vunpack.c.l.b16 %v3520
        %v3759 = vunpack.c.h.b16 %v3520
        %v3760 = vunpack.c.l.b16 %v3521
        %v3761 = vunpack.c.h.b16 %v3521
        %v3762 = vpack.c.b16 %v3604, %v3602
        %v3763 = vpack.c.b16 %v3605, %v3603
        %v3764 = vpack.c.b16 %v3608, %v3606
        %v3765 = vpack.c.b16 %v3609, %v3607
        %v3766 = vpack.c.b16 %v3612, %v3610
        %v3767 = vpack.c.b16 %v3613, %v3611
        %v3768 = vpack.c.b16 %v3616, %v3614
        %v3769 = vpack.c.b16 %v3617, %v3615
        %v3770 = vpack.c.b16 %v3620, %v3618
        %v3771 = vpack.c.b16 %v3621, %v3619
        %v3772 = vpack.c.b16 %v3624, %v3622
        %v3773 = vpack.c.b16 %v3625, %v3623
        %v3774 = vpack.c.b16 %v3628, %v3626
        %v3775 = vpack.c.b16 %v3629, %v3627
        %v3776 = vpack.c.b16 %v3632, %v3630
        %v3777 = vpack.c.b16 %v3633, %v3631
        %v3778 = vpack.c.b16 %v3636, %v3634
        %v3779 = vpack.c.b16 %v3637, %v3635
        %v3780 = vpack.c.b16 %v3640, %v3638
        %v3781 = vpack.c.b16 %v3641, %v3639
        %v3782 = vpack.c.b16 %v3644, %v3642
        %v3783 = vpack.c.b16 %v3645, %v3643
        %v3784 = vpack.c.b16 %v3648, %v3646
        %v3785 = vpack.c.b16 %v3649, %v3647
        %v3786 = vpack.c.b16 %v3652, %v3650
        %v3787 = vpack.c.b16 %v3653, %v3651
        %v3788 = vpack.c.b16 %v3656, %v3654
        %v3789 = vpack.c.b16 %v3657, %v3655
        %v3790 = vpack.c.b16 %v3660, %v3658
        %v3791 = vpack.c.b16 %v3661, %v3659
        %v3792 = vpack.c.b16 %v3664, %v3662
        %v3793 = vpack.c.b16 %v3665, %v3663
        %v3794 = vpack.c.b16 %v3668, %v3666
        %v3795 = vpack.c.b16 %v3669, %v3667
        %v3796 = vpack.c.b16 %v3672, %v3670
        %v3797 = vpack.c.b16 %v3673, %v3671
        %v3798 = vpack.c.b16 %v3676, %v3674
        %v3799 = vpack.c.b16 %v3677, %v3675
        %v3800 = vpack.c.b16 %v3680, %v3678
        %v3801 = vpack.c.b16 %v3681, %v3679
        %v3802 = vpack.c.b16 %v3684, %v3682
        %v3803 = vpack.c.b16 %v3685, %v3683
        %v3804 = vpack.c.b16 %v3688, %v3686
        %v3805 = vpack.c.b16 %v3689, %v3687
        %v3806 = vpack.c.b16 %v3692, %v3690
        %v3807 = vpack.c.b16 %v3693, %v3691
        %v3808 = vpack.c.b16 %v3696, %v3694
        %v3809 = vpack.c.b16 %v3697, %v3695
        %v3810 = vpack.c.b16 %v3700, %v3698
        %v3811 = vpack.c.b16 %v3701, %v3699
        %v3812 = vpack.c.b16 %v3704, %v3702
        %v3813 = vpack.c.b16 %v3705, %v3703
        %v3814 = vpack.c.b16 %v3708, %v3706
        %v3815 = vpack.c.b16 %v3709, %v3707
        %v3816 = vpack.c.b16 %v3712, %v3710
        %v3817 = vpack.c.b16 %v3713, %v3711
        %v3818 = vpack.c.b16 %v3716, %v3714
        %v3819 = vpack.c.b16 %v3717, %v3715
        %v3820 = vpack.c.b16 %v3720, %v3718
        %v3821 = vpack.c.b16 %v3721, %v3719
        %v3822 = vpack.c.b16 %v3724, %v3722
        %v3823 = vpack.c.b16 %v3725, %v3723
        %v3824 = vpack.c.b16 %v3728, %v3726
        %v3825 = vpack.c.b16 %v3729, %v3727
        %v3826 = vpack.c.b16 %v3732, %v3730
        %v3827 = vpack.c.b16 %v3733, %v3731
        %v3828 = vpack.c.b16 %v3736, %v3734
        %v3829 = vpack.c.b16 %v3737, %v3735
        %v3830 = vpack.c.b16 %v3740, %v3738
        %v3831 = vpack.c.b16 %v3741, %v3739
        %v3832 = vpack.c.b16 %v3744, %v3742
        %v3833 = vpack.c.b16 %v3745, %v3743
        %v3834 = vpack.c.b16 %v3748, %v3746
        %v3835 = vpack.c.b16 %v3749, %v3747
        %v3836 = vpack.c.b16 %v3752, %v3750
        %v3837 = vpack.c.b16 %v3753, %v3751
        %v3838 = vpack.c.b16 %v3756, %v3754
        %v3839 = vpack.c.b16 %v3757, %v3755
        %v3840 = vpack.c.b16 %v3760, %v3758
        %v3841 = vpack.c.b16 %v3761, %v3759
        %3922 = vmatprep.subr.bf16.mxu0 %v3777
        %3923 = vmatpush1.bf16.msra.mxu0 %v3776
        %3924 = vmatprep.subr.bf16.mxu0 %v3775
        %3925 = vmatpush1.bf16.msra.mxu0 %v3774
        %3926 = vmatprep.subr.bf16.mxu0 %v3773
        %3927 = vmatpush1.bf16.msra.mxu0 %v3772
        %3928 = vmatprep.subr.bf16.mxu0 %v3771
        %3929 = vmatpush1.bf16.msra.mxu0 %v3770
        %3930 = vmatprep.subr.bf16.mxu0 %v3769
        %3931 = vmatpush1.bf16.msra.mxu0 %v3768
        %3932 = vmatprep.subr.bf16.mxu0 %v3767
        %3933 = vmatpush1.bf16.msra.mxu0 %v3766
        %3934 = vmatprep.subr.bf16.mxu0 %v3765
        %3935 = vmatpush1.bf16.msra.mxu0 %v3764
        %3936 = vmatprep.subr.bf16.mxu0 %v3763
        %3937 = vmatpush1.bf16.msra.mxu0 %v3762
        %3938 = vmatprep.subr.bf16.mxu0 %v3793
        %3939 = vmatpush2.bf16.msra.mxu0 %v3792
        %3940 = vmatprep.subr.bf16.mxu0 %v3791
        %3941 = vmatpush2.bf16.msra.mxu0 %v3790
        %3942 = vmatprep.subr.bf16.mxu0 %v3789
        %3943 = vmatpush2.bf16.msra.mxu0 %v3788
        %3944 = vmatprep.subr.bf16.mxu0 %v3787
        %3945 = vmatpush2.bf16.msra.mxu0 %v3786
        %3946 = vmatprep.subr.bf16.mxu0 %v3785
        %3947 = vmatpush2.bf16.msra.mxu0 %v3784
        %3948 = vmatprep.subr.bf16.mxu0 %v3783
        %3949 = vmatpush2.bf16.msra.mxu0 %v3782
        %3950 = vmatprep.subr.bf16.mxu0 %v3781
        %3951 = vmatpush2.bf16.msra.mxu0 %v3780
        %3952 = vmatprep.subr.bf16.mxu0 %v3779
        %3953 = vmatpush2.bf16.msra.mxu0 %v3778
        %3954 = vmatprep.mubr.bf16.mxu0 %v1509
        %3955 = vmatmul.mubr.bf16.gmra.mxu0 %v1508
        %v3956 = vpop.f32.mrf.mxu0
        %v3957 = vadd.f32 0.0, %v3956
        %v3958 = vpop.f32.mrf.mxu0
        %v3959 = vadd.f32 0.0, %v3958
        %v3960 = vpop.f32.mrf.mxu0
        %v3961 = vadd.f32 0.0, %v3960
        %v3962 = vpop.f32.mrf.mxu0
        %v3963 = vadd.f32 0.0, %v3962
        %3964 = vmatprep.mubr.bf16.mxu0 %v1514
        %3965 = vmatmul.mubr.bf16.gmra.mxu0 %v1513
        %v3966 = vpop.f32.mrf.mxu0
        %v3967 = vadd.f32 0.0, %v3966
        %v3968 = vpop.f32.mrf.mxu0
        %v3969 = vadd.f32 0.0, %v3968
        %v3970 = vpop.f32.mrf.mxu0
        %v3971 = vadd.f32 0.0, %v3970
        %v3972 = vpop.f32.mrf.mxu0
        %v3973 = vadd.f32 0.0, %v3972
        %3974 = vdwg.mxu0
        %3975 = vmatprep.subr.bf16.mxu0 %v3809
        %3976 = vmatpush1.bf16.msra.mxu0 %v3808
        %3977 = vmatprep.subr.bf16.mxu0 %v3807
        %3978 = vmatpush1.bf16.msra.mxu0 %v3806
        %3979 = vmatprep.subr.bf16.mxu0 %v3805
        %3980 = vmatpush1.bf16.msra.mxu0 %v3804
        %3981 = vmatprep.subr.bf16.mxu0 %v3803
        %3982 = vmatpush1.bf16.msra.mxu0 %v3802
        %3983 = vmatprep.subr.bf16.mxu0 %v3801
        %3984 = vmatpush1.bf16.msra.mxu0 %v3800
        %3985 = vmatprep.subr.bf16.mxu0 %v3799
        %3986 = vmatpush1.bf16.msra.mxu0 %v3798
        %3987 = vmatprep.subr.bf16.mxu0 %v3797
        %3988 = vmatpush1.bf16.msra.mxu0 %v3796
        %3989 = vmatprep.subr.bf16.mxu0 %v3795
        %3990 = vmatpush1.bf16.msra.mxu0 %v3794
        %3991 = vmatprep.subr.bf16.mxu0 %v3825
        %3992 = vmatpush2.bf16.msra.mxu0 %v3824
        %3993 = vmatprep.subr.bf16.mxu0 %v3823
        %3994 = vmatpush2.bf16.msra.mxu0 %v3822
        %3995 = vmatprep.subr.bf16.mxu0 %v3821
        %3996 = vmatpush2.bf16.msra.mxu0 %v3820
        %3997 = vmatprep.subr.bf16.mxu0 %v3819
        %3998 = vmatpush2.bf16.msra.mxu0 %v3818
        %3999 = vmatprep.subr.bf16.mxu0 %v3817
        %4000 = vmatpush2.bf16.msra.mxu0 %v3816
        %4001 = vmatprep.subr.bf16.mxu0 %v3815
        %4002 = vmatpush2.bf16.msra.mxu0 %v3814
        %4003 = vmatprep.subr.bf16.mxu0 %v3813
        %4004 = vmatpush2.bf16.msra.mxu0 %v3812
        %4005 = vmatprep.subr.bf16.mxu0 %v3811
        %4006 = vmatpush2.bf16.msra.mxu0 %v3810
        %4007 = vmatprep.mubr.bf16.mxu0 %v1511
        %4008 = vmatmul.mubr.bf16.gmra.mxu0 %v1510
        %v4009 = vpop.f32.mrf.mxu0
        %v4010 = vadd.f32 %v3957, %v4009
        %v4011 = vpop.f32.mrf.mxu0
        %v4012 = vadd.f32 %v3959, %v4011
        %v4013 = vpop.f32.mrf.mxu0
        %v4014 = vadd.f32 %v3961, %v4013
        %v4015 = vpop.f32.mrf.mxu0
        %v4016 = vadd.f32 %v3963, %v4015
        %4017 = vmatprep.mubr.bf16.mxu0 %v1516
        %4018 = vmatmul.mubr.bf16.gmra.mxu0 %v1515
        %v4019 = vpop.f32.mrf.mxu0
        %v4020 = vadd.f32 %v3967, %v4019
        %v4021 = vpop.f32.mrf.mxu0
        %v4022 = vadd.f32 %v3969, %v4021
        %v4023 = vpop.f32.mrf.mxu0
        %v4024 = vadd.f32 %v3971, %v4023
        %v4025 = vpop.f32.mrf.mxu0
        %v4026 = vadd.f32 %v3973, %v4025
        %4027 = vdwg.mxu0
        %4028 = vmatprep.subr.bf16.mxu0 %v3841
        %4029 = vmatpush1.bf16.msra.mxu0 %v3840
        %4030 = vmatprep.subr.bf16.mxu0 %v3839
        %4031 = vmatpush1.bf16.msra.mxu0 %v3838
        %4032 = vmatprep.subr.bf16.mxu0 %v3837
        %4033 = vmatpush1.bf16.msra.mxu0 %v3836
        %4034 = vmatprep.subr.bf16.mxu0 %v3835
        %4035 = vmatpush1.bf16.msra.mxu0 %v3834
        %4036 = vmatprep.subr.bf16.mxu0 %v3833
        %4037 = vmatpush1.bf16.msra.mxu0 %v3832
        %4038 = vmatprep.subr.bf16.mxu0 %v3831
        %4039 = vmatpush1.bf16.msra.mxu0 %v3830
        %4040 = vmatprep.subr.bf16.mxu0 %v3829
        %4041 = vmatpush1.bf16.msra.mxu0 %v3828
        %4042 = vmatprep.subr.bf16.mxu0 %v3827
        %4043 = vmatpush1.bf16.msra.mxu0 %v3826
        %4044 = vmatprep.subr.bf16.mxu0 0
        %4045 = vmatpush2.bf16.msra.mxu0 0
        %4046 = vmatprep.subr.bf16.mxu0 0
        %4047 = vmatpush2.bf16.msra.mxu0 0
        %4048 = vmatprep.subr.bf16.mxu0 0
        %4049 = vmatpush2.bf16.msra.mxu0 0
        %4050 = vmatprep.subr.bf16.mxu0 0
        %4051 = vmatpush2.bf16.msra.mxu0 0
        %4052 = vmatprep.subr.bf16.mxu0 0
        %4053 = vmatpush2.bf16.msra.mxu0 0
        %4054 = vmatprep.subr.bf16.mxu0 0
        %4055 = vmatpush2.bf16.msra.mxu0 0
        %4056 = vmatprep.subr.bf16.mxu0 0
        %4057 = vmatpush2.bf16.msra.mxu0 0
        %4058 = vmatprep.subr.bf16.mxu0 0
        %4059 = vmatpush2.bf16.msra.mxu0 0
        %4060 = vmatprep.mubr.bf16.mxu0 0
        %4061 = vmatmul.mubr.bf16.gmra.mxu0 %v1512
        %v4062 = vpop.f32.mrf.mxu0
        %v4063 = vadd.f32 %v4010, %v4062
        %v4064 = vpop.f32.mrf.mxu0
        %v4065 = vadd.f32 %v4012, %v4064
        %v4066 = vpop.f32.mrf.mxu0
        %v4067 = vadd.f32 %v4014, %v4066
        %v4068 = vpop.f32.mrf.mxu0
        %v4069 = vadd.f32 %v4016, %v4068
        %4070 = vmatprep.mubr.bf16.mxu0 0
        %4071 = vmatmul.mubr.bf16.gmra.mxu0 %v1517
        %v4072 = vpop.f32.mrf.mxu0
        %v4073 = vadd.f32 %v4020, %v4072
        %v4074 = vpop.f32.mrf.mxu0
        %v4075 = vadd.f32 %v4022, %v4074
        %v4076 = vpop.f32.mrf.mxu0
        %v4077 = vadd.f32 %v4024, %v4076
        %v4078 = vpop.f32.mrf.mxu0
        %v4079 = vadd.f32 %v4026, %v4078
        %4080 = vdwg.mxu0
        %s4081 = scalar_lea.vmem [#allocation2], 192
        %v4082 = vld [vmem:[%s4081] sm:$0xff]
        %v4083 = vld [vmem:[%s4081 + $0x8] sm:$0xff]
        %v4084 = vld [vmem:[%s4081 + $0x10] sm:$0xff]
        %v4085 = vld [vmem:[%s4081 + $0x18] sm:$0xff]
        %v4086 = vld [vmem:[%s4081 + $0x20] sm:$0xff]
        %v4087 = vld [vmem:[%s4081 + $0x28] sm:$0xff]
        %v4088 = vld [vmem:[%s4081 + $0x30] sm:$0xff]
        %v4089 = vld [vmem:[%s4081 + $0x38] sm:$0xff]
        %v4090 = vadd.f32 %v4082, %v4063
        %v4091 = vadd.f32 %v4083, %v4065
        %v4092 = vadd.f32 %v4084, %v4067
        %v4093 = vadd.f32 %v4085, %v4069
        %v4094 = vadd.f32 %v4086, %v4073
        %v4095 = vadd.f32 %v4087, %v4075
        %v4096 = vadd.f32 %v4088, %v4077
        %v4097 = vadd.f32 %v4089, %v4079
        %4098 = vst [vmem:[%s4081] sm:$0xff] %v4090
        %4099 = vst [vmem:[%s4081 + $0x8] sm:$0xff] %v4091
        %4100 = vst [vmem:[%s4081 + $0x10] sm:$0xff] %v4092
        %4101 = vst [vmem:[%s4081 + $0x18] sm:$0xff] %v4093
        %4102 = vst [vmem:[%s4081 + $0x20] sm:$0xff] %v4094
        %4103 = vst [vmem:[%s4081 + $0x28] sm:$0xff] %v4095
        %4104 = vst [vmem:[%s4081 + $0x30] sm:$0xff] %v4096
        %4105 = vst [vmem:[%s4081 + $0x38] sm:$0xff] %v4097
        %s4106 = scalar_lea.vmem %s1284, 1024 [#allocation3]
        %v4107 = vld [vmem:[%s4106] sm:$0xff]
        %v4108 = vld [vmem:[%s4106 + $0x8] sm:$0xff]
        %v4109 = vld [vmem:[%s4106 + $0x10] sm:$0xff]
        %v4110 = vld [vmem:[%s4106 + $0x18] sm:$0xff]
        %v4111 = vld [vmem:[%s4106 + $0x20] sm:$0xff]
        %v4112 = vld [vmem:[%s4106 + $0x28] sm:$0xff]
        %v4113 = vld [vmem:[%s4106 + $0x30] sm:$0xff]
        %v4114 = vld [vmem:[%s4106 + $0x38] sm:$0xff]
        %v4115 = vld [vmem:[%s4106 + $0x40] sm:$0xff]
        %v4116 = vld [vmem:[%s4106 + $0x48] sm:$0xff]
        %v4117 = vld [vmem:[%s4106 + $0x50] sm:$0xff]
        %v4118 = vld [vmem:[%s4106 + $0x58] sm:$0xff]
        %v4119 = vld [vmem:[%s4106 + $0x60] sm:$0xff]
        %v4120 = vld [vmem:[%s4106 + $0x68] sm:$0xff]
        %v4121 = vld [vmem:[%s4106 + $0x70] sm:$0xff]
        %v4122 = vld [vmem:[%s4106 + $0x78] sm:$0xff]
        %v4123 = vld [vmem:[%s4106 + $0x80] sm:$0xff]
        %v4124 = vld [vmem:[%s4106 + $0x88] sm:$0xff]
        %v4125 = vld [vmem:[%s4106 + $0x90] sm:$0xff]
        %v4126 = vld [vmem:[%s4106 + $0x98] sm:$0xff]
        %v4127 = vld [vmem:[%s4106 + $0xa0] sm:$0xff]
        %v4128 = vld [vmem:[%s4106 + $0xa8] sm:$0xff]
        %v4129 = vld [vmem:[%s4106 + $0xb0] sm:$0xff]
        %v4130 = vld [vmem:[%s4106 + $0xb8] sm:$0xff]
        %v4131 = vld [vmem:[%s4106 + $0xc0] sm:$0xff]
        %v4132 = vld [vmem:[%s4106 + $0xc8] sm:$0xff]
        %v4133 = vld [vmem:[%s4106 + $0xd0] sm:$0xff]
        %v4134 = vld [vmem:[%s4106 + $0xd8] sm:$0xff]
        %v4135 = vld [vmem:[%s4106 + $0xe0] sm:$0xff]
        %v4136 = vld [vmem:[%s4106 + $0xe8] sm:$0xff]
        %v4137 = vld [vmem:[%s4106 + $0xf0] sm:$0xff]
        %v4138 = vld [vmem:[%s4106 + $0xf8] sm:$0xff]
        %v4139 = vld [vmem:[%s4106 + $0x100] sm:$0xff]
        %v4140 = vld [vmem:[%s4106 + $0x108] sm:$0xff]
        %v4141 = vld [vmem:[%s4106 + $0x110] sm:$0xff]
        %v4142 = vld [vmem:[%s4106 + $0x118] sm:$0xff]
        %v4143 = vld [vmem:[%s4106 + $0x120] sm:$0xff]
        %v4144 = vld [vmem:[%s4106 + $0x128] sm:$0xff]
        %v4145 = vld [vmem:[%s4106 + $0x130] sm:$0xff]
        %v4146 = vld [vmem:[%s4106 + $0x138] sm:$0xff]
        %v4147 = vld [vmem:[%s4106 + $0x140] sm:$0xff]
        %v4148 = vld [vmem:[%s4106 + $0x148] sm:$0xff]
        %v4149 = vld [vmem:[%s4106 + $0x150] sm:$0xff]
        %v4150 = vld [vmem:[%s4106 + $0x158] sm:$0xff]
        %v4151 = vld [vmem:[%s4106 + $0x160] sm:$0xff]
        %v4152 = vld [vmem:[%s4106 + $0x168] sm:$0xff]
        %v4153 = vld [vmem:[%s4106 + $0x170] sm:$0xff]
        %v4154 = vld [vmem:[%s4106 + $0x178] sm:$0xff]
        %v4155 = vld [vmem:[%s4106 + $0x180] sm:$0xff]
        %v4156 = vld [vmem:[%s4106 + $0x188] sm:$0xff]
        %v4157 = vld [vmem:[%s4106 + $0x190] sm:$0xff]
        %v4158 = vld [vmem:[%s4106 + $0x198] sm:$0xff]
        %v4159 = vld [vmem:[%s4106 + $0x1a0] sm:$0xff]
        %v4160 = vld [vmem:[%s4106 + $0x1a8] sm:$0xff]
        %v4161 = vld [vmem:[%s4106 + $0x1b0] sm:$0xff]
        %v4162 = vld [vmem:[%s4106 + $0x1b8] sm:$0xff]
        %v4163 = vld [vmem:[%s4106 + $0x1c0] sm:$0xff]
        %v4164 = vld [vmem:[%s4106 + $0x1c8] sm:$0xff]
        %v4165 = vld [vmem:[%s4106 + $0x1d0] sm:$0xff]
        %v4166 = vld [vmem:[%s4106 + $0x1d8] sm:$0xff]
        %v4167 = vld [vmem:[%s4106 + $0x1e0] sm:$0xff]
        %v4168 = vld [vmem:[%s4106 + $0x1e8] sm:$0xff]
        %v4169 = vld [vmem:[%s4106 + $0x1f0] sm:$0xff]
        %v4170 = vld [vmem:[%s4106 + $0x1f8] sm:$0xff]
        %v4171 = vld [vmem:[%s4106 + $0x200] sm:$0xff]
        %v4172 = vld [vmem:[%s4106 + $0x208] sm:$0xff]
        %v4173 = vld [vmem:[%s4106 + $0x210] sm:$0xff]
        %v4174 = vld [vmem:[%s4106 + $0x218] sm:$0xff]
        %v4175 = vld [vmem:[%s4106 + $0x220] sm:$0xff]
        %v4176 = vld [vmem:[%s4106 + $0x228] sm:$0xff]
        %v4177 = vld [vmem:[%s4106 + $0x230] sm:$0xff]
        %v4178 = vld [vmem:[%s4106 + $0x238] sm:$0xff]
        %v4179 = vld [vmem:[%s4106 + $0x240] sm:$0xff]
        %v4180 = vld [vmem:[%s4106 + $0x248] sm:$0xff]
        %v4181 = vld [vmem:[%s4106 + $0x250] sm:$0xff]
        %v4182 = vld [vmem:[%s4106 + $0x258] sm:$0xff]
        %v4183 = vld [vmem:[%s4106 + $0x260] sm:$0xff]
        %v4184 = vld [vmem:[%s4106 + $0x268] sm:$0xff]
        %v4185 = vld [vmem:[%s4106 + $0x270] sm:$0xff]
        %v4186 = vld [vmem:[%s4106 + $0x278] sm:$0xff]
        %v4267 = vunpack.c.l.b16 %v4107
        %v4268 = vunpack.c.h.b16 %v4107
        %v4269 = vunpack.c.l.b16 %v4108
        %v4270 = vunpack.c.h.b16 %v4108
        %v4271 = vunpack.c.l.b16 %v4109
        %v4272 = vunpack.c.h.b16 %v4109
        %v4273 = vunpack.c.l.b16 %v4110
        %v4274 = vunpack.c.h.b16 %v4110
        %v4275 = vunpack.c.l.b16 %v4111
        %v4276 = vunpack.c.h.b16 %v4111
        %v4277 = vunpack.c.l.b16 %v4112
        %v4278 = vunpack.c.h.b16 %v4112
        %v4279 = vunpack.c.l.b16 %v4113
        %v4280 = vunpack.c.h.b16 %v4113
        %v4281 = vunpack.c.l.b16 %v4114
        %v4282 = vunpack.c.h.b16 %v4114
        %v4283 = vunpack.c.l.b16 %v4115
        %v4284 = vunpack.c.h.b16 %v4115
        %v4285 = vunpack.c.l.b16 %v4116
        %v4286 = vunpack.c.h.b16 %v4116
        %v4287 = vunpack.c.l.b16 %v4117
        %v4288 = vunpack.c.h.b16 %v4117
        %v4289 = vunpack.c.l.b16 %v4118
        %v4290 = vunpack.c.h.b16 %v4118
        %v4291 = vunpack.c.l.b16 %v4119
        %v4292 = vunpack.c.h.b16 %v4119
        %v4293 = vunpack.c.l.b16 %v4120
        %v4294 = vunpack.c.h.b16 %v4120
        %v4295 = vunpack.c.l.b16 %v4121
        %v4296 = vunpack.c.h.b16 %v4121
        %v4297 = vunpack.c.l.b16 %v4122
        %v4298 = vunpack.c.h.b16 %v4122
        %v4299 = vunpack.c.l.b16 %v4123
        %v4300 = vunpack.c.h.b16 %v4123
        %v4301 = vunpack.c.l.b16 %v4124
        %v4302 = vunpack.c.h.b16 %v4124
        %v4303 = vunpack.c.l.b16 %v4125
        %v4304 = vunpack.c.h.b16 %v4125
        %v4305 = vunpack.c.l.b16 %v4126
        %v4306 = vunpack.c.h.b16 %v4126
        %v4307 = vunpack.c.l.b16 %v4127
        %v4308 = vunpack.c.h.b16 %v4127
        %v4309 = vunpack.c.l.b16 %v4128
        %v4310 = vunpack.c.h.b16 %v4128
        %v4311 = vunpack.c.l.b16 %v4129
        %v4312 = vunpack.c.h.b16 %v4129
        %v4313 = vunpack.c.l.b16 %v4130
        %v4314 = vunpack.c.h.b16 %v4130
        %v4315 = vunpack.c.l.b16 %v4131
        %v4316 = vunpack.c.h.b16 %v4131
        %v4317 = vunpack.c.l.b16 %v4132
        %v4318 = vunpack.c.h.b16 %v4132
        %v4319 = vunpack.c.l.b16 %v4133
        %v4320 = vunpack.c.h.b16 %v4133
        %v4321 = vunpack.c.l.b16 %v4134
        %v4322 = vunpack.c.h.b16 %v4134
        %v4323 = vunpack.c.l.b16 %v4135
        %v4324 = vunpack.c.h.b16 %v4135
        %v4325 = vunpack.c.l.b16 %v4136
        %v4326 = vunpack.c.h.b16 %v4136
        %v4327 = vunpack.c.l.b16 %v4137
        %v4328 = vunpack.c.h.b16 %v4137
        %v4329 = vunpack.c.l.b16 %v4138
        %v4330 = vunpack.c.h.b16 %v4138
        %v4331 = vunpack.c.l.b16 %v4139
        %v4332 = vunpack.c.h.b16 %v4139
        %v4333 = vunpack.c.l.b16 %v4140
        %v4334 = vunpack.c.h.b16 %v4140
        %v4335 = vunpack.c.l.b16 %v4141
        %v4336 = vunpack.c.h.b16 %v4141
        %v4337 = vunpack.c.l.b16 %v4142
        %v4338 = vunpack.c.h.b16 %v4142
        %v4339 = vunpack.c.l.b16 %v4143
        %v4340 = vunpack.c.h.b16 %v4143
        %v4341 = vunpack.c.l.b16 %v4144
        %v4342 = vunpack.c.h.b16 %v4144
        %v4343 = vunpack.c.l.b16 %v4145
        %v4344 = vunpack.c.h.b16 %v4145
        %v4345 = vunpack.c.l.b16 %v4146
        %v4346 = vunpack.c.h.b16 %v4146
        %v4347 = vunpack.c.l.b16 %v4147
        %v4348 = vunpack.c.h.b16 %v4147
        %v4349 = vunpack.c.l.b16 %v4148
        %v4350 = vunpack.c.h.b16 %v4148
        %v4351 = vunpack.c.l.b16 %v4149
        %v4352 = vunpack.c.h.b16 %v4149
        %v4353 = vunpack.c.l.b16 %v4150
        %v4354 = vunpack.c.h.b16 %v4150
        %v4355 = vunpack.c.l.b16 %v4151
        %v4356 = vunpack.c.h.b16 %v4151
        %v4357 = vunpack.c.l.b16 %v4152
        %v4358 = vunpack.c.h.b16 %v4152
        %v4359 = vunpack.c.l.b16 %v4153
        %v4360 = vunpack.c.h.b16 %v4153
        %v4361 = vunpack.c.l.b16 %v4154
        %v4362 = vunpack.c.h.b16 %v4154
        %v4363 = vunpack.c.l.b16 %v4155
        %v4364 = vunpack.c.h.b16 %v4155
        %v4365 = vunpack.c.l.b16 %v4156
        %v4366 = vunpack.c.h.b16 %v4156
        %v4367 = vunpack.c.l.b16 %v4157
        %v4368 = vunpack.c.h.b16 %v4157
        %v4369 = vunpack.c.l.b16 %v4158
        %v4370 = vunpack.c.h.b16 %v4158
        %v4371 = vunpack.c.l.b16 %v4159
        %v4372 = vunpack.c.h.b16 %v4159
        %v4373 = vunpack.c.l.b16 %v4160
        %v4374 = vunpack.c.h.b16 %v4160
        %v4375 = vunpack.c.l.b16 %v4161
        %v4376 = vunpack.c.h.b16 %v4161
        %v4377 = vunpack.c.l.b16 %v4162
        %v4378 = vunpack.c.h.b16 %v4162
        %v4379 = vunpack.c.l.b16 %v4163
        %v4380 = vunpack.c.h.b16 %v4163
        %v4381 = vunpack.c.l.b16 %v4164
        %v4382 = vunpack.c.h.b16 %v4164
        %v4383 = vunpack.c.l.b16 %v4165
        %v4384 = vunpack.c.h.b16 %v4165
        %v4385 = vunpack.c.l.b16 %v4166
        %v4386 = vunpack.c.h.b16 %v4166
        %v4387 = vunpack.c.l.b16 %v4167
        %v4388 = vunpack.c.h.b16 %v4167
        %v4389 = vunpack.c.l.b16 %v4168
        %v4390 = vunpack.c.h.b16 %v4168
        %v4391 = vunpack.c.l.b16 %v4169
        %v4392 = vunpack.c.h.b16 %v4169
        %v4393 = vunpack.c.l.b16 %v4170
        %v4394 = vunpack.c.h.b16 %v4170
        %v4395 = vunpack.c.l.b16 %v4171
        %v4396 = vunpack.c.h.b16 %v4171
        %v4397 = vunpack.c.l.b16 %v4172
        %v4398 = vunpack.c.h.b16 %v4172
        %v4399 = vunpack.c.l.b16 %v4173
        %v4400 = vunpack.c.h.b16 %v4173
        %v4401 = vunpack.c.l.b16 %v4174
        %v4402 = vunpack.c.h.b16 %v4174
        %v4403 = vunpack.c.l.b16 %v4175
        %v4404 = vunpack.c.h.b16 %v4175
        %v4405 = vunpack.c.l.b16 %v4176
        %v4406 = vunpack.c.h.b16 %v4176
        %v4407 = vunpack.c.l.b16 %v4177
        %v4408 = vunpack.c.h.b16 %v4177
        %v4409 = vunpack.c.l.b16 %v4178
        %v4410 = vunpack.c.h.b16 %v4178
        %v4411 = vunpack.c.l.b16 %v4179
        %v4412 = vunpack.c.h.b16 %v4179
        %v4413 = vunpack.c.l.b16 %v4180
        %v4414 = vunpack.c.h.b16 %v4180
        %v4415 = vunpack.c.l.b16 %v4181
        %v4416 = vunpack.c.h.b16 %v4181
        %v4417 = vunpack.c.l.b16 %v4182
        %v4418 = vunpack.c.h.b16 %v4182
        %v4419 = vunpack.c.l.b16 %v4183
        %v4420 = vunpack.c.h.b16 %v4183
        %v4421 = vunpack.c.l.b16 %v4184
        %v4422 = vunpack.c.h.b16 %v4184
        %v4423 = vunpack.c.l.b16 %v4185
        %v4424 = vunpack.c.h.b16 %v4185
        %v4425 = vunpack.c.l.b16 %v4186
        %v4426 = vunpack.c.h.b16 %v4186
        %v4427 = vpack.c.b16 %v4269, %v4267
        %v4428 = vpack.c.b16 %v4270, %v4268
        %v4429 = vpack.c.b16 %v4273, %v4271
        %v4430 = vpack.c.b16 %v4274, %v4272
        %v4431 = vpack.c.b16 %v4277, %v4275
        %v4432 = vpack.c.b16 %v4278, %v4276
        %v4433 = vpack.c.b16 %v4281, %v4279
        %v4434 = vpack.c.b16 %v4282, %v4280
        %v4435 = vpack.c.b16 %v4285, %v4283
        %v4436 = vpack.c.b16 %v4286, %v4284
        %v4437 = vpack.c.b16 %v4289, %v4287
        %v4438 = vpack.c.b16 %v4290, %v4288
        %v4439 = vpack.c.b16 %v4293, %v4291
        %v4440 = vpack.c.b16 %v4294, %v4292
        %v4441 = vpack.c.b16 %v4297, %v4295
        %v4442 = vpack.c.b16 %v4298, %v4296
        %v4443 = vpack.c.b16 %v4301, %v4299
        %v4444 = vpack.c.b16 %v4302, %v4300
        %v4445 = vpack.c.b16 %v4305, %v4303
        %v4446 = vpack.c.b16 %v4306, %v4304
        %v4447 = vpack.c.b16 %v4309, %v4307
        %v4448 = vpack.c.b16 %v4310, %v4308
        %v4449 = vpack.c.b16 %v4313, %v4311
        %v4450 = vpack.c.b16 %v4314, %v4312
        %v4451 = vpack.c.b16 %v4317, %v4315
        %v4452 = vpack.c.b16 %v4318, %v4316
        %v4453 = vpack.c.b16 %v4321, %v4319
        %v4454 = vpack.c.b16 %v4322, %v4320
        %v4455 = vpack.c.b16 %v4325, %v4323
        %v4456 = vpack.c.b16 %v4326, %v4324
        %v4457 = vpack.c.b16 %v4329, %v4327
        %v4458 = vpack.c.b16 %v4330, %v4328
        %v4459 = vpack.c.b16 %v4333, %v4331
        %v4460 = vpack.c.b16 %v4334, %v4332
        %v4461 = vpack.c.b16 %v4337, %v4335
        %v4462 = vpack.c.b16 %v4338, %v4336
        %v4463 = vpack.c.b16 %v4341, %v4339
        %v4464 = vpack.c.b16 %v4342, %v4340
        %v4465 = vpack.c.b16 %v4345, %v4343
        %v4466 = vpack.c.b16 %v4346, %v4344
        %v4467 = vpack.c.b16 %v4349, %v4347
        %v4468 = vpack.c.b16 %v4350, %v4348
        %v4469 = vpack.c.b16 %v4353, %v4351
        %v4470 = vpack.c.b16 %v4354, %v4352
        %v4471 = vpack.c.b16 %v4357, %v4355
        %v4472 = vpack.c.b16 %v4358, %v4356
        %v4473 = vpack.c.b16 %v4361, %v4359
        %v4474 = vpack.c.b16 %v4362, %v4360
        %v4475 = vpack.c.b16 %v4365, %v4363
        %v4476 = vpack.c.b16 %v4366, %v4364
        %v4477 = vpack.c.b16 %v4369, %v4367
        %v4478 = vpack.c.b16 %v4370, %v4368
        %v4479 = vpack.c.b16 %v4373, %v4371
        %v4480 = vpack.c.b16 %v4374, %v4372
        %v4481 = vpack.c.b16 %v4377, %v4375
        %v4482 = vpack.c.b16 %v4378, %v4376
        %v4483 = vpack.c.b16 %v4381, %v4379
        %v4484 = vpack.c.b16 %v4382, %v4380
        %v4485 = vpack.c.b16 %v4385, %v4383
        %v4486 = vpack.c.b16 %v4386, %v4384
        %v4487 = vpack.c.b16 %v4389, %v4387
        %v4488 = vpack.c.b16 %v4390, %v4388
        %v4489 = vpack.c.b16 %v4393, %v4391
        %v4490 = vpack.c.b16 %v4394, %v4392
        %v4491 = vpack.c.b16 %v4397, %v4395
        %v4492 = vpack.c.b16 %v4398, %v4396
        %v4493 = vpack.c.b16 %v4401, %v4399
        %v4494 = vpack.c.b16 %v4402, %v4400
        %v4495 = vpack.c.b16 %v4405, %v4403
        %v4496 = vpack.c.b16 %v4406, %v4404
        %v4497 = vpack.c.b16 %v4409, %v4407
        %v4498 = vpack.c.b16 %v4410, %v4408
        %v4499 = vpack.c.b16 %v4413, %v4411
        %v4500 = vpack.c.b16 %v4414, %v4412
        %v4501 = vpack.c.b16 %v4417, %v4415
        %v4502 = vpack.c.b16 %v4418, %v4416
        %v4503 = vpack.c.b16 %v4421, %v4419
        %v4504 = vpack.c.b16 %v4422, %v4420
        %v4505 = vpack.c.b16 %v4425, %v4423
        %v4506 = vpack.c.b16 %v4426, %v4424
        %4587 = vmatprep.subr.bf16.mxu0 %v4442
        %4588 = vmatpush1.bf16.msra.mxu0 %v4441
        %4589 = vmatprep.subr.bf16.mxu0 %v4440
        %4590 = vmatpush1.bf16.msra.mxu0 %v4439
        %4591 = vmatprep.subr.bf16.mxu0 %v4438
        %4592 = vmatpush1.bf16.msra.mxu0 %v4437
        %4593 = vmatprep.subr.bf16.mxu0 %v4436
        %4594 = vmatpush1.bf16.msra.mxu0 %v4435
        %4595 = vmatprep.subr.bf16.mxu0 %v4434
        %4596 = vmatpush1.bf16.msra.mxu0 %v4433
        %4597 = vmatprep.subr.bf16.mxu0 %v4432
        %4598 = vmatpush1.bf16.msra.mxu0 %v4431
        %4599 = vmatprep.subr.bf16.mxu0 %v4430
        %4600 = vmatpush1.bf16.msra.mxu0 %v4429
        %4601 = vmatprep.subr.bf16.mxu0 %v4428
        %4602 = vmatpush1.bf16.msra.mxu0 %v4427
        %4603 = vmatprep.subr.bf16.mxu0 %v4458
        %4604 = vmatpush2.bf16.msra.mxu0 %v4457
        %4605 = vmatprep.subr.bf16.mxu0 %v4456
        %4606 = vmatpush2.bf16.msra.mxu0 %v4455
        %4607 = vmatprep.subr.bf16.mxu0 %v4454
        %4608 = vmatpush2.bf16.msra.mxu0 %v4453
        %4609 = vmatprep.subr.bf16.mxu0 %v4452
        %4610 = vmatpush2.bf16.msra.mxu0 %v4451
        %4611 = vmatprep.subr.bf16.mxu0 %v4450
        %4612 = vmatpush2.bf16.msra.mxu0 %v4449
        %4613 = vmatprep.subr.bf16.mxu0 %v4448
        %4614 = vmatpush2.bf16.msra.mxu0 %v4447
        %4615 = vmatprep.subr.bf16.mxu0 %v4446
        %4616 = vmatpush2.bf16.msra.mxu0 %v4445
        %4617 = vmatprep.subr.bf16.mxu0 %v4444
        %4618 = vmatpush2.bf16.msra.mxu0 %v4443
        %4619 = vmatprep.mubr.bf16.mxu0 %v1509
        %4620 = vmatmul.mubr.bf16.gmra.mxu0 %v1508
        %v4621 = vpop.f32.mrf.mxu0
        %v4622 = vadd.f32 0.0, %v4621
        %v4623 = vpop.f32.mrf.mxu0
        %v4624 = vadd.f32 0.0, %v4623
        %v4625 = vpop.f32.mrf.mxu0
        %v4626 = vadd.f32 0.0, %v4625
        %v4627 = vpop.f32.mrf.mxu0
        %v4628 = vadd.f32 0.0, %v4627
        %4629 = vmatprep.mubr.bf16.mxu0 %v1514
        %4630 = vmatmul.mubr.bf16.gmra.mxu0 %v1513
        %v4631 = vpop.f32.mrf.mxu0
        %v4632 = vadd.f32 0.0, %v4631
        %v4633 = vpop.f32.mrf.mxu0
        %v4634 = vadd.f32 0.0, %v4633
        %v4635 = vpop.f32.mrf.mxu0
        %v4636 = vadd.f32 0.0, %v4635
        %v4637 = vpop.f32.mrf.mxu0
        %v4638 = vadd.f32 0.0, %v4637
        %4639 = vdwg.mxu0
        %4640 = vmatprep.subr.bf16.mxu0 %v4474
        %4641 = vmatpush1.bf16.msra.mxu0 %v4473
        %4642 = vmatprep.subr.bf16.mxu0 %v4472
        %4643 = vmatpush1.bf16.msra.mxu0 %v4471
        %4644 = vmatprep.subr.bf16.mxu0 %v4470
        %4645 = vmatpush1.bf16.msra.mxu0 %v4469
        %4646 = vmatprep.subr.bf16.mxu0 %v4468
        %4647 = vmatpush1.bf16.msra.mxu0 %v4467
        %4648 = vmatprep.subr.bf16.mxu0 %v4466
        %4649 = vmatpush1.bf16.msra.mxu0 %v4465
        %4650 = vmatprep.subr.bf16.mxu0 %v4464
        %4651 = vmatpush1.bf16.msra.mxu0 %v4463
        %4652 = vmatprep.subr.bf16.mxu0 %v4462
        %4653 = vmatpush1.bf16.msra.mxu0 %v4461
        %4654 = vmatprep.subr.bf16.mxu0 %v4460
        %4655 = vmatpush1.bf16.msra.mxu0 %v4459
        %4656 = vmatprep.subr.bf16.mxu0 %v4490
        %4657 = vmatpush2.bf16.msra.mxu0 %v4489
        %4658 = vmatprep.subr.bf16.mxu0 %v4488
        %4659 = vmatpush2.bf16.msra.mxu0 %v4487
        %4660 = vmatprep.subr.bf16.mxu0 %v4486
        %4661 = vmatpush2.bf16.msra.mxu0 %v4485
        %4662 = vmatprep.subr.bf16.mxu0 %v4484
        %4663 = vmatpush2.bf16.msra.mxu0 %v4483
        %4664 = vmatprep.subr.bf16.mxu0 %v4482
        %4665 = vmatpush2.bf16.msra.mxu0 %v4481
        %4666 = vmatprep.subr.bf16.mxu0 %v4480
        %4667 = vmatpush2.bf16.msra.mxu0 %v4479
        %4668 = vmatprep.subr.bf16.mxu0 %v4478
        %4669 = vmatpush2.bf16.msra.mxu0 %v4477
        %4670 = vmatprep.subr.bf16.mxu0 %v4476
        %4671 = vmatpush2.bf16.msra.mxu0 %v4475
        %4672 = vmatprep.mubr.bf16.mxu0 %v1511
        %4673 = vmatmul.mubr.bf16.gmra.mxu0 %v1510
        %v4674 = vpop.f32.mrf.mxu0
        %v4675 = vadd.f32 %v4622, %v4674
        %v4676 = vpop.f32.mrf.mxu0
        %v4677 = vadd.f32 %v4624, %v4676
        %v4678 = vpop.f32.mrf.mxu0
        %v4679 = vadd.f32 %v4626, %v4678
        %v4680 = vpop.f32.mrf.mxu0
        %v4681 = vadd.f32 %v4628, %v4680
        %4682 = vmatprep.mubr.bf16.mxu0 %v1516
        %4683 = vmatmul.mubr.bf16.gmra.mxu0 %v1515
        %v4684 = vpop.f32.mrf.mxu0
        %v4685 = vadd.f32 %v4632, %v4684
        %v4686 = vpop.f32.mrf.mxu0
        %v4687 = vadd.f32 %v4634, %v4686
        %v4688 = vpop.f32.mrf.mxu0
        %v4689 = vadd.f32 %v4636, %v4688
        %v4690 = vpop.f32.mrf.mxu0
        %v4691 = vadd.f32 %v4638, %v4690
        %4692 = vdwg.mxu0
        %4693 = vmatprep.subr.bf16.mxu0 %v4506
        %4694 = vmatpush1.bf16.msra.mxu0 %v4505
        %4695 = vmatprep.subr.bf16.mxu0 %v4504
        %4696 = vmatpush1.bf16.msra.mxu0 %v4503
        %4697 = vmatprep.subr.bf16.mxu0 %v4502
        %4698 = vmatpush1.bf16.msra.mxu0 %v4501
        %4699 = vmatprep.subr.bf16.mxu0 %v4500
        %4700 = vmatpush1.bf16.msra.mxu0 %v4499
        %4701 = vmatprep.subr.bf16.mxu0 %v4498
        %4702 = vmatpush1.bf16.msra.mxu0 %v4497
        %4703 = vmatprep.subr.bf16.mxu0 %v4496
        %4704 = vmatpush1.bf16.msra.mxu0 %v4495
        %4705 = vmatprep.subr.bf16.mxu0 %v4494
        %4706 = vmatpush1.bf16.msra.mxu0 %v4493
        %4707 = vmatprep.subr.bf16.mxu0 %v4492
        %4708 = vmatpush1.bf16.msra.mxu0 %v4491
        %4709 = vmatprep.subr.bf16.mxu0 0
        %4710 = vmatpush2.bf16.msra.mxu0 0
        %4711 = vmatprep.subr.bf16.mxu0 0
        %4712 = vmatpush2.bf16.msra.mxu0 0
        %4713 = vmatprep.subr.bf16.mxu0 0
        %4714 = vmatpush2.bf16.msra.mxu0 0
        %4715 = vmatprep.subr.bf16.mxu0 0
        %4716 = vmatpush2.bf16.msra.mxu0 0
        %4717 = vmatprep.subr.bf16.mxu0 0
        %4718 = vmatpush2.bf16.msra.mxu0 0
        %4719 = vmatprep.subr.bf16.mxu0 0
        %4720 = vmatpush2.bf16.msra.mxu0 0
        %4721 = vmatprep.subr.bf16.mxu0 0
        %4722 = vmatpush2.bf16.msra.mxu0 0
        %4723 = vmatprep.subr.bf16.mxu0 0
        %4724 = vmatpush2.bf16.msra.mxu0 0
        %4725 = vmatprep.mubr.bf16.mxu0 0
        %4726 = vmatmul.mubr.bf16.gmra.mxu0 %v1512
        %v4727 = vpop.f32.mrf.mxu0
        %v4728 = vadd.f32 %v4675, %v4727
        %v4729 = vpop.f32.mrf.mxu0
        %v4730 = vadd.f32 %v4677, %v4729
        %v4731 = vpop.f32.mrf.mxu0
        %v4732 = vadd.f32 %v4679, %v4731
        %v4733 = vpop.f32.mrf.mxu0
        %v4734 = vadd.f32 %v4681, %v4733
        %4735 = vmatprep.mubr.bf16.mxu0 0
        %4736 = vmatmul.mubr.bf16.gmra.mxu0 %v1517
        %v4737 = vpop.f32.mrf.mxu0
        %v4738 = vadd.f32 %v4685, %v4737
        %v4739 = vpop.f32.mrf.mxu0
        %v4740 = vadd.f32 %v4687, %v4739
        %v4741 = vpop.f32.mrf.mxu0
        %v4742 = vadd.f32 %v4689, %v4741
        %v4743 = vpop.f32.mrf.mxu0
        %v4744 = vadd.f32 %v4691, %v4743
        %4745 = vdwg.mxu0
        %s4746 = scalar_lea.vmem [#allocation2], 256
        %v4747 = vld [vmem:[%s4746] sm:$0xff]
        %v4748 = vld [vmem:[%s4746 + $0x8] sm:$0xff]
        %v4749 = vld [vmem:[%s4746 + $0x10] sm:$0xff]
        %v4750 = vld [vmem:[%s4746 + $0x18] sm:$0xff]
        %v4751 = vld [vmem:[%s4746 + $0x20] sm:$0xff]
        %v4752 = vld [vmem:[%s4746 + $0x28] sm:$0xff]
        %v4753 = vld [vmem:[%s4746 + $0x30] sm:$0xff]
        %v4754 = vld [vmem:[%s4746 + $0x38] sm:$0xff]
        %v4755 = vadd.f32 %v4747, %v4728
        %v4756 = vadd.f32 %v4748, %v4730
        %v4757 = vadd.f32 %v4749, %v4732
        %v4758 = vadd.f32 %v4750, %v4734
        %v4759 = vadd.f32 %v4751, %v4738
        %v4760 = vadd.f32 %v4752, %v4740
        %v4761 = vadd.f32 %v4753, %v4742
        %v4762 = vadd.f32 %v4754, %v4744
        %4763 = vst [vmem:[%s4746] sm:$0xff] %v4755
        %4764 = vst [vmem:[%s4746 + $0x8] sm:$0xff] %v4756
        %4765 = vst [vmem:[%s4746 + $0x10] sm:$0xff] %v4757
        %4766 = vst [vmem:[%s4746 + $0x18] sm:$0xff] %v4758
        %4767 = vst [vmem:[%s4746 + $0x20] sm:$0xff] %v4759
        %4768 = vst [vmem:[%s4746 + $0x28] sm:$0xff] %v4760
        %4769 = vst [vmem:[%s4746 + $0x30] sm:$0xff] %v4761
        %4770 = vst [vmem:[%s4746 + $0x38] sm:$0xff] %v4762
        %s4771 = scalar_lea.vmem %s1284, 1152 [#allocation3]
        %v4772 = vld [vmem:[%s4771] sm:$0xff]
        %v4773 = vld [vmem:[%s4771 + $0x8] sm:$0xff]
        %v4774 = vld [vmem:[%s4771 + $0x10] sm:$0xff]
        %v4775 = vld [vmem:[%s4771 + $0x18] sm:$0xff]
        %v4776 = vld [vmem:[%s4771 + $0x20] sm:$0xff]
        %v4777 = vld [vmem:[%s4771 + $0x28] sm:$0xff]
        %v4778 = vld [vmem:[%s4771 + $0x30] sm:$0xff]
        %v4779 = vld [vmem:[%s4771 + $0x38] sm:$0xff]
        %v4780 = vld [vmem:[%s4771 + $0x40] sm:$0xff]
        %v4781 = vld [vmem:[%s4771 + $0x48] sm:$0xff]
        %v4782 = vld [vmem:[%s4771 + $0x50] sm:$0xff]
        %v4783 = vld [vmem:[%s4771 + $0x58] sm:$0xff]
        %v4784 = vld [vmem:[%s4771 + $0x60] sm:$0xff]
        %v4785 = vld [vmem:[%s4771 + $0x68] sm:$0xff]
        %v4786 = vld [vmem:[%s4771 + $0x70] sm:$0xff]
        %v4787 = vld [vmem:[%s4771 + $0x78] sm:$0xff]
        %v4788 = vld [vmem:[%s4771 + $0x80] sm:$0xff]
        %v4789 = vld [vmem:[%s4771 + $0x88] sm:$0xff]
        %v4790 = vld [vmem:[%s4771 + $0x90] sm:$0xff]
        %v4791 = vld [vmem:[%s4771 + $0x98] sm:$0xff]
        %v4792 = vld [vmem:[%s4771 + $0xa0] sm:$0xff]
        %v4793 = vld [vmem:[%s4771 + $0xa8] sm:$0xff]
        %v4794 = vld [vmem:[%s4771 + $0xb0] sm:$0xff]
        %v4795 = vld [vmem:[%s4771 + $0xb8] sm:$0xff]
        %v4796 = vld [vmem:[%s4771 + $0xc0] sm:$0xff]
        %v4797 = vld [vmem:[%s4771 + $0xc8] sm:$0xff]
        %v4798 = vld [vmem:[%s4771 + $0xd0] sm:$0xff]
        %v4799 = vld [vmem:[%s4771 + $0xd8] sm:$0xff]
        %v4800 = vld [vmem:[%s4771 + $0xe0] sm:$0xff]
        %v4801 = vld [vmem:[%s4771 + $0xe8] sm:$0xff]
        %v4802 = vld [vmem:[%s4771 + $0xf0] sm:$0xff]
        %v4803 = vld [vmem:[%s4771 + $0xf8] sm:$0xff]
        %v4804 = vld [vmem:[%s4771 + $0x100] sm:$0xff]
        %v4805 = vld [vmem:[%s4771 + $0x108] sm:$0xff]
        %v4806 = vld [vmem:[%s4771 + $0x110] sm:$0xff]
        %v4807 = vld [vmem:[%s4771 + $0x118] sm:$0xff]
        %v4808 = vld [vmem:[%s4771 + $0x120] sm:$0xff]
        %v4809 = vld [vmem:[%s4771 + $0x128] sm:$0xff]
        %v4810 = vld [vmem:[%s4771 + $0x130] sm:$0xff]
        %v4811 = vld [vmem:[%s4771 + $0x138] sm:$0xff]
        %v4812 = vld [vmem:[%s4771 + $0x140] sm:$0xff]
        %v4813 = vld [vmem:[%s4771 + $0x148] sm:$0xff]
        %v4814 = vld [vmem:[%s4771 + $0x150] sm:$0xff]
        %v4815 = vld [vmem:[%s4771 + $0x158] sm:$0xff]
        %v4816 = vld [vmem:[%s4771 + $0x160] sm:$0xff]
        %v4817 = vld [vmem:[%s4771 + $0x168] sm:$0xff]
        %v4818 = vld [vmem:[%s4771 + $0x170] sm:$0xff]
        %v4819 = vld [vmem:[%s4771 + $0x178] sm:$0xff]
        %v4820 = vld [vmem:[%s4771 + $0x180] sm:$0xff]
        %v4821 = vld [vmem:[%s4771 + $0x188] sm:$0xff]
        %v4822 = vld [vmem:[%s4771 + $0x190] sm:$0xff]
        %v4823 = vld [vmem:[%s4771 + $0x198] sm:$0xff]
        %v4824 = vld [vmem:[%s4771 + $0x1a0] sm:$0xff]
        %v4825 = vld [vmem:[%s4771 + $0x1a8] sm:$0xff]
        %v4826 = vld [vmem:[%s4771 + $0x1b0] sm:$0xff]
        %v4827 = vld [vmem:[%s4771 + $0x1b8] sm:$0xff]
        %v4828 = vld [vmem:[%s4771 + $0x1c0] sm:$0xff]
        %v4829 = vld [vmem:[%s4771 + $0x1c8] sm:$0xff]
        %v4830 = vld [vmem:[%s4771 + $0x1d0] sm:$0xff]
        %v4831 = vld [vmem:[%s4771 + $0x1d8] sm:$0xff]
        %v4832 = vld [vmem:[%s4771 + $0x1e0] sm:$0xff]
        %v4833 = vld [vmem:[%s4771 + $0x1e8] sm:$0xff]
        %v4834 = vld [vmem:[%s4771 + $0x1f0] sm:$0xff]
        %v4835 = vld [vmem:[%s4771 + $0x1f8] sm:$0xff]
        %v4836 = vld [vmem:[%s4771 + $0x200] sm:$0xff]
        %v4837 = vld [vmem:[%s4771 + $0x208] sm:$0xff]
        %v4838 = vld [vmem:[%s4771 + $0x210] sm:$0xff]
        %v4839 = vld [vmem:[%s4771 + $0x218] sm:$0xff]
        %v4840 = vld [vmem:[%s4771 + $0x220] sm:$0xff]
        %v4841 = vld [vmem:[%s4771 + $0x228] sm:$0xff]
        %v4842 = vld [vmem:[%s4771 + $0x230] sm:$0xff]
        %v4843 = vld [vmem:[%s4771 + $0x238] sm:$0xff]
        %v4844 = vld [vmem:[%s4771 + $0x240] sm:$0xff]
        %v4845 = vld [vmem:[%s4771 + $0x248] sm:$0xff]
        %v4846 = vld [vmem:[%s4771 + $0x250] sm:$0xff]
        %v4847 = vld [vmem:[%s4771 + $0x258] sm:$0xff]
        %v4848 = vld [vmem:[%s4771 + $0x260] sm:$0xff]
        %v4849 = vld [vmem:[%s4771 + $0x268] sm:$0xff]
        %v4850 = vld [vmem:[%s4771 + $0x270] sm:$0xff]
        %v4851 = vld [vmem:[%s4771 + $0x278] sm:$0xff]
        %v4932 = vunpack.c.l.b16 %v4772
        %v4933 = vunpack.c.h.b16 %v4772
        %v4934 = vunpack.c.l.b16 %v4773
        %v4935 = vunpack.c.h.b16 %v4773
        %v4936 = vunpack.c.l.b16 %v4774
        %v4937 = vunpack.c.h.b16 %v4774
        %v4938 = vunpack.c.l.b16 %v4775
        %v4939 = vunpack.c.h.b16 %v4775
        %v4940 = vunpack.c.l.b16 %v4776
        %v4941 = vunpack.c.h.b16 %v4776
        %v4942 = vunpack.c.l.b16 %v4777
        %v4943 = vunpack.c.h.b16 %v4777
        %v4944 = vunpack.c.l.b16 %v4778
        %v4945 = vunpack.c.h.b16 %v4778
        %v4946 = vunpack.c.l.b16 %v4779
        %v4947 = vunpack.c.h.b16 %v4779
        %v4948 = vunpack.c.l.b16 %v4780
        %v4949 = vunpack.c.h.b16 %v4780
        %v4950 = vunpack.c.l.b16 %v4781
        %v4951 = vunpack.c.h.b16 %v4781
        %v4952 = vunpack.c.l.b16 %v4782
        %v4953 = vunpack.c.h.b16 %v4782
        %v4954 = vunpack.c.l.b16 %v4783
        %v4955 = vunpack.c.h.b16 %v4783
        %v4956 = vunpack.c.l.b16 %v4784
        %v4957 = vunpack.c.h.b16 %v4784
        %v4958 = vunpack.c.l.b16 %v4785
        %v4959 = vunpack.c.h.b16 %v4785
        %v4960 = vunpack.c.l.b16 %v4786
        %v4961 = vunpack.c.h.b16 %v4786
        %v4962 = vunpack.c.l.b16 %v4787
        %v4963 = vunpack.c.h.b16 %v4787
        %v4964 = vunpack.c.l.b16 %v4788
        %v4965 = vunpack.c.h.b16 %v4788
        %v4966 = vunpack.c.l.b16 %v4789
        %v4967 = vunpack.c.h.b16 %v4789
        %v4968 = vunpack.c.l.b16 %v4790
        %v4969 = vunpack.c.h.b16 %v4790
        %v4970 = vunpack.c.l.b16 %v4791
        %v4971 = vunpack.c.h.b16 %v4791
        %v4972 = vunpack.c.l.b16 %v4792
        %v4973 = vunpack.c.h.b16 %v4792
        %v4974 = vunpack.c.l.b16 %v4793
        %v4975 = vunpack.c.h.b16 %v4793
        %v4976 = vunpack.c.l.b16 %v4794
        %v4977 = vunpack.c.h.b16 %v4794
        %v4978 = vunpack.c.l.b16 %v4795
        %v4979 = vunpack.c.h.b16 %v4795
        %v4980 = vunpack.c.l.b16 %v4796
        %v4981 = vunpack.c.h.b16 %v4796
        %v4982 = vunpack.c.l.b16 %v4797
        %v4983 = vunpack.c.h.b16 %v4797
        %v4984 = vunpack.c.l.b16 %v4798
        %v4985 = vunpack.c.h.b16 %v4798
        %v4986 = vunpack.c.l.b16 %v4799
        %v4987 = vunpack.c.h.b16 %v4799
        %v4988 = vunpack.c.l.b16 %v4800
        %v4989 = vunpack.c.h.b16 %v4800
        %v4990 = vunpack.c.l.b16 %v4801
        %v4991 = vunpack.c.h.b16 %v4801
        %v4992 = vunpack.c.l.b16 %v4802
        %v4993 = vunpack.c.h.b16 %v4802
        %v4994 = vunpack.c.l.b16 %v4803
        %v4995 = vunpack.c.h.b16 %v4803
        %v4996 = vunpack.c.l.b16 %v4804
        %v4997 = vunpack.c.h.b16 %v4804
        %v4998 = vunpack.c.l.b16 %v4805
        %v4999 = vunpack.c.h.b16 %v4805
        %v5000 = vunpack.c.l.b16 %v4806
        %v5001 = vunpack.c.h.b16 %v4806
        %v5002 = vunpack.c.l.b16 %v4807
        %v5003 = vunpack.c.h.b16 %v4807
        %v5004 = vunpack.c.l.b16 %v4808
        %v5005 = vunpack.c.h.b16 %v4808
        %v5006 = vunpack.c.l.b16 %v4809
        %v5007 = vunpack.c.h.b16 %v4809
        %v5008 = vunpack.c.l.b16 %v4810
        %v5009 = vunpack.c.h.b16 %v4810
        %v5010 = vunpack.c.l.b16 %v4811
        %v5011 = vunpack.c.h.b16 %v4811
        %v5012 = vunpack.c.l.b16 %v4812
        %v5013 = vunpack.c.h.b16 %v4812
        %v5014 = vunpack.c.l.b16 %v4813
        %v5015 = vunpack.c.h.b16 %v4813
        %v5016 = vunpack.c.l.b16 %v4814
        %v5017 = vunpack.c.h.b16 %v4814
        %v5018 = vunpack.c.l.b16 %v4815
        %v5019 = vunpack.c.h.b16 %v4815
        %v5020 = vunpack.c.l.b16 %v4816
        %v5021 = vunpack.c.h.b16 %v4816
        %v5022 = vunpack.c.l.b16 %v4817
        %v5023 = vunpack.c.h.b16 %v4817
        %v5024 = vunpack.c.l.b16 %v4818
        %v5025 = vunpack.c.h.b16 %v4818
        %v5026 = vunpack.c.l.b16 %v4819
        %v5027 = vunpack.c.h.b16 %v4819
        %v5028 = vunpack.c.l.b16 %v4820
        %v5029 = vunpack.c.h.b16 %v4820
        %v5030 = vunpack.c.l.b16 %v4821
        %v5031 = vunpack.c.h.b16 %v4821
        %v5032 = vunpack.c.l.b16 %v4822
        %v5033 = vunpack.c.h.b16 %v4822
        %v5034 = vunpack.c.l.b16 %v4823
        %v5035 = vunpack.c.h.b16 %v4823
        %v5036 = vunpack.c.l.b16 %v4824
        %v5037 = vunpack.c.h.b16 %v4824
        %v5038 = vunpack.c.l.b16 %v4825
        %v5039 = vunpack.c.h.b16 %v4825
        %v5040 = vunpack.c.l.b16 %v4826
        %v5041 = vunpack.c.h.b16 %v4826
        %v5042 = vunpack.c.l.b16 %v4827
        %v5043 = vunpack.c.h.b16 %v4827
        %v5044 = vunpack.c.l.b16 %v4828
        %v5045 = vunpack.c.h.b16 %v4828
        %v5046 = vunpack.c.l.b16 %v4829
        %v5047 = vunpack.c.h.b16 %v4829
        %v5048 = vunpack.c.l.b16 %v4830
        %v5049 = vunpack.c.h.b16 %v4830
        %v5050 = vunpack.c.l.b16 %v4831
        %v5051 = vunpack.c.h.b16 %v4831
        %v5052 = vunpack.c.l.b16 %v4832
        %v5053 = vunpack.c.h.b16 %v4832
        %v5054 = vunpack.c.l.b16 %v4833
        %v5055 = vunpack.c.h.b16 %v4833
        %v5056 = vunpack.c.l.b16 %v4834
        %v5057 = vunpack.c.h.b16 %v4834
        %v5058 = vunpack.c.l.b16 %v4835
        %v5059 = vunpack.c.h.b16 %v4835
        %v5060 = vunpack.c.l.b16 %v4836
        %v5061 = vunpack.c.h.b16 %v4836
        %v5062 = vunpack.c.l.b16 %v4837
        %v5063 = vunpack.c.h.b16 %v4837
        %v5064 = vunpack.c.l.b16 %v4838
        %v5065 = vunpack.c.h.b16 %v4838
        %v5066 = vunpack.c.l.b16 %v4839
        %v5067 = vunpack.c.h.b16 %v4839
        %v5068 = vunpack.c.l.b16 %v4840
        %v5069 = vunpack.c.h.b16 %v4840
        %v5070 = vunpack.c.l.b16 %v4841
        %v5071 = vunpack.c.h.b16 %v4841
        %v5072 = vunpack.c.l.b16 %v4842
        %v5073 = vunpack.c.h.b16 %v4842
        %v5074 = vunpack.c.l.b16 %v4843
        %v5075 = vunpack.c.h.b16 %v4843
        %v5076 = vunpack.c.l.b16 %v4844
        %v5077 = vunpack.c.h.b16 %v4844
        %v5078 = vunpack.c.l.b16 %v4845
        %v5079 = vunpack.c.h.b16 %v4845
        %v5080 = vunpack.c.l.b16 %v4846
        %v5081 = vunpack.c.h.b16 %v4846
        %v5082 = vunpack.c.l.b16 %v4847
        %v5083 = vunpack.c.h.b16 %v4847
        %v5084 = vunpack.c.l.b16 %v4848
        %v5085 = vunpack.c.h.b16 %v4848
        %v5086 = vunpack.c.l.b16 %v4849
        %v5087 = vunpack.c.h.b16 %v4849
        %v5088 = vunpack.c.l.b16 %v4850
        %v5089 = vunpack.c.h.b16 %v4850
        %v5090 = vunpack.c.l.b16 %v4851
        %v5091 = vunpack.c.h.b16 %v4851
        %v5092 = vpack.c.b16 %v4934, %v4932
        %v5093 = vpack.c.b16 %v4935, %v4933
        %v5094 = vpack.c.b16 %v4938, %v4936
        %v5095 = vpack.c.b16 %v4939, %v4937
        %v5096 = vpack.c.b16 %v4942, %v4940
        %v5097 = vpack.c.b16 %v4943, %v4941
        %v5098 = vpack.c.b16 %v4946, %v4944
        %v5099 = vpack.c.b16 %v4947, %v4945
        %v5100 = vpack.c.b16 %v4950, %v4948
        %v5101 = vpack.c.b16 %v4951, %v4949
        %v5102 = vpack.c.b16 %v4954, %v4952
        %v5103 = vpack.c.b16 %v4955, %v4953
        %v5104 = vpack.c.b16 %v4958, %v4956
        %v5105 = vpack.c.b16 %v4959, %v4957
        %v5106 = vpack.c.b16 %v4962, %v4960
        %v5107 = vpack.c.b16 %v4963, %v4961
        %v5108 = vpack.c.b16 %v4966, %v4964
        %v5109 = vpack.c.b16 %v4967, %v4965
        %v5110 = vpack.c.b16 %v4970, %v4968
        %v5111 = vpack.c.b16 %v4971, %v4969
        %v5112 = vpack.c.b16 %v4974, %v4972
        %v5113 = vpack.c.b16 %v4975, %v4973
        %v5114 = vpack.c.b16 %v4978, %v4976
        %v5115 = vpack.c.b16 %v4979, %v4977
        %v5116 = vpack.c.b16 %v4982, %v4980
        %v5117 = vpack.c.b16 %v4983, %v4981
        %v5118 = vpack.c.b16 %v4986, %v4984
        %v5119 = vpack.c.b16 %v4987, %v4985
        %v5120 = vpack.c.b16 %v4990, %v4988
        %v5121 = vpack.c.b16 %v4991, %v4989
        %v5122 = vpack.c.b16 %v4994, %v4992
        %v5123 = vpack.c.b16 %v4995, %v4993
        %v5124 = vpack.c.b16 %v4998, %v4996
        %v5125 = vpack.c.b16 %v4999, %v4997
        %v5126 = vpack.c.b16 %v5002, %v5000
        %v5127 = vpack.c.b16 %v5003, %v5001
        %v5128 = vpack.c.b16 %v5006, %v5004
        %v5129 = vpack.c.b16 %v5007, %v5005
        %v5130 = vpack.c.b16 %v5010, %v5008
        %v5131 = vpack.c.b16 %v5011, %v5009
        %v5132 = vpack.c.b16 %v5014, %v5012
        %v5133 = vpack.c.b16 %v5015, %v5013
        %v5134 = vpack.c.b16 %v5018, %v5016
        %v5135 = vpack.c.b16 %v5019, %v5017
        %v5136 = vpack.c.b16 %v5022, %v5020
        %v5137 = vpack.c.b16 %v5023, %v5021
        %v5138 = vpack.c.b16 %v5026, %v5024
        %v5139 = vpack.c.b16 %v5027, %v5025
        %v5140 = vpack.c.b16 %v5030, %v5028
        %v5141 = vpack.c.b16 %v5031, %v5029
        %v5142 = vpack.c.b16 %v5034, %v5032
        %v5143 = vpack.c.b16 %v5035, %v5033
        %v5144 = vpack.c.b16 %v5038, %v5036
        %v5145 = vpack.c.b16 %v5039, %v5037
        %v5146 = vpack.c.b16 %v5042, %v5040
        %v5147 = vpack.c.b16 %v5043, %v5041
        %v5148 = vpack.c.b16 %v5046, %v5044
        %v5149 = vpack.c.b16 %v5047, %v5045
        %v5150 = vpack.c.b16 %v5050, %v5048
        %v5151 = vpack.c.b16 %v5051, %v5049
        %v5152 = vpack.c.b16 %v5054, %v5052
        %v5153 = vpack.c.b16 %v5055, %v5053
        %v5154 = vpack.c.b16 %v5058, %v5056
        %v5155 = vpack.c.b16 %v5059, %v5057
        %v5156 = vpack.c.b16 %v5062, %v5060
        %v5157 = vpack.c.b16 %v5063, %v5061
        %v5158 = vpack.c.b16 %v5066, %v5064
        %v5159 = vpack.c.b16 %v5067, %v5065
        %v5160 = vpack.c.b16 %v5070, %v5068
        %v5161 = vpack.c.b16 %v5071, %v5069
        %v5162 = vpack.c.b16 %v5074, %v5072
        %v5163 = vpack.c.b16 %v5075, %v5073
        %v5164 = vpack.c.b16 %v5078, %v5076
        %v5165 = vpack.c.b16 %v5079, %v5077
        %v5166 = vpack.c.b16 %v5082, %v5080
        %v5167 = vpack.c.b16 %v5083, %v5081
        %v5168 = vpack.c.b16 %v5086, %v5084
        %v5169 = vpack.c.b16 %v5087, %v5085
        %v5170 = vpack.c.b16 %v5090, %v5088
        %v5171 = vpack.c.b16 %v5091, %v5089
        %5252 = vmatprep.subr.bf16.mxu0 %v5107
        %5253 = vmatpush1.bf16.msra.mxu0 %v5106
        %5254 = vmatprep.subr.bf16.mxu0 %v5105
        %5255 = vmatpush1.bf16.msra.mxu0 %v5104
        %5256 = vmatprep.subr.bf16.mxu0 %v5103
        %5257 = vmatpush1.bf16.msra.mxu0 %v5102
        %5258 = vmatprep.subr.bf16.mxu0 %v5101
        %5259 = vmatpush1.bf16.msra.mxu0 %v5100
        %5260 = vmatprep.subr.bf16.mxu0 %v5099
        %5261 = vmatpush1.bf16.msra.mxu0 %v5098
        %5262 = vmatprep.subr.bf16.mxu0 %v5097
        %5263 = vmatpush1.bf16.msra.mxu0 %v5096
        %5264 = vmatprep.subr.bf16.mxu0 %v5095
        %5265 = vmatpush1.bf16.msra.mxu0 %v5094
        %5266 = vmatprep.subr.bf16.mxu0 %v5093
        %5267 = vmatpush1.bf16.msra.mxu0 %v5092
        %5268 = vmatprep.subr.bf16.mxu0 %v5123
        %5269 = vmatpush2.bf16.msra.mxu0 %v5122
        %5270 = vmatprep.subr.bf16.mxu0 %v5121
        %5271 = vmatpush2.bf16.msra.mxu0 %v5120
        %5272 = vmatprep.subr.bf16.mxu0 %v5119
        %5273 = vmatpush2.bf16.msra.mxu0 %v5118
        %5274 = vmatprep.subr.bf16.mxu0 %v5117
        %5275 = vmatpush2.bf16.msra.mxu0 %v5116
        %5276 = vmatprep.subr.bf16.mxu0 %v5115
        %5277 = vmatpush2.bf16.msra.mxu0 %v5114
        %5278 = vmatprep.subr.bf16.mxu0 %v5113
        %5279 = vmatpush2.bf16.msra.mxu0 %v5112
        %5280 = vmatprep.subr.bf16.mxu0 %v5111
        %5281 = vmatpush2.bf16.msra.mxu0 %v5110
        %5282 = vmatprep.subr.bf16.mxu0 %v5109
        %5283 = vmatpush2.bf16.msra.mxu0 %v5108
        %5284 = vmatprep.mubr.bf16.mxu0 %v1509
        %5285 = vmatmul.mubr.bf16.gmra.mxu0 %v1508
        %v5286 = vpop.f32.mrf.mxu0
        %v5287 = vadd.f32 0.0, %v5286
        %v5288 = vpop.f32.mrf.mxu0
        %v5289 = vadd.f32 0.0, %v5288
        %v5290 = vpop.f32.mrf.mxu0
        %v5291 = vadd.f32 0.0, %v5290
        %v5292 = vpop.f32.mrf.mxu0
        %v5293 = vadd.f32 0.0, %v5292
        %5294 = vmatprep.mubr.bf16.mxu0 %v1514
        %5295 = vmatmul.mubr.bf16.gmra.mxu0 %v1513
        %v5296 = vpop.f32.mrf.mxu0
        %v5297 = vadd.f32 0.0, %v5296
        %v5298 = vpop.f32.mrf.mxu0
        %v5299 = vadd.f32 0.0, %v5298
        %v5300 = vpop.f32.mrf.mxu0
        %v5301 = vadd.f32 0.0, %v5300
        %v5302 = vpop.f32.mrf.mxu0
        %v5303 = vadd.f32 0.0, %v5302
        %5304 = vdwg.mxu0
        %5305 = vmatprep.subr.bf16.mxu0 %v5139
        %5306 = vmatpush1.bf16.msra.mxu0 %v5138
        %5307 = vmatprep.subr.bf16.mxu0 %v5137
        %5308 = vmatpush1.bf16.msra.mxu0 %v5136
        %5309 = vmatprep.subr.bf16.mxu0 %v5135
        %5310 = vmatpush1.bf16.msra.mxu0 %v5134
        %5311 = vmatprep.subr.bf16.mxu0 %v5133
        %5312 = vmatpush1.bf16.msra.mxu0 %v5132
        %5313 = vmatprep.subr.bf16.mxu0 %v5131
        %5314 = vmatpush1.bf16.msra.mxu0 %v5130
        %5315 = vmatprep.subr.bf16.mxu0 %v5129
        %5316 = vmatpush1.bf16.msra.mxu0 %v5128
        %5317 = vmatprep.subr.bf16.mxu0 %v5127
        %5318 = vmatpush1.bf16.msra.mxu0 %v5126
        %5319 = vmatprep.subr.bf16.mxu0 %v5125
        %5320 = vmatpush1.bf16.msra.mxu0 %v5124
        %5321 = vmatprep.subr.bf16.mxu0 %v5155
        %5322 = vmatpush2.bf16.msra.mxu0 %v5154
        %5323 = vmatprep.subr.bf16.mxu0 %v5153
        %5324 = vmatpush2.bf16.msra.mxu0 %v5152
        %5325 = vmatprep.subr.bf16.mxu0 %v5151
        %5326 = vmatpush2.bf16.msra.mxu0 %v5150
        %5327 = vmatprep.subr.bf16.mxu0 %v5149
        %5328 = vmatpush2.bf16.msra.mxu0 %v5148
        %5329 = vmatprep.subr.bf16.mxu0 %v5147
        %5330 = vmatpush2.bf16.msra.mxu0 %v5146
        %5331 = vmatprep.subr.bf16.mxu0 %v5145
        %5332 = vmatpush2.bf16.msra.mxu0 %v5144
        %5333 = vmatprep.subr.bf16.mxu0 %v5143
        %5334 = vmatpush2.bf16.msra.mxu0 %v5142
        %5335 = vmatprep.subr.bf16.mxu0 %v5141
        %5336 = vmatpush2.bf16.msra.mxu0 %v5140
        %5337 = vmatprep.mubr.bf16.mxu0 %v1511
        %5338 = vmatmul.mubr.bf16.gmra.mxu0 %v1510
        %v5339 = vpop.f32.mrf.mxu0
        %v5340 = vadd.f32 %v5287, %v5339
        %v5341 = vpop.f32.mrf.mxu0
        %v5342 = vadd.f32 %v5289, %v5341
        %v5343 = vpop.f32.mrf.mxu0
        %v5344 = vadd.f32 %v5291, %v5343
        %v5345 = vpop.f32.mrf.mxu0
        %v5346 = vadd.f32 %v5293, %v5345
        %5347 = vmatprep.mubr.bf16.mxu0 %v1516
        %5348 = vmatmul.mubr.bf16.gmra.mxu0 %v1515
        %v5349 = vpop.f32.mrf.mxu0
        %v5350 = vadd.f32 %v5297, %v5349
        %v5351 = vpop.f32.mrf.mxu0
        %v5352 = vadd.f32 %v5299, %v5351
        %v5353 = vpop.f32.mrf.mxu0
        %v5354 = vadd.f32 %v5301, %v5353
        %v5355 = vpop.f32.mrf.mxu0
        %v5356 = vadd.f32 %v5303, %v5355
        %5357 = vdwg.mxu0
        %5358 = vmatprep.subr.bf16.mxu0 %v5171
        %5359 = vmatpush1.bf16.msra.mxu0 %v5170
        %5360 = vmatprep.subr.bf16.mxu0 %v5169
        %5361 = vmatpush1.bf16.msra.mxu0 %v5168
        %5362 = vmatprep.subr.bf16.mxu0 %v5167
        %5363 = vmatpush1.bf16.msra.mxu0 %v5166
        %5364 = vmatprep.subr.bf16.mxu0 %v5165
        %5365 = vmatpush1.bf16.msra.mxu0 %v5164
        %5366 = vmatprep.subr.bf16.mxu0 %v5163
        %5367 = vmatpush1.bf16.msra.mxu0 %v5162
        %5368 = vmatprep.subr.bf16.mxu0 %v5161
        %5369 = vmatpush1.bf16.msra.mxu0 %v5160
        %5370 = vmatprep.subr.bf16.mxu0 %v5159
        %5371 = vmatpush1.bf16.msra.mxu0 %v5158
        %5372 = vmatprep.subr.bf16.mxu0 %v5157
        %5373 = vmatpush1.bf16.msra.mxu0 %v5156
        %5374 = vmatprep.subr.bf16.mxu0 0
        %5375 = vmatpush2.bf16.msra.mxu0 0
        %5376 = vmatprep.subr.bf16.mxu0 0
        %5377 = vmatpush2.bf16.msra.mxu0 0
        %5378 = vmatprep.subr.bf16.mxu0 0
        %5379 = vmatpush2.bf16.msra.mxu0 0
        %5380 = vmatprep.subr.bf16.mxu0 0
        %5381 = vmatpush2.bf16.msra.mxu0 0
        %5382 = vmatprep.subr.bf16.mxu0 0
        %5383 = vmatpush2.bf16.msra.mxu0 0
        %5384 = vmatprep.subr.bf16.mxu0 0
        %5385 = vmatpush2.bf16.msra.mxu0 0
        %5386 = vmatprep.subr.bf16.mxu0 0
        %5387 = vmatpush2.bf16.msra.mxu0 0
        %5388 = vmatprep.subr.bf16.mxu0 0
        %5389 = vmatpush2.bf16.msra.mxu0 0
        %5390 = vmatprep.mubr.bf16.mxu0 0
        %5391 = vmatmul.mubr.bf16.gmra.mxu0 %v1512
        %v5392 = vpop.f32.mrf.mxu0
        %v5393 = vadd.f32 %v5340, %v5392
        %v5394 = vpop.f32.mrf.mxu0
        %v5395 = vadd.f32 %v5342, %v5394
        %v5396 = vpop.f32.mrf.mxu0
        %v5397 = vadd.f32 %v5344, %v5396
        %v5398 = vpop.f32.mrf.mxu0
        %v5399 = vadd.f32 %v5346, %v5398
        %5400 = vmatprep.mubr.bf16.mxu0 0
        %5401 = vmatmul.mubr.bf16.gmra.mxu0 %v1517
        %v5402 = vpop.f32.mrf.mxu0
        %v5403 = vadd.f32 %v5350, %v5402
        %v5404 = vpop.f32.mrf.mxu0
        %v5405 = vadd.f32 %v5352, %v5404
        %v5406 = vpop.f32.mrf.mxu0
        %v5407 = vadd.f32 %v5354, %v5406
        %v5408 = vpop.f32.mrf.mxu0
        %v5409 = vadd.f32 %v5356, %v5408
        %5410 = vdwg.mxu0
        %s5411 = scalar_lea.vmem [#allocation2], 320
        %v5412 = vld [vmem:[%s5411] sm:$0xff]
        %v5413 = vld [vmem:[%s5411 + $0x8] sm:$0xff]
        %v5414 = vld [vmem:[%s5411 + $0x10] sm:$0xff]
        %v5415 = vld [vmem:[%s5411 + $0x18] sm:$0xff]
        %v5416 = vld [vmem:[%s5411 + $0x20] sm:$0xff]
        %v5417 = vld [vmem:[%s5411 + $0x28] sm:$0xff]
        %v5418 = vld [vmem:[%s5411 + $0x30] sm:$0xff]
        %v5419 = vld [vmem:[%s5411 + $0x38] sm:$0xff]
        %v5420 = vadd.f32 %v5412, %v5393
        %v5421 = vadd.f32 %v5413, %v5395
        %v5422 = vadd.f32 %v5414, %v5397
        %v5423 = vadd.f32 %v5415, %v5399
        %v5424 = vadd.f32 %v5416, %v5403
        %v5425 = vadd.f32 %v5417, %v5405
        %v5426 = vadd.f32 %v5418, %v5407
        %v5427 = vadd.f32 %v5419, %v5409
        %5428 = vst [vmem:[%s5411] sm:$0xff] %v5420
        %5429 = vst [vmem:[%s5411 + $0x8] sm:$0xff] %v5421
        %5430 = vst [vmem:[%s5411 + $0x10] sm:$0xff] %v5422
        %5431 = vst [vmem:[%s5411 + $0x18] sm:$0xff] %v5423
        %5432 = vst [vmem:[%s5411 + $0x20] sm:$0xff] %v5424
        %5433 = vst [vmem:[%s5411 + $0x28] sm:$0xff] %v5425
        %5434 = vst [vmem:[%s5411 + $0x30] sm:$0xff] %v5426
        %5435 = vst [vmem:[%s5411 + $0x38] sm:$0xff] %v5427
        %s5436 = scalar_lea.vmem %s1284, 1280 [#allocation3]
        %v5437 = vld [vmem:[%s5436] sm:$0xff]
        %v5438 = vld [vmem:[%s5436 + $0x8] sm:$0xff]
        %v5439 = vld [vmem:[%s5436 + $0x10] sm:$0xff]
        %v5440 = vld [vmem:[%s5436 + $0x18] sm:$0xff]
        %v5441 = vld [vmem:[%s5436 + $0x20] sm:$0xff]
        %v5442 = vld [vmem:[%s5436 + $0x28] sm:$0xff]
        %v5443 = vld [vmem:[%s5436 + $0x30] sm:$0xff]
        %v5444 = vld [vmem:[%s5436 + $0x38] sm:$0xff]
        %v5445 = vld [vmem:[%s5436 + $0x40] sm:$0xff]
        %v5446 = vld [vmem:[%s5436 + $0x48] sm:$0xff]
        %v5447 = vld [vmem:[%s5436 + $0x50] sm:$0xff]
        %v5448 = vld [vmem:[%s5436 + $0x58] sm:$0xff]
        %v5449 = vld [vmem:[%s5436 + $0x60] sm:$0xff]
        %v5450 = vld [vmem:[%s5436 + $0x68] sm:$0xff]
        %v5451 = vld [vmem:[%s5436 + $0x70] sm:$0xff]
        %v5452 = vld [vmem:[%s5436 + $0x78] sm:$0xff]
        %v5453 = vld [vmem:[%s5436 + $0x80] sm:$0xff]
        %v5454 = vld [vmem:[%s5436 + $0x88] sm:$0xff]
        %v5455 = vld [vmem:[%s5436 + $0x90] sm:$0xff]
        %v5456 = vld [vmem:[%s5436 + $0x98] sm:$0xff]
        %v5457 = vld [vmem:[%s5436 + $0xa0] sm:$0xff]
        %v5458 = vld [vmem:[%s5436 + $0xa8] sm:$0xff]
        %v5459 = vld [vmem:[%s5436 + $0xb0] sm:$0xff]
        %v5460 = vld [vmem:[%s5436 + $0xb8] sm:$0xff]
        %v5461 = vld [vmem:[%s5436 + $0xc0] sm:$0xff]
        %v5462 = vld [vmem:[%s5436 + $0xc8] sm:$0xff]
        %v5463 = vld [vmem:[%s5436 + $0xd0] sm:$0xff]
        %v5464 = vld [vmem:[%s5436 + $0xd8] sm:$0xff]
        %v5465 = vld [vmem:[%s5436 + $0xe0] sm:$0xff]
        %v5466 = vld [vmem:[%s5436 + $0xe8] sm:$0xff]
        %v5467 = vld [vmem:[%s5436 + $0xf0] sm:$0xff]
        %v5468 = vld [vmem:[%s5436 + $0xf8] sm:$0xff]
        %v5469 = vld [vmem:[%s5436 + $0x100] sm:$0xff]
        %v5470 = vld [vmem:[%s5436 + $0x108] sm:$0xff]
        %v5471 = vld [vmem:[%s5436 + $0x110] sm:$0xff]
        %v5472 = vld [vmem:[%s5436 + $0x118] sm:$0xff]
        %v5473 = vld [vmem:[%s5436 + $0x120] sm:$0xff]
        %v5474 = vld [vmem:[%s5436 + $0x128] sm:$0xff]
        %v5475 = vld [vmem:[%s5436 + $0x130] sm:$0xff]
        %v5476 = vld [vmem:[%s5436 + $0x138] sm:$0xff]
        %v5477 = vld [vmem:[%s5436 + $0x140] sm:$0xff]
        %v5478 = vld [vmem:[%s5436 + $0x148] sm:$0xff]
        %v5479 = vld [vmem:[%s5436 + $0x150] sm:$0xff]
        %v5480 = vld [vmem:[%s5436 + $0x158] sm:$0xff]
        %v5481 = vld [vmem:[%s5436 + $0x160] sm:$0xff]
        %v5482 = vld [vmem:[%s5436 + $0x168] sm:$0xff]
        %v5483 = vld [vmem:[%s5436 + $0x170] sm:$0xff]
        %v5484 = vld [vmem:[%s5436 + $0x178] sm:$0xff]
        %v5485 = vld [vmem:[%s5436 + $0x180] sm:$0xff]
        %v5486 = vld [vmem:[%s5436 + $0x188] sm:$0xff]
        %v5487 = vld [vmem:[%s5436 + $0x190] sm:$0xff]
        %v5488 = vld [vmem:[%s5436 + $0x198] sm:$0xff]
        %v5489 = vld [vmem:[%s5436 + $0x1a0] sm:$0xff]
        %v5490 = vld [vmem:[%s5436 + $0x1a8] sm:$0xff]
        %v5491 = vld [vmem:[%s5436 + $0x1b0] sm:$0xff]
        %v5492 = vld [vmem:[%s5436 + $0x1b8] sm:$0xff]
        %v5493 = vld [vmem:[%s5436 + $0x1c0] sm:$0xff]
        %v5494 = vld [vmem:[%s5436 + $0x1c8] sm:$0xff]
        %v5495 = vld [vmem:[%s5436 + $0x1d0] sm:$0xff]
        %v5496 = vld [vmem:[%s5436 + $0x1d8] sm:$0xff]
        %v5497 = vld [vmem:[%s5436 + $0x1e0] sm:$0xff]
        %v5498 = vld [vmem:[%s5436 + $0x1e8] sm:$0xff]
        %v5499 = vld [vmem:[%s5436 + $0x1f0] sm:$0xff]
        %v5500 = vld [vmem:[%s5436 + $0x1f8] sm:$0xff]
        %v5501 = vld [vmem:[%s5436 + $0x200] sm:$0xff]
        %v5502 = vld [vmem:[%s5436 + $0x208] sm:$0xff]
        %v5503 = vld [vmem:[%s5436 + $0x210] sm:$0xff]
        %v5504 = vld [vmem:[%s5436 + $0x218] sm:$0xff]
        %v5505 = vld [vmem:[%s5436 + $0x220] sm:$0xff]
        %v5506 = vld [vmem:[%s5436 + $0x228] sm:$0xff]
        %v5507 = vld [vmem:[%s5436 + $0x230] sm:$0xff]
        %v5508 = vld [vmem:[%s5436 + $0x238] sm:$0xff]
        %v5509 = vld [vmem:[%s5436 + $0x240] sm:$0xff]
        %v5510 = vld [vmem:[%s5436 + $0x248] sm:$0xff]
        %v5511 = vld [vmem:[%s5436 + $0x250] sm:$0xff]
        %v5512 = vld [vmem:[%s5436 + $0x258] sm:$0xff]
        %v5513 = vld [vmem:[%s5436 + $0x260] sm:$0xff]
        %v5514 = vld [vmem:[%s5436 + $0x268] sm:$0xff]
        %v5515 = vld [vmem:[%s5436 + $0x270] sm:$0xff]
        %v5516 = vld [vmem:[%s5436 + $0x278] sm:$0xff]
        %v5597 = vunpack.c.l.b16 %v5437
        %v5598 = vunpack.c.h.b16 %v5437
        %v5599 = vunpack.c.l.b16 %v5438
        %v5600 = vunpack.c.h.b16 %v5438
        %v5601 = vunpack.c.l.b16 %v5439
        %v5602 = vunpack.c.h.b16 %v5439
        %v5603 = vunpack.c.l.b16 %v5440
        %v5604 = vunpack.c.h.b16 %v5440
        %v5605 = vunpack.c.l.b16 %v5441
        %v5606 = vunpack.c.h.b16 %v5441
        %v5607 = vunpack.c.l.b16 %v5442
        %v5608 = vunpack.c.h.b16 %v5442
        %v5609 = vunpack.c.l.b16 %v5443
        %v5610 = vunpack.c.h.b16 %v5443
        %v5611 = vunpack.c.l.b16 %v5444
        %v5612 = vunpack.c.h.b16 %v5444
        %v5613 = vunpack.c.l.b16 %v5445
        %v5614 = vunpack.c.h.b16 %v5445
        %v5615 = vunpack.c.l.b16 %v5446
        %v5616 = vunpack.c.h.b16 %v5446
        %v5617 = vunpack.c.l.b16 %v5447
        %v5618 = vunpack.c.h.b16 %v5447
        %v5619 = vunpack.c.l.b16 %v5448
        %v5620 = vunpack.c.h.b16 %v5448
        %v5621 = vunpack.c.l.b16 %v5449
        %v5622 = vunpack.c.h.b16 %v5449
        %v5623 = vunpack.c.l.b16 %v5450
        %v5624 = vunpack.c.h.b16 %v5450
        %v5625 = vunpack.c.l.b16 %v5451
        %v5626 = vunpack.c.h.b16 %v5451
        %v5627 = vunpack.c.l.b16 %v5452
        %v5628 = vunpack.c.h.b16 %v5452
        %v5629 = vunpack.c.l.b16 %v5453
        %v5630 = vunpack.c.h.b16 %v5453
        %v5631 = vunpack.c.l.b16 %v5454
        %v5632 = vunpack.c.h.b16 %v5454
        %v5633 = vunpack.c.l.b16 %v5455
        %v5634 = vunpack.c.h.b16 %v5455
        %v5635 = vunpack.c.l.b16 %v5456
        %v5636 = vunpack.c.h.b16 %v5456
        %v5637 = vunpack.c.l.b16 %v5457
        %v5638 = vunpack.c.h.b16 %v5457
        %v5639 = vunpack.c.l.b16 %v5458
        %v5640 = vunpack.c.h.b16 %v5458
        %v5641 = vunpack.c.l.b16 %v5459
        %v5642 = vunpack.c.h.b16 %v5459
        %v5643 = vunpack.c.l.b16 %v5460
        %v5644 = vunpack.c.h.b16 %v5460
        %v5645 = vunpack.c.l.b16 %v5461
        %v5646 = vunpack.c.h.b16 %v5461
        %v5647 = vunpack.c.l.b16 %v5462
        %v5648 = vunpack.c.h.b16 %v5462
        %v5649 = vunpack.c.l.b16 %v5463
        %v5650 = vunpack.c.h.b16 %v5463
        %v5651 = vunpack.c.l.b16 %v5464
        %v5652 = vunpack.c.h.b16 %v5464
        %v5653 = vunpack.c.l.b16 %v5465
        %v5654 = vunpack.c.h.b16 %v5465
        %v5655 = vunpack.c.l.b16 %v5466
        %v5656 = vunpack.c.h.b16 %v5466
        %v5657 = vunpack.c.l.b16 %v5467
        %v5658 = vunpack.c.h.b16 %v5467
        %v5659 = vunpack.c.l.b16 %v5468
        %v5660 = vunpack.c.h.b16 %v5468
        %v5661 = vunpack.c.l.b16 %v5469
        %v5662 = vunpack.c.h.b16 %v5469
        %v5663 = vunpack.c.l.b16 %v5470
        %v5664 = vunpack.c.h.b16 %v5470
        %v5665 = vunpack.c.l.b16 %v5471
        %v5666 = vunpack.c.h.b16 %v5471
        %v5667 = vunpack.c.l.b16 %v5472
        %v5668 = vunpack.c.h.b16 %v5472
        %v5669 = vunpack.c.l.b16 %v5473
        %v5670 = vunpack.c.h.b16 %v5473
        %v5671 = vunpack.c.l.b16 %v5474
        %v5672 = vunpack.c.h.b16 %v5474
        %v5673 = vunpack.c.l.b16 %v5475
        %v5674 = vunpack.c.h.b16 %v5475
        %v5675 = vunpack.c.l.b16 %v5476
        %v5676 = vunpack.c.h.b16 %v5476
        %v5677 = vunpack.c.l.b16 %v5477
        %v5678 = vunpack.c.h.b16 %v5477
        %v5679 = vunpack.c.l.b16 %v5478
        %v5680 = vunpack.c.h.b16 %v5478
        %v5681 = vunpack.c.l.b16 %v5479
        %v5682 = vunpack.c.h.b16 %v5479
        %v5683 = vunpack.c.l.b16 %v5480
        %v5684 = vunpack.c.h.b16 %v5480
        %v5685 = vunpack.c.l.b16 %v5481
        %v5686 = vunpack.c.h.b16 %v5481
        %v5687 = vunpack.c.l.b16 %v5482
        %v5688 = vunpack.c.h.b16 %v5482
        %v5689 = vunpack.c.l.b16 %v5483
        %v5690 = vunpack.c.h.b16 %v5483
        %v5691 = vunpack.c.l.b16 %v5484
        %v5692 = vunpack.c.h.b16 %v5484
        %v5693 = vunpack.c.l.b16 %v5485
        %v5694 = vunpack.c.h.b16 %v5485
        %v5695 = vunpack.c.l.b16 %v5486
        %v5696 = vunpack.c.h.b16 %v5486
        %v5697 = vunpack.c.l.b16 %v5487
        %v5698 = vunpack.c.h.b16 %v5487
        %v5699 = vunpack.c.l.b16 %v5488
        %v5700 = vunpack.c.h.b16 %v5488
        %v5701 = vunpack.c.l.b16 %v5489
        %v5702 = vunpack.c.h.b16 %v5489
        %v5703 = vunpack.c.l.b16 %v5490
        %v5704 = vunpack.c.h.b16 %v5490
        %v5705 = vunpack.c.l.b16 %v5491
        %v5706 = vunpack.c.h.b16 %v5491
        %v5707 = vunpack.c.l.b16 %v5492
        %v5708 = vunpack.c.h.b16 %v5492
        %v5709 = vunpack.c.l.b16 %v5493
        %v5710 = vunpack.c.h.b16 %v5493
        %v5711 = vunpack.c.l.b16 %v5494
        %v5712 = vunpack.c.h.b16 %v5494
        %v5713 = vunpack.c.l.b16 %v5495
        %v5714 = vunpack.c.h.b16 %v5495
        %v5715 = vunpack.c.l.b16 %v5496
        %v5716 = vunpack.c.h.b16 %v5496
        %v5717 = vunpack.c.l.b16 %v5497
        %v5718 = vunpack.c.h.b16 %v5497
        %v5719 = vunpack.c.l.b16 %v5498
        %v5720 = vunpack.c.h.b16 %v5498
        %v5721 = vunpack.c.l.b16 %v5499
        %v5722 = vunpack.c.h.b16 %v5499
        %v5723 = vunpack.c.l.b16 %v5500
        %v5724 = vunpack.c.h.b16 %v5500
        %v5725 = vunpack.c.l.b16 %v5501
        %v5726 = vunpack.c.h.b16 %v5501
        %v5727 = vunpack.c.l.b16 %v5502
        %v5728 = vunpack.c.h.b16 %v5502
        %v5729 = vunpack.c.l.b16 %v5503
        %v5730 = vunpack.c.h.b16 %v5503
        %v5731 = vunpack.c.l.b16 %v5504
        %v5732 = vunpack.c.h.b16 %v5504
        %v5733 = vunpack.c.l.b16 %v5505
        %v5734 = vunpack.c.h.b16 %v5505
        %v5735 = vunpack.c.l.b16 %v5506
        %v5736 = vunpack.c.h.b16 %v5506
        %v5737 = vunpack.c.l.b16 %v5507
        %v5738 = vunpack.c.h.b16 %v5507
        %v5739 = vunpack.c.l.b16 %v5508
        %v5740 = vunpack.c.h.b16 %v5508
        %v5741 = vunpack.c.l.b16 %v5509
        %v5742 = vunpack.c.h.b16 %v5509
        %v5743 = vunpack.c.l.b16 %v5510
        %v5744 = vunpack.c.h.b16 %v5510
        %v5745 = vunpack.c.l.b16 %v5511
        %v5746 = vunpack.c.h.b16 %v5511
        %v5747 = vunpack.c.l.b16 %v5512
        %v5748 = vunpack.c.h.b16 %v5512
        %v5749 = vunpack.c.l.b16 %v5513
        %v5750 = vunpack.c.h.b16 %v5513
        %v5751 = vunpack.c.l.b16 %v5514
        %v5752 = vunpack.c.h.b16 %v5514
        %v5753 = vunpack.c.l.b16 %v5515
        %v5754 = vunpack.c.h.b16 %v5515
        %v5755 = vunpack.c.l.b16 %v5516
        %v5756 = vunpack.c.h.b16 %v5516
        %v5757 = vpack.c.b16 %v5599, %v5597
        %v5758 = vpack.c.b16 %v5600, %v5598
        %v5759 = vpack.c.b16 %v5603, %v5601
        %v5760 = vpack.c.b16 %v5604, %v5602
        %v5761 = vpack.c.b16 %v5607, %v5605
        %v5762 = vpack.c.b16 %v5608, %v5606
        %v5763 = vpack.c.b16 %v5611, %v5609
        %v5764 = vpack.c.b16 %v5612, %v5610
        %v5765 = vpack.c.b16 %v5615, %v5613
        %v5766 = vpack.c.b16 %v5616, %v5614
        %v5767 = vpack.c.b16 %v5619, %v5617
        %v5768 = vpack.c.b16 %v5620, %v5618
        %v5769 = vpack.c.b16 %v5623, %v5621
        %v5770 = vpack.c.b16 %v5624, %v5622
        %v5771 = vpack.c.b16 %v5627, %v5625
        %v5772 = vpack.c.b16 %v5628, %v5626
        %v5773 = vpack.c.b16 %v5631, %v5629
        %v5774 = vpack.c.b16 %v5632, %v5630
        %v5775 = vpack.c.b16 %v5635, %v5633
        %v5776 = vpack.c.b16 %v5636, %v5634
        %v5777 = vpack.c.b16 %v5639, %v5637
        %v5778 = vpack.c.b16 %v5640, %v5638
        %v5779 = vpack.c.b16 %v5643, %v5641
        %v5780 = vpack.c.b16 %v5644, %v5642
        %v5781 = vpack.c.b16 %v5647, %v5645
        %v5782 = vpack.c.b16 %v5648, %v5646
        %v5783 = vpack.c.b16 %v5651, %v5649
        %v5784 = vpack.c.b16 %v5652, %v5650
        %v5785 = vpack.c.b16 %v5655, %v5653
        %v5786 = vpack.c.b16 %v5656, %v5654
        %v5787 = vpack.c.b16 %v5659, %v5657
        %v5788 = vpack.c.b16 %v5660, %v5658
        %v5789 = vpack.c.b16 %v5663, %v5661
        %v5790 = vpack.c.b16 %v5664, %v5662
        %v5791 = vpack.c.b16 %v5667, %v5665
        %v5792 = vpack.c.b16 %v5668, %v5666
        %v5793 = vpack.c.b16 %v5671, %v5669
        %v5794 = vpack.c.b16 %v5672, %v5670
        %v5795 = vpack.c.b16 %v5675, %v5673
        %v5796 = vpack.c.b16 %v5676, %v5674
        %v5797 = vpack.c.b16 %v5679, %v5677
        %v5798 = vpack.c.b16 %v5680, %v5678
        %v5799 = vpack.c.b16 %v5683, %v5681
        %v5800 = vpack.c.b16 %v5684, %v5682
        %v5801 = vpack.c.b16 %v5687, %v5685
        %v5802 = vpack.c.b16 %v5688, %v5686
        %v5803 = vpack.c.b16 %v5691, %v5689
        %v5804 = vpack.c.b16 %v5692, %v5690
        %v5805 = vpack.c.b16 %v5695, %v5693
        %v5806 = vpack.c.b16 %v5696, %v5694
        %v5807 = vpack.c.b16 %v5699, %v5697
        %v5808 = vpack.c.b16 %v5700, %v5698
        %v5809 = vpack.c.b16 %v5703, %v5701
        %v5810 = vpack.c.b16 %v5704, %v5702
        %v5811 = vpack.c.b16 %v5707, %v5705
        %v5812 = vpack.c.b16 %v5708, %v5706
        %v5813 = vpack.c.b16 %v5711, %v5709
        %v5814 = vpack.c.b16 %v5712, %v5710
        %v5815 = vpack.c.b16 %v5715, %v5713
        %v5816 = vpack.c.b16 %v5716, %v5714
        %v5817 = vpack.c.b16 %v5719, %v5717
        %v5818 = vpack.c.b16 %v5720, %v5718
        %v5819 = vpack.c.b16 %v5723, %v5721
        %v5820 = vpack.c.b16 %v5724, %v5722
        %v5821 = vpack.c.b16 %v5727, %v5725
        %v5822 = vpack.c.b16 %v5728, %v5726
        %v5823 = vpack.c.b16 %v5731, %v5729
        %v5824 = vpack.c.b16 %v5732, %v5730
        %v5825 = vpack.c.b16 %v5735, %v5733
        %v5826 = vpack.c.b16 %v5736, %v5734
        %v5827 = vpack.c.b16 %v5739, %v5737
        %v5828 = vpack.c.b16 %v5740, %v5738
        %v5829 = vpack.c.b16 %v5743, %v5741
        %v5830 = vpack.c.b16 %v5744, %v5742
        %v5831 = vpack.c.b16 %v5747, %v5745
        %v5832 = vpack.c.b16 %v5748, %v5746
        %v5833 = vpack.c.b16 %v5751, %v5749
        %v5834 = vpack.c.b16 %v5752, %v5750
        %v5835 = vpack.c.b16 %v5755, %v5753
        %v5836 = vpack.c.b16 %v5756, %v5754
        %5917 = vmatprep.subr.bf16.mxu0 %v5772
        %5918 = vmatpush1.bf16.msra.mxu0 %v5771
        %5919 = vmatprep.subr.bf16.mxu0 %v5770
        %5920 = vmatpush1.bf16.msra.mxu0 %v5769
        %5921 = vmatprep.subr.bf16.mxu0 %v5768
        %5922 = vmatpush1.bf16.msra.mxu0 %v5767
        %5923 = vmatprep.subr.bf16.mxu0 %v5766
        %5924 = vmatpush1.bf16.msra.mxu0 %v5765
        %5925 = vmatprep.subr.bf16.mxu0 %v5764
        %5926 = vmatpush1.bf16.msra.mxu0 %v5763
        %5927 = vmatprep.subr.bf16.mxu0 %v5762
        %5928 = vmatpush1.bf16.msra.mxu0 %v5761
        %5929 = vmatprep.subr.bf16.mxu0 %v5760
        %5930 = vmatpush1.bf16.msra.mxu0 %v5759
        %5931 = vmatprep.subr.bf16.mxu0 %v5758
        %5932 = vmatpush1.bf16.msra.mxu0 %v5757
        %5933 = vmatprep.subr.bf16.mxu0 %v5788
        %5934 = vmatpush2.bf16.msra.mxu0 %v5787
        %5935 = vmatprep.subr.bf16.mxu0 %v5786
        %5936 = vmatpush2.bf16.msra.mxu0 %v5785
        %5937 = vmatprep.subr.bf16.mxu0 %v5784
        %5938 = vmatpush2.bf16.msra.mxu0 %v5783
        %5939 = vmatprep.subr.bf16.mxu0 %v5782
        %5940 = vmatpush2.bf16.msra.mxu0 %v5781
        %5941 = vmatprep.subr.bf16.mxu0 %v5780
        %5942 = vmatpush2.bf16.msra.mxu0 %v5779
        %5943 = vmatprep.subr.bf16.mxu0 %v5778
        %5944 = vmatpush2.bf16.msra.mxu0 %v5777
        %5945 = vmatprep.subr.bf16.mxu0 %v5776
        %5946 = vmatpush2.bf16.msra.mxu0 %v5775
        %5947 = vmatprep.subr.bf16.mxu0 %v5774
        %5948 = vmatpush2.bf16.msra.mxu0 %v5773
        %5949 = vmatprep.mubr.bf16.mxu0 %v1509
        %5950 = vmatmul.mubr.bf16.gmra.mxu0 %v1508
        %v5951 = vpop.f32.mrf.mxu0
        %v5952 = vadd.f32 0.0, %v5951
        %v5953 = vpop.f32.mrf.mxu0
        %v5954 = vadd.f32 0.0, %v5953
        %v5955 = vpop.f32.mrf.mxu0
        %v5956 = vadd.f32 0.0, %v5955
        %v5957 = vpop.f32.mrf.mxu0
        %v5958 = vadd.f32 0.0, %v5957
        %5959 = vmatprep.mubr.bf16.mxu0 %v1514
        %5960 = vmatmul.mubr.bf16.gmra.mxu0 %v1513
        %v5961 = vpop.f32.mrf.mxu0
        %v5962 = vadd.f32 0.0, %v5961
        %v5963 = vpop.f32.mrf.mxu0
        %v5964 = vadd.f32 0.0, %v5963
        %v5965 = vpop.f32.mrf.mxu0
        %v5966 = vadd.f32 0.0, %v5965
        %v5967 = vpop.f32.mrf.mxu0
        %v5968 = vadd.f32 0.0, %v5967
        %5969 = vdwg.mxu0
        %5970 = vmatprep.subr.bf16.mxu0 %v5804
        %5971 = vmatpush1.bf16.msra.mxu0 %v5803
        %5972 = vmatprep.subr.bf16.mxu0 %v5802
        %5973 = vmatpush1.bf16.msra.mxu0 %v5801
        %5974 = vmatprep.subr.bf16.mxu0 %v5800
        %5975 = vmatpush1.bf16.msra.mxu0 %v5799
        %5976 = vmatprep.subr.bf16.mxu0 %v5798
        %5977 = vmatpush1.bf16.msra.mxu0 %v5797
        %5978 = vmatprep.subr.bf16.mxu0 %v5796
        %5979 = vmatpush1.bf16.msra.mxu0 %v5795
        %5980 = vmatprep.subr.bf16.mxu0 %v5794
        %5981 = vmatpush1.bf16.msra.mxu0 %v5793
        %5982 = vmatprep.subr.bf16.mxu0 %v5792
        %5983 = vmatpush1.bf16.msra.mxu0 %v5791
        %5984 = vmatprep.subr.bf16.mxu0 %v5790
        %5985 = vmatpush1.bf16.msra.mxu0 %v5789
        %5986 = vmatprep.subr.bf16.mxu0 %v5820
        %5987 = vmatpush2.bf16.msra.mxu0 %v5819
        %5988 = vmatprep.subr.bf16.mxu0 %v5818
        %5989 = vmatpush2.bf16.msra.mxu0 %v5817
        %5990 = vmatprep.subr.bf16.mxu0 %v5816
        %5991 = vmatpush2.bf16.msra.mxu0 %v5815
        %5992 = vmatprep.subr.bf16.mxu0 %v5814
        %5993 = vmatpush2.bf16.msra.mxu0 %v5813
        %5994 = vmatprep.subr.bf16.mxu0 %v5812
        %5995 = vmatpush2.bf16.msra.mxu0 %v5811
        %5996 = vmatprep.subr.bf16.mxu0 %v5810
        %5997 = vmatpush2.bf16.msra.mxu0 %v5809
        %5998 = vmatprep.subr.bf16.mxu0 %v5808
        %5999 = vmatpush2.bf16.msra.mxu0 %v5807
        %6000 = vmatprep.subr.bf16.mxu0 %v5806
        %6001 = vmatpush2.bf16.msra.mxu0 %v5805
        %6002 = vmatprep.mubr.bf16.mxu0 %v1511
        %6003 = vmatmul.mubr.bf16.gmra.mxu0 %v1510
        %v6004 = vpop.f32.mrf.mxu0
        %v6005 = vadd.f32 %v5952, %v6004
        %v6006 = vpop.f32.mrf.mxu0
        %v6007 = vadd.f32 %v5954, %v6006
        %v6008 = vpop.f32.mrf.mxu0
        %v6009 = vadd.f32 %v5956, %v6008
        %v6010 = vpop.f32.mrf.mxu0
        %v6011 = vadd.f32 %v5958, %v6010
        %6012 = vmatprep.mubr.bf16.mxu0 %v1516
        %6013 = vmatmul.mubr.bf16.gmra.mxu0 %v1515
        %v6014 = vpop.f32.mrf.mxu0
        %v6015 = vadd.f32 %v5962, %v6014
        %v6016 = vpop.f32.mrf.mxu0
        %v6017 = vadd.f32 %v5964, %v6016
        %v6018 = vpop.f32.mrf.mxu0
        %v6019 = vadd.f32 %v5966, %v6018
        %v6020 = vpop.f32.mrf.mxu0
        %v6021 = vadd.f32 %v5968, %v6020
        %6022 = vdwg.mxu0
        %6023 = vmatprep.subr.bf16.mxu0 %v5836
        %6024 = vmatpush1.bf16.msra.mxu0 %v5835
        %6025 = vmatprep.subr.bf16.mxu0 %v5834
        %6026 = vmatpush1.bf16.msra.mxu0 %v5833
        %6027 = vmatprep.subr.bf16.mxu0 %v5832
        %6028 = vmatpush1.bf16.msra.mxu0 %v5831
        %6029 = vmatprep.subr.bf16.mxu0 %v5830
        %6030 = vmatpush1.bf16.msra.mxu0 %v5829
        %6031 = vmatprep.subr.bf16.mxu0 %v5828
        %6032 = vmatpush1.bf16.msra.mxu0 %v5827
        %6033 = vmatprep.subr.bf16.mxu0 %v5826
        %6034 = vmatpush1.bf16.msra.mxu0 %v5825
        %6035 = vmatprep.subr.bf16.mxu0 %v5824
        %6036 = vmatpush1.bf16.msra.mxu0 %v5823
        %6037 = vmatprep.subr.bf16.mxu0 %v5822
        %6038 = vmatpush1.bf16.msra.mxu0 %v5821
        %6039 = vmatprep.subr.bf16.mxu0 0
        %6040 = vmatpush2.bf16.msra.mxu0 0
        %6041 = vmatprep.subr.bf16.mxu0 0
        %6042 = vmatpush2.bf16.msra.mxu0 0
        %6043 = vmatprep.subr.bf16.mxu0 0
        %6044 = vmatpush2.bf16.msra.mxu0 0
        %6045 = vmatprep.subr.bf16.mxu0 0
        %6046 = vmatpush2.bf16.msra.mxu0 0
        %6047 = vmatprep.subr.bf16.mxu0 0
        %6048 = vmatpush2.bf16.msra.mxu0 0
        %6049 = vmatprep.subr.bf16.mxu0 0
        %6050 = vmatpush2.bf16.msra.mxu0 0
        %6051 = vmatprep.subr.bf16.mxu0 0
        %6052 = vmatpush2.bf16.msra.mxu0 0
        %6053 = vmatprep.subr.bf16.mxu0 0
        %6054 = vmatpush2.bf16.msra.mxu0 0
        %6055 = vmatprep.mubr.bf16.mxu0 0
        %6056 = vmatmul.mubr.bf16.gmra.mxu0 %v1512
        %v6057 = vpop.f32.mrf.mxu0
        %v6058 = vadd.f32 %v6005, %v6057
        %v6059 = vpop.f32.mrf.mxu0
        %v6060 = vadd.f32 %v6007, %v6059
        %v6061 = vpop.f32.mrf.mxu0
        %v6062 = vadd.f32 %v6009, %v6061
        %v6063 = vpop.f32.mrf.mxu0
        %v6064 = vadd.f32 %v6011, %v6063
        %6065 = vmatprep.mubr.bf16.mxu0 0
        %6066 = vmatmul.mubr.bf16.gmra.mxu0 %v1517
        %v6067 = vpop.f32.mrf.mxu0
        %v6068 = vadd.f32 %v6015, %v6067
        %v6069 = vpop.f32.mrf.mxu0
        %v6070 = vadd.f32 %v6017, %v6069
        %v6071 = vpop.f32.mrf.mxu0
        %v6072 = vadd.f32 %v6019, %v6071
        %v6073 = vpop.f32.mrf.mxu0
        %v6074 = vadd.f32 %v6021, %v6073
        %6075 = vdwg.mxu0
        %s6076 = scalar_lea.vmem [#allocation2], 384
        %v6077 = vld [vmem:[%s6076] sm:$0xff]
        %v6078 = vld [vmem:[%s6076 + $0x8] sm:$0xff]
        %v6079 = vld [vmem:[%s6076 + $0x10] sm:$0xff]
        %v6080 = vld [vmem:[%s6076 + $0x18] sm:$0xff]
        %v6081 = vld [vmem:[%s6076 + $0x20] sm:$0xff]
        %v6082 = vld [vmem:[%s6076 + $0x28] sm:$0xff]
        %v6083 = vld [vmem:[%s6076 + $0x30] sm:$0xff]
        %v6084 = vld [vmem:[%s6076 + $0x38] sm:$0xff]
        %v6085 = vadd.f32 %v6077, %v6058
        %v6086 = vadd.f32 %v6078, %v6060
        %v6087 = vadd.f32 %v6079, %v6062
        %v6088 = vadd.f32 %v6080, %v6064
        %v6089 = vadd.f32 %v6081, %v6068
        %v6090 = vadd.f32 %v6082, %v6070
        %v6091 = vadd.f32 %v6083, %v6072
        %v6092 = vadd.f32 %v6084, %v6074
        %6093 = vst [vmem:[%s6076] sm:$0xff] %v6085
        %6094 = vst [vmem:[%s6076 + $0x8] sm:$0xff] %v6086
        %6095 = vst [vmem:[%s6076 + $0x10] sm:$0xff] %v6087
        %6096 = vst [vmem:[%s6076 + $0x18] sm:$0xff] %v6088
        %6097 = vst [vmem:[%s6076 + $0x20] sm:$0xff] %v6089
        %6098 = vst [vmem:[%s6076 + $0x28] sm:$0xff] %v6090
        %6099 = vst [vmem:[%s6076 + $0x30] sm:$0xff] %v6091
        %6100 = vst [vmem:[%s6076 + $0x38] sm:$0xff] %v6092
        %s6101 = scalar_lea.vmem %s1284, 1408 [#allocation3]
        %v6102 = vld [vmem:[%s6101] sm:$0xff]
        %v6103 = vld [vmem:[%s6101 + $0x8] sm:$0xff]
        %v6104 = vld [vmem:[%s6101 + $0x10] sm:$0xff]
        %v6105 = vld [vmem:[%s6101 + $0x18] sm:$0xff]
        %v6106 = vld [vmem:[%s6101 + $0x20] sm:$0xff]
        %v6107 = vld [vmem:[%s6101 + $0x28] sm:$0xff]
        %v6108 = vld [vmem:[%s6101 + $0x30] sm:$0xff]
        %v6109 = vld [vmem:[%s6101 + $0x38] sm:$0xff]
        %v6110 = vld [vmem:[%s6101 + $0x40] sm:$0xff]
        %v6111 = vld [vmem:[%s6101 + $0x48] sm:$0xff]
        %v6112 = vld [vmem:[%s6101 + $0x50] sm:$0xff]
        %v6113 = vld [vmem:[%s6101 + $0x58] sm:$0xff]
        %v6114 = vld [vmem:[%s6101 + $0x60] sm:$0xff]
        %v6115 = vld [vmem:[%s6101 + $0x68] sm:$0xff]
        %v6116 = vld [vmem:[%s6101 + $0x70] sm:$0xff]
        %v6117 = vld [vmem:[%s6101 + $0x78] sm:$0xff]
        %v6118 = vld [vmem:[%s6101 + $0x80] sm:$0xff]
        %v6119 = vld [vmem:[%s6101 + $0x88] sm:$0xff]
        %v6120 = vld [vmem:[%s6101 + $0x90] sm:$0xff]
        %v6121 = vld [vmem:[%s6101 + $0x98] sm:$0xff]
        %v6122 = vld [vmem:[%s6101 + $0xa0] sm:$0xff]
        %v6123 = vld [vmem:[%s6101 + $0xa8] sm:$0xff]
        %v6124 = vld [vmem:[%s6101 + $0xb0] sm:$0xff]
        %v6125 = vld [vmem:[%s6101 + $0xb8] sm:$0xff]
        %v6126 = vld [vmem:[%s6101 + $0xc0] sm:$0xff]
        %v6127 = vld [vmem:[%s6101 + $0xc8] sm:$0xff]
        %v6128 = vld [vmem:[%s6101 + $0xd0] sm:$0xff]
        %v6129 = vld [vmem:[%s6101 + $0xd8] sm:$0xff]
        %v6130 = vld [vmem:[%s6101 + $0xe0] sm:$0xff]
        %v6131 = vld [vmem:[%s6101 + $0xe8] sm:$0xff]
        %v6132 = vld [vmem:[%s6101 + $0xf0] sm:$0xff]
        %v6133 = vld [vmem:[%s6101 + $0xf8] sm:$0xff]
        %v6134 = vld [vmem:[%s6101 + $0x100] sm:$0xff]
        %v6135 = vld [vmem:[%s6101 + $0x108] sm:$0xff]
        %v6136 = vld [vmem:[%s6101 + $0x110] sm:$0xff]
        %v6137 = vld [vmem:[%s6101 + $0x118] sm:$0xff]
        %v6138 = vld [vmem:[%s6101 + $0x120] sm:$0xff]
        %v6139 = vld [vmem:[%s6101 + $0x128] sm:$0xff]
        %v6140 = vld [vmem:[%s6101 + $0x130] sm:$0xff]
        %v6141 = vld [vmem:[%s6101 + $0x138] sm:$0xff]
        %v6142 = vld [vmem:[%s6101 + $0x140] sm:$0xff]
        %v6143 = vld [vmem:[%s6101 + $0x148] sm:$0xff]
        %v6144 = vld [vmem:[%s6101 + $0x150] sm:$0xff]
        %v6145 = vld [vmem:[%s6101 + $0x158] sm:$0xff]
        %v6146 = vld [vmem:[%s6101 + $0x160] sm:$0xff]
        %v6147 = vld [vmem:[%s6101 + $0x168] sm:$0xff]
        %v6148 = vld [vmem:[%s6101 + $0x170] sm:$0xff]
        %v6149 = vld [vmem:[%s6101 + $0x178] sm:$0xff]
        %v6150 = vld [vmem:[%s6101 + $0x180] sm:$0xff]
        %v6151 = vld [vmem:[%s6101 + $0x188] sm:$0xff]
        %v6152 = vld [vmem:[%s6101 + $0x190] sm:$0xff]
        %v6153 = vld [vmem:[%s6101 + $0x198] sm:$0xff]
        %v6154 = vld [vmem:[%s6101 + $0x1a0] sm:$0xff]
        %v6155 = vld [vmem:[%s6101 + $0x1a8] sm:$0xff]
        %v6156 = vld [vmem:[%s6101 + $0x1b0] sm:$0xff]
        %v6157 = vld [vmem:[%s6101 + $0x1b8] sm:$0xff]
        %v6158 = vld [vmem:[%s6101 + $0x1c0] sm:$0xff]
        %v6159 = vld [vmem:[%s6101 + $0x1c8] sm:$0xff]
        %v6160 = vld [vmem:[%s6101 + $0x1d0] sm:$0xff]
        %v6161 = vld [vmem:[%s6101 + $0x1d8] sm:$0xff]
        %v6162 = vld [vmem:[%s6101 + $0x1e0] sm:$0xff]
        %v6163 = vld [vmem:[%s6101 + $0x1e8] sm:$0xff]
        %v6164 = vld [vmem:[%s6101 + $0x1f0] sm:$0xff]
        %v6165 = vld [vmem:[%s6101 + $0x1f8] sm:$0xff]
        %v6166 = vld [vmem:[%s6101 + $0x200] sm:$0xff]
        %v6167 = vld [vmem:[%s6101 + $0x208] sm:$0xff]
        %v6168 = vld [vmem:[%s6101 + $0x210] sm:$0xff]
        %v6169 = vld [vmem:[%s6101 + $0x218] sm:$0xff]
        %v6170 = vld [vmem:[%s6101 + $0x220] sm:$0xff]
        %v6171 = vld [vmem:[%s6101 + $0x228] sm:$0xff]
        %v6172 = vld [vmem:[%s6101 + $0x230] sm:$0xff]
        %v6173 = vld [vmem:[%s6101 + $0x238] sm:$0xff]
        %v6174 = vld [vmem:[%s6101 + $0x240] sm:$0xff]
        %v6175 = vld [vmem:[%s6101 + $0x248] sm:$0xff]
        %v6176 = vld [vmem:[%s6101 + $0x250] sm:$0xff]
        %v6177 = vld [vmem:[%s6101 + $0x258] sm:$0xff]
        %v6178 = vld [vmem:[%s6101 + $0x260] sm:$0xff]
        %v6179 = vld [vmem:[%s6101 + $0x268] sm:$0xff]
        %v6180 = vld [vmem:[%s6101 + $0x270] sm:$0xff]
        %v6181 = vld [vmem:[%s6101 + $0x278] sm:$0xff]
        %v6262 = vunpack.c.l.b16 %v6102
        %v6263 = vunpack.c.h.b16 %v6102
        %v6264 = vunpack.c.l.b16 %v6103
        %v6265 = vunpack.c.h.b16 %v6103
        %v6266 = vunpack.c.l.b16 %v6104
        %v6267 = vunpack.c.h.b16 %v6104
        %v6268 = vunpack.c.l.b16 %v6105
        %v6269 = vunpack.c.h.b16 %v6105
        %v6270 = vunpack.c.l.b16 %v6106
        %v6271 = vunpack.c.h.b16 %v6106
        %v6272 = vunpack.c.l.b16 %v6107
        %v6273 = vunpack.c.h.b16 %v6107
        %v6274 = vunpack.c.l.b16 %v6108
        %v6275 = vunpack.c.h.b16 %v6108
        %v6276 = vunpack.c.l.b16 %v6109
        %v6277 = vunpack.c.h.b16 %v6109
        %v6278 = vunpack.c.l.b16 %v6110
        %v6279 = vunpack.c.h.b16 %v6110
        %v6280 = vunpack.c.l.b16 %v6111
        %v6281 = vunpack.c.h.b16 %v6111
        %v6282 = vunpack.c.l.b16 %v6112
        %v6283 = vunpack.c.h.b16 %v6112
        %v6284 = vunpack.c.l.b16 %v6113
        %v6285 = vunpack.c.h.b16 %v6113
        %v6286 = vunpack.c.l.b16 %v6114
        %v6287 = vunpack.c.h.b16 %v6114
        %v6288 = vunpack.c.l.b16 %v6115
        %v6289 = vunpack.c.h.b16 %v6115
        %v6290 = vunpack.c.l.b16 %v6116
        %v6291 = vunpack.c.h.b16 %v6116
        %v6292 = vunpack.c.l.b16 %v6117
        %v6293 = vunpack.c.h.b16 %v6117
        %v6294 = vunpack.c.l.b16 %v6118
        %v6295 = vunpack.c.h.b16 %v6118
        %v6296 = vunpack.c.l.b16 %v6119
        %v6297 = vunpack.c.h.b16 %v6119
        %v6298 = vunpack.c.l.b16 %v6120
        %v6299 = vunpack.c.h.b16 %v6120
        %v6300 = vunpack.c.l.b16 %v6121
        %v6301 = vunpack.c.h.b16 %v6121
        %v6302 = vunpack.c.l.b16 %v6122
        %v6303 = vunpack.c.h.b16 %v6122
        %v6304 = vunpack.c.l.b16 %v6123
        %v6305 = vunpack.c.h.b16 %v6123
        %v6306 = vunpack.c.l.b16 %v6124
        %v6307 = vunpack.c.h.b16 %v6124
        %v6308 = vunpack.c.l.b16 %v6125
        %v6309 = vunpack.c.h.b16 %v6125
        %v6310 = vunpack.c.l.b16 %v6126
        %v6311 = vunpack.c.h.b16 %v6126
        %v6312 = vunpack.c.l.b16 %v6127
        %v6313 = vunpack.c.h.b16 %v6127
        %v6314 = vunpack.c.l.b16 %v6128
        %v6315 = vunpack.c.h.b16 %v6128
        %v6316 = vunpack.c.l.b16 %v6129
        %v6317 = vunpack.c.h.b16 %v6129
        %v6318 = vunpack.c.l.b16 %v6130
        %v6319 = vunpack.c.h.b16 %v6130
        %v6320 = vunpack.c.l.b16 %v6131
        %v6321 = vunpack.c.h.b16 %v6131
        %v6322 = vunpack.c.l.b16 %v6132
        %v6323 = vunpack.c.h.b16 %v6132
        %v6324 = vunpack.c.l.b16 %v6133
        %v6325 = vunpack.c.h.b16 %v6133
        %v6326 = vunpack.c.l.b16 %v6134
        %v6327 = vunpack.c.h.b16 %v6134
        %v6328 = vunpack.c.l.b16 %v6135
        %v6329 = vunpack.c.h.b16 %v6135
        %v6330 = vunpack.c.l.b16 %v6136
        %v6331 = vunpack.c.h.b16 %v6136
        %v6332 = vunpack.c.l.b16 %v6137
        %v6333 = vunpack.c.h.b16 %v6137
        %v6334 = vunpack.c.l.b16 %v6138
        %v6335 = vunpack.c.h.b16 %v6138
        %v6336 = vunpack.c.l.b16 %v6139
        %v6337 = vunpack.c.h.b16 %v6139
        %v6338 = vunpack.c.l.b16 %v6140
        %v6339 = vunpack.c.h.b16 %v6140
        %v6340 = vunpack.c.l.b16 %v6141
        %v6341 = vunpack.c.h.b16 %v6141
        %v6342 = vunpack.c.l.b16 %v6142
        %v6343 = vunpack.c.h.b16 %v6142
        %v6344 = vunpack.c.l.b16 %v6143
        %v6345 = vunpack.c.h.b16 %v6143
        %v6346 = vunpack.c.l.b16 %v6144
        %v6347 = vunpack.c.h.b16 %v6144
        %v6348 = vunpack.c.l.b16 %v6145
        %v6349 = vunpack.c.h.b16 %v6145
        %v6350 = vunpack.c.l.b16 %v6146
        %v6351 = vunpack.c.h.b16 %v6146
        %v6352 = vunpack.c.l.b16 %v6147
        %v6353 = vunpack.c.h.b16 %v6147
        %v6354 = vunpack.c.l.b16 %v6148
        %v6355 = vunpack.c.h.b16 %v6148
        %v6356 = vunpack.c.l.b16 %v6149
        %v6357 = vunpack.c.h.b16 %v6149
        %v6358 = vunpack.c.l.b16 %v6150
        %v6359 = vunpack.c.h.b16 %v6150
        %v6360 = vunpack.c.l.b16 %v6151
        %v6361 = vunpack.c.h.b16 %v6151
        %v6362 = vunpack.c.l.b16 %v6152
        %v6363 = vunpack.c.h.b16 %v6152
        %v6364 = vunpack.c.l.b16 %v6153
        %v6365 = vunpack.c.h.b16 %v6153
        %v6366 = vunpack.c.l.b16 %v6154
        %v6367 = vunpack.c.h.b16 %v6154
        %v6368 = vunpack.c.l.b16 %v6155
        %v6369 = vunpack.c.h.b16 %v6155
        %v6370 = vunpack.c.l.b16 %v6156
        %v6371 = vunpack.c.h.b16 %v6156
        %v6372 = vunpack.c.l.b16 %v6157
        %v6373 = vunpack.c.h.b16 %v6157
        %v6374 = vunpack.c.l.b16 %v6158
        %v6375 = vunpack.c.h.b16 %v6158
        %v6376 = vunpack.c.l.b16 %v6159
        %v6377 = vunpack.c.h.b16 %v6159
        %v6378 = vunpack.c.l.b16 %v6160
        %v6379 = vunpack.c.h.b16 %v6160
        %v6380 = vunpack.c.l.b16 %v6161
        %v6381 = vunpack.c.h.b16 %v6161
        %v6382 = vunpack.c.l.b16 %v6162
        %v6383 = vunpack.c.h.b16 %v6162
        %v6384 = vunpack.c.l.b16 %v6163
        %v6385 = vunpack.c.h.b16 %v6163
        %v6386 = vunpack.c.l.b16 %v6164
        %v6387 = vunpack.c.h.b16 %v6164
        %v6388 = vunpack.c.l.b16 %v6165
        %v6389 = vunpack.c.h.b16 %v6165
        %v6390 = vunpack.c.l.b16 %v6166
        %v6391 = vunpack.c.h.b16 %v6166
        %v6392 = vunpack.c.l.b16 %v6167
        %v6393 = vunpack.c.h.b16 %v6167
        %v6394 = vunpack.c.l.b16 %v6168
        %v6395 = vunpack.c.h.b16 %v6168
        %v6396 = vunpack.c.l.b16 %v6169
        %v6397 = vunpack.c.h.b16 %v6169
        %v6398 = vunpack.c.l.b16 %v6170
        %v6399 = vunpack.c.h.b16 %v6170
        %v6400 = vunpack.c.l.b16 %v6171
        %v6401 = vunpack.c.h.b16 %v6171
        %v6402 = vunpack.c.l.b16 %v6172
        %v6403 = vunpack.c.h.b16 %v6172
        %v6404 = vunpack.c.l.b16 %v6173
        %v6405 = vunpack.c.h.b16 %v6173
        %v6406 = vunpack.c.l.b16 %v6174
        %v6407 = vunpack.c.h.b16 %v6174
        %v6408 = vunpack.c.l.b16 %v6175
        %v6409 = vunpack.c.h.b16 %v6175
        %v6410 = vunpack.c.l.b16 %v6176
        %v6411 = vunpack.c.h.b16 %v6176
        %v6412 = vunpack.c.l.b16 %v6177
        %v6413 = vunpack.c.h.b16 %v6177
        %v6414 = vunpack.c.l.b16 %v6178
        %v6415 = vunpack.c.h.b16 %v6178
        %v6416 = vunpack.c.l.b16 %v6179
        %v6417 = vunpack.c.h.b16 %v6179
        %v6418 = vunpack.c.l.b16 %v6180
        %v6419 = vunpack.c.h.b16 %v6180
        %v6420 = vunpack.c.l.b16 %v6181
        %v6421 = vunpack.c.h.b16 %v6181
        %v6422 = vpack.c.b16 %v6264, %v6262
        %v6423 = vpack.c.b16 %v6265, %v6263
        %v6424 = vpack.c.b16 %v6268, %v6266
        %v6425 = vpack.c.b16 %v6269, %v6267
        %v6426 = vpack.c.b16 %v6272, %v6270
        %v6427 = vpack.c.b16 %v6273, %v6271
        %v6428 = vpack.c.b16 %v6276, %v6274
        %v6429 = vpack.c.b16 %v6277, %v6275
        %v6430 = vpack.c.b16 %v6280, %v6278
        %v6431 = vpack.c.b16 %v6281, %v6279
        %v6432 = vpack.c.b16 %v6284, %v6282
        %v6433 = vpack.c.b16 %v6285, %v6283
        %v6434 = vpack.c.b16 %v6288, %v6286
        %v6435 = vpack.c.b16 %v6289, %v6287
        %v6436 = vpack.c.b16 %v6292, %v6290
        %v6437 = vpack.c.b16 %v6293, %v6291
        %v6438 = vpack.c.b16 %v6296, %v6294
        %v6439 = vpack.c.b16 %v6297, %v6295
        %v6440 = vpack.c.b16 %v6300, %v6298
        %v6441 = vpack.c.b16 %v6301, %v6299
        %v6442 = vpack.c.b16 %v6304, %v6302
        %v6443 = vpack.c.b16 %v6305, %v6303
        %v6444 = vpack.c.b16 %v6308, %v6306
        %v6445 = vpack.c.b16 %v6309, %v6307
        %v6446 = vpack.c.b16 %v6312, %v6310
        %v6447 = vpack.c.b16 %v6313, %v6311
        %v6448 = vpack.c.b16 %v6316, %v6314
        %v6449 = vpack.c.b16 %v6317, %v6315
        %v6450 = vpack.c.b16 %v6320, %v6318
        %v6451 = vpack.c.b16 %v6321, %v6319
        %v6452 = vpack.c.b16 %v6324, %v6322
        %v6453 = vpack.c.b16 %v6325, %v6323
        %v6454 = vpack.c.b16 %v6328, %v6326
        %v6455 = vpack.c.b16 %v6329, %v6327
        %v6456 = vpack.c.b16 %v6332, %v6330
        %v6457 = vpack.c.b16 %v6333, %v6331
        %v6458 = vpack.c.b16 %v6336, %v6334
        %v6459 = vpack.c.b16 %v6337, %v6335
        %v6460 = vpack.c.b16 %v6340, %v6338
        %v6461 = vpack.c.b16 %v6341, %v6339
        %v6462 = vpack.c.b16 %v6344, %v6342
        %v6463 = vpack.c.b16 %v6345, %v6343
        %v6464 = vpack.c.b16 %v6348, %v6346
        %v6465 = vpack.c.b16 %v6349, %v6347
        %v6466 = vpack.c.b16 %v6352, %v6350
        %v6467 = vpack.c.b16 %v6353, %v6351
        %v6468 = vpack.c.b16 %v6356, %v6354
        %v6469 = vpack.c.b16 %v6357, %v6355
        %v6470 = vpack.c.b16 %v6360, %v6358
        %v6471 = vpack.c.b16 %v6361, %v6359
        %v6472 = vpack.c.b16 %v6364, %v6362
        %v6473 = vpack.c.b16 %v6365, %v6363
        %v6474 = vpack.c.b16 %v6368, %v6366
        %v6475 = vpack.c.b16 %v6369, %v6367
        %v6476 = vpack.c.b16 %v6372, %v6370
        %v6477 = vpack.c.b16 %v6373, %v6371
        %v6478 = vpack.c.b16 %v6376, %v6374
        %v6479 = vpack.c.b16 %v6377, %v6375
        %v6480 = vpack.c.b16 %v6380, %v6378
        %v6481 = vpack.c.b16 %v6381, %v6379
        %v6482 = vpack.c.b16 %v6384, %v6382
        %v6483 = vpack.c.b16 %v6385, %v6383
        %v6484 = vpack.c.b16 %v6388, %v6386
        %v6485 = vpack.c.b16 %v6389, %v6387
        %v6486 = vpack.c.b16 %v6392, %v6390
        %v6487 = vpack.c.b16 %v6393, %v6391
        %v6488 = vpack.c.b16 %v6396, %v6394
        %v6489 = vpack.c.b16 %v6397, %v6395
        %v6490 = vpack.c.b16 %v6400, %v6398
        %v6491 = vpack.c.b16 %v6401, %v6399
        %v6492 = vpack.c.b16 %v6404, %v6402
        %v6493 = vpack.c.b16 %v6405, %v6403
        %v6494 = vpack.c.b16 %v6408, %v6406
        %v6495 = vpack.c.b16 %v6409, %v6407
        %v6496 = vpack.c.b16 %v6412, %v6410
        %v6497 = vpack.c.b16 %v6413, %v6411
        %v6498 = vpack.c.b16 %v6416, %v6414
        %v6499 = vpack.c.b16 %v6417, %v6415
        %v6500 = vpack.c.b16 %v6420, %v6418
        %v6501 = vpack.c.b16 %v6421, %v6419
        %6582 = vmatprep.subr.bf16.mxu0 %v6437
        %6583 = vmatpush1.bf16.msra.mxu0 %v6436
        %6584 = vmatprep.subr.bf16.mxu0 %v6435
        %6585 = vmatpush1.bf16.msra.mxu0 %v6434
        %6586 = vmatprep.subr.bf16.mxu0 %v6433
        %6587 = vmatpush1.bf16.msra.mxu0 %v6432
        %6588 = vmatprep.subr.bf16.mxu0 %v6431
        %6589 = vmatpush1.bf16.msra.mxu0 %v6430
        %6590 = vmatprep.subr.bf16.mxu0 %v6429
        %6591 = vmatpush1.bf16.msra.mxu0 %v6428
        %6592 = vmatprep.subr.bf16.mxu0 %v6427
        %6593 = vmatpush1.bf16.msra.mxu0 %v6426
        %6594 = vmatprep.subr.bf16.mxu0 %v6425
        %6595 = vmatpush1.bf16.msra.mxu0 %v6424
        %6596 = vmatprep.subr.bf16.mxu0 %v6423
        %6597 = vmatpush1.bf16.msra.mxu0 %v6422
        %6598 = vmatprep.subr.bf16.mxu0 %v6453
        %6599 = vmatpush2.bf16.msra.mxu0 %v6452
        %6600 = vmatprep.subr.bf16.mxu0 %v6451
        %6601 = vmatpush2.bf16.msra.mxu0 %v6450
        %6602 = vmatprep.subr.bf16.mxu0 %v6449
        %6603 = vmatpush2.bf16.msra.mxu0 %v6448
        %6604 = vmatprep.subr.bf16.mxu0 %v6447
        %6605 = vmatpush2.bf16.msra.mxu0 %v6446
        %6606 = vmatprep.subr.bf16.mxu0 %v6445
        %6607 = vmatpush2.bf16.msra.mxu0 %v6444
        %6608 = vmatprep.subr.bf16.mxu0 %v6443
        %6609 = vmatpush2.bf16.msra.mxu0 %v6442
        %6610 = vmatprep.subr.bf16.mxu0 %v6441
        %6611 = vmatpush2.bf16.msra.mxu0 %v6440
        %6612 = vmatprep.subr.bf16.mxu0 %v6439
        %6613 = vmatpush2.bf16.msra.mxu0 %v6438
        %6614 = vmatprep.mubr.bf16.mxu0 %v1509
        %6615 = vmatmul.mubr.bf16.gmra.mxu0 %v1508
        %v6616 = vpop.f32.mrf.mxu0
        %v6617 = vadd.f32 0.0, %v6616
        %v6618 = vpop.f32.mrf.mxu0
        %v6619 = vadd.f32 0.0, %v6618
        %v6620 = vpop.f32.mrf.mxu0
        %v6621 = vadd.f32 0.0, %v6620
        %v6622 = vpop.f32.mrf.mxu0
        %v6623 = vadd.f32 0.0, %v6622
        %6624 = vmatprep.mubr.bf16.mxu0 %v1514
        %6625 = vmatmul.mubr.bf16.gmra.mxu0 %v1513
        %v6626 = vpop.f32.mrf.mxu0
        %v6627 = vadd.f32 0.0, %v6626
        %v6628 = vpop.f32.mrf.mxu0
        %v6629 = vadd.f32 0.0, %v6628
        %v6630 = vpop.f32.mrf.mxu0
        %v6631 = vadd.f32 0.0, %v6630
        %v6632 = vpop.f32.mrf.mxu0
        %v6633 = vadd.f32 0.0, %v6632
        %6634 = vdwg.mxu0
        %6635 = vmatprep.subr.bf16.mxu0 %v6469
        %6636 = vmatpush1.bf16.msra.mxu0 %v6468
        %6637 = vmatprep.subr.bf16.mxu0 %v6467
        %6638 = vmatpush1.bf16.msra.mxu0 %v6466
        %6639 = vmatprep.subr.bf16.mxu0 %v6465
        %6640 = vmatpush1.bf16.msra.mxu0 %v6464
        %6641 = vmatprep.subr.bf16.mxu0 %v6463
        %6642 = vmatpush1.bf16.msra.mxu0 %v6462
        %6643 = vmatprep.subr.bf16.mxu0 %v6461
        %6644 = vmatpush1.bf16.msra.mxu0 %v6460
        %6645 = vmatprep.subr.bf16.mxu0 %v6459
        %6646 = vmatpush1.bf16.msra.mxu0 %v6458
        %6647 = vmatprep.subr.bf16.mxu0 %v6457
        %6648 = vmatpush1.bf16.msra.mxu0 %v6456
        %6649 = vmatprep.subr.bf16.mxu0 %v6455
        %6650 = vmatpush1.bf16.msra.mxu0 %v6454
        %6651 = vmatprep.subr.bf16.mxu0 %v6485
        %6652 = vmatpush2.bf16.msra.mxu0 %v6484
        %6653 = vmatprep.subr.bf16.mxu0 %v6483
        %6654 = vmatpush2.bf16.msra.mxu0 %v6482
        %6655 = vmatprep.subr.bf16.mxu0 %v6481
        %6656 = vmatpush2.bf16.msra.mxu0 %v6480
        %6657 = vmatprep.subr.bf16.mxu0 %v6479
        %6658 = vmatpush2.bf16.msra.mxu0 %v6478
        %6659 = vmatprep.subr.bf16.mxu0 %v6477
        %6660 = vmatpush2.bf16.msra.mxu0 %v6476
        %6661 = vmatprep.subr.bf16.mxu0 %v6475
        %6662 = vmatpush2.bf16.msra.mxu0 %v6474
        %6663 = vmatprep.subr.bf16.mxu0 %v6473
        %6664 = vmatpush2.bf16.msra.mxu0 %v6472
        %6665 = vmatprep.subr.bf16.mxu0 %v6471
        %6666 = vmatpush2.bf16.msra.mxu0 %v6470
        %6667 = vmatprep.mubr.bf16.mxu0 %v1511
        %6668 = vmatmul.mubr.bf16.gmra.mxu0 %v1510
        %v6669 = vpop.f32.mrf.mxu0
        %v6670 = vadd.f32 %v6617, %v6669
        %v6671 = vpop.f32.mrf.mxu0
        %v6672 = vadd.f32 %v6619, %v6671
        %v6673 = vpop.f32.mrf.mxu0
        %v6674 = vadd.f32 %v6621, %v6673
        %v6675 = vpop.f32.mrf.mxu0
        %v6676 = vadd.f32 %v6623, %v6675
        %6677 = vmatprep.mubr.bf16.mxu0 %v1516
        %6678 = vmatmul.mubr.bf16.gmra.mxu0 %v1515
        %v6679 = vpop.f32.mrf.mxu0
        %v6680 = vadd.f32 %v6627, %v6679
        %v6681 = vpop.f32.mrf.mxu0
        %v6682 = vadd.f32 %v6629, %v6681
        %v6683 = vpop.f32.mrf.mxu0
        %v6684 = vadd.f32 %v6631, %v6683
        %v6685 = vpop.f32.mrf.mxu0
        %v6686 = vadd.f32 %v6633, %v6685
        %6687 = vdwg.mxu0
        %6688 = vmatprep.subr.bf16.mxu0 %v6501
        %6689 = vmatpush1.bf16.msra.mxu0 %v6500
        %6690 = vmatprep.subr.bf16.mxu0 %v6499
        %6691 = vmatpush1.bf16.msra.mxu0 %v6498
        %6692 = vmatprep.subr.bf16.mxu0 %v6497
        %6693 = vmatpush1.bf16.msra.mxu0 %v6496
        %6694 = vmatprep.subr.bf16.mxu0 %v6495
        %6695 = vmatpush1.bf16.msra.mxu0 %v6494
        %6696 = vmatprep.subr.bf16.mxu0 %v6493
        %6697 = vmatpush1.bf16.msra.mxu0 %v6492
        %6698 = vmatprep.subr.bf16.mxu0 %v6491
        %6699 = vmatpush1.bf16.msra.mxu0 %v6490
        %6700 = vmatprep.subr.bf16.mxu0 %v6489
        %6701 = vmatpush1.bf16.msra.mxu0 %v6488
        %6702 = vmatprep.subr.bf16.mxu0 %v6487
        %6703 = vmatpush1.bf16.msra.mxu0 %v6486
        %6704 = vmatprep.subr.bf16.mxu0 0
        %6705 = vmatpush2.bf16.msra.mxu0 0
        %6706 = vmatprep.subr.bf16.mxu0 0
        %6707 = vmatpush2.bf16.msra.mxu0 0
        %6708 = vmatprep.subr.bf16.mxu0 0
        %6709 = vmatpush2.bf16.msra.mxu0 0
        %6710 = vmatprep.subr.bf16.mxu0 0
        %6711 = vmatpush2.bf16.msra.mxu0 0
        %6712 = vmatprep.subr.bf16.mxu0 0
        %6713 = vmatpush2.bf16.msra.mxu0 0
        %6714 = vmatprep.subr.bf16.mxu0 0
        %6715 = vmatpush2.bf16.msra.mxu0 0
        %6716 = vmatprep.subr.bf16.mxu0 0
        %6717 = vmatpush2.bf16.msra.mxu0 0
        %6718 = vmatprep.subr.bf16.mxu0 0
        %6719 = vmatpush2.bf16.msra.mxu0 0
        %6720 = vmatprep.mubr.bf16.mxu0 0
        %6721 = vmatmul.mubr.bf16.gmra.mxu0 %v1512
        %v6722 = vpop.f32.mrf.mxu0
        %v6723 = vadd.f32 %v6670, %v6722
        %v6724 = vpop.f32.mrf.mxu0
        %v6725 = vadd.f32 %v6672, %v6724
        %v6726 = vpop.f32.mrf.mxu0
        %v6727 = vadd.f32 %v6674, %v6726
        %v6728 = vpop.f32.mrf.mxu0
        %v6729 = vadd.f32 %v6676, %v6728
        %6730 = vmatprep.mubr.bf16.mxu0 0
        %6731 = vmatmul.mubr.bf16.gmra.mxu0 %v1517
        %v6732 = vpop.f32.mrf.mxu0
        %v6733 = vadd.f32 %v6680, %v6732
        %v6734 = vpop.f32.mrf.mxu0
        %v6735 = vadd.f32 %v6682, %v6734
        %v6736 = vpop.f32.mrf.mxu0
        %v6737 = vadd.f32 %v6684, %v6736
        %v6738 = vpop.f32.mrf.mxu0
        %v6739 = vadd.f32 %v6686, %v6738
        %6740 = vdwg.mxu0
        %s6741 = scalar_lea.vmem [#allocation2], 448
        %v6742 = vld [vmem:[%s6741] sm:$0xff]
        %v6743 = vld [vmem:[%s6741 + $0x8] sm:$0xff]
        %v6744 = vld [vmem:[%s6741 + $0x10] sm:$0xff]
        %v6745 = vld [vmem:[%s6741 + $0x18] sm:$0xff]
        %v6746 = vld [vmem:[%s6741 + $0x20] sm:$0xff]
        %v6747 = vld [vmem:[%s6741 + $0x28] sm:$0xff]
        %v6748 = vld [vmem:[%s6741 + $0x30] sm:$0xff]
        %v6749 = vld [vmem:[%s6741 + $0x38] sm:$0xff]
        %v6750 = vadd.f32 %v6742, %v6723
        %v6751 = vadd.f32 %v6743, %v6725
        %v6752 = vadd.f32 %v6744, %v6727
        %v6753 = vadd.f32 %v6745, %v6729
        %v6754 = vadd.f32 %v6746, %v6733
        %v6755 = vadd.f32 %v6747, %v6735
        %v6756 = vadd.f32 %v6748, %v6737
        %v6757 = vadd.f32 %v6749, %v6739
        %6758 = vst [vmem:[%s6741] sm:$0xff] %v6750
        %6759 = vst [vmem:[%s6741 + $0x8] sm:$0xff] %v6751
        %6760 = vst [vmem:[%s6741 + $0x10] sm:$0xff] %v6752
        %6761 = vst [vmem:[%s6741 + $0x18] sm:$0xff] %v6753
        %6762 = vst [vmem:[%s6741 + $0x20] sm:$0xff] %v6754
        %6763 = vst [vmem:[%s6741 + $0x28] sm:$0xff] %v6755
        %6764 = vst [vmem:[%s6741 + $0x30] sm:$0xff] %v6756
        %6765 = vst [vmem:[%s6741 + $0x38] sm:$0xff] %v6757
        %p6766 = scmp.eq.s32.totalorder %s16, 1
        // Predicated region
        $region105: #{clf_head_pallas.1} parent=91 // pred_check
          %p6767 = pneg %p6766
        $region106: #{clf_head_pallas.1} parent=91 // pred_check_branch
          %6769 = sbr.rel (%p6767) target = $region108
        $region107: #{clf_head_pallas.1} parent=91 // pred_region
          %v6770 = vld [vmem:[#allocation2] sm:$0xff]
          %v6771 = vld [vmem:[#allocation2 + $0x8] sm:$0xff]
          %v6772 = vld [vmem:[#allocation2 + $0x10] sm:$0xff]
          %v6773 = vld [vmem:[#allocation2 + $0x18] sm:$0xff]
          %v6774 = vld [vmem:[#allocation2 + $0x20] sm:$0xff]
          %v6775 = vld [vmem:[#allocation2 + $0x28] sm:$0xff]
          %v6776 = vld [vmem:[#allocation2 + $0x30] sm:$0xff]
          %v6777 = vld [vmem:[#allocation2 + $0x38] sm:$0xff]
          %v6778 = vld [vmem:[#allocation2 + $0x40] sm:$0xff]
          %v6779 = vld [vmem:[#allocation2 + $0x48] sm:$0xff]
          %v6780 = vld [vmem:[#allocation2 + $0x50] sm:$0xff]
          %v6781 = vld [vmem:[#allocation2 + $0x58] sm:$0xff]
          %v6782 = vld [vmem:[#allocation2 + $0x60] sm:$0xff]
          %v6783 = vld [vmem:[#allocation2 + $0x68] sm:$0xff]
          %v6784 = vld [vmem:[#allocation2 + $0x70] sm:$0xff]
          %v6785 = vld [vmem:[#allocation2 + $0x78] sm:$0xff]
          %v6786 = vld [vmem:[#allocation2 + $0x80] sm:$0xff]
          %v6787 = vld [vmem:[#allocation2 + $0x88] sm:$0xff]
          %v6788 = vld [vmem:[#allocation2 + $0x90] sm:$0xff]
          %v6789 = vld [vmem:[#allocation2 + $0x98] sm:$0xff]
          %v6790 = vld [vmem:[#allocation2 + $0xa0] sm:$0xff]
          %v6791 = vld [vmem:[#allocation2 + $0xa8] sm:$0xff]
          %v6792 = vld [vmem:[#allocation2 + $0xb0] sm:$0xff]
          %v6793 = vld [vmem:[#allocation2 + $0xb8] sm:$0xff]
          %v6794 = vld [vmem:[#allocation2 + $0xc0] sm:$0xff]
          %v6795 = vld [vmem:[#allocation2 + $0xc8] sm:$0xff]
          %v6796 = vld [vmem:[#allocation2 + $0xd0] sm:$0xff]
          %v6797 = vld [vmem:[#allocation2 + $0xd8] sm:$0xff]
          %v6798 = vld [vmem:[#allocation2 + $0xe0] sm:$0xff]
          %v6799 = vld [vmem:[#allocation2 + $0xe8] sm:$0xff]
          %v6800 = vld [vmem:[#allocation2 + $0xf0] sm:$0xff]
          %v6801 = vld [vmem:[#allocation2 + $0xf8] sm:$0xff]
          %v6802 = vld [vmem:[#allocation2 + $0x100] sm:$0xff]
          %v6803 = vld [vmem:[#allocation2 + $0x108] sm:$0xff]
          %v6804 = vld [vmem:[#allocation2 + $0x110] sm:$0xff]
          %v6805 = vld [vmem:[#allocation2 + $0x118] sm:$0xff]
          %v6806 = vld [vmem:[#allocation2 + $0x120] sm:$0xff]
          %v6807 = vld [vmem:[#allocation2 + $0x128] sm:$0xff]
          %v6808 = vld [vmem:[#allocation2 + $0x130] sm:$0xff]
          %v6809 = vld [vmem:[#allocation2 + $0x138] sm:$0xff]
          %v6810 = vld [vmem:[#allocation2 + $0x140] sm:$0xff]
          %v6811 = vld [vmem:[#allocation2 + $0x148] sm:$0xff]
          %v6812 = vld [vmem:[#allocation2 + $0x150] sm:$0xff]
          %v6813 = vld [vmem:[#allocation2 + $0x158] sm:$0xff]
          %v6814 = vld [vmem:[#allocation2 + $0x160] sm:$0xff]
          %v6815 = vld [vmem:[#allocation2 + $0x168] sm:$0xff]
          %v6816 = vld [vmem:[#allocation2 + $0x170] sm:$0xff]
          %v6817 = vld [vmem:[#allocation2 + $0x178] sm:$0xff]
          %v6818 = vld [vmem:[#allocation2 + $0x180] sm:$0xff]
          %v6819 = vld [vmem:[#allocation2 + $0x188] sm:$0xff]
          %v6820 = vld [vmem:[#allocation2 + $0x190] sm:$0xff]
          %v6821 = vld [vmem:[#allocation2 + $0x198] sm:$0xff]
          %v6822 = vld [vmem:[#allocation2 + $0x1a0] sm:$0xff]
          %v6823 = vld [vmem:[#allocation2 + $0x1a8] sm:$0xff]
          %v6824 = vld [vmem:[#allocation2 + $0x1b0] sm:$0xff]
          %v6825 = vld [vmem:[#allocation2 + $0x1b8] sm:$0xff]
          %v6826 = vld [vmem:[#allocation2 + $0x1c0] sm:$0xff]
          %v6827 = vld [vmem:[#allocation2 + $0x1c8] sm:$0xff]
          %v6828 = vld [vmem:[#allocation2 + $0x1d0] sm:$0xff]
          %v6829 = vld [vmem:[#allocation2 + $0x1d8] sm:$0xff]
          %v6830 = vld [vmem:[#allocation2 + $0x1e0] sm:$0xff]
          %v6831 = vld [vmem:[#allocation2 + $0x1e8] sm:$0xff]
          %v6832 = vld [vmem:[#allocation2 + $0x1f0] sm:$0xff]
          %v6833 = vld [vmem:[#allocation2 + $0x1f8] sm:$0xff]
          %v6834 = vlaneseq
          %v6835 = vand.u32 %v6834, 127
          %v6836 = vadd.s32 %v6835, 128
          %vm6837 = vcmp.lt.s32.totalorder %v6835, 169
          %vm6838 = vcmp.lt.s32.totalorder %v6836, 169
          %v6839 = vsel %vm6837, 1, 0
          %v6840 = vsel %vm6838, 1, 0
          %vm6841 = vcmp.eq.s32.totalorder %v6839, 1
          %vm6842 = vcmp.eq.s32.totalorder %v6840, 1
          %v6843 = vsel %vm6841, %v6770, -inf
          %v6844 = vsel %vm6842, %v6771, -inf
          %v6845 = vsel %vm6841, %v6772, -inf
          %v6846 = vsel %vm6842, %v6773, -inf
          %v6847 = vsel %vm6841, %v6774, -inf
          %v6848 = vsel %vm6842, %v6775, -inf
          %v6849 = vsel %vm6841, %v6776, -inf
          %v6850 = vsel %vm6842, %v6777, -inf
          %v6851 = vsel %vm6841, %v6778, -inf
          %v6852 = vsel %vm6842, %v6779, -inf
          %v6853 = vsel %vm6841, %v6780, -inf
          %v6854 = vsel %vm6842, %v6781, -inf
          %v6855 = vsel %vm6841, %v6782, -inf
          %v6856 = vsel %vm6842, %v6783, -inf
          %v6857 = vsel %vm6841, %v6784, -inf
          %v6858 = vsel %vm6842, %v6785, -inf
          %v6859 = vsel %vm6841, %v6786, -inf
          %v6860 = vsel %vm6842, %v6787, -inf
          %v6861 = vsel %vm6841, %v6788, -inf
          %v6862 = vsel %vm6842, %v6789, -inf
          %v6863 = vsel %vm6841, %v6790, -inf
          %v6864 = vsel %vm6842, %v6791, -inf
          %v6865 = vsel %vm6841, %v6792, -inf
          %v6866 = vsel %vm6842, %v6793, -inf
          %v6867 = vsel %vm6841, %v6794, -inf
          %v6868 = vsel %vm6842, %v6795, -inf
          %v6869 = vsel %vm6841, %v6796, -inf
          %v6870 = vsel %vm6842, %v6797, -inf
          %v6871 = vsel %vm6841, %v6798, -inf
          %v6872 = vsel %vm6842, %v6799, -inf
          %v6873 = vsel %vm6841, %v6800, -inf
          %v6874 = vsel %vm6842, %v6801, -inf
          %v6875 = vsel %vm6841, %v6802, -inf
          %v6876 = vsel %vm6842, %v6803, -inf
          %v6877 = vsel %vm6841, %v6804, -inf
          %v6878 = vsel %vm6842, %v6805, -inf
          %v6879 = vsel %vm6841, %v6806, -inf
          %v6880 = vsel %vm6842, %v6807, -inf
          %v6881 = vsel %vm6841, %v6808, -inf
          %v6882 = vsel %vm6842, %v6809, -inf
          %v6883 = vsel %vm6841, %v6810, -inf
          %v6884 = vsel %vm6842, %v6811, -inf
          %v6885 = vsel %vm6841, %v6812, -inf
          %v6886 = vsel %vm6842, %v6813, -inf
          %v6887 = vsel %vm6841, %v6814, -inf
          %v6888 = vsel %vm6842, %v6815, -inf
          %v6889 = vsel %vm6841, %v6816, -inf
          %v6890 = vsel %vm6842, %v6817, -inf
          %v6891 = vsel %vm6841, %v6818, -inf
          %v6892 = vsel %vm6842, %v6819, -inf
          %v6893 = vsel %vm6841, %v6820, -inf
          %v6894 = vsel %vm6842, %v6821, -inf
          %v6895 = vsel %vm6841, %v6822, -inf
          %v6896 = vsel %vm6842, %v6823, -inf
          %v6897 = vsel %vm6841, %v6824, -inf
          %v6898 = vsel %vm6842, %v6825, -inf
          %v6899 = vsel %vm6841, %v6826, -inf
          %v6900 = vsel %vm6842, %v6827, -inf
          %v6901 = vsel %vm6841, %v6828, -inf
          %v6902 = vsel %vm6842, %v6829, -inf
          %v6903 = vsel %vm6841, %v6830, -inf
          %v6904 = vsel %vm6842, %v6831, -inf
          %v6905 = vsel %vm6841, %v6832, -inf
          %v6906 = vsel %vm6842, %v6833, -inf
          %v6907 = vadd.f32 %v6770, %v6771
          %6908 = vadd.xlane.f32.xlu0 %v6907
          %v6909 = vpop.xlane.xlu0 %6908
          %v6910 = vadd.f32 %v6772, %v6773
          %6911 = vadd.xlane.f32.xlu0 %v6910
          %v6912 = vpop.xlane.xlu0 %6911
          %v6913 = vadd.f32 %v6774, %v6775
          %6914 = vadd.xlane.f32.xlu0 %v6913
          %v6915 = vpop.xlane.xlu0 %6914
          %v6916 = vadd.f32 %v6776, %v6777
          %6917 = vadd.xlane.f32.xlu0 %v6916
          %v6918 = vpop.xlane.xlu0 %6917
          %v6919 = vadd.f32 %v6778, %v6779
          %6920 = vadd.xlane.f32.xlu0 %v6919
          %v6921 = vpop.xlane.xlu0 %6920
          %v6922 = vadd.f32 %v6780, %v6781
          %6923 = vadd.xlane.f32.xlu0 %v6922
          %v6924 = vpop.xlane.xlu0 %6923
          %v6925 = vadd.f32 %v6782, %v6783
          %6926 = vadd.xlane.f32.xlu0 %v6925
          %v6927 = vpop.xlane.xlu0 %6926
          %v6928 = vadd.f32 %v6784, %v6785
          %6929 = vadd.xlane.f32.xlu0 %v6928
          %v6930 = vpop.xlane.xlu0 %6929
          %v6931 = vadd.f32 %v6786, %v6787
          %6932 = vadd.xlane.f32.xlu0 %v6931
          %v6933 = vpop.xlane.xlu0 %6932
          %v6934 = vadd.f32 %v6788, %v6789
          %6935 = vadd.xlane.f32.xlu0 %v6934
          %v6936 = vpop.xlane.xlu0 %6935
          %v6937 = vadd.f32 %v6790, %v6791
          %6938 = vadd.xlane.f32.xlu0 %v6937
          %v6939 = vpop.xlane.xlu0 %6938
          %v6940 = vadd.f32 %v6792, %v6793
          %6941 = vadd.xlane.f32.xlu0 %v6940
          %v6942 = vpop.xlane.xlu0 %6941
          %v6943 = vadd.f32 %v6794, %v6795
          %6944 = vadd.xlane.f32.xlu0 %v6943
          %v6945 = vpop.xlane.xlu0 %6944
          %v6946 = vadd.f32 %v6796, %v6797
          %6947 = vadd.xlane.f32.xlu0 %v6946
          %v6948 = vpop.xlane.xlu0 %6947
          %v6949 = vadd.f32 %v6798, %v6799
          %6950 = vadd.xlane.f32.xlu0 %v6949
          %v6951 = vpop.xlane.xlu0 %6950
          %v6952 = vadd.f32 %v6800, %v6801
          %6953 = vadd.xlane.f32.xlu0 %v6952
          %v6954 = vpop.xlane.xlu0 %6953
          %v6955 = vadd.f32 %v6802, %v6803
          %6956 = vadd.xlane.f32.xlu0 %v6955
          %v6957 = vpop.xlane.xlu0 %6956
          %v6958 = vadd.f32 %v6804, %v6805
          %6959 = vadd.xlane.f32.xlu0 %v6958
          %v6960 = vpop.xlane.xlu0 %6959
          %v6961 = vadd.f32 %v6806, %v6807
          %6962 = vadd.xlane.f32.xlu0 %v6961
          %v6963 = vpop.xlane.xlu0 %6962
          %v6964 = vadd.f32 %v6808, %v6809
          %6965 = vadd.xlane.f32.xlu0 %v6964
          %v6966 = vpop.xlane.xlu0 %6965
          %v6967 = vadd.f32 %v6810, %v6811
          %6968 = vadd.xlane.f32.xlu0 %v6967
          %v6969 = vpop.xlane.xlu0 %6968
          %v6970 = vadd.f32 %v6812, %v6813
          %6971 = vadd.xlane.f32.xlu0 %v6970
          %v6972 = vpop.xlane.xlu0 %6971
          %v6973 = vadd.f32 %v6814, %v6815
          %6974 = vadd.xlane.f32.xlu0 %v6973
          %v6975 = vpop.xlane.xlu0 %6974
          %v6976 = vadd.f32 %v6816, %v6817
          %6977 = vadd.xlane.f32.xlu0 %v6976
          %v6978 = vpop.xlane.xlu0 %6977
          %v6979 = vadd.f32 %v6818, %v6819
          %6980 = vadd.xlane.f32.xlu0 %v6979
          %v6981 = vpop.xlane.xlu0 %6980
          %v6982 = vadd.f32 %v6820, %v6821
          %6983 = vadd.xlane.f32.xlu0 %v6982
          %v6984 = vpop.xlane.xlu0 %6983
          %v6985 = vadd.f32 %v6822, %v6823
          %6986 = vadd.xlane.f32.xlu0 %v6985
          %v6987 = vpop.xlane.xlu0 %6986
          %v6988 = vadd.f32 %v6824, %v6825
          %6989 = vadd.xlane.f32.xlu0 %v6988
          %v6990 = vpop.xlane.xlu0 %6989
          %v6991 = vadd.f32 %v6826, %v6827
          %6992 = vadd.xlane.f32.xlu0 %v6991
          %v6993 = vpop.xlane.xlu0 %6992
          %v6994 = vadd.f32 %v6828, %v6829
          %6995 = vadd.xlane.f32.xlu0 %v6994
          %v6996 = vpop.xlane.xlu0 %6995
          %v6997 = vadd.f32 %v6830, %v6831
          %6998 = vadd.xlane.f32.xlu0 %v6997
          %v6999 = vpop.xlane.xlu0 %6998
          %v7000 = vadd.f32 %v6832, %v6833
          %7001 = vadd.xlane.f32.xlu0 %v7000
          %v7002 = vpop.xlane.xlu0 %7001
          %v7003 = vmul.f32 %v6909, 0.00591716
          %v7004 = vmul.f32 %v6912, 0.00591716
          %v7005 = vmul.f32 %v6915, 0.00591716
          %v7006 = vmul.f32 %v6918, 0.00591716
          %v7007 = vmul.f32 %v6921, 0.00591716
          %v7008 = vmul.f32 %v6924, 0.00591716
          %v7009 = vmul.f32 %v6927, 0.00591716
          %v7010 = vmul.f32 %v6930, 0.00591716
          %v7011 = vmul.f32 %v6933, 0.00591716
          %v7012 = vmul.f32 %v6936, 0.00591716
          %v7013 = vmul.f32 %v6939, 0.00591716
          %v7014 = vmul.f32 %v6942, 0.00591716
          %v7015 = vmul.f32 %v6945, 0.00591716
          %v7016 = vmul.f32 %v6948, 0.00591716
          %v7017 = vmul.f32 %v6951, 0.00591716
          %v7018 = vmul.f32 %v6954, 0.00591716
          %v7019 = vmul.f32 %v6957, 0.00591716
          %v7020 = vmul.f32 %v6960, 0.00591716
          %v7021 = vmul.f32 %v6963, 0.00591716
          %v7022 = vmul.f32 %v6966, 0.00591716
          %v7023 = vmul.f32 %v6969, 0.00591716
          %v7024 = vmul.f32 %v6972, 0.00591716
          %v7025 = vmul.f32 %v6975, 0.00591716
          %v7026 = vmul.f32 %v6978, 0.00591716
          %v7027 = vmul.f32 %v6981, 0.00591716
          %v7028 = vmul.f32 %v6984, 0.00591716
          %v7029 = vmul.f32 %v6987, 0.00591716
          %v7030 = vmul.f32 %v6990, 0.00591716
          %v7031 = vmul.f32 %v6993, 0.00591716
          %v7032 = vmul.f32 %v6996, 0.00591716
          %v7033 = vmul.f32 %v6999, 0.00591716
          %v7034 = vmul.f32 %v7002, 0.00591716
          %v7035 = vmax.f32 %v6843, %v6844
          %7036 = vmax.xlane.f32.xlu0 %v7035
          %v7037 = vpop.xlane.xlu0 %7036
          %v7038 = vmax.f32 %v6845, %v6846
          %7039 = vmax.xlane.f32.xlu0 %v7038
          %v7040 = vpop.xlane.xlu0 %7039
          %v7041 = vmax.f32 %v6847, %v6848
          %7042 = vmax.xlane.f32.xlu0 %v7041
          %v7043 = vpop.xlane.xlu0 %7042
          %v7044 = vmax.f32 %v6849, %v6850
          %7045 = vmax.xlane.f32.xlu0 %v7044
          %v7046 = vpop.xlane.xlu0 %7045
          %v7047 = vmax.f32 %v6851, %v6852
          %7048 = vmax.xlane.f32.xlu0 %v7047
          %v7049 = vpop.xlane.xlu0 %7048
          %v7050 = vmax.f32 %v6853, %v6854
          %7051 = vmax.xlane.f32.xlu0 %v7050
          %v7052 = vpop.xlane.xlu0 %7051
          %v7053 = vmax.f32 %v6855, %v6856
          %7054 = vmax.xlane.f32.xlu0 %v7053
          %v7055 = vpop.xlane.xlu0 %7054
          %v7056 = vmax.f32 %v6857, %v6858
          %7057 = vmax.xlane.f32.xlu0 %v7056
          %v7058 = vpop.xlane.xlu0 %7057
          %v7059 = vmax.f32 %v6859, %v6860
          %7060 = vmax.xlane.f32.xlu0 %v7059
          %v7061 = vpop.xlane.xlu0 %7060
          %v7062 = vmax.f32 %v6861, %v6862
          %7063 = vmax.xlane.f32.xlu0 %v7062
          %v7064 = vpop.xlane.xlu0 %7063
          %v7065 = vmax.f32 %v6863, %v6864
          %7066 = vmax.xlane.f32.xlu0 %v7065
          %v7067 = vpop.xlane.xlu0 %7066
          %v7068 = vmax.f32 %v6865, %v6866
          %7069 = vmax.xlane.f32.xlu0 %v7068
          %v7070 = vpop.xlane.xlu0 %7069
          %v7071 = vmax.f32 %v6867, %v6868
          %7072 = vmax.xlane.f32.xlu0 %v7071
          %v7073 = vpop.xlane.xlu0 %7072
          %v7074 = vmax.f32 %v6869, %v6870
          %7075 = vmax.xlane.f32.xlu0 %v7074
          %v7076 = vpop.xlane.xlu0 %7075
          %v7077 = vmax.f32 %v6871, %v6872
          %7078 = vmax.xlane.f32.xlu0 %v7077
          %v7079 = vpop.xlane.xlu0 %7078
          %v7080 = vmax.f32 %v6873, %v6874
          %7081 = vmax.xlane.f32.xlu0 %v7080
          %v7082 = vpop.xlane.xlu0 %7081
          %v7083 = vmax.f32 %v6875, %v6876
          %7084 = vmax.xlane.f32.xlu0 %v7083
          %v7085 = vpop.xlane.xlu0 %7084
          %v7086 = vmax.f32 %v6877, %v6878
          %7087 = vmax.xlane.f32.xlu0 %v7086
          %v7088 = vpop.xlane.xlu0 %7087
          %v7089 = vmax.f32 %v6879, %v6880
          %7090 = vmax.xlane.f32.xlu0 %v7089
          %v7091 = vpop.xlane.xlu0 %7090
          %v7092 = vmax.f32 %v6881, %v6882
          %7093 = vmax.xlane.f32.xlu0 %v7092
          %v7094 = vpop.xlane.xlu0 %7093
          %v7095 = vmax.f32 %v6883, %v6884
          %7096 = vmax.xlane.f32.xlu0 %v7095
          %v7097 = vpop.xlane.xlu0 %7096
          %v7098 = vmax.f32 %v6885, %v6886
          %7099 = vmax.xlane.f32.xlu0 %v7098
          %v7100 = vpop.xlane.xlu0 %7099
          %v7101 = vmax.f32 %v6887, %v6888
          %7102 = vmax.xlane.f32.xlu0 %v7101
          %v7103 = vpop.xlane.xlu0 %7102
          %v7104 = vmax.f32 %v6889, %v6890
          %7105 = vmax.xlane.f32.xlu0 %v7104
          %v7106 = vpop.xlane.xlu0 %7105
          %v7107 = vmax.f32 %v6891, %v6892
          %7108 = vmax.xlane.f32.xlu0 %v7107
          %v7109 = vpop.xlane.xlu0 %7108
          %v7110 = vmax.f32 %v6893, %v6894
          %7111 = vmax.xlane.f32.xlu0 %v7110
          %v7112 = vpop.xlane.xlu0 %7111
          %v7113 = vmax.f32 %v6895, %v6896
          %7114 = vmax.xlane.f32.xlu0 %v7113
          %v7115 = vpop.xlane.xlu0 %7114
          %v7116 = vmax.f32 %v6897, %v6898
          %7117 = vmax.xlane.f32.xlu0 %v7116
          %v7118 = vpop.xlane.xlu0 %7117
          %v7119 = vmax.f32 %v6899, %v6900
          %7120 = vmax.xlane.f32.xlu0 %v7119
          %v7121 = vpop.xlane.xlu0 %7120
          %v7122 = vmax.f32 %v6901, %v6902
          %7123 = vmax.xlane.f32.xlu0 %v7122
          %v7124 = vpop.xlane.xlu0 %7123
          %v7125 = vmax.f32 %v6903, %v6904
          %7126 = vmax.xlane.f32.xlu0 %v7125
          %v7127 = vpop.xlane.xlu0 %7126
          %v7128 = vmax.f32 %v6905, %v6906
          %7129 = vmax.xlane.f32.xlu0 %v7128
          %v7130 = vpop.xlane.xlu0 %7129
          %v7131 = vld [vmem:[%s2] sm:$0xff]
          %v7132 = vld [vmem:[%s2 + $0x8] sm:$0xff]
          %v7133 = vld [vmem:[%s2 + $0x10] sm:$0xff]
          %v7134 = vld [vmem:[%s2 + $0x18] sm:$0xff]
          %v7135 = vld [vmem:[%s2 + $0x20] sm:$0xff]
          %v7136 = vld [vmem:[%s2 + $0x28] sm:$0xff]
          %v7137 = vld [vmem:[%s2 + $0x30] sm:$0xff]
          %v7138 = vld [vmem:[%s2 + $0x38] sm:$0xff]
          %v7171 = vlaneseq
          %v7172 = vshrl.u32 %v7171, 7
          %v7173 = vsub.s32 %v6835, %v7172
          %v7174 = vrot.slane %v7037, %v7173
          %v7175 = vadd.s32 %v6835, 4294967288
          %v7176 = vlaneseq
          %v7177 = vshrl.u32 %v7176, 7
          %v7178 = vsub.s32 %v7175, %v7177
          %v7179 = vrot.slane %v7040, %v7178
          %vm7180 = vcmask 130112
          %v7181 = vsel %vm7180, %v7179, %v7174
          %v7182 = vadd.s32 %v6835, 4294967280
          %v7183 = vlaneseq
          %v7184 = vshrl.u32 %v7183, 7
          %v7185 = vsub.s32 %v7182, %v7184
          %v7186 = vrot.slane %v7043, %v7185
          %vm7187 = vcmask 195712
          %v7188 = vsel %vm7187, %v7186, %v7181
          %v7189 = vadd.s32 %v6835, 4294967272
          %v7190 = vlaneseq
          %v7191 = vshrl.u32 %v7190, 7
          %v7192 = vsub.s32 %v7189, %v7191
          %v7193 = vrot.slane %v7046, %v7192
          %vm7194 = vcmask 261312
          %v7195 = vsel %vm7194, %v7193, %v7188
          %v7196 = vlaneseq
          %v7197 = vshrl.u32 %v7196, 7
          %v7198 = vsub.s32 %v6835, %v7197
          %v7199 = vrot.slane %v7049, %v7198
          %v7200 = vlaneseq
          %v7201 = vshrl.u32 %v7200, 7
          %v7202 = vsub.s32 %v7175, %v7201
          %v7203 = vrot.slane %v7052, %v7202
          %v7204 = vsel %vm7180, %v7203, %v7199
          %v7205 = vlaneseq
          %v7206 = vshrl.u32 %v7205, 7
          %v7207 = vsub.s32 %v7182, %v7206
          %v7208 = vrot.slane %v7055, %v7207
          %v7209 = vsel %vm7187, %v7208, %v7204
          %v7210 = vlaneseq
          %v7211 = vshrl.u32 %v7210, 7
          %v7212 = vsub.s32 %v7189, %v7211
          %v7213 = vrot.slane %v7058, %v7212
          %v7214 = vsel %vm7194, %v7213, %v7209
          %v7215 = vlaneseq
          %v7216 = vshrl.u32 %v7215, 7
          %v7217 = vsub.s32 %v6835, %v7216
          %v7218 = vrot.slane %v7061, %v7217
          %v7219 = vlaneseq
          %v7220 = vshrl.u32 %v7219, 7
          %v7221 = vsub.s32 %v7175, %v7220
          %v7222 = vrot.slane %v7064, %v7221
          %v7223 = vsel %vm7180, %v7222, %v7218
          %v7224 = vlaneseq
          %v7225 = vshrl.u32 %v7224, 7
          %v7226 = vsub.s32 %v7182, %v7225
          %v7227 = vrot.slane %v7067, %v7226
          %v7228 = vsel %vm7187, %v7227, %v7223
          %v7229 = vlaneseq
          %v7230 = vshrl.u32 %v7229, 7
          %v7231 = vsub.s32 %v7189, %v7230
          %v7232 = vrot.slane %v7070, %v7231
          %v7233 = vsel %vm7194, %v7232, %v7228
          %v7234 = vlaneseq
          %v7235 = vshrl.u32 %v7234, 7
          %v7236 = vsub.s32 %v6835, %v7235
          %v7237 = vrot.slane %v7073, %v7236
          %v7238 = vlaneseq
          %v7239 = vshrl.u32 %v7238, 7
          %v7240 = vsub.s32 %v7175, %v7239
          %v7241 = vrot.slane %v7076, %v7240
          %v7242 = vsel %vm7180, %v7241, %v7237
          %v7243 = vlaneseq
          %v7244 = vshrl.u32 %v7243, 7
          %v7245 = vsub.s32 %v7182, %v7244
          %v7246 = vrot.slane %v7079, %v7245
          %v7247 = vsel %vm7187, %v7246, %v7242
          %v7248 = vlaneseq
          %v7249 = vshrl.u32 %v7248, 7
          %v7250 = vsub.s32 %v7189, %v7249
          %v7251 = vrot.slane %v7082, %v7250
          %v7252 = vsel %vm7194, %v7251, %v7247
          %v7253 = vlaneseq
          %v7254 = vshrl.u32 %v7253, 7
          %v7255 = vsub.s32 %v6835, %v7254
          %v7256 = vrot.slane %v7085, %v7255
          %v7257 = vlaneseq
          %v7258 = vshrl.u32 %v7257, 7
          %v7259 = vsub.s32 %v7175, %v7258
          %v7260 = vrot.slane %v7088, %v7259
          %v7261 = vsel %vm7180, %v7260, %v7256
          %v7262 = vlaneseq
          %v7263 = vshrl.u32 %v7262, 7
          %v7264 = vsub.s32 %v7182, %v7263
          %v7265 = vrot.slane %v7091, %v7264
          %v7266 = vsel %vm7187, %v7265, %v7261
          %v7267 = vlaneseq
          %v7268 = vshrl.u32 %v7267, 7
          %v7269 = vsub.s32 %v7189, %v7268
          %v7270 = vrot.slane %v7094, %v7269
          %v7271 = vsel %vm7194, %v7270, %v7266
          %v7272 = vlaneseq
          %v7273 = vshrl.u32 %v7272, 7
          %v7274 = vsub.s32 %v6835, %v7273
          %v7275 = vrot.slane %v7097, %v7274
          %v7276 = vlaneseq
          %v7277 = vshrl.u32 %v7276, 7
          %v7278 = vsub.s32 %v7175, %v7277
          %v7279 = vrot.slane %v7100, %v7278
          %v7280 = vsel %vm7180, %v7279, %v7275
          %v7281 = vlaneseq
          %v7282 = vshrl.u32 %v7281, 7
          %v7283 = vsub.s32 %v7182, %v7282
          %v7284 = vrot.slane %v7103, %v7283
          %v7285 = vsel %vm7187, %v7284, %v7280
          %v7286 = vlaneseq
          %v7287 = vshrl.u32 %v7286, 7
          %v7288 = vsub.s32 %v7189, %v7287
          %v7289 = vrot.slane %v7106, %v7288
          %v7290 = vsel %vm7194, %v7289, %v7285
          %v7291 = vlaneseq
          %v7292 = vshrl.u32 %v7291, 7
          %v7293 = vsub.s32 %v6835, %v7292
          %v7294 = vrot.slane %v7109, %v7293
          %v7295 = vlaneseq
          %v7296 = vshrl.u32 %v7295, 7
          %v7297 = vsub.s32 %v7175, %v7296
          %v7298 = vrot.slane %v7112, %v7297
          %v7299 = vsel %vm7180, %v7298, %v7294
          %v7300 = vlaneseq
          %v7301 = vshrl.u32 %v7300, 7
          %v7302 = vsub.s32 %v7182, %v7301
          %v7303 = vrot.slane %v7115, %v7302
          %v7304 = vsel %vm7187, %v7303, %v7299
          %v7305 = vlaneseq
          %v7306 = vshrl.u32 %v7305, 7
          %v7307 = vsub.s32 %v7189, %v7306
          %v7308 = vrot.slane %v7118, %v7307
          %v7309 = vsel %vm7194, %v7308, %v7304
          %v7310 = vlaneseq
          %v7311 = vshrl.u32 %v7310, 7
          %v7312 = vsub.s32 %v6835, %v7311
          %v7313 = vrot.slane %v7121, %v7312
          %v7314 = vlaneseq
          %v7315 = vshrl.u32 %v7314, 7
          %v7316 = vsub.s32 %v7175, %v7315
          %v7317 = vrot.slane %v7124, %v7316
          %v7318 = vsel %vm7180, %v7317, %v7313
          %v7319 = vlaneseq
          %v7320 = vshrl.u32 %v7319, 7
          %v7321 = vsub.s32 %v7182, %v7320
          %v7322 = vrot.slane %v7127, %v7321
          %v7323 = vsel %vm7187, %v7322, %v7318
          %v7324 = vlaneseq
          %v7325 = vshrl.u32 %v7324, 7
          %v7326 = vsub.s32 %v7189, %v7325
          %v7327 = vrot.slane %v7130, %v7326
          %v7328 = vsel %vm7194, %v7327, %v7323
          %vm7329 = vcmask 1041409
          %v7330 = vsel %vm7329, %v7214, %v7195
          %vm7331 = vcmask 1042434
          %v7332 = vsel %vm7331, %v7233, %v7330
          %vm7333 = vcmask 1043459
          %v7334 = vsel %vm7333, %v7252, %v7332
          %vm7335 = vcmask 1044484
          %v7336 = vsel %vm7335, %v7271, %v7334
          %vm7337 = vcmask 1045509
          %v7338 = vsel %vm7337, %v7290, %v7336
          %vm7339 = vcmask 1046534
          %v7340 = vsel %vm7339, %v7309, %v7338
          %vm7341 = vcmask 1047559
          %v7342 = vsel %vm7341, %v7328, %v7340
          %vm7343 = vcmask 261120
          %v7344 = vsel %vm7343, %v7342, 0
          %7346 = vmatprep.subr.mxu0 0.0
          %7347 = vmatpush1.msra.mxu0 0.0
          %7348 = vmatprep.subr.mxu0 0.0
          %7349 = vmatpush1.msra.mxu0 0.0
          %7350 = vmatprep.subr.mxu0 0.0
          %7351 = vmatpush1.msra.mxu0 0.0
          %7352 = vmatprep.subr.mxu0 0.0
          %7353 = vmatpush1.msra.mxu0 0.0
          %7354 = vmatprep.subr.mxu0 0.0
          %7355 = vmatpush1.msra.mxu0 0.0
          %7356 = vmatprep.subr.mxu0 0.0
          %7357 = vmatpush1.msra.mxu0 0.0
          %7358 = vmatprep.subr.mxu0 0.0
          %7359 = vmatpush1.msra.mxu0 0.0
          %7360 = vmatprep.subr.mxu0 0.0
          %7361 = vmatpush1.msra.mxu0 0.0
          %7362 = vmatprep.subr.mxu0 0.0
          %7363 = vmatpush1.msra.mxu0 0.0
          %7364 = vmatprep.subr.mxu0 0.0
          %7365 = vmatpush1.msra.mxu0 0.0
          %7366 = vmatprep.subr.mxu0 0.0
          %7367 = vmatpush1.msra.mxu0 0.0
          %7368 = vmatprep.subr.mxu0 0.0
          %7369 = vmatpush1.msra.mxu0 0.0
          %7370 = vmatprep.subr.mxu0 0.0
          %7371 = vmatpush1.msra.mxu0 %v7138
          %7372 = vmatprep.subr.mxu0 0.0
          %7373 = vmatpush1.msra.mxu0 %v7137
          %7374 = vmatprep.subr.mxu0 0.0
          %7375 = vmatpush1.msra.mxu0 %v7136
          %7376 = vmatprep.subr.mxu0 0.0
          %7377 = vmatpush1.msra.mxu0 %v7135
          %7378 = vmatprep.subr.mxu0 0.0
          %7379 = vmatpush2.msra.mxu0 0.0
          %7380 = vmatprep.subr.mxu0 0.0
          %7381 = vmatpush2.msra.mxu0 0.0
          %7382 = vmatprep.subr.mxu0 0.0
          %7383 = vmatpush2.msra.mxu0 0.0
          %7384 = vmatprep.subr.mxu0 0.0
          %7385 = vmatpush2.msra.mxu0 0.0
          %7386 = vmatprep.subr.mxu0 0.0
          %7387 = vmatpush2.msra.mxu0 0.0
          %7388 = vmatprep.subr.mxu0 0.0
          %7389 = vmatpush2.msra.mxu0 0.0
          %7390 = vmatprep.subr.mxu0 0.0
          %7391 = vmatpush2.msra.mxu0 0.0
          %7392 = vmatprep.subr.mxu0 0.0
          %7393 = vmatpush2.msra.mxu0 0.0
          %7394 = vmatprep.subr.mxu0 0.0
          %7395 = vmatpush2.msra.mxu0 0.0
          %7396 = vmatprep.subr.mxu0 0.0
          %7397 = vmatpush2.msra.mxu0 0.0
          %7398 = vmatprep.subr.mxu0 0.0
          %7399 = vmatpush2.msra.mxu0 0.0
          %7400 = vmatprep.subr.mxu0 0.0
          %7401 = vmatpush2.msra.mxu0 0.0
          %7402 = vmatprep.subr.mxu0 0.0
          %7403 = vmatpush2.msra.mxu0 0.0
          %7404 = vmatprep.subr.mxu0 0.0
          %7405 = vmatpush2.msra.mxu0 0.0
          %7406 = vmatprep.subr.mxu0 0.0
          %7407 = vmatpush2.msra.mxu0 0.0
          %7408 = vmatprep.subr.mxu0 0.0
          %7409 = vmatpush2.msra.mxu0 0.0
          %7410 = vmatprep.mubr.f32.mxu0 0.0
          %7411 = vmatmul.mubr.f32.gmra.mxu0 %v7344
          %v7412 = vpop.f32.mrf.mxu0
          %v7413 = vadd.f32 0.0, %v7412
          %v7414 = vpop.f32.mrf.mxu0
          %7415 = vdwg.mxu0
          %v7448 = vlaneseq
          %v7449 = vshrl.u32 %v7448, 7
          %v7450 = vsub.s32 %v6835, %v7449
          %v7451 = vrot.slane %v7003, %v7450
          %v7452 = vlaneseq
          %v7453 = vshrl.u32 %v7452, 7
          %v7454 = vsub.s32 %v7175, %v7453
          %v7455 = vrot.slane %v7004, %v7454
          %v7456 = vsel %vm7180, %v7455, %v7451
          %v7457 = vlaneseq
          %v7458 = vshrl.u32 %v7457, 7
          %v7459 = vsub.s32 %v7182, %v7458
          %v7460 = vrot.slane %v7005, %v7459
          %v7461 = vsel %vm7187, %v7460, %v7456
          %v7462 = vlaneseq
          %v7463 = vshrl.u32 %v7462, 7
          %v7464 = vsub.s32 %v7189, %v7463
          %v7465 = vrot.slane %v7006, %v7464
          %v7466 = vsel %vm7194, %v7465, %v7461
          %v7467 = vlaneseq
          %v7468 = vshrl.u32 %v7467, 7
          %v7469 = vsub.s32 %v6835, %v7468
          %v7470 = vrot.slane %v7007, %v7469
          %v7471 = vlaneseq
          %v7472 = vshrl.u32 %v7471, 7
          %v7473 = vsub.s32 %v7175, %v7472
          %v7474 = vrot.slane %v7008, %v7473
          %v7475 = vsel %vm7180, %v7474, %v7470
          %v7476 = vlaneseq
          %v7477 = vshrl.u32 %v7476, 7
          %v7478 = vsub.s32 %v7182, %v7477
          %v7479 = vrot.slane %v7009, %v7478
          %v7480 = vsel %vm7187, %v7479, %v7475
          %v7481 = vlaneseq
          %v7482 = vshrl.u32 %v7481, 7
          %v7483 = vsub.s32 %v7189, %v7482
          %v7484 = vrot.slane %v7010, %v7483
          %v7485 = vsel %vm7194, %v7484, %v7480
          %v7486 = vlaneseq
          %v7487 = vshrl.u32 %v7486, 7
          %v7488 = vsub.s32 %v6835, %v7487
          %v7489 = vrot.slane %v7011, %v7488
          %v7490 = vlaneseq
          %v7491 = vshrl.u32 %v7490, 7
          %v7492 = vsub.s32 %v7175, %v7491
          %v7493 = vrot.slane %v7012, %v7492
          %v7494 = vsel %vm7180, %v7493, %v7489
          %v7495 = vlaneseq
          %v7496 = vshrl.u32 %v7495, 7
          %v7497 = vsub.s32 %v7182, %v7496
          %v7498 = vrot.slane %v7013, %v7497
          %v7499 = vsel %vm7187, %v7498, %v7494
          %v7500 = vlaneseq
          %v7501 = vshrl.u32 %v7500, 7
          %v7502 = vsub.s32 %v7189, %v7501
          %v7503 = vrot.slane %v7014, %v7502
          %v7504 = vsel %vm7194, %v7503, %v7499
          %v7505 = vlaneseq
          %v7506 = vshrl.u32 %v7505, 7
          %v7507 = vsub.s32 %v6835, %v7506
          %v7508 = vrot.slane %v7015, %v7507
          %v7509 = vlaneseq
          %v7510 = vshrl.u32 %v7509, 7
          %v7511 = vsub.s32 %v7175, %v7510
          %v7512 = vrot.slane %v7016, %v7511
          %v7513 = vsel %vm7180, %v7512, %v7508
          %v7514 = vlaneseq
          %v7515 = vshrl.u32 %v7514, 7
          %v7516 = vsub.s32 %v7182, %v7515
          %v7517 = vrot.slane %v7017, %v7516
          %v7518 = vsel %vm7187, %v7517, %v7513
          %v7519 = vlaneseq
          %v7520 = vshrl.u32 %v7519, 7
          %v7521 = vsub.s32 %v7189, %v7520
          %v7522 = vrot.slane %v7018, %v7521
          %v7523 = vsel %vm7194, %v7522, %v7518
          %v7524 = vlaneseq
          %v7525 = vshrl.u32 %v7524, 7
          %v7526 = vsub.s32 %v6835, %v7525
          %v7527 = vrot.slane %v7019, %v7526
          %v7528 = vlaneseq
          %v7529 = vshrl.u32 %v7528, 7
          %v7530 = vsub.s32 %v7175, %v7529
          %v7531 = vrot.slane %v7020, %v7530
          %v7532 = vsel %vm7180, %v7531, %v7527
          %v7533 = vlaneseq
          %v7534 = vshrl.u32 %v7533, 7
          %v7535 = vsub.s32 %v7182, %v7534
          %v7536 = vrot.slane %v7021, %v7535
          %v7537 = vsel %vm7187, %v7536, %v7532
          %v7538 = vlaneseq
          %v7539 = vshrl.u32 %v7538, 7
          %v7540 = vsub.s32 %v7189, %v7539
          %v7541 = vrot.slane %v7022, %v7540
          %v7542 = vsel %vm7194, %v7541, %v7537
          %v7543 = vlaneseq
          %v7544 = vshrl.u32 %v7543, 7
          %v7545 = vsub.s32 %v6835, %v7544
          %v7546 = vrot.slane %v7023, %v7545
          %v7547 = vlaneseq
          %v7548 = vshrl.u32 %v7547, 7
          %v7549 = vsub.s32 %v7175, %v7548
          %v7550 = vrot.slane %v7024, %v7549
          %v7551 = vsel %vm7180, %v7550, %v7546
          %v7552 = vlaneseq
          %v7553 = vshrl.u32 %v7552, 7
          %v7554 = vsub.s32 %v7182, %v7553
          %v7555 = vrot.slane %v7025, %v7554
          %v7556 = vsel %vm7187, %v7555, %v7551
          %v7557 = vlaneseq
          %v7558 = vshrl.u32 %v7557, 7
          %v7559 = vsub.s32 %v7189, %v7558
          %v7560 = vrot.slane %v7026, %v7559
          %v7561 = vsel %vm7194, %v7560, %v7556
          %v7562 = vlaneseq
          %v7563 = vshrl.u32 %v7562, 7
          %v7564 = vsub.s32 %v6835, %v7563
          %v7565 = vrot.slane %v7027, %v7564
          %v7566 = vlaneseq
          %v7567 = vshrl.u32 %v7566, 7
          %v7568 = vsub.s32 %v7175, %v7567
          %v7569 = vrot.slane %v7028, %v7568
          %v7570 = vsel %vm7180, %v7569, %v7565
          %v7571 = vlaneseq
          %v7572 = vshrl.u32 %v7571, 7
          %v7573 = vsub.s32 %v7182, %v7572
          %v7574 = vrot.slane %v7029, %v7573
          %v7575 = vsel %vm7187, %v7574, %v7570
          %v7576 = vlaneseq
          %v7577 = vshrl.u32 %v7576, 7
          %v7578 = vsub.s32 %v7189, %v7577
          %v7579 = vrot.slane %v7030, %v7578
          %v7580 = vsel %vm7194, %v7579, %v7575
          %v7581 = vlaneseq
          %v7582 = vshrl.u32 %v7581, 7
          %v7583 = vsub.s32 %v6835, %v7582
          %v7584 = vrot.slane %v7031, %v7583
          %v7585 = vlaneseq
          %v7586 = vshrl.u32 %v7585, 7
          %v7587 = vsub.s32 %v7175, %v7586
          %v7588 = vrot.slane %v7032, %v7587
          %v7589 = vsel %vm7180, %v7588, %v7584
          %v7590 = vlaneseq
          %v7591 = vshrl.u32 %v7590, 7
          %v7592 = vsub.s32 %v7182, %v7591
          %v7593 = vrot.slane %v7033, %v7592
          %v7594 = vsel %vm7187, %v7593, %v7589
          %v7595 = vlaneseq
          %v7596 = vshrl.u32 %v7595, 7
          %v7597 = vsub.s32 %v7189, %v7596
          %v7598 = vrot.slane %v7034, %v7597
          %v7599 = vsel %vm7194, %v7598, %v7594
          %v7600 = vsel %vm7329, %v7485, %v7466
          %v7601 = vsel %vm7331, %v7504, %v7600
          %v7602 = vsel %vm7333, %v7523, %v7601
          %v7603 = vsel %vm7335, %v7542, %v7602
          %v7604 = vsel %vm7337, %v7561, %v7603
          %v7605 = vsel %vm7339, %v7580, %v7604
          %v7606 = vsel %vm7341, %v7599, %v7605
          %v7607 = vsel %vm7343, %v7606, 0
          %7609 = vmatprep.subr.mxu0 0.0
          %7610 = vmatpush1.msra.mxu0 0.0
          %7611 = vmatprep.subr.mxu0 0.0
          %7612 = vmatpush1.msra.mxu0 0.0
          %7613 = vmatprep.subr.mxu0 0.0
          %7614 = vmatpush1.msra.mxu0 0.0
          %7615 = vmatprep.subr.mxu0 0.0
          %7616 = vmatpush1.msra.mxu0 0.0
          %7617 = vmatprep.subr.mxu0 0.0
          %7618 = vmatpush1.msra.mxu0 0.0
          %7619 = vmatprep.subr.mxu0 0.0
          %7620 = vmatpush1.msra.mxu0 0.0
          %7621 = vmatprep.subr.mxu0 0.0
          %7622 = vmatpush1.msra.mxu0 0.0
          %7623 = vmatprep.subr.mxu0 0.0
          %7624 = vmatpush1.msra.mxu0 0.0
          %7625 = vmatprep.subr.mxu0 0.0
          %7626 = vmatpush1.msra.mxu0 0.0
          %7627 = vmatprep.subr.mxu0 0.0
          %7628 = vmatpush1.msra.mxu0 0.0
          %7629 = vmatprep.subr.mxu0 0.0
          %7630 = vmatpush1.msra.mxu0 0.0
          %7631 = vmatprep.subr.mxu0 0.0
          %7632 = vmatpush1.msra.mxu0 0.0
          %7633 = vmatprep.subr.mxu0 0.0
          %7634 = vmatpush1.msra.mxu0 %v7134
          %7635 = vmatprep.subr.mxu0 0.0
          %7636 = vmatpush1.msra.mxu0 %v7133
          %7637 = vmatprep.subr.mxu0 0.0
          %7638 = vmatpush1.msra.mxu0 %v7132
          %7639 = vmatprep.subr.mxu0 0.0
          %7640 = vmatpush1.msra.mxu0 %v7131
          %7641 = vmatprep.subr.mxu0 0.0
          %7642 = vmatpush2.msra.mxu0 0.0
          %7643 = vmatprep.subr.mxu0 0.0
          %7644 = vmatpush2.msra.mxu0 0.0
          %7645 = vmatprep.subr.mxu0 0.0
          %7646 = vmatpush2.msra.mxu0 0.0
          %7647 = vmatprep.subr.mxu0 0.0
          %7648 = vmatpush2.msra.mxu0 0.0
          %7649 = vmatprep.subr.mxu0 0.0
          %7650 = vmatpush2.msra.mxu0 0.0
          %7651 = vmatprep.subr.mxu0 0.0
          %7652 = vmatpush2.msra.mxu0 0.0
          %7653 = vmatprep.subr.mxu0 0.0
          %7654 = vmatpush2.msra.mxu0 0.0
          %7655 = vmatprep.subr.mxu0 0.0
          %7656 = vmatpush2.msra.mxu0 0.0
          %7657 = vmatprep.subr.mxu0 0.0
          %7658 = vmatpush2.msra.mxu0 0.0
          %7659 = vmatprep.subr.mxu0 0.0
          %7660 = vmatpush2.msra.mxu0 0.0
          %7661 = vmatprep.subr.mxu0 0.0
          %7662 = vmatpush2.msra.mxu0 0.0
          %7663 = vmatprep.subr.mxu0 0.0
          %7664 = vmatpush2.msra.mxu0 0.0
          %7665 = vmatprep.subr.mxu0 0.0
          %7666 = vmatpush2.msra.mxu0 0.0
          %7667 = vmatprep.subr.mxu0 0.0
          %7668 = vmatpush2.msra.mxu0 0.0
          %7669 = vmatprep.subr.mxu0 0.0
          %7670 = vmatpush2.msra.mxu0 0.0
          %7671 = vmatprep.subr.mxu0 0.0
          %7672 = vmatpush2.msra.mxu0 0.0
          %7673 = vmatprep.mubr.f32.mxu0 0.0
          %7674 = vmatmul.mubr.f32.gmra.mxu0 %v7607
          %v7675 = vpop.f32.mrf.mxu0
          %v7676 = vadd.f32 %v7413, %v7675
          %v7677 = vpop.f32.mrf.mxu0
          %7678 = vdwg.mxu0
          %v7679 = vld [vmem:[%s3] sm:$0x1]
          %v7681 = vlaneseq
          %v7682 = vshrl.u32 %v7681, 7
          %v7683 = vsub.s32 0, %v7682
          %v7684 = vrot.slane %v7679, %v7683
          %v7686 = vadd.f32 %v7676, %v7684
          %vm7687 = vcmask 64512
          %7688 = vst.msk [vmem:[#allocation5] sm:$0xff] %vm7687, %v7686
        $region108: #{clf_head_pallas.1} parent=91 // pred_fallthru
          _
        // Predicated region
        $region109: #{clf_head_pallas.1} parent=91 // pred_check
          %p7689 = pneg %p123
        $region110: #{clf_head_pallas.1} parent=91 // pred_check_branch
          %7691 = sbr.rel (%p7689) target = $region112
        $region111: #{clf_head_pallas.1} parent=91 // pred_region
          %s7693 = ssub.s32 128, 128
          %7694 = vsyncadd [#allocation6], %s7693
          %s7696 = sshll.u32 [#allocation5], 4
          %s7697 = int_to_ptr.vmem [resolvable:$true] %s7696
          %7699 = dma.vmem_to_hbm [thread:$0]  %s7697, 128, %s4, [#allocation6]
        $region112: #{clf_head_pallas.1} parent=91 // pred_fallthru
          _
        // Predicated region
        $region113: #{clf_head_pallas.1} parent=91 // pred_check
          %p7700 = pneg %p123
        $region114: #{clf_head_pallas.1} parent=91 // pred_check_branch
          %7702 = sbr.rel (%p7700) target = $region116
        $region115: #{clf_head_pallas.1} parent=91 // pred_region
          %7703 = dma.done [#allocation6], 128
        $region116: #{clf_head_pallas.1} parent=91 // pred_fallthru
          _
      $region92: #{clf_head_pallas.1} parent=5 // pred_fallthru
        _
      %p7704 = scmp.le.s32.totalorder 2, %s11
      // Predicated region
      $region117: #{clf_head_pallas.1} parent=5 // pred_check
        %p7705 = pneg %p7704
      $region118: #{clf_head_pallas.1} parent=5 // pred_check_branch
        %7707 = sbr.rel (%p7705) target = $region120
      $region119: #{clf_head_pallas.1} parent=5 // pred_region
        %s7708 = ssub.s32 %s11, 2
      $region120: #{clf_head_pallas.1} parent=5 // pred_fallthru
        _
    $region6: #{clf_head_pallas.1} parent=1 // loop_footer
      %s15 = sadd.s32 1, %s11
    $region7: #{clf_head_pallas.1} parent=1 // loop_footer_branch
      %10 = sbr.rel target = $region3
    $region8: #{clf_head_pallas.1} parent=1 // loop_exit
      _
    %7709 = vsyncpa [#allocation6], 1
    %s7710 = scalar_lea.sflag [#allocation6], 1
    %7711 = vsyncpa %s7710, 1

</llo_original>
